<compile_context>
chip_gen: v7x
topology: tpu7x:2x2x1
jax: 0.10.0
libtpu: 0.0.40
codegen_flags: <defaults>
</compile_context>

<pallas_src>
import functools

import numpy as np
import jax
import jax.numpy as jnp
from jax import lax
from jax.experimental import pallas as pl
from jax.experimental.pallas import tpu as pltpu

INPUT_RESOLUTION = 128  # Superresolution256.input_resolution


# ---------------------------------------------------------------------------
# Host-side (numpy) bilinear weight construction, cached per (in, out) size.
# ---------------------------------------------------------------------------
@functools.lru_cache(maxsize=None)
def _bilinear_weights_t(in_size: int, out_size: int) -> np.ndarray:
    """(in_size, out_size) f32 matrix W^T reproducing PyTorch bilinear interpolation
    with align_corners=False.  Stored transposed so the long output axis is lane-dense
    in VMEM."""
    o = np.arange(out_size, dtype=np.float64)
    scale = in_size / out_size
    src = (o + 0.5) * scale - 0.5
    src = np.maximum(src, 0.0)              # PyTorch clamps negative source idx to 0
    i0 = np.clip(np.floor(src).astype(np.int64), 0, in_size - 1)
    i1 = np.clip(i0 + 1, 0, in_size - 1)
    w1 = src - i0
    w0 = 1.0 - w1
    wt = np.zeros((in_size, out_size), dtype=np.float64)
    cols = np.arange(out_size)
    np.add.at(wt, (i0, cols), w0)
    np.add.at(wt, (i1, cols), w1)
    return wt.astype(np.float32)


# ---------------------------------------------------------------------------
# Pallas kernel: separable bilinear resize of one (c_blk, Hin, Win) tile.
# ---------------------------------------------------------------------------
def _resize_kernel(wwt_ref, wht_ref, x_ref, o_ref):
    # wwt_ref: (Win, Wout)   lane-dense W-axis weights (W^T)
    # wht_ref: (Hin, Hout)   lane-dense H-axis weights (W^T)
    # x_ref  : (c_blk, Hin, Win)   one batch element's channel block
    # o_ref  : (c_blk, Hout, Wout)
    c_blk, hin, win = x_ref.shape
    wout = wwt_ref.shape[1]

    x = x_ref[...].astype(jnp.float32)

    # Pass 1 (W axis): single fused matmul over all channels -> lane-dense intermediate.
    tmp = jnp.dot(x.reshape(c_blk * hin, win), wwt_ref[...],
                  preferred_element_type=jnp.float32)            # (C*Hin, Wout)
    tmp = tmp.reshape(c_blk, hin, wout)

    # Pass 2 (H axis): short unrolled loop over channels; contract Hin (dim 0 of WhT),
    # so the weight operand stays lane-dense (no (256, Hin) padded layout).
    wht = wht_ref[...]
    for c in range(c_blk):
        out_c = lax.dot_general(
            wht, tmp[c],
            dimension_numbers=(((0,), (0,)), ((), ())),
            preferred_element_type=jnp.float32)                  # (Hout, Wout)
        o_ref[c] = out_c.astype(o_ref.dtype)


def _pick_channel_block(num_channels, out_h, out_w, itemsize,
                        bytes_cap=8 * 1024 * 1024):
    """Largest channel block (dividing C) whose output tile stays <= bytes_cap, so
    2x double-buffered output blocks fit the scoped VMEM budget on v7x/v6e/v5e."""
    max_c = max(1, bytes_cap // (out_h * out_w * itemsize))
    c_blk = min(num_channels, max_c)
    while num_channels % c_blk:
        c_blk -= 1
    return c_blk


def bilinear_resize_nchw(x, out_h, out_w, *, antialias=False):
    """Equivalent of F.interpolate(x, (out_h, out_w), mode='bilinear',
    align_corners=False) for NCHW input."""
    n, c, hin, win = x.shape
    if (hin, win) == (out_h, out_w):
        return x  # identity — skip the kernel entirely
    # Plain bilinear weights only match PyTorch's antialiased path when upsampling.
    assert (not antialias) or (hin <= out_h and win <= out_w), (
        "antialiased downsampling is not supported by this kernel")

    wwt = jnp.asarray(_bilinear_weights_t(win, out_w))   # (Win, Wout)
    wht = jnp.asarray(_bilinear_weights_t(hin, out_h))   # (Hin, Hout)

    c_blk = _pick_channel_block(c, out_h, out_w, x.dtype.itemsize)
    grid = (n, c // c_blk)   # >= 2 steps whenever N >= 2 (keeps both v7x TCs busy)

    return pl.pallas_call(
        _resize_kernel,
        out_shape=jax.ShapeDtypeStruct((n, c, out_h, out_w), x.dtype),
        grid=grid,
        in_specs=[
            pl.BlockSpec((win, out_w), lambda i, j: (0, 0)),                  # WwT (shared)
            pl.BlockSpec((hin, out_h), lambda i, j: (0, 0)),                  # WhT (shared)
            pl.BlockSpec((None, c_blk, hin, win), lambda i, j: (i, j, 0, 0)),  # x tile
        ],
        out_specs=pl.BlockSpec((None, c_blk, out_h, out_w),
                               lambda i, j: (i, j, 0, 0)),
        compiler_params=pltpu.CompilerParams(
            dimension_semantics=("parallel", "parallel")),
    )(wwt, wht, x)


# ---------------------------------------------------------------------------
# Superresolution256 forward (weight-free part).
# ---------------------------------------------------------------------------
def superresolution256_forward(rgb, x, ws, *, sr_antialias=True):
    """Forward of Superresolution256 minus the two learned StyleGAN2 synthesis blocks.

    rgb: (N, 3, H, W),  x: (N, C, H, W),  ws: (N, num_ws, 512)   (NCHW, like PyTorch)
    Returns (rgb_resized, x_resized, ws_repeated).
    """
    ws = jnp.repeat(ws[:, -1:, :], 3, axis=1)   # ws[:, -1:, :].repeat(1, 3, 1)
    if x.shape[-1] < INPUT_RESOLUTION:
        x = bilinear_resize_nchw(x, INPUT_RESOLUTION, INPUT_RESOLUTION,
                                 antialias=sr_antialias)
        rgb = bilinear_resize_nchw(rgb, INPUT_RESOLUTION, INPUT_RESOLUTION,
                                   antialias=sr_antialias)
    # TODO(synk): x, rgb = block0(x, rgb, ws); x, rgb = block1(x, rgb, ws) — StyleGAN2
    # modulated-conv blocks with learned parameters; not representable without weights.
    return rgb, x, ws


if __name__ == "__main__":
    key = jax.random.PRNGKey(0)
    k1, k2, k3 = jax.random.split(key, 3)
    # Small shapes consistent with the module: NCHW rgb (3 channels), feature map x,
    # and a stack of w vectors (w_dim=512).
    rgb = jax.random.normal(k1, (2, 3, 16, 16), dtype=jnp.float32)
    x = jax.random.normal(k2, (2, 32, 16, 16), dtype=jnp.float32)
    ws = jax.random.normal(k3, (2, 14, 512), dtype=jnp.float32)

    rgb_out, x_out, ws_out = superresolution256_forward(rgb, x, ws)
    rgb_out, x_out, ws_out = jax.block_until_ready((rgb_out, x_out, ws_out))

    assert rgb_out.shape == (2, 3, INPUT_RESOLUTION, INPUT_RESOLUTION), rgb_out.shape
    assert x_out.shape == (2, 32, INPUT_RESOLUTION, INPUT_RESOLUTION), x_out.shape
    assert ws_out.shape == (2, 3, 512), ws_out.shape

    # Pure-JAX separable bilinear reference using the same weight matrices.
    def ref_resize(a, out_h, out_w):
        wht_r = jnp.asarray(_bilinear_weights_t(a.shape[2], out_h))
        wwt_r = jnp.asarray(_bilinear_weights_t(a.shape[3], out_w))
        return jnp.einsum("hO,nchw,wP->ncOP", wht_r, a, wwt_r)

    ref_rgb = ref_resize(rgb, INPUT_RESOLUTION, INPUT_RESOLUTION)
    ref_x = ref_resize(x, INPUT_RESOLUTION, INPUT_RESOLUTION)
    assert jnp.allclose(rgb_out, ref_rgb, atol=1e-4, rtol=1e-4)
    assert jnp.allclose(x_out, ref_x, atol=1e-4, rtol=1e-4)
    assert jnp.allclose(ws_out, jnp.repeat(ws[:, -1:, :], 3, axis=1))

    print("KERNEL_OK")
</pallas_src>

<mosaic_0001>
module attributes {stable_mosaic.version = 11 : i64} {
  func.func @_resize_kernel(%arg0: i32, %arg1: i32, %arg2: memref<16x128xf32, #tpu.memory_space<vmem>>, %arg3: memref<16x128xf32, #tpu.memory_space<vmem>>, %arg4: memref<1x32x16x16xf32, #tpu.memory_space<vmem>>, %arg5: memref<1x32x128x128xf32, #tpu.memory_space<vmem>>) attributes {dimension_semantics = [#tpu.dimension_semantics<parallel>, #tpu.dimension_semantics<parallel>], iteration_bounds = array<i64: 2, 1>, scalar_prefetch = 0 : i64, scratch_operands = 0 : i64, tpu.core_type = #tpu.core_type<tc>, window_params = [{pipeline_mode = #tpu.pipeline_mode<synchronous>, transform_indices = @transform_0, window_bounds = array<i64: 16, 128>}, {pipeline_mode = #tpu.pipeline_mode<synchronous>, transform_indices = @transform_1, window_bounds = array<i64: 16, 128>}, {transform_indices = @transform_2, window_bounds = array<i64: 1, 32, 16, 16>}, {transform_indices = @transform_3, window_bounds = array<i64: 1, 32, 128, 128>}]} {
    %c0 = arith.constant 0 : index
    %c0_0 = arith.constant 0 : index
    %c0_1 = arith.constant 0 : index
    %c0_2 = arith.constant 0 : index
    %0 = vector.load %arg4[%c0, %c0_0, %c0_1, %c0_2] : memref<1x32x16x16xf32, #tpu.memory_space<vmem>>, vector<1x32x16x16xf32>
    %1 = vector.shape_cast %0 : vector<1x32x16x16xf32> to vector<32x16x16xf32>
    %2 = vector.shape_cast %1 : vector<32x16x16xf32> to vector<512x16xf32>
    %c0_3 = arith.constant 0 : index
    %c0_4 = arith.constant 0 : index
    %3 = vector.load %arg2[%c0_3, %c0_4] : memref<16x128xf32, #tpu.memory_space<vmem>>, vector<16x128xf32>
    %cst = arith.constant dense<0.000000e+00> : vector<512x128xf32>
    %4 = tpu.matmul %2, %3, %cst {dimension_numbers = #tpu.dot_dimension_numbers<[1], [0], [0], [1], [0, 0, 1, 1], [], []>} : vector<512x16xf32>, vector<16x128xf32>, vector<512x128xf32> -> vector<512x128xf32>
    %5 = vector.shape_cast %4 : vector<512x128xf32> to vector<32x16x128xf32>
    %c0_5 = arith.constant 0 : index
    %c0_6 = arith.constant 0 : index
    %6 = vector.load %arg3[%c0_5, %c0_6] : memref<16x128xf32, #tpu.memory_space<vmem>>, vector<16x128xf32>
    %7 = vector.extract_strided_slice %5 {offsets = [0, 0, 0], sizes = [1, 16, 128], strides = [1, 1, 1]} : vector<32x16x128xf32> to vector<1x16x128xf32>
    %8 = vector.shape_cast %7 : vector<1x16x128xf32> to vector<16x128xf32>
    %cst_7 = arith.constant dense<0.000000e+00> : vector<128x128xf32>
    %9 = tpu.matmul %6, %8, %cst_7 {dimension_numbers = #tpu.dot_dimension_numbers<[0], [0], [1], [1], [0, 1, 1, 1], [], []>} : vector<16x128xf32>, vector<16x128xf32>, vector<128x128xf32> -> vector<128x128xf32>
    %c0_8 = arith.constant 0 : index
    %c0_9 = arith.constant 0 : index
    %c0_10 = arith.constant 0 : index
    %c0_11 = arith.constant 0 : index
    %10 = vector.load %arg5[%c0_8, %c0_9, %c0_10, %c0_11] : memref<1x32x128x128xf32, #tpu.memory_space<vmem>>, vector<1x1x128x128xf32>
    %11 = vector.shape_cast %10 : vector<1x1x128x128xf32> to vector<128x128xf32>
    %12 = vector.shape_cast %9 : vector<128x128xf32> to vector<1x1x128x128xf32>
    tpu.vector_store %arg5[%c0_8, %c0_9, %c0_10, %c0_11], %12 {strides = array<i32>} : memref<1x32x128x128xf32, #tpu.memory_space<vmem>>, vector<1x1x128x128xf32>,
    %13 = vector.extract_strided_slice %5 {offsets = [1, 0, 0], sizes = [1, 16, 128], strides = [1, 1, 1]} : vector<32x16x128xf32> to vector<1x16x128xf32>
    %14 = vector.shape_cast %13 : vector<1x16x128xf32> to vector<16x128xf32>
    %cst_12 = arith.constant dense<0.000000e+00> : vector<128x128xf32>
    %15 = tpu.matmul %6, %14, %cst_12 {dimension_numbers = #tpu.dot_dimension_numbers<[0], [0], [1], [1], [0, 1, 1, 1], [], []>} : vector<16x128xf32>, vector<16x128xf32>, vector<128x128xf32> -> vector<128x128xf32>
    %c0_13 = arith.constant 0 : index
    %c1 = arith.constant 1 : index
    %c0_14 = arith.constant 0 : index
    %c0_15 = arith.constant 0 : index
    %16 = vector.load %arg5[%c0_13, %c1, %c0_14, %c0_15] : memref<1x32x128x128xf32, #tpu.memory_space<vmem>>, vector<1x1x128x128xf32>
    %17 = vector.shape_cast %16 : vector<1x1x128x128xf32> to vector<128x128xf32>
    %18 = vector.shape_cast %15 : vector<128x128xf32> to vector<1x1x128x128xf32>
    tpu.vector_store %arg5[%c0_13, %c1, %c0_14, %c0_15], %18 {strides = array<i32>} : memref<1x32x128x128xf32, #tpu.memory_space<vmem>>, vector<1x1x128x128xf32>,
    %19 = vector.extract_strided_slice %5 {offsets = [2, 0, 0], sizes = [1, 16, 128], strides = [1, 1, 1]} : vector<32x16x128xf32> to vector<1x16x128xf32>
    %20 = vector.shape_cast %19 : vector<1x16x128xf32> to vector<16x128xf32>
    %cst_16 = arith.constant dense<0.000000e+00> : vector<128x128xf32>
    %21 = tpu.matmul %6, %20, %cst_16 {dimension_numbers = #tpu.dot_dimension_numbers<[0], [0], [1], [1], [0, 1, 1, 1], [], []>} : vector<16x128xf32>, vector<16x128xf32>, vector<128x128xf32> -> vector<128x128xf32>
    %c0_17 = arith.constant 0 : index
    %c2 = arith.constant 2 : index
    %c0_18 = arith.constant 0 : index
    %c0_19 = arith.constant 0 : index
    %22 = vector.load %arg5[%c0_17, %c2, %c0_18, %c0_19] : memref<1x32x128x128xf32, #tpu.memory_space<vmem>>, vector<1x1x128x128xf32>
    %23 = vector.shape_cast %22 : vector<1x1x128x128xf32> to vector<128x128xf32>
    %24 = vector.shape_cast %21 : vector<128x128xf32> to vector<1x1x128x128xf32>
    tpu.vector_store %arg5[%c0_17, %c2, %c0_18, %c0_19], %24 {strides = array<i32>} : memref<1x32x128x128xf32, #tpu.memory_space<vmem>>, vector<1x1x128x128xf32>,
    %25 = vector.extract_strided_slice %5 {offsets = [3, 0, 0], sizes = [1, 16, 128], strides = [1, 1, 1]} : vector<32x16x128xf32> to vector<1x16x128xf32>
    %26 = vector.shape_cast %25 : vector<1x16x128xf32> to vector<16x128xf32>
    %cst_20 = arith.constant dense<0.000000e+00> : vector<128x128xf32>
    %27 = tpu.matmul %6, %26, %cst_20 {dimension_numbers = #tpu.dot_dimension_numbers<[0], [0], [1], [1], [0, 1, 1, 1], [], []>} : vector<16x128xf32>, vector<16x128xf32>, vector<128x128xf32> -> vector<128x128xf32>
    %c0_21 = arith.constant 0 : index
    %c3 = arith.constant 3 : index
    %c0_22 = arith.constant 0 : index
    %c0_23 = arith.constant 0 : index
    %28 = vector.load %arg5[%c0_21, %c3, %c0_22, %c0_23] : memref<1x32x128x128xf32, #tpu.memory_space<vmem>>, vector<1x1x128x128xf32>
    %29 = vector.shape_cast %28 : vector<1x1x128x128xf32> to vector<128x128xf32>
    %30 = vector.shape_cast %27 : vector<128x128xf32> to vector<1x1x128x128xf32>
    tpu.vector_store %arg5[%c0_21, %c3, %c0_22, %c0_23], %30 {strides = array<i32>} : memref<1x32x128x128xf32, #tpu.memory_space<vmem>>, vector<1x1x128x128xf32>,
    %31 = vector.extract_strided_slice %5 {offsets = [4, 0, 0], sizes = [1, 16, 128], strides = [1, 1, 1]} : vector<32x16x128xf32> to vector<1x16x128xf32>
    %32 = vector.shape_cast %31 : vector<1x16x128xf32> to vector<16x128xf32>
    %cst_24 = arith.constant dense<0.000000e+00> : vector<128x128xf32>
    %33 = tpu.matmul %6, %32, %cst_24 {dimension_numbers = #tpu.dot_dimension_numbers<[0], [0], [1], [1], [0, 1, 1, 1], [], []>} : vector<16x128xf32>, vector<16x128xf32>, vector<128x128xf32> -> vector<128x128xf32>
    %c0_25 = arith.constant 0 : index
    %c4 = arith.constant 4 : index
    %c0_26 = arith.constant 0 : index
    %c0_27 = arith.constant 0 : index
    %34 = vector.load %arg5[%c0_25, %c4, %c0_26, %c0_27] : memref<1x32x128x128xf32, #tpu.memory_space<vmem>>, vector<1x1x128x128xf32>
    %35 = vector.shape_cast %34 : vector<1x1x128x128xf32> to vector<128x128xf32>
    %36 = vector.shape_cast %33 : vector<128x128xf32> to vector<1x1x128x128xf32>
    tpu.vector_store %arg5[%c0_25, %c4, %c0_26, %c0_27], %36 {strides = array<i32>} : memref<1x32x128x128xf32, #tpu.memory_space<vmem>>, vector<1x1x128x128xf32>,
    %37 = vector.extract_strided_slice %5 {offsets = [5, 0, 0], sizes = [1, 16, 128], strides = [1, 1, 1]} : vector<32x16x128xf32> to vector<1x16x128xf32>
    %38 = vector.shape_cast %37 : vector<1x16x128xf32> to vector<16x128xf32>
    %cst_28 = arith.constant dense<0.000000e+00> : vector<128x128xf32>
    %39 = tpu.matmul %6, %38, %cst_28 {dimension_numbers = #tpu.dot_dimension_numbers<[0], [0], [1], [1], [0, 1, 1, 1], [], []>} : vector<16x128xf32>, vector<16x128xf32>, vector<128x128xf32> -> vector<128x128xf32>
    %c0_29 = arith.constant 0 : index
    %c5 = arith.constant 5 : index
    %c0_30 = arith.constant 0 : index
    %c0_31 = arith.constant 0 : index
    %40 = vector.load %arg5[%c0_29, %c5, %c0_30, %c0_31] : memref<1x32x128x128xf32, #tpu.memory_space<vmem>>, vector<1x1x128x128xf32>
    %41 = vector.shape_cast %40 : vector<1x1x128x128xf32> to vector<128x128xf32>
    %42 = vector.shape_cast %39 : vector<128x128xf32> to vector<1x1x128x128xf32>
    tpu.vector_store %arg5[%c0_29, %c5, %c0_30, %c0_31], %42 {strides = array<i32>} : memref<1x32x128x128xf32, #tpu.memory_space<vmem>>, vector<1x1x128x128xf32>,
    %43 = vector.extract_strided_slice %5 {offsets = [6, 0, 0], sizes = [1, 16, 128], strides = [1, 1, 1]} : vector<32x16x128xf32> to vector<1x16x128xf32>
    %44 = vector.shape_cast %43 : vector<1x16x128xf32> to vector<16x128xf32>
    %cst_32 = arith.constant dense<0.000000e+00> : vector<128x128xf32>
    %45 = tpu.matmul %6, %44, %cst_32 {dimension_numbers = #tpu.dot_dimension_numbers<[0], [0], [1], [1], [0, 1, 1, 1], [], []>} : vector<16x128xf32>, vector<16x128xf32>, vector<128x128xf32> -> vector<128x128xf32>
    %c0_33 = arith.constant 0 : index
    %c6 = arith.constant 6 : index
    %c0_34 = arith.constant 0 : index
    %c0_35 = arith.constant 0 : index
    %46 = vector.load %arg5[%c0_33, %c6, %c0_34, %c0_35] : memref<1x32x128x128xf32, #tpu.memory_space<vmem>>, vector<1x1x128x128xf32>
    %47 = vector.shape_cast %46 : vector<1x1x128x128xf32> to vector<128x128xf32>
    %48 = vector.shape_cast %45 : vector<128x128xf32> to vector<1x1x128x128xf32>
    tpu.vector_store %arg5[%c0_33, %c6, %c0_34, %c0_35], %48 {strides = array<i32>} : memref<1x32x128x128xf32, #tpu.memory_space<vmem>>, vector<1x1x128x128xf32>,
    %49 = vector.extract_strided_slice %5 {offsets = [7, 0, 0], sizes = [1, 16, 128], strides = [1, 1, 1]} : vector<32x16x128xf32> to vector<1x16x128xf32>
    %50 = vector.shape_cast %49 : vector<1x16x128xf32> to vector<16x128xf32>
    %cst_36 = arith.constant dense<0.000000e+00> : vector<128x128xf32>
    %51 = tpu.matmul %6, %50, %cst_36 {dimension_numbers = #tpu.dot_dimension_numbers<[0], [0], [1], [1], [0, 1, 1, 1], [], []>} : vector<16x128xf32>, vector<16x128xf32>, vector<128x128xf32> -> vector<128x128xf32>
    %c0_37 = arith.constant 0 : index
    %c7 = arith.constant 7 : index
    %c0_38 = arith.constant 0 : index
    %c0_39 = arith.constant 0 : index
    %52 = vector.load %arg5[%c0_37, %c7, %c0_38, %c0_39] : memref<1x32x128x128xf32, #tpu.memory_space<vmem>>, vector<1x1x128x128xf32>
    %53 = vector.shape_cast %52 : vector<1x1x128x128xf32> to vector<128x128xf32>
    %54 = vector.shape_cast %51 : vector<128x128xf32> to vector<1x1x128x128xf32>
    tpu.vector_store %arg5[%c0_37, %c7, %c0_38, %c0_39], %54 {strides = array<i32>} : memref<1x32x128x128xf32, #tpu.memory_space<vmem>>, vector<1x1x128x128xf32>,
    %55 = vector.extract_strided_slice %5 {offsets = [8, 0, 0], sizes = [1, 16, 128], strides = [1, 1, 1]} : vector<32x16x128xf32> to vector<1x16x128xf32>
    %56 = vector.shape_cast %55 : vector<1x16x128xf32> to vector<16x128xf32>
    %cst_40 = arith.constant dense<0.000000e+00> : vector<128x128xf32>
    %57 = tpu.matmul %6, %56, %cst_40 {dimension_numbers = #tpu.dot_dimension_numbers<[0], [0], [1], [1], [0, 1, 1, 1], [], []>} : vector<16x128xf32>, vector<16x128xf32>, vector<128x128xf32> -> vector<128x128xf32>
    %c0_41 = arith.constant 0 : index
    %c8 = arith.constant 8 : index
    %c0_42 = arith.constant 0 : index
    %c0_43 = arith.constant 0 : index
    %58 = vector.load %arg5[%c0_41, %c8, %c0_42, %c0_43] : memref<1x32x128x128xf32, #tpu.memory_space<vmem>>, vector<1x1x128x128xf32>
    %59 = vector.shape_cast %58 : vector<1x1x128x128xf32> to vector<128x128xf32>
    %60 = vector.shape_cast %57 : vector<128x128xf32> to vector<1x1x128x128xf32>
    tpu.vector_store %arg5[%c0_41, %c8, %c0_42, %c0_43], %60 {strides = array<i32>} : memref<1x32x128x128xf32, #tpu.memory_space<vmem>>, vector<1x1x128x128xf32>,
    %61 = vector.extract_strided_slice %5 {offsets = [9, 0, 0], sizes = [1, 16, 128], strides = [1, 1, 1]} : vector<32x16x128xf32> to vector<1x16x128xf32>
    %62 = vector.shape_cast %61 : vector<1x16x128xf32> to vector<16x128xf32>
    %cst_44 = arith.constant dense<0.000000e+00> : vector<128x128xf32>
    %63 = tpu.matmul %6, %62, %cst_44 {dimension_numbers = #tpu.dot_dimension_numbers<[0], [0], [1], [1], [0, 1, 1, 1], [], []>} : vector<16x128xf32>, vector<16x128xf32>, vector<128x128xf32> -> vector<128x128xf32>
    %c0_45 = arith.constant 0 : index
    %c9 = arith.constant 9 : index
    %c0_46 = arith.constant 0 : index
    %c0_47 = arith.constant 0 : index
    %64 = vector.load %arg5[%c0_45, %c9, %c0_46, %c0_47] : memref<1x32x128x128xf32, #tpu.memory_space<vmem>>, vector<1x1x128x128xf32>
    %65 = vector.shape_cast %64 : vector<1x1x128x128xf32> to vector<128x128xf32>
    %66 = vector.shape_cast %63 : vector<128x128xf32> to vector<1x1x128x128xf32>
    tpu.vector_store %arg5[%c0_45, %c9, %c0_46, %c0_47], %66 {strides = array<i32>} : memref<1x32x128x128xf32, #tpu.memory_space<vmem>>, vector<1x1x128x128xf32>,
    %67 = vector.extract_strided_slice %5 {offsets = [10, 0, 0], sizes = [1, 16, 128], strides = [1, 1, 1]} : vector<32x16x128xf32> to vector<1x16x128xf32>
    %68 = vector.shape_cast %67 : vector<1x16x128xf32> to vector<16x128xf32>
    %cst_48 = arith.constant dense<0.000000e+00> : vector<128x128xf32>
    %69 = tpu.matmul %6, %68, %cst_48 {dimension_numbers = #tpu.dot_dimension_numbers<[0], [0], [1], [1], [0, 1, 1, 1], [], []>} : vector<16x128xf32>, vector<16x128xf32>, vector<128x128xf32> -> vector<128x128xf32>
    %c0_49 = arith.constant 0 : index
    %c10 = arith.constant 10 : index
    %c0_50 = arith.constant 0 : index
    %c0_51 = arith.constant 0 : index
    %70 = vector.load %arg5[%c0_49, %c10, %c0_50, %c0_51] : memref<1x32x128x128xf32, #tpu.memory_space<vmem>>, vector<1x1x128x128xf32>
    %71 = vector.shape_cast %70 : vector<1x1x128x128xf32> to vector<128x128xf32>
    %72 = vector.shape_cast %69 : vector<128x128xf32> to vector<1x1x128x128xf32>
    tpu.vector_store %arg5[%c0_49, %c10, %c0_50, %c0_51], %72 {strides = array<i32>} : memref<1x32x128x128xf32, #tpu.memory_space<vmem>>, vector<1x1x128x128xf32>,
    %73 = vector.extract_strided_slice %5 {offsets = [11, 0, 0], sizes = [1, 16, 128], strides = [1, 1, 1]} : vector<32x16x128xf32> to vector<1x16x128xf32>
    %74 = vector.shape_cast %73 : vector<1x16x128xf32> to vector<16x128xf32>
    %cst_52 = arith.constant dense<0.000000e+00> : vector<128x128xf32>
    %75 = tpu.matmul %6, %74, %cst_52 {dimension_numbers = #tpu.dot_dimension_numbers<[0], [0], [1], [1], [0, 1, 1, 1], [], []>} : vector<16x128xf32>, vector<16x128xf32>, vector<128x128xf32> -> vector<128x128xf32>
    %c0_53 = arith.constant 0 : index
    %c11 = arith.constant 11 : index
    %c0_54 = arith.constant 0 : index
    %c0_55 = arith.constant 0 : index
    %76 = vector.load %arg5[%c0_53, %c11, %c0_54, %c0_55] : memref<1x32x128x128xf32, #tpu.memory_space<vmem>>, vector<1x1x128x128xf32>
    %77 = vector.shape_cast %76 : vector<1x1x128x128xf32> to vector<128x128xf32>
    %78 = vector.shape_cast %75 : vector<128x128xf32> to vector<1x1x128x128xf32>
    tpu.vector_store %arg5[%c0_53, %c11, %c0_54, %c0_55], %78 {strides = array<i32>} : memref<1x32x128x128xf32, #tpu.memory_space<vmem>>, vector<1x1x128x128xf32>,
    %79 = vector.extract_strided_slice %5 {offsets = [12, 0, 0], sizes = [1, 16, 128], strides = [1, 1, 1]} : vector<32x16x128xf32> to vector<1x16x128xf32>
    %80 = vector.shape_cast %79 : vector<1x16x128xf32> to vector<16x128xf32>
    %cst_56 = arith.constant dense<0.000000e+00> : vector<128x128xf32>
    %81 = tpu.matmul %6, %80, %cst_56 {dimension_numbers = #tpu.dot_dimension_numbers<[0], [0], [1], [1], [0, 1, 1, 1], [], []>} : vector<16x128xf32>, vector<16x128xf32>, vector<128x128xf32> -> vector<128x128xf32>
    %c0_57 = arith.constant 0 : index
    %c12 = arith.constant 12 : index
    %c0_58 = arith.constant 0 : index
    %c0_59 = arith.constant 0 : index
    %82 = vector.load %arg5[%c0_57, %c12, %c0_58, %c0_59] : memref<1x32x128x128xf32, #tpu.memory_space<vmem>>, vector<1x1x128x128xf32>
    %83 = vector.shape_cast %82 : vector<1x1x128x128xf32> to vector<128x128xf32>
    %84 = vector.shape_cast %81 : vector<128x128xf32> to vector<1x1x128x128xf32>
    tpu.vector_store %arg5[%c0_57, %c12, %c0_58, %c0_59], %84 {strides = array<i32>} : memref<1x32x128x128xf32, #tpu.memory_space<vmem>>, vector<1x1x128x128xf32>,
    %85 = vector.extract_strided_slice %5 {offsets = [13, 0, 0], sizes = [1, 16, 128], strides = [1, 1, 1]} : vector<32x16x128xf32> to vector<1x16x128xf32>
    %86 = vector.shape_cast %85 : vector<1x16x128xf32> to vector<16x128xf32>
    %cst_60 = arith.constant dense<0.000000e+00> : vector<128x128xf32>
    %87 = tpu.matmul %6, %86, %cst_60 {dimension_numbers = #tpu.dot_dimension_numbers<[0], [0], [1], [1], [0, 1, 1, 1], [], []>} : vector<16x128xf32>, vector<16x128xf32>, vector<128x128xf32> -> vector<128x128xf32>
    %c0_61 = arith.constant 0 : index
    %c13 = arith.constant 13 : index
    %c0_62 = arith.constant 0 : index
    %c0_63 = arith.constant 0 : index
    %88 = vector.load %arg5[%c0_61, %c13, %c0_62, %c0_63] : memref<1x32x128x128xf32, #tpu.memory_space<vmem>>, vector<1x1x128x128xf32>
    %89 = vector.shape_cast %88 : vector<1x1x128x128xf32> to vector<128x128xf32>
    %90 = vector.shape_cast %87 : vector<128x128xf32> to vector<1x1x128x128xf32>
    tpu.vector_store %arg5[%c0_61, %c13, %c0_62, %c0_63], %90 {strides = array<i32>} : memref<1x32x128x128xf32, #tpu.memory_space<vmem>>, vector<1x1x128x128xf32>,
    %91 = vector.extract_strided_slice %5 {offsets = [14, 0, 0], sizes = [1, 16, 128], strides = [1, 1, 1]} : vector<32x16x128xf32> to vector<1x16x128xf32>
    %92 = vector.shape_cast %91 : vector<1x16x128xf32> to vector<16x128xf32>
    %cst_64 = arith.constant dense<0.000000e+00> : vector<128x128xf32>
    %93 = tpu.matmul %6, %92, %cst_64 {dimension_numbers = #tpu.dot_dimension_numbers<[0], [0], [1], [1], [0, 1, 1, 1], [], []>} : vector<16x128xf32>, vector<16x128xf32>, vector<128x128xf32> -> vector<128x128xf32>
    %c0_65 = arith.constant 0 : index
    %c14 = arith.constant 14 : index
    %c0_66 = arith.constant 0 : index
    %c0_67 = arith.constant 0 : index
    %94 = vector.load %arg5[%c0_65, %c14, %c0_66, %c0_67] : memref<1x32x128x128xf32, #tpu.memory_space<vmem>>, vector<1x1x128x128xf32>
    %95 = vector.shape_cast %94 : vector<1x1x128x128xf32> to vector<128x128xf32>
    %96 = vector.shape_cast %93 : vector<128x128xf32> to vector<1x1x128x128xf32>
    tpu.vector_store %arg5[%c0_65, %c14, %c0_66, %c0_67], %96 {strides = array<i32>} : memref<1x32x128x128xf32, #tpu.memory_space<vmem>>, vector<1x1x128x128xf32>,
    %97 = vector.extract_strided_slice %5 {offsets = [15, 0, 0], sizes = [1, 16, 128], strides = [1, 1, 1]} : vector<32x16x128xf32> to vector<1x16x128xf32>
    %98 = vector.shape_cast %97 : vector<1x16x128xf32> to vector<16x128xf32>
    %cst_68 = arith.constant dense<0.000000e+00> : vector<128x128xf32>
    %99 = tpu.matmul %6, %98, %cst_68 {dimension_numbers = #tpu.dot_dimension_numbers<[0], [0], [1], [1], [0, 1, 1, 1], [], []>} : vector<16x128xf32>, vector<16x128xf32>, vector<128x128xf32> -> vector<128x128xf32>
    %c0_69 = arith.constant 0 : index
    %c15 = arith.constant 15 : index
    %c0_70 = arith.constant 0 : index
    %c0_71 = arith.constant 0 : index
    %100 = vector.load %arg5[%c0_69, %c15, %c0_70, %c0_71] : memref<1x32x128x128xf32, #tpu.memory_space<vmem>>, vector<1x1x128x128xf32>
    %101 = vector.shape_cast %100 : vector<1x1x128x128xf32> to vector<128x128xf32>
    %102 = vector.shape_cast %99 : vector<128x128xf32> to vector<1x1x128x128xf32>
    tpu.vector_store %arg5[%c0_69, %c15, %c0_70, %c0_71], %102 {strides = array<i32>} : memref<1x32x128x128xf32, #tpu.memory_space<vmem>>, vector<1x1x128x128xf32>,
    %103 = vector.extract_strided_slice %5 {offsets = [16, 0, 0], sizes = [1, 16, 128], strides = [1, 1, 1]} : vector<32x16x128xf32> to vector<1x16x128xf32>
    %104 = vector.shape_cast %103 : vector<1x16x128xf32> to vector<16x128xf32>
    %cst_72 = arith.constant dense<0.000000e+00> : vector<128x128xf32>
    %105 = tpu.matmul %6, %104, %cst_72 {dimension_numbers = #tpu.dot_dimension_numbers<[0], [0], [1], [1], [0, 1, 1, 1], [], []>} : vector<16x128xf32>, vector<16x128xf32>, vector<128x128xf32> -> vector<128x128xf32>
    %c0_73 = arith.constant 0 : index
    %c16 = arith.constant 16 : index
    %c0_74 = arith.constant 0 : index
    %c0_75 = arith.constant 0 : index
    %106 = vector.load %arg5[%c0_73, %c16, %c0_74, %c0_75] : memref<1x32x128x128xf32, #tpu.memory_space<vmem>>, vector<1x1x128x128xf32>
    %107 = vector.shape_cast %106 : vector<1x1x128x128xf32> to vector<128x128xf32>
    %108 = vector.shape_cast %105 : vector<128x128xf32> to vector<1x1x128x128xf32>
    tpu.vector_store %arg5[%c0_73, %c16, %c0_74, %c0_75], %108 {strides = array<i32>} : memref<1x32x128x128xf32, #tpu.memory_space<vmem>>, vector<1x1x128x128xf32>,
    %109 = vector.extract_strided_slice %5 {offsets = [17, 0, 0], sizes = [1, 16, 128], strides = [1, 1, 1]} : vector<32x16x128xf32> to vector<1x16x128xf32>
    %110 = vector.shape_cast %109 : vector<1x16x128xf32> to vector<16x128xf32>
    %cst_76 = arith.constant dense<0.000000e+00> : vector<128x128xf32>
    %111 = tpu.matmul %6, %110, %cst_76 {dimension_numbers = #tpu.dot_dimension_numbers<[0], [0], [1], [1], [0, 1, 1, 1], [], []>} : vector<16x128xf32>, vector<16x128xf32>, vector<128x128xf32> -> vector<128x128xf32>
    %c0_77 = arith.constant 0 : index
    %c17 = arith.constant 17 : index
    %c0_78 = arith.constant 0 : index
    %c0_79 = arith.constant 0 : index
    %112 = vector.load %arg5[%c0_77, %c17, %c0_78, %c0_79] : memref<1x32x128x128xf32, #tpu.memory_space<vmem>>, vector<1x1x128x128xf32>
    %113 = vector.shape_cast %112 : vector<1x1x128x128xf32> to vector<128x128xf32>
    %114 = vector.shape_cast %111 : vector<128x128xf32> to vector<1x1x128x128xf32>
    tpu.vector_store %arg5[%c0_77, %c17, %c0_78, %c0_79], %114 {strides = array<i32>} : memref<1x32x128x128xf32, #tpu.memory_space<vmem>>, vector<1x1x128x128xf32>,
    %115 = vector.extract_strided_slice %5 {offsets = [18, 0, 0], sizes = [1, 16, 128], strides = [1, 1, 1]} : vector<32x16x128xf32> to vector<1x16x128xf32>
    %116 = vector.shape_cast %115 : vector<1x16x128xf32> to vector<16x128xf32>
    %cst_80 = arith.constant dense<0.000000e+00> : vector<128x128xf32>
    %117 = tpu.matmul %6, %116, %cst_80 {dimension_numbers = #tpu.dot_dimension_numbers<[0], [0], [1], [1], [0, 1, 1, 1], [], []>} : vector<16x128xf32>, vector<16x128xf32>, vector<128x128xf32> -> vector<128x128xf32>
    %c0_81 = arith.constant 0 : index
    %c18 = arith.constant 18 : index
    %c0_82 = arith.constant 0 : index
    %c0_83 = arith.constant 0 : index
    %118 = vector.load %arg5[%c0_81, %c18, %c0_82, %c0_83] : memref<1x32x128x128xf32, #tpu.memory_space<vmem>>, vector<1x1x128x128xf32>
    %119 = vector.shape_cast %118 : vector<1x1x128x128xf32> to vector<128x128xf32>
    %120 = vector.shape_cast %117 : vector<128x128xf32> to vector<1x1x128x128xf32>
    tpu.vector_store %arg5[%c0_81, %c18, %c0_82, %c0_83], %120 {strides = array<i32>} : memref<1x32x128x128xf32, #tpu.memory_space<vmem>>, vector<1x1x128x128xf32>,
    %121 = vector.extract_strided_slice %5 {offsets = [19, 0, 0], sizes = [1, 16, 128], strides = [1, 1, 1]} : vector<32x16x128xf32> to vector<1x16x128xf32>
    %122 = vector.shape_cast %121 : vector<1x16x128xf32> to vector<16x128xf32>
    %cst_84 = arith.constant dense<0.000000e+00> : vector<128x128xf32>
    %123 = tpu.matmul %6, %122, %cst_84 {dimension_numbers = #tpu.dot_dimension_numbers<[0], [0], [1], [1], [0, 1, 1, 1], [], []>} : vector<16x128xf32>, vector<16x128xf32>, vector<128x128xf32> -> vector<128x128xf32>
    %c0_85 = arith.constant 0 : index
    %c19 = arith.constant 19 : index
    %c0_86 = arith.constant 0 : index
    %c0_87 = arith.constant 0 : index
    %124 = vector.load %arg5[%c0_85, %c19, %c0_86, %c0_87] : memref<1x32x128x128xf32, #tpu.memory_space<vmem>>, vector<1x1x128x128xf32>
    %125 = vector.shape_cast %124 : vector<1x1x128x128xf32> to vector<128x128xf32>
    %126 = vector.shape_cast %123 : vector<128x128xf32> to vector<1x1x128x128xf32>
    tpu.vector_store %arg5[%c0_85, %c19, %c0_86, %c0_87], %126 {strides = array<i32>} : memref<1x32x128x128xf32, #tpu.memory_space<vmem>>, vector<1x1x128x128xf32>,
    %127 = vector.extract_strided_slice %5 {offsets = [20, 0, 0], sizes = [1, 16, 128], strides = [1, 1, 1]} : vector<32x16x128xf32> to vector<1x16x128xf32>
    %128 = vector.shape_cast %127 : vector<1x16x128xf32> to vector<16x128xf32>
    %cst_88 = arith.constant dense<0.000000e+00> : vector<128x128xf32>
    %129 = tpu.matmul %6, %128, %cst_88 {dimension_numbers = #tpu.dot_dimension_numbers<[0], [0], [1], [1], [0, 1, 1, 1], [], []>} : vector<16x128xf32>, vector<16x128xf32>, vector<128x128xf32> -> vector<128x128xf32>
    %c0_89 = arith.constant 0 : index
    %c20 = arith.constant 20 : index
    %c0_90 = arith.constant 0 : index
    %c0_91 = arith.constant 0 : index
    %130 = vector.load %arg5[%c0_89, %c20, %c0_90, %c0_91] : memref<1x32x128x128xf32, #tpu.memory_space<vmem>>, vector<1x1x128x128xf32>
    %131 = vector.shape_cast %130 : vector<1x1x128x128xf32> to vector<128x128xf32>
    %132 = vector.shape_cast %129 : vector<128x128xf32> to vector<1x1x128x128xf32>
    tpu.vector_store %arg5[%c0_89, %c20, %c0_90, %c0_91], %132 {strides = array<i32>} : memref<1x32x128x128xf32, #tpu.memory_space<vmem>>, vector<1x1x128x128xf32>,
    %133 = vector.extract_strided_slice %5 {offsets = [21, 0, 0], sizes = [1, 16, 128], strides = [1, 1, 1]} : vector<32x16x128xf32> to vector<1x16x128xf32>
    %134 = vector.shape_cast %133 : vector<1x16x128xf32> to vector<16x128xf32>
    %cst_92 = arith.constant dense<0.000000e+00> : vector<128x128xf32>
    %135 = tpu.matmul %6, %134, %cst_92 {dimension_numbers = #tpu.dot_dimension_numbers<[0], [0], [1], [1], [0, 1, 1, 1], [], []>} : vector<16x128xf32>, vector<16x128xf32>, vector<128x128xf32> -> vector<128x128xf32>
    %c0_93 = arith.constant 0 : index
    %c21 = arith.constant 21 : index
    %c0_94 = arith.constant 0 : index
    %c0_95 = arith.constant 0 : index
    %136 = vector.load %arg5[%c0_93, %c21, %c0_94, %c0_95] : memref<1x32x128x128xf32, #tpu.memory_space<vmem>>, vector<1x1x128x128xf32>
    %137 = vector.shape_cast %136 : vector<1x1x128x128xf32> to vector<128x128xf32>
    %138 = vector.shape_cast %135 : vector<128x128xf32> to vector<1x1x128x128xf32>
    tpu.vector_store %arg5[%c0_93, %c21, %c0_94, %c0_95], %138 {strides = array<i32>} : memref<1x32x128x128xf32, #tpu.memory_space<vmem>>, vector<1x1x128x128xf32>,
    %139 = vector.extract_strided_slice %5 {offsets = [22, 0, 0], sizes = [1, 16, 128], strides = [1, 1, 1]} : vector<32x16x128xf32> to vector<1x16x128xf32>
    %140 = vector.shape_cast %139 : vector<1x16x128xf32> to vector<16x128xf32>
    %cst_96 = arith.constant dense<0.000000e+00> : vector<128x128xf32>
    %141 = tpu.matmul %6, %140, %cst_96 {dimension_numbers = #tpu.dot_dimension_numbers<[0], [0], [1], [1], [0, 1, 1, 1], [], []>} : vector<16x128xf32>, vector<16x128xf32>, vector<128x128xf32> -> vector<128x128xf32>
    %c0_97 = arith.constant 0 : index
    %c22 = arith.constant 22 : index
    %c0_98 = arith.constant 0 : index
    %c0_99 = arith.constant 0 : index
    %142 = vector.load %arg5[%c0_97, %c22, %c0_98, %c0_99] : memref<1x32x128x128xf32, #tpu.memory_space<vmem>>, vector<1x1x128x128xf32>
    %143 = vector.shape_cast %142 : vector<1x1x128x128xf32> to vector<128x128xf32>
    %144 = vector.shape_cast %141 : vector<128x128xf32> to vector<1x1x128x128xf32>
    tpu.vector_store %arg5[%c0_97, %c22, %c0_98, %c0_99], %144 {strides = array<i32>} : memref<1x32x128x128xf32, #tpu.memory_space<vmem>>, vector<1x1x128x128xf32>,
    %145 = vector.extract_strided_slice %5 {offsets = [23, 0, 0], sizes = [1, 16, 128], strides = [1, 1, 1]} : vector<32x16x128xf32> to vector<1x16x128xf32>
    %146 = vector.shape_cast %145 : vector<1x16x128xf32> to vector<16x128xf32>
    %cst_100 = arith.constant dense<0.000000e+00> : vector<128x128xf32>
    %147 = tpu.matmul %6, %146, %cst_100 {dimension_numbers = #tpu.dot_dimension_numbers<[0], [0], [1], [1], [0, 1, 1, 1], [], []>} : vector<16x128xf32>, vector<16x128xf32>, vector<128x128xf32> -> vector<128x128xf32>
    %c0_101 = arith.constant 0 : index
    %c23 = arith.constant 23 : index
    %c0_102 = arith.constant 0 : index
    %c0_103 = arith.constant 0 : index
    %148 = vector.load %arg5[%c0_101, %c23, %c0_102, %c0_103] : memref<1x32x128x128xf32, #tpu.memory_space<vmem>>, vector<1x1x128x128xf32>
    %149 = vector.shape_cast %148 : vector<1x1x128x128xf32> to vector<128x128xf32>
    %150 = vector.shape_cast %147 : vector<128x128xf32> to vector<1x1x128x128xf32>
    tpu.vector_store %arg5[%c0_101, %c23, %c0_102, %c0_103], %150 {strides = array<i32>} : memref<1x32x128x128xf32, #tpu.memory_space<vmem>>, vector<1x1x128x128xf32>,
    %151 = vector.extract_strided_slice %5 {offsets = [24, 0, 0], sizes = [1, 16, 128], strides = [1, 1, 1]} : vector<32x16x128xf32> to vector<1x16x128xf32>
    %152 = vector.shape_cast %151 : vector<1x16x128xf32> to vector<16x128xf32>
    %cst_104 = arith.constant dense<0.000000e+00> : vector<128x128xf32>
    %153 = tpu.matmul %6, %152, %cst_104 {dimension_numbers = #tpu.dot_dimension_numbers<[0], [0], [1], [1], [0, 1, 1, 1], [], []>} : vector<16x128xf32>, vector<16x128xf32>, vector<128x128xf32> -> vector<128x128xf32>
    %c0_105 = arith.constant 0 : index
    %c24 = arith.constant 24 : index
    %c0_106 = arith.constant 0 : index
    %c0_107 = arith.constant 0 : index
    %154 = vector.load %arg5[%c0_105, %c24, %c0_106, %c0_107] : memref<1x32x128x128xf32, #tpu.memory_space<vmem>>, vector<1x1x128x128xf32>
    %155 = vector.shape_cast %154 : vector<1x1x128x128xf32> to vector<128x128xf32>
    %156 = vector.shape_cast %153 : vector<128x128xf32> to vector<1x1x128x128xf32>
    tpu.vector_store %arg5[%c0_105, %c24, %c0_106, %c0_107], %156 {strides = array<i32>} : memref<1x32x128x128xf32, #tpu.memory_space<vmem>>, vector<1x1x128x128xf32>,
    %157 = vector.extract_strided_slice %5 {offsets = [25, 0, 0], sizes = [1, 16, 128], strides = [1, 1, 1]} : vector<32x16x128xf32> to vector<1x16x128xf32>
    %158 = vector.shape_cast %157 : vector<1x16x128xf32> to vector<16x128xf32>
    %cst_108 = arith.constant dense<0.000000e+00> : vector<128x128xf32>
    %159 = tpu.matmul %6, %158, %cst_108 {dimension_numbers = #tpu.dot_dimension_numbers<[0], [0], [1], [1], [0, 1, 1, 1], [], []>} : vector<16x128xf32>, vector<16x128xf32>, vector<128x128xf32> -> vector<128x128xf32>
    %c0_109 = arith.constant 0 : index
    %c25 = arith.constant 25 : index
    %c0_110 = arith.constant 0 : index
    %c0_111 = arith.constant 0 : index
    %160 = vector.load %arg5[%c0_109, %c25, %c0_110, %c0_111] : memref<1x32x128x128xf32, #tpu.memory_space<vmem>>, vector<1x1x128x128xf32>
    %161 = vector.shape_cast %160 : vector<1x1x128x128xf32> to vector<128x128xf32>
    %162 = vector.shape_cast %159 : vector<128x128xf32> to vector<1x1x128x128xf32>
    tpu.vector_store %arg5[%c0_109, %c25, %c0_110, %c0_111], %162 {strides = array<i32>} : memref<1x32x128x128xf32, #tpu.memory_space<vmem>>, vector<1x1x128x128xf32>,
    %163 = vector.extract_strided_slice %5 {offsets = [26, 0, 0], sizes = [1, 16, 128], strides = [1, 1, 1]} : vector<32x16x128xf32> to vector<1x16x128xf32>
    %164 = vector.shape_cast %163 : vector<1x16x128xf32> to vector<16x128xf32>
    %cst_112 = arith.constant dense<0.000000e+00> : vector<128x128xf32>
    %165 = tpu.matmul %6, %164, %cst_112 {dimension_numbers = #tpu.dot_dimension_numbers<[0], [0], [1], [1], [0, 1, 1, 1], [], []>} : vector<16x128xf32>, vector<16x128xf32>, vector<128x128xf32> -> vector<128x128xf32>
    %c0_113 = arith.constant 0 : index
    %c26 = arith.constant 26 : index
    %c0_114 = arith.constant 0 : index
    %c0_115 = arith.constant 0 : index
    %166 = vector.load %arg5[%c0_113, %c26, %c0_114, %c0_115] : memref<1x32x128x128xf32, #tpu.memory_space<vmem>>, vector<1x1x128x128xf32>
    %167 = vector.shape_cast %166 : vector<1x1x128x128xf32> to vector<128x128xf32>
    %168 = vector.shape_cast %165 : vector<128x128xf32> to vector<1x1x128x128xf32>
    tpu.vector_store %arg5[%c0_113, %c26, %c0_114, %c0_115], %168 {strides = array<i32>} : memref<1x32x128x128xf32, #tpu.memory_space<vmem>>, vector<1x1x128x128xf32>,
    %169 = vector.extract_strided_slice %5 {offsets = [27, 0, 0], sizes = [1, 16, 128], strides = [1, 1, 1]} : vector<32x16x128xf32> to vector<1x16x128xf32>
    %170 = vector.shape_cast %169 : vector<1x16x128xf32> to vector<16x128xf32>
    %cst_116 = arith.constant dense<0.000000e+00> : vector<128x128xf32>
    %171 = tpu.matmul %6, %170, %cst_116 {dimension_numbers = #tpu.dot_dimension_numbers<[0], [0], [1], [1], [0, 1, 1, 1], [], []>} : vector<16x128xf32>, vector<16x128xf32>, vector<128x128xf32> -> vector<128x128xf32>
    %c0_117 = arith.constant 0 : index
    %c27 = arith.constant 27 : index
    %c0_118 = arith.constant 0 : index
    %c0_119 = arith.constant 0 : index
    %172 = vector.load %arg5[%c0_117, %c27, %c0_118, %c0_119] : memref<1x32x128x128xf32, #tpu.memory_space<vmem>>, vector<1x1x128x128xf32>
    %173 = vector.shape_cast %172 : vector<1x1x128x128xf32> to vector<128x128xf32>
    %174 = vector.shape_cast %171 : vector<128x128xf32> to vector<1x1x128x128xf32>
    tpu.vector_store %arg5[%c0_117, %c27, %c0_118, %c0_119], %174 {strides = array<i32>} : memref<1x32x128x128xf32, #tpu.memory_space<vmem>>, vector<1x1x128x128xf32>,
    %175 = vector.extract_strided_slice %5 {offsets = [28, 0, 0], sizes = [1, 16, 128], strides = [1, 1, 1]} : vector<32x16x128xf32> to vector<1x16x128xf32>
    %176 = vector.shape_cast %175 : vector<1x16x128xf32> to vector<16x128xf32>
    %cst_120 = arith.constant dense<0.000000e+00> : vector<128x128xf32>
    %177 = tpu.matmul %6, %176, %cst_120 {dimension_numbers = #tpu.dot_dimension_numbers<[0], [0], [1], [1], [0, 1, 1, 1], [], []>} : vector<16x128xf32>, vector<16x128xf32>, vector<128x128xf32> -> vector<128x128xf32>
    %c0_121 = arith.constant 0 : index
    %c28 = arith.constant 28 : index
    %c0_122 = arith.constant 0 : index
    %c0_123 = arith.constant 0 : index
    %178 = vector.load %arg5[%c0_121, %c28, %c0_122, %c0_123] : memref<1x32x128x128xf32, #tpu.memory_space<vmem>>, vector<1x1x128x128xf32>
    %179 = vector.shape_cast %178 : vector<1x1x128x128xf32> to vector<128x128xf32>
    %180 = vector.shape_cast %177 : vector<128x128xf32> to vector<1x1x128x128xf32>
    tpu.vector_store %arg5[%c0_121, %c28, %c0_122, %c0_123], %180 {strides = array<i32>} : memref<1x32x128x128xf32, #tpu.memory_space<vmem>>, vector<1x1x128x128xf32>,
    %181 = vector.extract_strided_slice %5 {offsets = [29, 0, 0], sizes = [1, 16, 128], strides = [1, 1, 1]} : vector<32x16x128xf32> to vector<1x16x128xf32>
    %182 = vector.shape_cast %181 : vector<1x16x128xf32> to vector<16x128xf32>
    %cst_124 = arith.constant dense<0.000000e+00> : vector<128x128xf32>
    %183 = tpu.matmul %6, %182, %cst_124 {dimension_numbers = #tpu.dot_dimension_numbers<[0], [0], [1], [1], [0, 1, 1, 1], [], []>} : vector<16x128xf32>, vector<16x128xf32>, vector<128x128xf32> -> vector<128x128xf32>
    %c0_125 = arith.constant 0 : index
    %c29 = arith.constant 29 : index
    %c0_126 = arith.constant 0 : index
    %c0_127 = arith.constant 0 : index
    %184 = vector.load %arg5[%c0_125, %c29, %c0_126, %c0_127] : memref<1x32x128x128xf32, #tpu.memory_space<vmem>>, vector<1x1x128x128xf32>
    %185 = vector.shape_cast %184 : vector<1x1x128x128xf32> to vector<128x128xf32>
    %186 = vector.shape_cast %183 : vector<128x128xf32> to vector<1x1x128x128xf32>
    tpu.vector_store %arg5[%c0_125, %c29, %c0_126, %c0_127], %186 {strides = array<i32>} : memref<1x32x128x128xf32, #tpu.memory_space<vmem>>, vector<1x1x128x128xf32>,
    %187 = vector.extract_strided_slice %5 {offsets = [30, 0, 0], sizes = [1, 16, 128], strides = [1, 1, 1]} : vector<32x16x128xf32> to vector<1x16x128xf32>
    %188 = vector.shape_cast %187 : vector<1x16x128xf32> to vector<16x128xf32>
    %cst_128 = arith.constant dense<0.000000e+00> : vector<128x128xf32>
    %189 = tpu.matmul %6, %188, %cst_128 {dimension_numbers = #tpu.dot_dimension_numbers<[0], [0], [1], [1], [0, 1, 1, 1], [], []>} : vector<16x128xf32>, vector<16x128xf32>, vector<128x128xf32> -> vector<128x128xf32>
    %c0_129 = arith.constant 0 : index
    %c30 = arith.constant 30 : index
    %c0_130 = arith.constant 0 : index
    %c0_131 = arith.constant 0 : index
    %190 = vector.load %arg5[%c0_129, %c30, %c0_130, %c0_131] : memref<1x32x128x128xf32, #tpu.memory_space<vmem>>, vector<1x1x128x128xf32>
    %191 = vector.shape_cast %190 : vector<1x1x128x128xf32> to vector<128x128xf32>
    %192 = vector.shape_cast %189 : vector<128x128xf32> to vector<1x1x128x128xf32>
    tpu.vector_store %arg5[%c0_129, %c30, %c0_130, %c0_131], %192 {strides = array<i32>} : memref<1x32x128x128xf32, #tpu.memory_space<vmem>>, vector<1x1x128x128xf32>,
    %193 = vector.extract_strided_slice %5 {offsets = [31, 0, 0], sizes = [1, 16, 128], strides = [1, 1, 1]} : vector<32x16x128xf32> to vector<1x16x128xf32>
    %194 = vector.shape_cast %193 : vector<1x16x128xf32> to vector<16x128xf32>
    %cst_132 = arith.constant dense<0.000000e+00> : vector<128x128xf32>
    %195 = tpu.matmul %6, %194, %cst_132 {dimension_numbers = #tpu.dot_dimension_numbers<[0], [0], [1], [1], [0, 1, 1, 1], [], []>} : vector<16x128xf32>, vector<16x128xf32>, vector<128x128xf32> -> vector<128x128xf32>
    %c0_133 = arith.constant 0 : index
    %c31 = arith.constant 31 : index
    %c0_134 = arith.constant 0 : index
    %c0_135 = arith.constant 0 : index
    %196 = vector.load %arg5[%c0_133, %c31, %c0_134, %c0_135] : memref<1x32x128x128xf32, #tpu.memory_space<vmem>>, vector<1x1x128x128xf32>
    %197 = vector.shape_cast %196 : vector<1x1x128x128xf32> to vector<128x128xf32>
    %198 = vector.shape_cast %195 : vector<128x128xf32> to vector<1x1x128x128xf32>
    tpu.vector_store %arg5[%c0_133, %c31, %c0_134, %c0_135], %198 {strides = array<i32>} : memref<1x32x128x128xf32, #tpu.memory_space<vmem>>, vector<1x1x128x128xf32>,
    return
  }
  func.func @transform_0(%arg0: i32, %arg1: i32) -> (i32, i32) {
    %c0_i32 = arith.constant 0 : i32
    %c0_i32_0 = arith.constant 0 : i32
    %c0_i32_1 = arith.constant 0 : i32
    return %c0_i32, %c0_i32_0 : i32, i32
  }
  func.func @transform_1(%arg0: i32, %arg1: i32) -> (i32, i32) {
    %c0_i32 = arith.constant 0 : i32
    %c0_i32_0 = arith.constant 0 : i32
    %c0_i32_1 = arith.constant 0 : i32
    return %c0_i32, %c0_i32_0 : i32, i32
  }
  func.func @transform_2(%arg0: i32, %arg1: i32) -> (i32, i32, i32, i32) {
    %c0_i32 = arith.constant 0 : i32
    %c0_i32_0 = arith.constant 0 : i32
    %c0_i32_1 = arith.constant 0 : i32
    return %arg0, %arg1, %c0_i32, %c0_i32_0 : i32, i32, i32, i32
  }
  func.func @transform_3(%arg0: i32, %arg1: i32) -> (i32, i32, i32, i32) {
    %c0_i32 = arith.constant 0 : i32
    %c0_i32_0 = arith.constant 0 : i32
    %c0_i32_1 = arith.constant 0 : i32
    return %arg0, %arg1, %c0_i32, %c0_i32_0 : i32, i32, i32, i32
  }
}

</mosaic_0001>

<llo_original>
// kernel: tpu_custom_call.1
$region0: #{tpu_custom_call.1}
  #allocation0 [shape = 'u32[]', space=smem, size = 0x4, offset = 0x4, fixed_abs, tag = 'smem constant byte address 0x4 - core index']
  #allocation1 [shape = 'u32[144,128]{1,0:T(1,128)}', space=vmem, size = 0x12000, scoped, tag = 'internal scratch']
  %s0 = inlined_call_operand.hbm [shape: f32[16,128], index: 0, kind: input, shape index: {}]
  %s1 = inlined_call_operand.hbm [shape: f32[16,128], index: 1, kind: input, shape index: {}]
  %s2 = inlined_call_operand.vmem [shape: f32[2,32,16,16], index: 2, kind: input, shape index: {}]
  %s3 = inlined_call_operand.hbm [shape: f32[2,32,128,128], index: 3, kind: output, shape index: {}]
  %s4 = sld [smem:[#allocation0]]
  $region53: #{tpu_custom_call.1} parent=0
    _
  %s6 = ssub.s32 1, %s4
  %s7 = scalar_select 0, %s6, %s4
  $region1: #{tpu_custom_call.1} parent=0
    #allocation2 [shape = 'u8[8192]{0}', space=vmem, size = 0x2000, scoped, tag = 'input window, operand 0, single buffered']
    #allocation3 [shape = 's32[2]{0}', space=sflag, size = 0x8, scoped, tag = 'scoped memory for tpu_custom_call.1']
    #allocation4 [shape = 's32[2]{0}', space=sflag, size = 0x8, scoped, tag = 'scoped memory for tpu_custom_call.1']
    #allocation5 [shape = 'u8[8192]{0}', space=vmem, size = 0x2000, scoped, tag = 'input window, operand 1, single buffered']
    #allocation6 [shape = 's32[1]{0}', space=sflag, size = 0x4, scoped, tag = 'scoped memory for tpu_custom_call.1']
    #allocation7 [shape = 'u8[4194304]{0}', space=vmem, size = 0x400000, scoped, tag = 'output window, operand 0']
    %8 = vsyncpa [#allocation3], 0
    %9 = vsyncpa [#allocation6], 0
    %10 = vsyncpa [#allocation4], 0
    %s11 = scalar_lea.sflag [#allocation4], 1
    %12 = vsyncpa %s11, 0
    loop: start=0, step=1, limit=4
    $region2: #{tpu_custom_call.1} parent=1 // loop_pre_header
      _
    $region3: #{tpu_custom_call.1} parent=1 // loop_header
      %s14 = sphi 0, %s18
      %p15 = scmp.ge.s32.totalorder %s14, 4
      %s21 = sphi 0, %s33
      %s22 = sphi 0, %s29
      %s23 = sphi 0, %s21
      %s24 = sphi 0, %s22
      %s25 = sphi 0, %s23
      %s26 = sphi 0, %s24
      %s34 = sphi 0, %s34
      %s36 = sphi 0, %s34
      %s37 = sphi 0, %s36
      %s51 = sphi 0, %s37
      %s55 = sphi 0, %s55
      %s57 = sphi 0, %s55
      %s58 = sphi 0, %s57
      %s72 = sphi 0, %s58
      %s80 = sphi 0, %s82
      %s83 = sphi 0, %s80
      %s84 = sphi 0, %s83
      %s100 = sphi 0, %s84
      %s108 = sphi 0, %s110
      %s111 = sphi 0, %s108
      %s112 = sphi 0, %s111
      %s128 = sphi 0, %s112
    $region4: #{tpu_custom_call.1} parent=1 // loop_header_branch
      %17 = sbr.rel (%p15) target = $region8
    $region5: #{tpu_custom_call.1} parent=1 // loop_body
      %s19 = ssub.s32 %s14, 1
      %s20 = ssub.s32 %s14, 2
      %s27 = sadd.s32 1, %s22
      %p28 = scmp.ge.s32.totalorder %s27, 1
      %s29 = scalar_select %p28, 0, %s27
      %s30 = sadd.s32 1, %s21
      %s31 = scalar_select %p28, %s30, %s21
      %p32 = scmp.ge.s32.totalorder %s31, 2
      %s33 = scalar_select %p32, 0, %s31
      %s35 = sadd.s32 %s34, 1
      %p38 = scmp.eq.s32.totalorder %s14, 1
      %p39 = scmp.ne.s32.totalorder %s34, %s36
      %p40 = scmp.eq.s32.totalorder %s14, 0
      %p41 = por %p39, %p40
      %p42 = scmp.ne.s32.totalorder %s34, %s36
      %p43 = scmp.eq.s32.totalorder %s19, 1
      %p44 = por %p42, %p43
      %p45 = scmp.ne.s32.totalorder %s36, %s37
      %p46 = scmp.eq.s32.totalorder %s19, 0
      %p47 = por %p45, %p46
      %p48 = scmp.ne.s32.totalorder %s36, %s37
      %p49 = scmp.eq.s32.totalorder %s20, 1
      %p50 = por %p48, %p49
      %p52 = scmp.ne.s32.totalorder %s37, %s51
      %p53 = scmp.eq.s32.totalorder %s20, 0
      %p54 = por %p52, %p53
      %s56 = sadd.s32 %s55, 1
      %p59 = scmp.eq.s32.totalorder %s14, 1
      %p60 = scmp.ne.s32.totalorder %s55, %s57
      %p61 = scmp.eq.s32.totalorder %s14, 0
      %p62 = por %p60, %p61
      %p63 = scmp.ne.s32.totalorder %s55, %s57
      %p64 = scmp.eq.s32.totalorder %s19, 1
      %p65 = por %p63, %p64
      %p66 = scmp.ne.s32.totalorder %s57, %s58
      %p67 = scmp.eq.s32.totalorder %s19, 0
      %p68 = por %p66, %p67
      %p69 = scmp.ne.s32.totalorder %s57, %s58
      %p70 = scmp.eq.s32.totalorder %s20, 1
      %p71 = por %p69, %p70
      %p73 = scmp.ne.s32.totalorder %s58, %s72
      %p74 = scmp.eq.s32.totalorder %s20, 0
      %p75 = por %p73, %p74
      %s76 = ssub.s32 %s21, %s33
      %s77 = ssub.s32 %s22, %s29
      %s78 = sor.u32 %s76, %s77
      %p79 = scmp.eq.s32.totalorder %s78, 0
      %s81 = sadd.s32 %s80, 1
      %s82 = scalar_select %p79, %s80, %s81
      %p85 = pneg %p79
      %p86 = scmp.eq.s32.totalorder %s14, 1
      %p87 = por %p85, %p86
      %p88 = scmp.ne.s32.totalorder %s80, %s83
      %p89 = scmp.eq.s32.totalorder %s14, 0
      %p90 = por %p88, %p89
      %p91 = scmp.ne.s32.totalorder %s80, %s83
      %p92 = scmp.eq.s32.totalorder %s19, 1
      %p93 = por %p91, %p92
      %p94 = scmp.ne.s32.totalorder %s83, %s84
      %p95 = scmp.eq.s32.totalorder %s19, 0
      %p96 = por %p94, %p95
      %p97 = scmp.ne.s32.totalorder %s83, %s84
      %p98 = scmp.eq.s32.totalorder %s20, 1
      %p99 = por %p97, %p98
      %p101 = scmp.ne.s32.totalorder %s84, %s100
      %p102 = scmp.eq.s32.totalorder %s20, 0
      %p103 = por %p101, %p102
      %s104 = ssub.s32 %s21, %s33
      %s105 = ssub.s32 %s22, %s29
      %s106 = sor.u32 %s104, %s105
      %p107 = scmp.eq.s32.totalorder %s106, 0
      %s109 = sadd.s32 %s108, 1
      %s110 = scalar_select %p107, %s108, %s109
      %p113 = pneg %p107
      %p114 = scmp.eq.s32.totalorder %s14, 1
      %p115 = por %p113, %p114
      %p116 = scmp.ne.s32.totalorder %s108, %s111
      %p117 = scmp.eq.s32.totalorder %s14, 0
      %p118 = por %p116, %p117
      %p119 = scmp.ne.s32.totalorder %s108, %s111
      %p120 = scmp.eq.s32.totalorder %s19, 1
      %p121 = por %p119, %p120
      %p122 = scmp.ne.s32.totalorder %s111, %s112
      %p123 = scmp.eq.s32.totalorder %s19, 0
      %p124 = por %p122, %p123
      %p125 = scmp.ne.s32.totalorder %s111, %s112
      %p126 = scmp.eq.s32.totalorder %s20, 1
      %p127 = por %p125, %p126
      %p129 = scmp.ne.s32.totalorder %s112, %s128
      %p130 = scmp.eq.s32.totalorder %s20, 0
      %p131 = por %p129, %p130
      %p132 = scmp.le.s32.totalorder 1, %s14
      %p133 = scmp.lt.s32.totalorder %s14, 3
      %p134 = pnand %p132, %p133
      %p135 = pneg %p134
      // Predicated region
      $region9: #{tpu_custom_call.1} parent=5 // pred_check
        _
      $region10: #{tpu_custom_call.1} parent=5 // pred_check_branch
        %137 = sbr.rel (%p134) target = $region12
      $region11: #{tpu_custom_call.1} parent=5 // pred_region
        %s138 = ssub.s32 %s14, 1
        // Predicated region
        $region13: #{tpu_custom_call.1} parent=11 // pred_check
          %p139 = pneg %p47
        $region14: #{tpu_custom_call.1} parent=11 // pred_check_branch
          %141 = sbr.rel (%p139) target = $region16
        $region15: #{tpu_custom_call.1} parent=11 // pred_region
          %s143 = ssub.s32 256, 256
          %144 = vsyncadd [#allocation3], %s143
          %s145 = sshll.u32 [#allocation2], 4
          %s146 = int_to_ptr.vmem [resolvable:$true] %s145
          %151 = dma.hbm_to_vmem [thread:$0]  %s0, 256, %s146, [#allocation3], 128, 128, 8
        $region16: #{tpu_custom_call.1} parent=11 // pred_fallthru
          _
        // Predicated region
        $region17: #{tpu_custom_call.1} parent=11 // pred_check
          %p152 = pneg %p68
        $region18: #{tpu_custom_call.1} parent=11 // pred_check_branch
          %154 = sbr.rel (%p152) target = $region20
        $region19: #{tpu_custom_call.1} parent=11 // pred_region
          %s156 = ssub.s32 256, 256
          %157 = vsyncadd [#allocation6], %s156
          %s158 = sshll.u32 [#allocation5], 4
          %s159 = int_to_ptr.vmem [resolvable:$true] %s158
          %164 = dma.hbm_to_vmem [thread:$0]  %s1, 256, %s159, [#allocation6], 128, 128, 8
        $region20: #{tpu_custom_call.1} parent=11 // pred_fallthru
          _
      $region12: #{tpu_custom_call.1} parent=5 // pred_fallthru
        _
      %p165 = scmp.lt.s32.totalorder %s14, 2
      // Predicated region
      $region21: #{tpu_custom_call.1} parent=5 // pred_check
        %p166 = pneg %p165
      $region22: #{tpu_custom_call.1} parent=5 // pred_check_branch
        %168 = sbr.rel (%p166) target = $region24
      $region23: #{tpu_custom_call.1} parent=5 // pred_region
        // Predicated region
        $region25: #{tpu_custom_call.1} parent=23 // pred_check
          %p169 = pneg %p90
        $region26: #{tpu_custom_call.1} parent=23 // pred_check_branch
          %171 = sbr.rel (%p169) target = $region28
        $region27: #{tpu_custom_call.1} parent=23 // pred_region
          %s172 = smul.u32 32, %s22
          %p173 = scmp.lt.s32.totalorder %s21, 1
          %s174 = scalar_select %p173, %s21, 1
          %p175 = scmp.lt.s32.totalorder %s172, 31
          %s176 = scalar_select %p175, %s172, 31
          %s177 = smul.addr %s176, 2
          %s178 = smul.addr %s174, 64
          %s179 = sadd.s32 %s177, %s178
          %s180 = smul.addr %s179, 8
          %s181 = scalar_lea.vmem %s2, %s180
          %s182 = smul.u32 32, %s22
        $region28: #{tpu_custom_call.1} parent=23 // pred_fallthru
          _
      $region24: #{tpu_custom_call.1} parent=5 // pred_fallthru
        _
      %p183 = scmp.le.s32.totalorder 1, %s14
      %p184 = scmp.lt.s32.totalorder %s14, 3
      %p185 = pnand %p183, %p184
      %p186 = pneg %p185
      // Predicated region
      $region29: #{tpu_custom_call.1} parent=5 // pred_check
        _
      $region30: #{tpu_custom_call.1} parent=5 // pred_check_branch
        %188 = sbr.rel (%p185) target = $region32
      $region31: #{tpu_custom_call.1} parent=5 // pred_region
        %s189 = ssub.s32 %s14, 1
        // Predicated region
        $region33: #{tpu_custom_call.1} parent=31 // pred_check
          %p190 = pneg %p47
        $region34: #{tpu_custom_call.1} parent=31 // pred_check_branch
          %192 = sbr.rel (%p190) target = $region36
        $region35: #{tpu_custom_call.1} parent=31 // pred_region
          %193 = dma.done [#allocation3], 256
        $region36: #{tpu_custom_call.1} parent=31 // pred_fallthru
          _
        // Predicated region
        $region37: #{tpu_custom_call.1} parent=31 // pred_check
          %p194 = pneg %p68
        $region38: #{tpu_custom_call.1} parent=31 // pred_check_branch
          %196 = sbr.rel (%p194) target = $region40
        $region39: #{tpu_custom_call.1} parent=31 // pred_region
          %197 = dma.done [#allocation6], 256
        $region40: #{tpu_custom_call.1} parent=31 // pred_fallthru
          _
        %p198 = pneg %p47
        %p199 = pneg %p44
        %p200 = pneg %p68
        %p201 = pneg %p65
        %s202 = smul.u32 32, %s24
        %p203 = scmp.lt.s32.totalorder %s23, 1
        %s204 = scalar_select %p203, %s23, 1
        %p205 = scmp.lt.s32.totalorder %s202, 31
        %s206 = scalar_select %p205, %s202, 31
        %s207 = smul.addr %s206, 2
        %s208 = smul.addr %s204, 64
        %s209 = sadd.s32 %s207, %s208
        %s210 = smul.addr %s209, 8
        %s211 = scalar_lea.vmem %s2, %s210
        %p212 = pneg %p96
        %p213 = pneg %p93
        %p214 = pneg %p124
        %p215 = pneg %p121
        %s216 = sand.u32 %s111, 1
        %s217 = scalar_lea.sflag [#allocation4], %s216
        %s218 = sand.u32 %s111, 1
        %s219 = smul.addr %s218, 4096
        %s220 = scalar_lea.vmem [#allocation7], %s219
        %s221 = smul.u32 32, %s24
        %p222 = scmp.lt.s32.totalorder %s23, 1
        %s223 = scalar_select %p222, %s23, 1
        %p224 = scmp.lt.s32.totalorder %s221, 31
        %s225 = scalar_select %p224, %s221, 31
        %s226 = smul.addr %s225, 2
        %s227 = smul.addr %s223, 64
        %s228 = sadd.s32 %s226, %s227
        %s229 = smul.addr %s228, 8
        %s230 = scalar_lea.vmem %s2, %s229
        %s231 = smul.u32 32, %s24
        %s232 = smul.u32 32, %s24
        %v233 = vld [vmem:[%s230] sm:$0xff]
        %v234 = vld [vmem:[%s230 + $0x8] sm:$0xff]
        %v235 = vld [vmem:[%s230 + $0x10] sm:$0xff]
        %v236 = vld [vmem:[%s230 + $0x18] sm:$0xff]
        %v237 = vld [vmem:[%s230 + $0x20] sm:$0xff]
        %v238 = vld [vmem:[%s230 + $0x28] sm:$0xff]
        %v239 = vld [vmem:[%s230 + $0x30] sm:$0xff]
        %v240 = vld [vmem:[%s230 + $0x38] sm:$0xff]
        %v241 = vld [vmem:[%s230 + $0x40] sm:$0xff]
        %v242 = vld [vmem:[%s230 + $0x48] sm:$0xff]
        %v243 = vld [vmem:[%s230 + $0x50] sm:$0xff]
        %v244 = vld [vmem:[%s230 + $0x58] sm:$0xff]
        %v245 = vld [vmem:[%s230 + $0x60] sm:$0xff]
        %v246 = vld [vmem:[%s230 + $0x68] sm:$0xff]
        %v247 = vld [vmem:[%s230 + $0x70] sm:$0xff]
        %v248 = vld [vmem:[%s230 + $0x78] sm:$0xff]
        %v249 = vld [vmem:[%s230 + $0x80] sm:$0xff]
        %v250 = vld [vmem:[%s230 + $0x88] sm:$0xff]
        %v251 = vld [vmem:[%s230 + $0x90] sm:$0xff]
        %v252 = vld [vmem:[%s230 + $0x98] sm:$0xff]
        %v253 = vld [vmem:[%s230 + $0xa0] sm:$0xff]
        %v254 = vld [vmem:[%s230 + $0xa8] sm:$0xff]
        %v255 = vld [vmem:[%s230 + $0xb0] sm:$0xff]
        %v256 = vld [vmem:[%s230 + $0xb8] sm:$0xff]
        %v257 = vld [vmem:[%s230 + $0xc0] sm:$0xff]
        %v258 = vld [vmem:[%s230 + $0xc8] sm:$0xff]
        %v259 = vld [vmem:[%s230 + $0xd0] sm:$0xff]
        %v260 = vld [vmem:[%s230 + $0xd8] sm:$0xff]
        %v261 = vld [vmem:[%s230 + $0xe0] sm:$0xff]
        %v262 = vld [vmem:[%s230 + $0xe8] sm:$0xff]
        %v263 = vld [vmem:[%s230 + $0xf0] sm:$0xff]
        %v264 = vld [vmem:[%s230 + $0xf8] sm:$0xff]
        %v265 = vld [vmem:[%s230 + $0x100] sm:$0xff]
        %v266 = vld [vmem:[%s230 + $0x108] sm:$0xff]
        %v267 = vld [vmem:[%s230 + $0x110] sm:$0xff]
        %v268 = vld [vmem:[%s230 + $0x118] sm:$0xff]
        %v269 = vld [vmem:[%s230 + $0x120] sm:$0xff]
        %v270 = vld [vmem:[%s230 + $0x128] sm:$0xff]
        %v271 = vld [vmem:[%s230 + $0x130] sm:$0xff]
        %v272 = vld [vmem:[%s230 + $0x138] sm:$0xff]
        %v273 = vld [vmem:[%s230 + $0x140] sm:$0xff]
        %v274 = vld [vmem:[%s230 + $0x148] sm:$0xff]
        %v275 = vld [vmem:[%s230 + $0x150] sm:$0xff]
        %v276 = vld [vmem:[%s230 + $0x158] sm:$0xff]
        %v277 = vld [vmem:[%s230 + $0x160] sm:$0xff]
        %v278 = vld [vmem:[%s230 + $0x168] sm:$0xff]
        %v279 = vld [vmem:[%s230 + $0x170] sm:$0xff]
        %v280 = vld [vmem:[%s230 + $0x178] sm:$0xff]
        %v281 = vld [vmem:[%s230 + $0x180] sm:$0xff]
        %v282 = vld [vmem:[%s230 + $0x188] sm:$0xff]
        %v283 = vld [vmem:[%s230 + $0x190] sm:$0xff]
        %v284 = vld [vmem:[%s230 + $0x198] sm:$0xff]
        %v285 = vld [vmem:[%s230 + $0x1a0] sm:$0xff]
        %v286 = vld [vmem:[%s230 + $0x1a8] sm:$0xff]
        %v287 = vld [vmem:[%s230 + $0x1b0] sm:$0xff]
        %v288 = vld [vmem:[%s230 + $0x1b8] sm:$0xff]
        %v289 = vld [vmem:[%s230 + $0x1c0] sm:$0xff]
        %v290 = vld [vmem:[%s230 + $0x1c8] sm:$0xff]
        %v291 = vld [vmem:[%s230 + $0x1d0] sm:$0xff]
        %v292 = vld [vmem:[%s230 + $0x1d8] sm:$0xff]
        %v293 = vld [vmem:[%s230 + $0x1e0] sm:$0xff]
        %v294 = vld [vmem:[%s230 + $0x1e8] sm:$0xff]
        %v295 = vld [vmem:[%s230 + $0x1f0] sm:$0xff]
        %v296 = vld [vmem:[%s230 + $0x1f8] sm:$0xff]
        %v297 = vld [vmem:[#allocation2] sm:$0xff]
        %v298 = vld [vmem:[#allocation2 + $0x8] sm:$0xff]
        %vm299 = vcmask 130048
        %v301 = vsel %vm299, %v233, 0
        %v304 = vsel %vm299, %v234, 0
        %v307 = vsel %vm299, %v235, 0
        %v310 = vsel %vm299, %v236, 0
        %v313 = vsel %vm299, %v237, 0
        %v316 = vsel %vm299, %v238, 0
        %v319 = vsel %vm299, %v239, 0
        %v322 = vsel %vm299, %v240, 0
        %v325 = vsel %vm299, %v241, 0
        %v328 = vsel %vm299, %v242, 0
        %v331 = vsel %vm299, %v243, 0
        %v334 = vsel %vm299, %v244, 0
        %v337 = vsel %vm299, %v245, 0
        %v340 = vsel %vm299, %v246, 0
        %v343 = vsel %vm299, %v247, 0
        %v346 = vsel %vm299, %v248, 0
        %v349 = vsel %vm299, %v249, 0
        %v352 = vsel %vm299, %v250, 0
        %v355 = vsel %vm299, %v251, 0
        %v358 = vsel %vm299, %v252, 0
        %v361 = vsel %vm299, %v253, 0
        %v364 = vsel %vm299, %v254, 0
        %v367 = vsel %vm299, %v255, 0
        %v370 = vsel %vm299, %v256, 0
        %v373 = vsel %vm299, %v257, 0
        %v376 = vsel %vm299, %v258, 0
        %v379 = vsel %vm299, %v259, 0
        %v382 = vsel %vm299, %v260, 0
        %v385 = vsel %vm299, %v261, 0
        %v388 = vsel %vm299, %v262, 0
        %v391 = vsel %vm299, %v263, 0
        %v394 = vsel %vm299, %v264, 0
        %v397 = vsel %vm299, %v265, 0
        %v400 = vsel %vm299, %v266, 0
        %v403 = vsel %vm299, %v267, 0
        %v406 = vsel %vm299, %v268, 0
        %v409 = vsel %vm299, %v269, 0
        %v412 = vsel %vm299, %v270, 0
        %v415 = vsel %vm299, %v271, 0
        %v418 = vsel %vm299, %v272, 0
        %v421 = vsel %vm299, %v273, 0
        %v424 = vsel %vm299, %v274, 0
        %v427 = vsel %vm299, %v275, 0
        %v430 = vsel %vm299, %v276, 0
        %v433 = vsel %vm299, %v277, 0
        %v436 = vsel %vm299, %v278, 0
        %v439 = vsel %vm299, %v279, 0
        %v442 = vsel %vm299, %v280, 0
        %v445 = vsel %vm299, %v281, 0
        %v448 = vsel %vm299, %v282, 0
        %v451 = vsel %vm299, %v283, 0
        %v454 = vsel %vm299, %v284, 0
        %v457 = vsel %vm299, %v285, 0
        %v460 = vsel %vm299, %v286, 0
        %v463 = vsel %vm299, %v287, 0
        %v466 = vsel %vm299, %v288, 0
        %v469 = vsel %vm299, %v289, 0
        %v472 = vsel %vm299, %v290, 0
        %v475 = vsel %vm299, %v291, 0
        %v478 = vsel %vm299, %v292, 0
        %v481 = vsel %vm299, %v293, 0
        %v484 = vsel %vm299, %v294, 0
        %v487 = vsel %vm299, %v295, 0
        %v490 = vsel %vm299, %v296, 0
        %492 = vmatprep.subr.mxu0 0.0
        %493 = vmatpush1.msra.mxu0 %v297
        %494 = vmatprep.subr.mxu0 0.0
        %495 = vmatpush1.msra.mxu0 %v298
        %496 = vmatprep.subr.mxu0 0.0
        %497 = vmatpush1.msra.mxu0 0.0
        %498 = vmatprep.subr.mxu0 0.0
        %499 = vmatpush1.msra.mxu0 0.0
        %500 = vmatprep.subr.mxu0 0.0
        %501 = vmatpush1.msra.mxu0 0.0
        %502 = vmatprep.subr.mxu0 0.0
        %503 = vmatpush1.msra.mxu0 0.0
        %504 = vmatprep.subr.mxu0 0.0
        %505 = vmatpush1.msra.mxu0 0.0
        %506 = vmatprep.subr.mxu0 0.0
        %507 = vmatpush1.msra.mxu0 0.0
        %508 = vmatprep.subr.mxu0 0.0
        %509 = vmatpush1.msra.mxu0 0.0
        %510 = vmatprep.subr.mxu0 0.0
        %511 = vmatpush1.msra.mxu0 0.0
        %512 = vmatprep.subr.mxu0 0.0
        %513 = vmatpush1.msra.mxu0 0.0
        %514 = vmatprep.subr.mxu0 0.0
        %515 = vmatpush1.msra.mxu0 0.0
        %516 = vmatprep.subr.mxu0 0.0
        %517 = vmatpush1.msra.mxu0 0.0
        %518 = vmatprep.subr.mxu0 0.0
        %519 = vmatpush1.msra.mxu0 0.0
        %520 = vmatprep.subr.mxu0 0.0
        %521 = vmatpush1.msra.mxu0 0.0
        %522 = vmatprep.subr.mxu0 0.0
        %523 = vmatpush1.msra.mxu0 0.0
        %524 = vmatprep.subr.mxu0 0.0
        %525 = vmatpush1.msra.mxu0 0.0
        %526 = vmatprep.subr.mxu0 0.0
        %527 = vmatpush1.msra.mxu0 0.0
        %528 = vmatprep.subr.mxu0 0.0
        %529 = vmatpush1.msra.mxu0 0.0
        %530 = vmatprep.subr.mxu0 0.0
        %531 = vmatpush1.msra.mxu0 0.0
        %532 = vmatprep.subr.mxu0 0.0
        %533 = vmatpush1.msra.mxu0 0.0
        %534 = vmatprep.subr.mxu0 0.0
        %535 = vmatpush1.msra.mxu0 0.0
        %536 = vmatprep.subr.mxu0 0.0
        %537 = vmatpush1.msra.mxu0 0.0
        %538 = vmatprep.subr.mxu0 0.0
        %539 = vmatpush1.msra.mxu0 0.0
        %540 = vmatprep.subr.mxu0 0.0
        %541 = vmatpush1.msra.mxu0 0.0
        %542 = vmatprep.subr.mxu0 0.0
        %543 = vmatpush1.msra.mxu0 0.0
        %544 = vmatprep.subr.mxu0 0.0
        %545 = vmatpush1.msra.mxu0 0.0
        %546 = vmatprep.subr.mxu0 0.0
        %547 = vmatpush1.msra.mxu0 0.0
        %548 = vmatprep.subr.mxu0 0.0
        %549 = vmatpush1.msra.mxu0 0.0
        %550 = vmatprep.subr.mxu0 0.0
        %551 = vmatpush1.msra.mxu0 0.0
        %552 = vmatprep.subr.mxu0 0.0
        %553 = vmatpush1.msra.mxu0 0.0
        %554 = vmatprep.subr.mxu0 0.0
        %555 = vmatpush1.msra.mxu0 0.0
        %556 = vmatprep.mubr.f32.mxu0 0.0
        %557 = vmatmul.mubr.f32.gmra.mrb[0].mxu0 %v301
        %v558 = vpop.f32.mrb[0].mxu0
        %v559 = vadd.f32 0.0, %v558
        %v560 = vpop.f32.mrb[0].mxu0
        %561 = vmatprep.mubr.f32.mxu0 0.0
        %562 = vmatmul.mubr.f32.gmra.mrb[0].mxu0 %v304
        %v563 = vpop.f32.mrb[0].mxu0
        %v564 = vadd.f32 0.0, %v563
        %v565 = vpop.f32.mrb[0].mxu0
        %566 = vmatprep.mubr.f32.mxu0 0.0
        %567 = vmatmul.mubr.f32.gmra.mrb[0].mxu0 %v307
        %v568 = vpop.f32.mrb[0].mxu0
        %v569 = vadd.f32 0.0, %v568
        %v570 = vpop.f32.mrb[0].mxu0
        %571 = vmatprep.mubr.f32.mxu0 0.0
        %572 = vmatmul.mubr.f32.gmra.mrb[0].mxu0 %v310
        %v573 = vpop.f32.mrb[0].mxu0
        %v574 = vadd.f32 0.0, %v573
        %v575 = vpop.f32.mrb[0].mxu0
        %576 = vmatprep.mubr.f32.mxu0 0.0
        %577 = vmatmul.mubr.f32.gmra.mrb[0].mxu0 %v313
        %v578 = vpop.f32.mrb[0].mxu0
        %v579 = vadd.f32 0.0, %v578
        %v580 = vpop.f32.mrb[0].mxu0
        %581 = vmatprep.mubr.f32.mxu0 0.0
        %582 = vmatmul.mubr.f32.gmra.mrb[0].mxu0 %v316
        %v583 = vpop.f32.mrb[0].mxu0
        %v584 = vadd.f32 0.0, %v583
        %v585 = vpop.f32.mrb[0].mxu0
        %586 = vmatprep.mubr.f32.mxu0 0.0
        %587 = vmatmul.mubr.f32.gmra.mrb[0].mxu0 %v319
        %v588 = vpop.f32.mrb[0].mxu0
        %v589 = vadd.f32 0.0, %v588
        %v590 = vpop.f32.mrb[0].mxu0
        %591 = vmatprep.mubr.f32.mxu0 0.0
        %592 = vmatmul.mubr.f32.gmra.mrb[0].mxu0 %v322
        %v593 = vpop.f32.mrb[0].mxu0
        %v594 = vadd.f32 0.0, %v593
        %v595 = vpop.f32.mrb[0].mxu0
        %596 = vmatprep.mubr.f32.mxu0 0.0
        %597 = vmatmul.mubr.f32.gmra.mrb[0].mxu0 %v325
        %v598 = vpop.f32.mrb[0].mxu0
        %v599 = vadd.f32 0.0, %v598
        %v600 = vpop.f32.mrb[0].mxu0
        %601 = vmatprep.mubr.f32.mxu0 0.0
        %602 = vmatmul.mubr.f32.gmra.mrb[0].mxu0 %v328
        %v603 = vpop.f32.mrb[0].mxu0
        %v604 = vadd.f32 0.0, %v603
        %v605 = vpop.f32.mrb[0].mxu0
        %606 = vmatprep.mubr.f32.mxu0 0.0
        %607 = vmatmul.mubr.f32.gmra.mrb[0].mxu0 %v331
        %v608 = vpop.f32.mrb[0].mxu0
        %v609 = vadd.f32 0.0, %v608
        %v610 = vpop.f32.mrb[0].mxu0
        %611 = vmatprep.mubr.f32.mxu0 0.0
        %612 = vmatmul.mubr.f32.gmra.mrb[0].mxu0 %v334
        %v613 = vpop.f32.mrb[0].mxu0
        %v614 = vadd.f32 0.0, %v613
        %v615 = vpop.f32.mrb[0].mxu0
        %616 = vmatprep.mubr.f32.mxu0 0.0
        %617 = vmatmul.mubr.f32.gmra.mrb[0].mxu0 %v337
        %v618 = vpop.f32.mrb[0].mxu0
        %v619 = vadd.f32 0.0, %v618
        %v620 = vpop.f32.mrb[0].mxu0
        %621 = vmatprep.mubr.f32.mxu0 0.0
        %622 = vmatmul.mubr.f32.gmra.mrb[0].mxu0 %v340
        %v623 = vpop.f32.mrb[0].mxu0
        %v624 = vadd.f32 0.0, %v623
        %v625 = vpop.f32.mrb[0].mxu0
        %626 = vmatprep.mubr.f32.mxu0 0.0
        %627 = vmatmul.mubr.f32.gmra.mrb[0].mxu0 %v343
        %v628 = vpop.f32.mrb[0].mxu0
        %v629 = vadd.f32 0.0, %v628
        %v630 = vpop.f32.mrb[0].mxu0
        %631 = vmatprep.mubr.f32.mxu0 0.0
        %632 = vmatmul.mubr.f32.gmra.mrb[0].mxu0 %v346
        %v633 = vpop.f32.mrb[0].mxu0
        %v634 = vadd.f32 0.0, %v633
        %v635 = vpop.f32.mrb[0].mxu0
        %636 = vmatprep.mubr.f32.mxu0 0.0
        %637 = vmatmul.mubr.f32.gmra.mrb[0].mxu0 %v349
        %v638 = vpop.f32.mrb[0].mxu0
        %v639 = vadd.f32 0.0, %v638
        %v640 = vpop.f32.mrb[0].mxu0
        %641 = vmatprep.mubr.f32.mxu0 0.0
        %642 = vmatmul.mubr.f32.gmra.mrb[0].mxu0 %v352
        %v643 = vpop.f32.mrb[0].mxu0
        %v644 = vadd.f32 0.0, %v643
        %v645 = vpop.f32.mrb[0].mxu0
        %646 = vmatprep.mubr.f32.mxu0 0.0
        %647 = vmatmul.mubr.f32.gmra.mrb[0].mxu0 %v355
        %v648 = vpop.f32.mrb[0].mxu0
        %v649 = vadd.f32 0.0, %v648
        %v650 = vpop.f32.mrb[0].mxu0
        %651 = vmatprep.mubr.f32.mxu0 0.0
        %652 = vmatmul.mubr.f32.gmra.mrb[0].mxu0 %v358
        %v653 = vpop.f32.mrb[0].mxu0
        %v654 = vadd.f32 0.0, %v653
        %v655 = vpop.f32.mrb[0].mxu0
        %656 = vmatprep.mubr.f32.mxu0 0.0
        %657 = vmatmul.mubr.f32.gmra.mrb[0].mxu0 %v361
        %v658 = vpop.f32.mrb[0].mxu0
        %v659 = vadd.f32 0.0, %v658
        %v660 = vpop.f32.mrb[0].mxu0
        %661 = vmatprep.mubr.f32.mxu0 0.0
        %662 = vmatmul.mubr.f32.gmra.mrb[0].mxu0 %v364
        %v663 = vpop.f32.mrb[0].mxu0
        %v664 = vadd.f32 0.0, %v663
        %v665 = vpop.f32.mrb[0].mxu0
        %666 = vmatprep.mubr.f32.mxu0 0.0
        %667 = vmatmul.mubr.f32.gmra.mrb[0].mxu0 %v367
        %v668 = vpop.f32.mrb[0].mxu0
        %v669 = vadd.f32 0.0, %v668
        %v670 = vpop.f32.mrb[0].mxu0
        %671 = vmatprep.mubr.f32.mxu0 0.0
        %672 = vmatmul.mubr.f32.gmra.mrb[0].mxu0 %v370
        %v673 = vpop.f32.mrb[0].mxu0
        %v674 = vadd.f32 0.0, %v673
        %v675 = vpop.f32.mrb[0].mxu0
        %676 = vmatprep.mubr.f32.mxu0 0.0
        %677 = vmatmul.mubr.f32.gmra.mrb[0].mxu0 %v373
        %v678 = vpop.f32.mrb[0].mxu0
        %v679 = vadd.f32 0.0, %v678
        %v680 = vpop.f32.mrb[0].mxu0
        %681 = vmatprep.mubr.f32.mxu0 0.0
        %682 = vmatmul.mubr.f32.gmra.mrb[0].mxu0 %v376
        %v683 = vpop.f32.mrb[0].mxu0
        %v684 = vadd.f32 0.0, %v683
        %v685 = vpop.f32.mrb[0].mxu0
        %686 = vmatprep.mubr.f32.mxu0 0.0
        %687 = vmatmul.mubr.f32.gmra.mrb[0].mxu0 %v379
        %v688 = vpop.f32.mrb[0].mxu0
        %v689 = vadd.f32 0.0, %v688
        %v690 = vpop.f32.mrb[0].mxu0
        %691 = vmatprep.mubr.f32.mxu0 0.0
        %692 = vmatmul.mubr.f32.gmra.mrb[0].mxu0 %v382
        %v693 = vpop.f32.mrb[0].mxu0
        %v694 = vadd.f32 0.0, %v693
        %v695 = vpop.f32.mrb[0].mxu0
        %696 = vmatprep.mubr.f32.mxu0 0.0
        %697 = vmatmul.mubr.f32.gmra.mrb[0].mxu0 %v385
        %v698 = vpop.f32.mrb[0].mxu0
        %v699 = vadd.f32 0.0, %v698
        %v700 = vpop.f32.mrb[0].mxu0
        %701 = vmatprep.mubr.f32.mxu0 0.0
        %702 = vmatmul.mubr.f32.gmra.mrb[0].mxu0 %v388
        %v703 = vpop.f32.mrb[0].mxu0
        %v704 = vadd.f32 0.0, %v703
        %v705 = vpop.f32.mrb[0].mxu0
        %706 = vmatprep.mubr.f32.mxu0 0.0
        %707 = vmatmul.mubr.f32.gmra.mrb[0].mxu0 %v391
        %v708 = vpop.f32.mrb[0].mxu0
        %v709 = vadd.f32 0.0, %v708
        %v710 = vpop.f32.mrb[0].mxu0
        %711 = vmatprep.mubr.f32.mxu0 0.0
        %712 = vmatmul.mubr.f32.gmra.mrb[0].mxu0 %v394
        %v713 = vpop.f32.mrb[0].mxu0
        %v714 = vadd.f32 0.0, %v713
        %v715 = vpop.f32.mrb[0].mxu0
        %716 = vmatprep.mubr.f32.mxu0 0.0
        %717 = vmatmul.mubr.f32.gmra.mrb[0].mxu0 %v397
        %v718 = vpop.f32.mrb[0].mxu0
        %v719 = vadd.f32 0.0, %v718
        %v720 = vpop.f32.mrb[0].mxu0
        %721 = vmatprep.mubr.f32.mxu0 0.0
        %722 = vmatmul.mubr.f32.gmra.mrb[0].mxu0 %v400
        %v723 = vpop.f32.mrb[0].mxu0
        %v724 = vadd.f32 0.0, %v723
        %v725 = vpop.f32.mrb[0].mxu0
        %726 = vmatprep.mubr.f32.mxu0 0.0
        %727 = vmatmul.mubr.f32.gmra.mrb[0].mxu0 %v403
        %v728 = vpop.f32.mrb[0].mxu0
        %v729 = vadd.f32 0.0, %v728
        %v730 = vpop.f32.mrb[0].mxu0
        %731 = vmatprep.mubr.f32.mxu0 0.0
        %732 = vmatmul.mubr.f32.gmra.mrb[0].mxu0 %v406
        %v733 = vpop.f32.mrb[0].mxu0
        %v734 = vadd.f32 0.0, %v733
        %v735 = vpop.f32.mrb[0].mxu0
        %736 = vmatprep.mubr.f32.mxu0 0.0
        %737 = vmatmul.mubr.f32.gmra.mrb[0].mxu0 %v409
        %v738 = vpop.f32.mrb[0].mxu0
        %v739 = vadd.f32 0.0, %v738
        %v740 = vpop.f32.mrb[0].mxu0
        %741 = vmatprep.mubr.f32.mxu0 0.0
        %742 = vmatmul.mubr.f32.gmra.mrb[0].mxu0 %v412
        %v743 = vpop.f32.mrb[0].mxu0
        %v744 = vadd.f32 0.0, %v743
        %v745 = vpop.f32.mrb[0].mxu0
        %746 = vmatprep.mubr.f32.mxu0 0.0
        %747 = vmatmul.mubr.f32.gmra.mrb[0].mxu0 %v415
        %v748 = vpop.f32.mrb[0].mxu0
        %v749 = vadd.f32 0.0, %v748
        %v750 = vpop.f32.mrb[0].mxu0
        %751 = vmatprep.mubr.f32.mxu0 0.0
        %752 = vmatmul.mubr.f32.gmra.mrb[0].mxu0 %v418
        %v753 = vpop.f32.mrb[0].mxu0
        %v754 = vadd.f32 0.0, %v753
        %v755 = vpop.f32.mrb[0].mxu0
        %756 = vmatprep.mubr.f32.mxu0 0.0
        %757 = vmatmul.mubr.f32.gmra.mrb[0].mxu0 %v421
        %v758 = vpop.f32.mrb[0].mxu0
        %v759 = vadd.f32 0.0, %v758
        %v760 = vpop.f32.mrb[0].mxu0
        %761 = vmatprep.mubr.f32.mxu0 0.0
        %762 = vmatmul.mubr.f32.gmra.mrb[0].mxu0 %v424
        %v763 = vpop.f32.mrb[0].mxu0
        %v764 = vadd.f32 0.0, %v763
        %v765 = vpop.f32.mrb[0].mxu0
        %766 = vmatprep.mubr.f32.mxu0 0.0
        %767 = vmatmul.mubr.f32.gmra.mrb[0].mxu0 %v427
        %v768 = vpop.f32.mrb[0].mxu0
        %v769 = vadd.f32 0.0, %v768
        %v770 = vpop.f32.mrb[0].mxu0
        %771 = vmatprep.mubr.f32.mxu0 0.0
        %772 = vmatmul.mubr.f32.gmra.mrb[0].mxu0 %v430
        %v773 = vpop.f32.mrb[0].mxu0
        %v774 = vadd.f32 0.0, %v773
        %v775 = vpop.f32.mrb[0].mxu0
        %776 = vmatprep.mubr.f32.mxu0 0.0
        %777 = vmatmul.mubr.f32.gmra.mrb[0].mxu0 %v433
        %v778 = vpop.f32.mrb[0].mxu0
        %v779 = vadd.f32 0.0, %v778
        %v780 = vpop.f32.mrb[0].mxu0
        %781 = vmatprep.mubr.f32.mxu0 0.0
        %782 = vmatmul.mubr.f32.gmra.mrb[0].mxu0 %v436
        %v783 = vpop.f32.mrb[0].mxu0
        %v784 = vadd.f32 0.0, %v783
        %v785 = vpop.f32.mrb[0].mxu0
        %786 = vmatprep.mubr.f32.mxu0 0.0
        %787 = vmatmul.mubr.f32.gmra.mrb[0].mxu0 %v439
        %v788 = vpop.f32.mrb[0].mxu0
        %v789 = vadd.f32 0.0, %v788
        %v790 = vpop.f32.mrb[0].mxu0
        %791 = vmatprep.mubr.f32.mxu0 0.0
        %792 = vmatmul.mubr.f32.gmra.mrb[0].mxu0 %v442
        %v793 = vpop.f32.mrb[0].mxu0
        %v794 = vadd.f32 0.0, %v793
        %v795 = vpop.f32.mrb[0].mxu0
        %796 = vmatprep.mubr.f32.mxu0 0.0
        %797 = vmatmul.mubr.f32.gmra.mrb[0].mxu0 %v445
        %v798 = vpop.f32.mrb[0].mxu0
        %v799 = vadd.f32 0.0, %v798
        %v800 = vpop.f32.mrb[0].mxu0
        %801 = vmatprep.mubr.f32.mxu0 0.0
        %802 = vmatmul.mubr.f32.gmra.mrb[0].mxu0 %v448
        %v803 = vpop.f32.mrb[0].mxu0
        %v804 = vadd.f32 0.0, %v803
        %v805 = vpop.f32.mrb[0].mxu0
        %806 = vmatprep.mubr.f32.mxu0 0.0
        %807 = vmatmul.mubr.f32.gmra.mrb[0].mxu0 %v451
        %v808 = vpop.f32.mrb[0].mxu0
        %v809 = vadd.f32 0.0, %v808
        %v810 = vpop.f32.mrb[0].mxu0
        %811 = vmatprep.mubr.f32.mxu0 0.0
        %812 = vmatmul.mubr.f32.gmra.mrb[0].mxu0 %v454
        %v813 = vpop.f32.mrb[0].mxu0
        %v814 = vadd.f32 0.0, %v813
        %v815 = vpop.f32.mrb[0].mxu0
        %816 = vmatprep.mubr.f32.mxu0 0.0
        %817 = vmatmul.mubr.f32.gmra.mrb[0].mxu0 %v457
        %v818 = vpop.f32.mrb[0].mxu0
        %v819 = vadd.f32 0.0, %v818
        %v820 = vpop.f32.mrb[0].mxu0
        %821 = vmatprep.mubr.f32.mxu0 0.0
        %822 = vmatmul.mubr.f32.gmra.mrb[0].mxu0 %v460
        %v823 = vpop.f32.mrb[0].mxu0
        %v824 = vadd.f32 0.0, %v823
        %v825 = vpop.f32.mrb[0].mxu0
        %826 = vmatprep.mubr.f32.mxu0 0.0
        %827 = vmatmul.mubr.f32.gmra.mrb[0].mxu0 %v463
        %v828 = vpop.f32.mrb[0].mxu0
        %v829 = vadd.f32 0.0, %v828
        %v830 = vpop.f32.mrb[0].mxu0
        %831 = vmatprep.mubr.f32.mxu0 0.0
        %832 = vmatmul.mubr.f32.gmra.mrb[0].mxu0 %v466
        %v833 = vpop.f32.mrb[0].mxu0
        %v834 = vadd.f32 0.0, %v833
        %v835 = vpop.f32.mrb[0].mxu0
        %836 = vmatprep.mubr.f32.mxu0 0.0
        %837 = vmatmul.mubr.f32.gmra.mrb[0].mxu0 %v469
        %v838 = vpop.f32.mrb[0].mxu0
        %v839 = vadd.f32 0.0, %v838
        %v840 = vpop.f32.mrb[0].mxu0
        %841 = vmatprep.mubr.f32.mxu0 0.0
        %842 = vmatmul.mubr.f32.gmra.mrb[0].mxu0 %v472
        %v843 = vpop.f32.mrb[0].mxu0
        %v844 = vadd.f32 0.0, %v843
        %v845 = vpop.f32.mrb[0].mxu0
        %846 = vmatprep.mubr.f32.mxu0 0.0
        %847 = vmatmul.mubr.f32.gmra.mrb[0].mxu0 %v475
        %v848 = vpop.f32.mrb[0].mxu0
        %v849 = vadd.f32 0.0, %v848
        %v850 = vpop.f32.mrb[0].mxu0
        %851 = vmatprep.mubr.f32.mxu0 0.0
        %852 = vmatmul.mubr.f32.gmra.mrb[0].mxu0 %v478
        %v853 = vpop.f32.mrb[0].mxu0
        %v854 = vadd.f32 0.0, %v853
        %v855 = vpop.f32.mrb[0].mxu0
        %856 = vmatprep.mubr.f32.mxu0 0.0
        %857 = vmatmul.mubr.f32.gmra.mrb[0].mxu0 %v481
        %v858 = vpop.f32.mrb[0].mxu0
        %v859 = vadd.f32 0.0, %v858
        %v860 = vpop.f32.mrb[0].mxu0
        %861 = vmatprep.mubr.f32.mxu0 0.0
        %862 = vmatmul.mubr.f32.gmra.mrb[0].mxu0 %v484
        %v863 = vpop.f32.mrb[0].mxu0
        %v864 = vadd.f32 0.0, %v863
        %v865 = vpop.f32.mrb[0].mxu0
        %866 = vmatprep.mubr.f32.mxu0 0.0
        %867 = vmatmul.mubr.f32.gmra.mrb[0].mxu0 %v487
        %v868 = vpop.f32.mrb[0].mxu0
        %v869 = vadd.f32 0.0, %v868
        %v870 = vpop.f32.mrb[0].mxu0
        %871 = vmatprep.mubr.f32.mxu0 0.0
        %872 = vmatmul.mubr.f32.gmra.mrb[0].mxu0 %v490
        %v873 = vpop.f32.mrb[0].mxu0
        %v874 = vadd.f32 0.0, %v873
        %v875 = vpop.f32.mrb[0].mxu0
        %876 = vdwg.mxu0
        %v877 = vld [vmem:[#allocation5] sm:$0xff]
        %v878 = vld [vmem:[#allocation5 + $0x8] sm:$0xff]
        %879 = vxpose.xlu0.b32.start [1/16] %v877, 128
        %880 = vxpose.xlu0.b32.cont [2/16] %v878, 128
        %881 = vxpose.xlu0.b32.cont [3/16] 0.0, 128
        %882 = vxpose.xlu0.b32.cont [4/16] 0.0, 128
        %883 = vxpose.xlu0.b32.cont [5/16] 0.0, 128
        %884 = vxpose.xlu0.b32.cont [6/16] 0.0, 128
        %885 = vxpose.xlu0.b32.cont [7/16] 0.0, 128
        %886 = vxpose.xlu0.b32.cont [8/16] 0.0, 128
        %887 = vxpose.xlu0.b32.cont [9/16] 0.0, 128
        %888 = vxpose.xlu0.b32.cont [10/16] 0.0, 128
        %889 = vxpose.xlu0.b32.cont [11/16] 0.0, 128
        %890 = vxpose.xlu0.b32.cont [12/16] 0.0, 128
        %891 = vxpose.xlu0.b32.cont [13/16] 0.0, 128
        %892 = vxpose.xlu0.b32.cont [14/16] 0.0, 128
        %893 = vxpose.xlu0.b32.cont [15/16] 0.0, 128
        %894 = vxpose.xlu0.b32.end [16/16] 0.0, 128
        %v895 = vpop.trf.xlu0
        %v896 = vpop.trf.xlu0
        %v897 = vpop.trf.xlu0
        %v898 = vpop.trf.xlu0
        %v899 = vpop.trf.xlu0
        %v900 = vpop.trf.xlu0
        %v901 = vpop.trf.xlu0
        %v902 = vpop.trf.xlu0
        %v903 = vpop.trf.xlu0
        %v904 = vpop.trf.xlu0
        %v905 = vpop.trf.xlu0
        %v906 = vpop.trf.xlu0
        %v907 = vpop.trf.xlu0
        %v908 = vpop.trf.xlu0
        %v909 = vpop.trf.xlu0
        %v910 = vpop.trf.xlu0
        %v912 = vsel %vm299, %v895, 0
        %v915 = vsel %vm299, %v896, 0
        %v918 = vsel %vm299, %v897, 0
        %v921 = vsel %vm299, %v898, 0
        %v924 = vsel %vm299, %v899, 0
        %v927 = vsel %vm299, %v900, 0
        %v930 = vsel %vm299, %v901, 0
        %v933 = vsel %vm299, %v902, 0
        %v936 = vsel %vm299, %v903, 0
        %v939 = vsel %vm299, %v904, 0
        %v942 = vsel %vm299, %v905, 0
        %v945 = vsel %vm299, %v906, 0
        %v948 = vsel %vm299, %v907, 0
        %v951 = vsel %vm299, %v908, 0
        %v954 = vsel %vm299, %v909, 0
        %v957 = vsel %vm299, %v910, 0
        %959 = vmatprep.subr.mxu0 0.0
        %960 = vmatpush1.msra.mxu0 %v559
        %961 = vmatprep.subr.mxu0 0.0
        %962 = vmatpush1.msra.mxu0 %v564
        %963 = vmatprep.subr.mxu0 0.0
        %964 = vmatpush1.msra.mxu0 0.0
        %965 = vmatprep.subr.mxu0 0.0
        %966 = vmatpush1.msra.mxu0 0.0
        %967 = vmatprep.subr.mxu0 0.0
        %968 = vmatpush1.msra.mxu0 0.0
        %969 = vmatprep.subr.mxu0 0.0
        %970 = vmatpush1.msra.mxu0 0.0
        %971 = vmatprep.subr.mxu0 0.0
        %972 = vmatpush1.msra.mxu0 0.0
        %973 = vmatprep.subr.mxu0 0.0
        %974 = vmatpush1.msra.mxu0 0.0
        %975 = vmatprep.subr.mxu0 0.0
        %976 = vmatpush1.msra.mxu0 0.0
        %977 = vmatprep.subr.mxu0 0.0
        %978 = vmatpush1.msra.mxu0 0.0
        %979 = vmatprep.subr.mxu0 0.0
        %980 = vmatpush1.msra.mxu0 0.0
        %981 = vmatprep.subr.mxu0 0.0
        %982 = vmatpush1.msra.mxu0 0.0
        %983 = vmatprep.subr.mxu0 0.0
        %984 = vmatpush1.msra.mxu0 0.0
        %985 = vmatprep.subr.mxu0 0.0
        %986 = vmatpush1.msra.mxu0 0.0
        %987 = vmatprep.subr.mxu0 0.0
        %988 = vmatpush1.msra.mxu0 0.0
        %989 = vmatprep.subr.mxu0 0.0
        %990 = vmatpush1.msra.mxu0 0.0
        %991 = vmatprep.subr.mxu0 0.0
        %992 = vmatpush1.msra.mxu0 0.0
        %993 = vmatprep.subr.mxu0 0.0
        %994 = vmatpush1.msra.mxu0 0.0
        %995 = vmatprep.subr.mxu0 0.0
        %996 = vmatpush1.msra.mxu0 0.0
        %997 = vmatprep.subr.mxu0 0.0
        %998 = vmatpush1.msra.mxu0 0.0
        %999 = vmatprep.subr.mxu0 0.0
        %1000 = vmatpush1.msra.mxu0 0.0
        %1001 = vmatprep.subr.mxu0 0.0
        %1002 = vmatpush1.msra.mxu0 0.0
        %1003 = vmatprep.subr.mxu0 0.0
        %1004 = vmatpush1.msra.mxu0 0.0
        %1005 = vmatprep.subr.mxu0 0.0
        %1006 = vmatpush1.msra.mxu0 0.0
        %1007 = vmatprep.subr.mxu0 0.0
        %1008 = vmatpush1.msra.mxu0 0.0
        %1009 = vmatprep.subr.mxu0 0.0
        %1010 = vmatpush1.msra.mxu0 0.0
        %1011 = vmatprep.subr.mxu0 0.0
        %1012 = vmatpush1.msra.mxu0 0.0
        %1013 = vmatprep.subr.mxu0 0.0
        %1014 = vmatpush1.msra.mxu0 0.0
        %1015 = vmatprep.subr.mxu0 0.0
        %1016 = vmatpush1.msra.mxu0 0.0
        %1017 = vmatprep.subr.mxu0 0.0
        %1018 = vmatpush1.msra.mxu0 0.0
        %1019 = vmatprep.subr.mxu0 0.0
        %1020 = vmatpush1.msra.mxu0 0.0
        %1021 = vmatprep.subr.mxu0 0.0
        %1022 = vmatpush1.msra.mxu0 0.0
        %1023 = vmatprep.mubr.f32.mxu0 0.0
        %1024 = vmatmul.mubr.f32.gmra.mrb[0].mxu0 %v912
        %v1025 = vpop.f32.mrb[0].mxu0
        %v1026 = vadd.f32 0.0, %v1025
        %v1027 = vpop.f32.mrb[0].mxu0
        %1028 = vmatprep.mubr.f32.mxu0 0.0
        %1029 = vmatmul.mubr.f32.gmra.mrb[0].mxu0 %v915
        %v1030 = vpop.f32.mrb[0].mxu0
        %v1031 = vadd.f32 0.0, %v1030
        %v1032 = vpop.f32.mrb[0].mxu0
        %1033 = vmatprep.mubr.f32.mxu0 0.0
        %1034 = vmatmul.mubr.f32.gmra.mrb[0].mxu0 %v918
        %v1035 = vpop.f32.mrb[0].mxu0
        %v1036 = vadd.f32 0.0, %v1035
        %v1037 = vpop.f32.mrb[0].mxu0
        %1038 = vmatprep.mubr.f32.mxu0 0.0
        %1039 = vmatmul.mubr.f32.gmra.mrb[0].mxu0 %v921
        %v1040 = vpop.f32.mrb[0].mxu0
        %v1041 = vadd.f32 0.0, %v1040
        %v1042 = vpop.f32.mrb[0].mxu0
        %1043 = vmatprep.mubr.f32.mxu0 0.0
        %1044 = vmatmul.mubr.f32.gmra.mrb[0].mxu0 %v924
        %v1045 = vpop.f32.mrb[0].mxu0
        %v1046 = vadd.f32 0.0, %v1045
        %v1047 = vpop.f32.mrb[0].mxu0
        %1048 = vmatprep.mubr.f32.mxu0 0.0
        %1049 = vmatmul.mubr.f32.gmra.mrb[0].mxu0 %v927
        %v1050 = vpop.f32.mrb[0].mxu0
        %v1051 = vadd.f32 0.0, %v1050
        %v1052 = vpop.f32.mrb[0].mxu0
        %1053 = vmatprep.mubr.f32.mxu0 0.0
        %1054 = vmatmul.mubr.f32.gmra.mrb[0].mxu0 %v930
        %v1055 = vpop.f32.mrb[0].mxu0
        %v1056 = vadd.f32 0.0, %v1055
        %v1057 = vpop.f32.mrb[0].mxu0
        %1058 = vmatprep.mubr.f32.mxu0 0.0
        %1059 = vmatmul.mubr.f32.gmra.mrb[0].mxu0 %v933
        %v1060 = vpop.f32.mrb[0].mxu0
        %v1061 = vadd.f32 0.0, %v1060
        %v1062 = vpop.f32.mrb[0].mxu0
        %1063 = vmatprep.mubr.f32.mxu0 0.0
        %1064 = vmatmul.mubr.f32.gmra.mrb[0].mxu0 %v936
        %v1065 = vpop.f32.mrb[0].mxu0
        %v1066 = vadd.f32 0.0, %v1065
        %v1067 = vpop.f32.mrb[0].mxu0
        %1068 = vmatprep.mubr.f32.mxu0 0.0
        %1069 = vmatmul.mubr.f32.gmra.mrb[0].mxu0 %v939
        %v1070 = vpop.f32.mrb[0].mxu0
        %v1071 = vadd.f32 0.0, %v1070
        %v1072 = vpop.f32.mrb[0].mxu0
        %1073 = vmatprep.mubr.f32.mxu0 0.0
        %1074 = vmatmul.mubr.f32.gmra.mrb[0].mxu0 %v942
        %v1075 = vpop.f32.mrb[0].mxu0
        %v1076 = vadd.f32 0.0, %v1075
        %v1077 = vpop.f32.mrb[0].mxu0
        %1078 = vmatprep.mubr.f32.mxu0 0.0
        %1079 = vmatmul.mubr.f32.gmra.mrb[0].mxu0 %v945
        %v1080 = vpop.f32.mrb[0].mxu0
        %v1081 = vadd.f32 0.0, %v1080
        %v1082 = vpop.f32.mrb[0].mxu0
        %1083 = vmatprep.mubr.f32.mxu0 0.0
        %1084 = vmatmul.mubr.f32.gmra.mrb[0].mxu0 %v948
        %v1085 = vpop.f32.mrb[0].mxu0
        %v1086 = vadd.f32 0.0, %v1085
        %v1087 = vpop.f32.mrb[0].mxu0
        %1088 = vmatprep.mubr.f32.mxu0 0.0
        %1089 = vmatmul.mubr.f32.gmra.mrb[0].mxu0 %v951
        %v1090 = vpop.f32.mrb[0].mxu0
        %v1091 = vadd.f32 0.0, %v1090
        %v1092 = vpop.f32.mrb[0].mxu0
        %1093 = vmatprep.mubr.f32.mxu0 0.0
        %1094 = vmatmul.mubr.f32.gmra.mrb[0].mxu0 %v954
        %v1095 = vpop.f32.mrb[0].mxu0
        %v1096 = vadd.f32 0.0, %v1095
        %v1097 = vpop.f32.mrb[0].mxu0
        %1098 = vmatprep.mubr.f32.mxu0 0.0
        %1099 = vmatmul.mubr.f32.gmra.mrb[0].mxu0 %v957
        %v1100 = vpop.f32.mrb[0].mxu0
        %v1101 = vadd.f32 0.0, %v1100
        %v1102 = vpop.f32.mrb[0].mxu0
        %1103 = vdwg.mxu0
        %1104 = vst [vmem:[%s220] sm:$0xff] %v1026
        %1105 = vst [vmem:[%s220 + $0x8] sm:$0xff] %v1031
        %1106 = vst [vmem:[%s220 + $0x10] sm:$0xff] %v1036
        %1107 = vst [vmem:[%s220 + $0x18] sm:$0xff] %v1041
        %1108 = vst [vmem:[%s220 + $0x20] sm:$0xff] %v1046
        %1109 = vst [vmem:[%s220 + $0x28] sm:$0xff] %v1051
        %1110 = vst [vmem:[%s220 + $0x30] sm:$0xff] %v1056
        %1111 = vst [vmem:[%s220 + $0x38] sm:$0xff] %v1061
        %1112 = vst [vmem:[%s220 + $0x40] sm:$0xff] %v1066
        %1113 = vst [vmem:[%s220 + $0x48] sm:$0xff] %v1071
        %1114 = vst [vmem:[%s220 + $0x50] sm:$0xff] %v1076
        %1115 = vst [vmem:[%s220 + $0x58] sm:$0xff] %v1081
        %1116 = vst [vmem:[%s220 + $0x60] sm:$0xff] %v1086
        %1117 = vst [vmem:[%s220 + $0x68] sm:$0xff] %v1091
        %1118 = vst [vmem:[%s220 + $0x70] sm:$0xff] %v1096
        %1119 = vst [vmem:[%s220 + $0x78] sm:$0xff] %v1101
        %1120 = vmatprep.subr.mxu0 0.0
        %1121 = vmatpush1.msra.mxu0 %v569
        %1122 = vmatprep.subr.mxu0 0.0
        %1123 = vmatpush1.msra.mxu0 %v574
        %1124 = vmatprep.subr.mxu0 0.0
        %1125 = vmatpush1.msra.mxu0 0.0
        %1126 = vmatprep.subr.mxu0 0.0
        %1127 = vmatpush1.msra.mxu0 0.0
        %1128 = vmatprep.subr.mxu0 0.0
        %1129 = vmatpush1.msra.mxu0 0.0
        %1130 = vmatprep.subr.mxu0 0.0
        %1131 = vmatpush1.msra.mxu0 0.0
        %1132 = vmatprep.subr.mxu0 0.0
        %1133 = vmatpush1.msra.mxu0 0.0
        %1134 = vmatprep.subr.mxu0 0.0
        %1135 = vmatpush1.msra.mxu0 0.0
        %1136 = vmatprep.subr.mxu0 0.0
        %1137 = vmatpush1.msra.mxu0 0.0
        %1138 = vmatprep.subr.mxu0 0.0
        %1139 = vmatpush1.msra.mxu0 0.0
        %1140 = vmatprep.subr.mxu0 0.0
        %1141 = vmatpush1.msra.mxu0 0.0
        %1142 = vmatprep.subr.mxu0 0.0
        %1143 = vmatpush1.msra.mxu0 0.0
        %1144 = vmatprep.subr.mxu0 0.0
        %1145 = vmatpush1.msra.mxu0 0.0
        %1146 = vmatprep.subr.mxu0 0.0
        %1147 = vmatpush1.msra.mxu0 0.0
        %1148 = vmatprep.subr.mxu0 0.0
        %1149 = vmatpush1.msra.mxu0 0.0
        %1150 = vmatprep.subr.mxu0 0.0
        %1151 = vmatpush1.msra.mxu0 0.0
        %1152 = vmatprep.subr.mxu0 0.0
        %1153 = vmatpush1.msra.mxu0 0.0
        %1154 = vmatprep.subr.mxu0 0.0
        %1155 = vmatpush1.msra.mxu0 0.0
        %1156 = vmatprep.subr.mxu0 0.0
        %1157 = vmatpush1.msra.mxu0 0.0
        %1158 = vmatprep.subr.mxu0 0.0
        %1159 = vmatpush1.msra.mxu0 0.0
        %1160 = vmatprep.subr.mxu0 0.0
        %1161 = vmatpush1.msra.mxu0 0.0
        %1162 = vmatprep.subr.mxu0 0.0
        %1163 = vmatpush1.msra.mxu0 0.0
        %1164 = vmatprep.subr.mxu0 0.0
        %1165 = vmatpush1.msra.mxu0 0.0
        %1166 = vmatprep.subr.mxu0 0.0
        %1167 = vmatpush1.msra.mxu0 0.0
        %1168 = vmatprep.subr.mxu0 0.0
        %1169 = vmatpush1.msra.mxu0 0.0
        %1170 = vmatprep.subr.mxu0 0.0
        %1171 = vmatpush1.msra.mxu0 0.0
        %1172 = vmatprep.subr.mxu0 0.0
        %1173 = vmatpush1.msra.mxu0 0.0
        %1174 = vmatprep.subr.mxu0 0.0
        %1175 = vmatpush1.msra.mxu0 0.0
        %1176 = vmatprep.subr.mxu0 0.0
        %1177 = vmatpush1.msra.mxu0 0.0
        %1178 = vmatprep.subr.mxu0 0.0
        %1179 = vmatpush1.msra.mxu0 0.0
        %1180 = vmatprep.subr.mxu0 0.0
        %1181 = vmatpush1.msra.mxu0 0.0
        %1182 = vmatprep.subr.mxu0 0.0
        %1183 = vmatpush1.msra.mxu0 0.0
        %1184 = vmatprep.mubr.f32.mxu0 0.0
        %1185 = vmatmul.mubr.f32.gmra.mrb[0].mxu0 %v912
        %v1186 = vpop.f32.mrb[0].mxu0
        %v1187 = vadd.f32 0.0, %v1186
        %v1188 = vpop.f32.mrb[0].mxu0
        %1189 = vmatprep.mubr.f32.mxu0 0.0
        %1190 = vmatmul.mubr.f32.gmra.mrb[0].mxu0 %v915
        %v1191 = vpop.f32.mrb[0].mxu0
        %v1192 = vadd.f32 0.0, %v1191
        %v1193 = vpop.f32.mrb[0].mxu0
        %1194 = vmatprep.mubr.f32.mxu0 0.0
        %1195 = vmatmul.mubr.f32.gmra.mrb[0].mxu0 %v918
        %v1196 = vpop.f32.mrb[0].mxu0
        %v1197 = vadd.f32 0.0, %v1196
        %v1198 = vpop.f32.mrb[0].mxu0
        %1199 = vmatprep.mubr.f32.mxu0 0.0
        %1200 = vmatmul.mubr.f32.gmra.mrb[0].mxu0 %v921
        %v1201 = vpop.f32.mrb[0].mxu0
        %v1202 = vadd.f32 0.0, %v1201
        %v1203 = vpop.f32.mrb[0].mxu0
        %1204 = vmatprep.mubr.f32.mxu0 0.0
        %1205 = vmatmul.mubr.f32.gmra.mrb[0].mxu0 %v924
        %v1206 = vpop.f32.mrb[0].mxu0
        %v1207 = vadd.f32 0.0, %v1206
        %v1208 = vpop.f32.mrb[0].mxu0
        %1209 = vmatprep.mubr.f32.mxu0 0.0
        %1210 = vmatmul.mubr.f32.gmra.mrb[0].mxu0 %v927
        %v1211 = vpop.f32.mrb[0].mxu0
        %v1212 = vadd.f32 0.0, %v1211
        %v1213 = vpop.f32.mrb[0].mxu0
        %1214 = vmatprep.mubr.f32.mxu0 0.0
        %1215 = vmatmul.mubr.f32.gmra.mrb[0].mxu0 %v930
        %v1216 = vpop.f32.mrb[0].mxu0
        %v1217 = vadd.f32 0.0, %v1216
        %v1218 = vpop.f32.mrb[0].mxu0
        %1219 = vmatprep.mubr.f32.mxu0 0.0
        %1220 = vmatmul.mubr.f32.gmra.mrb[0].mxu0 %v933
        %v1221 = vpop.f32.mrb[0].mxu0
        %v1222 = vadd.f32 0.0, %v1221
        %v1223 = vpop.f32.mrb[0].mxu0
        %1224 = vmatprep.mubr.f32.mxu0 0.0
        %1225 = vmatmul.mubr.f32.gmra.mrb[0].mxu0 %v936
        %v1226 = vpop.f32.mrb[0].mxu0
        %v1227 = vadd.f32 0.0, %v1226
        %v1228 = vpop.f32.mrb[0].mxu0
        %1229 = vmatprep.mubr.f32.mxu0 0.0
        %1230 = vmatmul.mubr.f32.gmra.mrb[0].mxu0 %v939
        %v1231 = vpop.f32.mrb[0].mxu0
        %v1232 = vadd.f32 0.0, %v1231
        %v1233 = vpop.f32.mrb[0].mxu0
        %1234 = vmatprep.mubr.f32.mxu0 0.0
        %1235 = vmatmul.mubr.f32.gmra.mrb[0].mxu0 %v942
        %v1236 = vpop.f32.mrb[0].mxu0
        %v1237 = vadd.f32 0.0, %v1236
        %v1238 = vpop.f32.mrb[0].mxu0
        %1239 = vmatprep.mubr.f32.mxu0 0.0
        %1240 = vmatmul.mubr.f32.gmra.mrb[0].mxu0 %v945
        %v1241 = vpop.f32.mrb[0].mxu0
        %v1242 = vadd.f32 0.0, %v1241
        %v1243 = vpop.f32.mrb[0].mxu0
        %1244 = vmatprep.mubr.f32.mxu0 0.0
        %1245 = vmatmul.mubr.f32.gmra.mrb[0].mxu0 %v948
        %v1246 = vpop.f32.mrb[0].mxu0
        %v1247 = vadd.f32 0.0, %v1246
        %v1248 = vpop.f32.mrb[0].mxu0
        %1249 = vmatprep.mubr.f32.mxu0 0.0
        %1250 = vmatmul.mubr.f32.gmra.mrb[0].mxu0 %v951
        %v1251 = vpop.f32.mrb[0].mxu0
        %v1252 = vadd.f32 0.0, %v1251
        %v1253 = vpop.f32.mrb[0].mxu0
        %1254 = vmatprep.mubr.f32.mxu0 0.0
        %1255 = vmatmul.mubr.f32.gmra.mrb[0].mxu0 %v954
        %v1256 = vpop.f32.mrb[0].mxu0
        %v1257 = vadd.f32 0.0, %v1256
        %v1258 = vpop.f32.mrb[0].mxu0
        %1259 = vmatprep.mubr.f32.mxu0 0.0
        %1260 = vmatmul.mubr.f32.gmra.mrb[0].mxu0 %v957
        %v1261 = vpop.f32.mrb[0].mxu0
        %v1262 = vadd.f32 0.0, %v1261
        %v1263 = vpop.f32.mrb[0].mxu0
        %1264 = vdwg.mxu0
        %s1265 = scalar_lea.vmem %s220, 128 [#allocation7]
        %1266 = vst [vmem:[%s1265] sm:$0xff] %v1187
        %1267 = vst [vmem:[%s1265 + $0x8] sm:$0xff] %v1192
        %1268 = vst [vmem:[%s1265 + $0x10] sm:$0xff] %v1197
        %1269 = vst [vmem:[%s1265 + $0x18] sm:$0xff] %v1202
        %1270 = vst [vmem:[%s1265 + $0x20] sm:$0xff] %v1207
        %1271 = vst [vmem:[%s1265 + $0x28] sm:$0xff] %v1212
        %1272 = vst [vmem:[%s1265 + $0x30] sm:$0xff] %v1217
        %1273 = vst [vmem:[%s1265 + $0x38] sm:$0xff] %v1222
        %1274 = vst [vmem:[%s1265 + $0x40] sm:$0xff] %v1227
        %1275 = vst [vmem:[%s1265 + $0x48] sm:$0xff] %v1232
        %1276 = vst [vmem:[%s1265 + $0x50] sm:$0xff] %v1237
        %1277 = vst [vmem:[%s1265 + $0x58] sm:$0xff] %v1242
        %1278 = vst [vmem:[%s1265 + $0x60] sm:$0xff] %v1247
        %1279 = vst [vmem:[%s1265 + $0x68] sm:$0xff] %v1252
        %1280 = vst [vmem:[%s1265 + $0x70] sm:$0xff] %v1257
        %1281 = vst [vmem:[%s1265 + $0x78] sm:$0xff] %v1262
        %1282 = vmatprep.subr.mxu0 0.0
        %1283 = vmatpush1.msra.mxu0 %v579
        %1284 = vmatprep.subr.mxu0 0.0
        %1285 = vmatpush1.msra.mxu0 %v584
        %1286 = vmatprep.subr.mxu0 0.0
        %1287 = vmatpush1.msra.mxu0 0.0
        %1288 = vmatprep.subr.mxu0 0.0
        %1289 = vmatpush1.msra.mxu0 0.0
        %1290 = vmatprep.subr.mxu0 0.0
        %1291 = vmatpush1.msra.mxu0 0.0
        %1292 = vmatprep.subr.mxu0 0.0
        %1293 = vmatpush1.msra.mxu0 0.0
        %1294 = vmatprep.subr.mxu0 0.0
        %1295 = vmatpush1.msra.mxu0 0.0
        %1296 = vmatprep.subr.mxu0 0.0
        %1297 = vmatpush1.msra.mxu0 0.0
        %1298 = vmatprep.subr.mxu0 0.0
        %1299 = vmatpush1.msra.mxu0 0.0
        %1300 = vmatprep.subr.mxu0 0.0
        %1301 = vmatpush1.msra.mxu0 0.0
        %1302 = vmatprep.subr.mxu0 0.0
        %1303 = vmatpush1.msra.mxu0 0.0
        %1304 = vmatprep.subr.mxu0 0.0
        %1305 = vmatpush1.msra.mxu0 0.0
        %1306 = vmatprep.subr.mxu0 0.0
        %1307 = vmatpush1.msra.mxu0 0.0
        %1308 = vmatprep.subr.mxu0 0.0
        %1309 = vmatpush1.msra.mxu0 0.0
        %1310 = vmatprep.subr.mxu0 0.0
        %1311 = vmatpush1.msra.mxu0 0.0
        %1312 = vmatprep.subr.mxu0 0.0
        %1313 = vmatpush1.msra.mxu0 0.0
        %1314 = vmatprep.subr.mxu0 0.0
        %1315 = vmatpush1.msra.mxu0 0.0
        %1316 = vmatprep.subr.mxu0 0.0
        %1317 = vmatpush1.msra.mxu0 0.0
        %1318 = vmatprep.subr.mxu0 0.0
        %1319 = vmatpush1.msra.mxu0 0.0
        %1320 = vmatprep.subr.mxu0 0.0
        %1321 = vmatpush1.msra.mxu0 0.0
        %1322 = vmatprep.subr.mxu0 0.0
        %1323 = vmatpush1.msra.mxu0 0.0
        %1324 = vmatprep.subr.mxu0 0.0
        %1325 = vmatpush1.msra.mxu0 0.0
        %1326 = vmatprep.subr.mxu0 0.0
        %1327 = vmatpush1.msra.mxu0 0.0
        %1328 = vmatprep.subr.mxu0 0.0
        %1329 = vmatpush1.msra.mxu0 0.0
        %1330 = vmatprep.subr.mxu0 0.0
        %1331 = vmatpush1.msra.mxu0 0.0
        %1332 = vmatprep.subr.mxu0 0.0
        %1333 = vmatpush1.msra.mxu0 0.0
        %1334 = vmatprep.subr.mxu0 0.0
        %1335 = vmatpush1.msra.mxu0 0.0
        %1336 = vmatprep.subr.mxu0 0.0
        %1337 = vmatpush1.msra.mxu0 0.0
        %1338 = vmatprep.subr.mxu0 0.0
        %1339 = vmatpush1.msra.mxu0 0.0
        %1340 = vmatprep.subr.mxu0 0.0
        %1341 = vmatpush1.msra.mxu0 0.0
        %1342 = vmatprep.subr.mxu0 0.0
        %1343 = vmatpush1.msra.mxu0 0.0
        %1344 = vmatprep.subr.mxu0 0.0
        %1345 = vmatpush1.msra.mxu0 0.0
        %1346 = vmatprep.mubr.f32.mxu0 0.0
        %1347 = vmatmul.mubr.f32.gmra.mrb[0].mxu0 %v912
        %v1348 = vpop.f32.mrb[0].mxu0
        %v1349 = vadd.f32 0.0, %v1348
        %v1350 = vpop.f32.mrb[0].mxu0
        %1351 = vmatprep.mubr.f32.mxu0 0.0
        %1352 = vmatmul.mubr.f32.gmra.mrb[0].mxu0 %v915
        %v1353 = vpop.f32.mrb[0].mxu0
        %v1354 = vadd.f32 0.0, %v1353
        %v1355 = vpop.f32.mrb[0].mxu0
        %1356 = vmatprep.mubr.f32.mxu0 0.0
        %1357 = vmatmul.mubr.f32.gmra.mrb[0].mxu0 %v918
        %v1358 = vpop.f32.mrb[0].mxu0
        %v1359 = vadd.f32 0.0, %v1358
        %v1360 = vpop.f32.mrb[0].mxu0
        %1361 = vmatprep.mubr.f32.mxu0 0.0
        %1362 = vmatmul.mubr.f32.gmra.mrb[0].mxu0 %v921
        %v1363 = vpop.f32.mrb[0].mxu0
        %v1364 = vadd.f32 0.0, %v1363
        %v1365 = vpop.f32.mrb[0].mxu0
        %1366 = vmatprep.mubr.f32.mxu0 0.0
        %1367 = vmatmul.mubr.f32.gmra.mrb[0].mxu0 %v924
        %v1368 = vpop.f32.mrb[0].mxu0
        %v1369 = vadd.f32 0.0, %v1368
        %v1370 = vpop.f32.mrb[0].mxu0
        %1371 = vmatprep.mubr.f32.mxu0 0.0
        %1372 = vmatmul.mubr.f32.gmra.mrb[0].mxu0 %v927
        %v1373 = vpop.f32.mrb[0].mxu0
        %v1374 = vadd.f32 0.0, %v1373
        %v1375 = vpop.f32.mrb[0].mxu0
        %1376 = vmatprep.mubr.f32.mxu0 0.0
        %1377 = vmatmul.mubr.f32.gmra.mrb[0].mxu0 %v930
        %v1378 = vpop.f32.mrb[0].mxu0
        %v1379 = vadd.f32 0.0, %v1378
        %v1380 = vpop.f32.mrb[0].mxu0
        %1381 = vmatprep.mubr.f32.mxu0 0.0
        %1382 = vmatmul.mubr.f32.gmra.mrb[0].mxu0 %v933
        %v1383 = vpop.f32.mrb[0].mxu0
        %v1384 = vadd.f32 0.0, %v1383
        %v1385 = vpop.f32.mrb[0].mxu0
        %1386 = vmatprep.mubr.f32.mxu0 0.0
        %1387 = vmatmul.mubr.f32.gmra.mrb[0].mxu0 %v936
        %v1388 = vpop.f32.mrb[0].mxu0
        %v1389 = vadd.f32 0.0, %v1388
        %v1390 = vpop.f32.mrb[0].mxu0
        %1391 = vmatprep.mubr.f32.mxu0 0.0
        %1392 = vmatmul.mubr.f32.gmra.mrb[0].mxu0 %v939
        %v1393 = vpop.f32.mrb[0].mxu0
        %v1394 = vadd.f32 0.0, %v1393
        %v1395 = vpop.f32.mrb[0].mxu0
        %1396 = vmatprep.mubr.f32.mxu0 0.0
        %1397 = vmatmul.mubr.f32.gmra.mrb[0].mxu0 %v942
        %v1398 = vpop.f32.mrb[0].mxu0
        %v1399 = vadd.f32 0.0, %v1398
        %v1400 = vpop.f32.mrb[0].mxu0
        %1401 = vmatprep.mubr.f32.mxu0 0.0
        %1402 = vmatmul.mubr.f32.gmra.mrb[0].mxu0 %v945
        %v1403 = vpop.f32.mrb[0].mxu0
        %v1404 = vadd.f32 0.0, %v1403
        %v1405 = vpop.f32.mrb[0].mxu0
        %1406 = vmatprep.mubr.f32.mxu0 0.0
        %1407 = vmatmul.mubr.f32.gmra.mrb[0].mxu0 %v948
        %v1408 = vpop.f32.mrb[0].mxu0
        %v1409 = vadd.f32 0.0, %v1408
        %v1410 = vpop.f32.mrb[0].mxu0
        %1411 = vmatprep.mubr.f32.mxu0 0.0
        %1412 = vmatmul.mubr.f32.gmra.mrb[0].mxu0 %v951
        %v1413 = vpop.f32.mrb[0].mxu0
        %v1414 = vadd.f32 0.0, %v1413
        %v1415 = vpop.f32.mrb[0].mxu0
        %1416 = vmatprep.mubr.f32.mxu0 0.0
        %1417 = vmatmul.mubr.f32.gmra.mrb[0].mxu0 %v954
        %v1418 = vpop.f32.mrb[0].mxu0
        %v1419 = vadd.f32 0.0, %v1418
        %v1420 = vpop.f32.mrb[0].mxu0
        %1421 = vmatprep.mubr.f32.mxu0 0.0
        %1422 = vmatmul.mubr.f32.gmra.mrb[0].mxu0 %v957
        %v1423 = vpop.f32.mrb[0].mxu0
        %v1424 = vadd.f32 0.0, %v1423
        %v1425 = vpop.f32.mrb[0].mxu0
        %1426 = vdwg.mxu0
        %s1427 = scalar_lea.vmem %s220, 256 [#allocation7]
        %1428 = vst [vmem:[%s1427] sm:$0xff] %v1349
        %1429 = vst [vmem:[%s1427 + $0x8] sm:$0xff] %v1354
        %1430 = vst [vmem:[%s1427 + $0x10] sm:$0xff] %v1359
        %1431 = vst [vmem:[%s1427 + $0x18] sm:$0xff] %v1364
        %1432 = vst [vmem:[%s1427 + $0x20] sm:$0xff] %v1369
        %1433 = vst [vmem:[%s1427 + $0x28] sm:$0xff] %v1374
        %1434 = vst [vmem:[%s1427 + $0x30] sm:$0xff] %v1379
        %1435 = vst [vmem:[%s1427 + $0x38] sm:$0xff] %v1384
        %1436 = vst [vmem:[%s1427 + $0x40] sm:$0xff] %v1389
        %1437 = vst [vmem:[%s1427 + $0x48] sm:$0xff] %v1394
        %1438 = vst [vmem:[%s1427 + $0x50] sm:$0xff] %v1399
        %1439 = vst [vmem:[%s1427 + $0x58] sm:$0xff] %v1404
        %1440 = vst [vmem:[%s1427 + $0x60] sm:$0xff] %v1409
        %1441 = vst [vmem:[%s1427 + $0x68] sm:$0xff] %v1414
        %1442 = vst [vmem:[%s1427 + $0x70] sm:$0xff] %v1419
        %1443 = vst [vmem:[%s1427 + $0x78] sm:$0xff] %v1424
        %1444 = vmatprep.subr.mxu0 0.0
        %1445 = vmatpush1.msra.mxu0 %v589
        %1446 = vmatprep.subr.mxu0 0.0
        %1447 = vmatpush1.msra.mxu0 %v594
        %1448 = vmatprep.subr.mxu0 0.0
        %1449 = vmatpush1.msra.mxu0 0.0
        %1450 = vmatprep.subr.mxu0 0.0
        %1451 = vmatpush1.msra.mxu0 0.0
        %1452 = vmatprep.subr.mxu0 0.0
        %1453 = vmatpush1.msra.mxu0 0.0
        %1454 = vmatprep.subr.mxu0 0.0
        %1455 = vmatpush1.msra.mxu0 0.0
        %1456 = vmatprep.subr.mxu0 0.0
        %1457 = vmatpush1.msra.mxu0 0.0
        %1458 = vmatprep.subr.mxu0 0.0
        %1459 = vmatpush1.msra.mxu0 0.0
        %1460 = vmatprep.subr.mxu0 0.0
        %1461 = vmatpush1.msra.mxu0 0.0
        %1462 = vmatprep.subr.mxu0 0.0
        %1463 = vmatpush1.msra.mxu0 0.0
        %1464 = vmatprep.subr.mxu0 0.0
        %1465 = vmatpush1.msra.mxu0 0.0
        %1466 = vmatprep.subr.mxu0 0.0
        %1467 = vmatpush1.msra.mxu0 0.0
        %1468 = vmatprep.subr.mxu0 0.0
        %1469 = vmatpush1.msra.mxu0 0.0
        %1470 = vmatprep.subr.mxu0 0.0
        %1471 = vmatpush1.msra.mxu0 0.0
        %1472 = vmatprep.subr.mxu0 0.0
        %1473 = vmatpush1.msra.mxu0 0.0
        %1474 = vmatprep.subr.mxu0 0.0
        %1475 = vmatpush1.msra.mxu0 0.0
        %1476 = vmatprep.subr.mxu0 0.0
        %1477 = vmatpush1.msra.mxu0 0.0
        %1478 = vmatprep.subr.mxu0 0.0
        %1479 = vmatpush1.msra.mxu0 0.0
        %1480 = vmatprep.subr.mxu0 0.0
        %1481 = vmatpush1.msra.mxu0 0.0
        %1482 = vmatprep.subr.mxu0 0.0
        %1483 = vmatpush1.msra.mxu0 0.0
        %1484 = vmatprep.subr.mxu0 0.0
        %1485 = vmatpush1.msra.mxu0 0.0
        %1486 = vmatprep.subr.mxu0 0.0
        %1487 = vmatpush1.msra.mxu0 0.0
        %1488 = vmatprep.subr.mxu0 0.0
        %1489 = vmatpush1.msra.mxu0 0.0
        %1490 = vmatprep.subr.mxu0 0.0
        %1491 = vmatpush1.msra.mxu0 0.0
        %1492 = vmatprep.subr.mxu0 0.0
        %1493 = vmatpush1.msra.mxu0 0.0
        %1494 = vmatprep.subr.mxu0 0.0
        %1495 = vmatpush1.msra.mxu0 0.0
        %1496 = vmatprep.subr.mxu0 0.0
        %1497 = vmatpush1.msra.mxu0 0.0
        %1498 = vmatprep.subr.mxu0 0.0
        %1499 = vmatpush1.msra.mxu0 0.0
        %1500 = vmatprep.subr.mxu0 0.0
        %1501 = vmatpush1.msra.mxu0 0.0
        %1502 = vmatprep.subr.mxu0 0.0
        %1503 = vmatpush1.msra.mxu0 0.0
        %1504 = vmatprep.subr.mxu0 0.0
        %1505 = vmatpush1.msra.mxu0 0.0
        %1506 = vmatprep.subr.mxu0 0.0
        %1507 = vmatpush1.msra.mxu0 0.0
        %1508 = vmatprep.mubr.f32.mxu0 0.0
        %1509 = vmatmul.mubr.f32.gmra.mrb[0].mxu0 %v912
        %v1510 = vpop.f32.mrb[0].mxu0
        %v1511 = vadd.f32 0.0, %v1510
        %v1512 = vpop.f32.mrb[0].mxu0
        %1513 = vmatprep.mubr.f32.mxu0 0.0
        %1514 = vmatmul.mubr.f32.gmra.mrb[0].mxu0 %v915
        %v1515 = vpop.f32.mrb[0].mxu0
        %v1516 = vadd.f32 0.0, %v1515
        %v1517 = vpop.f32.mrb[0].mxu0
        %1518 = vmatprep.mubr.f32.mxu0 0.0
        %1519 = vmatmul.mubr.f32.gmra.mrb[0].mxu0 %v918
        %v1520 = vpop.f32.mrb[0].mxu0
        %v1521 = vadd.f32 0.0, %v1520
        %v1522 = vpop.f32.mrb[0].mxu0
        %1523 = vmatprep.mubr.f32.mxu0 0.0
        %1524 = vmatmul.mubr.f32.gmra.mrb[0].mxu0 %v921
        %v1525 = vpop.f32.mrb[0].mxu0
        %v1526 = vadd.f32 0.0, %v1525
        %v1527 = vpop.f32.mrb[0].mxu0
        %1528 = vmatprep.mubr.f32.mxu0 0.0
        %1529 = vmatmul.mubr.f32.gmra.mrb[0].mxu0 %v924
        %v1530 = vpop.f32.mrb[0].mxu0
        %v1531 = vadd.f32 0.0, %v1530
        %v1532 = vpop.f32.mrb[0].mxu0
        %1533 = vmatprep.mubr.f32.mxu0 0.0
        %1534 = vmatmul.mubr.f32.gmra.mrb[0].mxu0 %v927
        %v1535 = vpop.f32.mrb[0].mxu0
        %v1536 = vadd.f32 0.0, %v1535
        %v1537 = vpop.f32.mrb[0].mxu0
        %1538 = vmatprep.mubr.f32.mxu0 0.0
        %1539 = vmatmul.mubr.f32.gmra.mrb[0].mxu0 %v930
        %v1540 = vpop.f32.mrb[0].mxu0
        %v1541 = vadd.f32 0.0, %v1540
        %v1542 = vpop.f32.mrb[0].mxu0
        %1543 = vmatprep.mubr.f32.mxu0 0.0
        %1544 = vmatmul.mubr.f32.gmra.mrb[0].mxu0 %v933
        %v1545 = vpop.f32.mrb[0].mxu0
        %v1546 = vadd.f32 0.0, %v1545
        %v1547 = vpop.f32.mrb[0].mxu0
        %1548 = vmatprep.mubr.f32.mxu0 0.0
        %1549 = vmatmul.mubr.f32.gmra.mrb[0].mxu0 %v936
        %v1550 = vpop.f32.mrb[0].mxu0
        %v1551 = vadd.f32 0.0, %v1550
        %v1552 = vpop.f32.mrb[0].mxu0
        %1553 = vmatprep.mubr.f32.mxu0 0.0
        %1554 = vmatmul.mubr.f32.gmra.mrb[0].mxu0 %v939
        %v1555 = vpop.f32.mrb[0].mxu0
        %v1556 = vadd.f32 0.0, %v1555
        %v1557 = vpop.f32.mrb[0].mxu0
        %1558 = vmatprep.mubr.f32.mxu0 0.0
        %1559 = vmatmul.mubr.f32.gmra.mrb[0].mxu0 %v942
        %v1560 = vpop.f32.mrb[0].mxu0
        %v1561 = vadd.f32 0.0, %v1560
        %v1562 = vpop.f32.mrb[0].mxu0
        %1563 = vmatprep.mubr.f32.mxu0 0.0
        %1564 = vmatmul.mubr.f32.gmra.mrb[0].mxu0 %v945
        %v1565 = vpop.f32.mrb[0].mxu0
        %v1566 = vadd.f32 0.0, %v1565
        %v1567 = vpop.f32.mrb[0].mxu0
        %1568 = vmatprep.mubr.f32.mxu0 0.0
        %1569 = vmatmul.mubr.f32.gmra.mrb[0].mxu0 %v948
        %v1570 = vpop.f32.mrb[0].mxu0
        %v1571 = vadd.f32 0.0, %v1570
        %v1572 = vpop.f32.mrb[0].mxu0
        %1573 = vmatprep.mubr.f32.mxu0 0.0
        %1574 = vmatmul.mubr.f32.gmra.mrb[0].mxu0 %v951
        %v1575 = vpop.f32.mrb[0].mxu0
        %v1576 = vadd.f32 0.0, %v1575
        %v1577 = vpop.f32.mrb[0].mxu0
        %1578 = vmatprep.mubr.f32.mxu0 0.0
        %1579 = vmatmul.mubr.f32.gmra.mrb[0].mxu0 %v954
        %v1580 = vpop.f32.mrb[0].mxu0
        %v1581 = vadd.f32 0.0, %v1580
        %v1582 = vpop.f32.mrb[0].mxu0
        %1583 = vmatprep.mubr.f32.mxu0 0.0
        %1584 = vmatmul.mubr.f32.gmra.mrb[0].mxu0 %v957
        %v1585 = vpop.f32.mrb[0].mxu0
        %v1586 = vadd.f32 0.0, %v1585
        %v1587 = vpop.f32.mrb[0].mxu0
        %1588 = vdwg.mxu0
        %s1589 = scalar_lea.vmem %s220, 384 [#allocation7]
        %1590 = vst [vmem:[%s1589] sm:$0xff] %v1511
        %1591 = vst [vmem:[%s1589 + $0x8] sm:$0xff] %v1516
        %1592 = vst [vmem:[%s1589 + $0x10] sm:$0xff] %v1521
        %1593 = vst [vmem:[%s1589 + $0x18] sm:$0xff] %v1526
        %1594 = vst [vmem:[%s1589 + $0x20] sm:$0xff] %v1531
        %1595 = vst [vmem:[%s1589 + $0x28] sm:$0xff] %v1536
        %1596 = vst [vmem:[%s1589 + $0x30] sm:$0xff] %v1541
        %1597 = vst [vmem:[%s1589 + $0x38] sm:$0xff] %v1546
        %1598 = vst [vmem:[%s1589 + $0x40] sm:$0xff] %v1551
        %1599 = vst [vmem:[%s1589 + $0x48] sm:$0xff] %v1556
        %1600 = vst [vmem:[%s1589 + $0x50] sm:$0xff] %v1561
        %1601 = vst [vmem:[%s1589 + $0x58] sm:$0xff] %v1566
        %1602 = vst [vmem:[%s1589 + $0x60] sm:$0xff] %v1571
        %1603 = vst [vmem:[%s1589 + $0x68] sm:$0xff] %v1576
        %1604 = vst [vmem:[%s1589 + $0x70] sm:$0xff] %v1581
        %1605 = vst [vmem:[%s1589 + $0x78] sm:$0xff] %v1586
        %1606 = vmatprep.subr.mxu0 0.0
        %1607 = vmatpush1.msra.mxu0 %v599
        %1608 = vmatprep.subr.mxu0 0.0
        %1609 = vmatpush1.msra.mxu0 %v604
        %1610 = vmatprep.subr.mxu0 0.0
        %1611 = vmatpush1.msra.mxu0 0.0
        %1612 = vmatprep.subr.mxu0 0.0
        %1613 = vmatpush1.msra.mxu0 0.0
        %1614 = vmatprep.subr.mxu0 0.0
        %1615 = vmatpush1.msra.mxu0 0.0
        %1616 = vmatprep.subr.mxu0 0.0
        %1617 = vmatpush1.msra.mxu0 0.0
        %1618 = vmatprep.subr.mxu0 0.0
        %1619 = vmatpush1.msra.mxu0 0.0
        %1620 = vmatprep.subr.mxu0 0.0
        %1621 = vmatpush1.msra.mxu0 0.0
        %1622 = vmatprep.subr.mxu0 0.0
        %1623 = vmatpush1.msra.mxu0 0.0
        %1624 = vmatprep.subr.mxu0 0.0
        %1625 = vmatpush1.msra.mxu0 0.0
        %1626 = vmatprep.subr.mxu0 0.0
        %1627 = vmatpush1.msra.mxu0 0.0
        %1628 = vmatprep.subr.mxu0 0.0
        %1629 = vmatpush1.msra.mxu0 0.0
        %1630 = vmatprep.subr.mxu0 0.0
        %1631 = vmatpush1.msra.mxu0 0.0
        %1632 = vmatprep.subr.mxu0 0.0
        %1633 = vmatpush1.msra.mxu0 0.0
        %1634 = vmatprep.subr.mxu0 0.0
        %1635 = vmatpush1.msra.mxu0 0.0
        %1636 = vmatprep.subr.mxu0 0.0
        %1637 = vmatpush1.msra.mxu0 0.0
        %1638 = vmatprep.subr.mxu0 0.0
        %1639 = vmatpush1.msra.mxu0 0.0
        %1640 = vmatprep.subr.mxu0 0.0
        %1641 = vmatpush1.msra.mxu0 0.0
        %1642 = vmatprep.subr.mxu0 0.0
        %1643 = vmatpush1.msra.mxu0 0.0
        %1644 = vmatprep.subr.mxu0 0.0
        %1645 = vmatpush1.msra.mxu0 0.0
        %1646 = vmatprep.subr.mxu0 0.0
        %1647 = vmatpush1.msra.mxu0 0.0
        %1648 = vmatprep.subr.mxu0 0.0
        %1649 = vmatpush1.msra.mxu0 0.0
        %1650 = vmatprep.subr.mxu0 0.0
        %1651 = vmatpush1.msra.mxu0 0.0
        %1652 = vmatprep.subr.mxu0 0.0
        %1653 = vmatpush1.msra.mxu0 0.0
        %1654 = vmatprep.subr.mxu0 0.0
        %1655 = vmatpush1.msra.mxu0 0.0
        %1656 = vmatprep.subr.mxu0 0.0
        %1657 = vmatpush1.msra.mxu0 0.0
        %1658 = vmatprep.subr.mxu0 0.0
        %1659 = vmatpush1.msra.mxu0 0.0
        %1660 = vmatprep.subr.mxu0 0.0
        %1661 = vmatpush1.msra.mxu0 0.0
        %1662 = vmatprep.subr.mxu0 0.0
        %1663 = vmatpush1.msra.mxu0 0.0
        %1664 = vmatprep.subr.mxu0 0.0
        %1665 = vmatpush1.msra.mxu0 0.0
        %1666 = vmatprep.subr.mxu0 0.0
        %1667 = vmatpush1.msra.mxu0 0.0
        %1668 = vmatprep.subr.mxu0 0.0
        %1669 = vmatpush1.msra.mxu0 0.0
        %1670 = vmatprep.mubr.f32.mxu0 0.0
        %1671 = vmatmul.mubr.f32.gmra.mrb[0].mxu0 %v912
        %v1672 = vpop.f32.mrb[0].mxu0
        %v1673 = vadd.f32 0.0, %v1672
        %v1674 = vpop.f32.mrb[0].mxu0
        %1675 = vmatprep.mubr.f32.mxu0 0.0
        %1676 = vmatmul.mubr.f32.gmra.mrb[0].mxu0 %v915
        %v1677 = vpop.f32.mrb[0].mxu0
        %v1678 = vadd.f32 0.0, %v1677
        %v1679 = vpop.f32.mrb[0].mxu0
        %1680 = vmatprep.mubr.f32.mxu0 0.0
        %1681 = vmatmul.mubr.f32.gmra.mrb[0].mxu0 %v918
        %v1682 = vpop.f32.mrb[0].mxu0
        %v1683 = vadd.f32 0.0, %v1682
        %v1684 = vpop.f32.mrb[0].mxu0
        %1685 = vmatprep.mubr.f32.mxu0 0.0
        %1686 = vmatmul.mubr.f32.gmra.mrb[0].mxu0 %v921
        %v1687 = vpop.f32.mrb[0].mxu0
        %v1688 = vadd.f32 0.0, %v1687
        %v1689 = vpop.f32.mrb[0].mxu0
        %1690 = vmatprep.mubr.f32.mxu0 0.0
        %1691 = vmatmul.mubr.f32.gmra.mrb[0].mxu0 %v924
        %v1692 = vpop.f32.mrb[0].mxu0
        %v1693 = vadd.f32 0.0, %v1692
        %v1694 = vpop.f32.mrb[0].mxu0
        %1695 = vmatprep.mubr.f32.mxu0 0.0
        %1696 = vmatmul.mubr.f32.gmra.mrb[0].mxu0 %v927
        %v1697 = vpop.f32.mrb[0].mxu0
        %v1698 = vadd.f32 0.0, %v1697
        %v1699 = vpop.f32.mrb[0].mxu0
        %1700 = vmatprep.mubr.f32.mxu0 0.0
        %1701 = vmatmul.mubr.f32.gmra.mrb[0].mxu0 %v930
        %v1702 = vpop.f32.mrb[0].mxu0
        %v1703 = vadd.f32 0.0, %v1702
        %v1704 = vpop.f32.mrb[0].mxu0
        %1705 = vmatprep.mubr.f32.mxu0 0.0
        %1706 = vmatmul.mubr.f32.gmra.mrb[0].mxu0 %v933
        %v1707 = vpop.f32.mrb[0].mxu0
        %v1708 = vadd.f32 0.0, %v1707
        %v1709 = vpop.f32.mrb[0].mxu0
        %1710 = vmatprep.mubr.f32.mxu0 0.0
        %1711 = vmatmul.mubr.f32.gmra.mrb[0].mxu0 %v936
        %v1712 = vpop.f32.mrb[0].mxu0
        %v1713 = vadd.f32 0.0, %v1712
        %v1714 = vpop.f32.mrb[0].mxu0
        %1715 = vmatprep.mubr.f32.mxu0 0.0
        %1716 = vmatmul.mubr.f32.gmra.mrb[0].mxu0 %v939
        %v1717 = vpop.f32.mrb[0].mxu0
        %v1718 = vadd.f32 0.0, %v1717
        %v1719 = vpop.f32.mrb[0].mxu0
        %1720 = vmatprep.mubr.f32.mxu0 0.0
        %1721 = vmatmul.mubr.f32.gmra.mrb[0].mxu0 %v942
        %v1722 = vpop.f32.mrb[0].mxu0
        %v1723 = vadd.f32 0.0, %v1722
        %v1724 = vpop.f32.mrb[0].mxu0
        %1725 = vmatprep.mubr.f32.mxu0 0.0
        %1726 = vmatmul.mubr.f32.gmra.mrb[0].mxu0 %v945
        %v1727 = vpop.f32.mrb[0].mxu0
        %v1728 = vadd.f32 0.0, %v1727
        %v1729 = vpop.f32.mrb[0].mxu0
        %1730 = vmatprep.mubr.f32.mxu0 0.0
        %1731 = vmatmul.mubr.f32.gmra.mrb[0].mxu0 %v948
        %v1732 = vpop.f32.mrb[0].mxu0
        %v1733 = vadd.f32 0.0, %v1732
        %v1734 = vpop.f32.mrb[0].mxu0
        %1735 = vmatprep.mubr.f32.mxu0 0.0
        %1736 = vmatmul.mubr.f32.gmra.mrb[0].mxu0 %v951
        %v1737 = vpop.f32.mrb[0].mxu0
        %v1738 = vadd.f32 0.0, %v1737
        %v1739 = vpop.f32.mrb[0].mxu0
        %1740 = vmatprep.mubr.f32.mxu0 0.0
        %1741 = vmatmul.mubr.f32.gmra.mrb[0].mxu0 %v954
        %v1742 = vpop.f32.mrb[0].mxu0
        %v1743 = vadd.f32 0.0, %v1742
        %v1744 = vpop.f32.mrb[0].mxu0
        %1745 = vmatprep.mubr.f32.mxu0 0.0
        %1746 = vmatmul.mubr.f32.gmra.mrb[0].mxu0 %v957
        %v1747 = vpop.f32.mrb[0].mxu0
        %v1748 = vadd.f32 0.0, %v1747
        %v1749 = vpop.f32.mrb[0].mxu0
        %1750 = vdwg.mxu0
        %s1751 = scalar_lea.vmem %s220, 512 [#allocation7]
        %1752 = vst [vmem:[%s1751] sm:$0xff] %v1673
        %1753 = vst [vmem:[%s1751 + $0x8] sm:$0xff] %v1678
        %1754 = vst [vmem:[%s1751 + $0x10] sm:$0xff] %v1683
        %1755 = vst [vmem:[%s1751 + $0x18] sm:$0xff] %v1688
        %1756 = vst [vmem:[%s1751 + $0x20] sm:$0xff] %v1693
        %1757 = vst [vmem:[%s1751 + $0x28] sm:$0xff] %v1698
        %1758 = vst [vmem:[%s1751 + $0x30] sm:$0xff] %v1703
        %1759 = vst [vmem:[%s1751 + $0x38] sm:$0xff] %v1708
        %1760 = vst [vmem:[%s1751 + $0x40] sm:$0xff] %v1713
        %1761 = vst [vmem:[%s1751 + $0x48] sm:$0xff] %v1718
        %1762 = vst [vmem:[%s1751 + $0x50] sm:$0xff] %v1723
        %1763 = vst [vmem:[%s1751 + $0x58] sm:$0xff] %v1728
        %1764 = vst [vmem:[%s1751 + $0x60] sm:$0xff] %v1733
        %1765 = vst [vmem:[%s1751 + $0x68] sm:$0xff] %v1738
        %1766 = vst [vmem:[%s1751 + $0x70] sm:$0xff] %v1743
        %1767 = vst [vmem:[%s1751 + $0x78] sm:$0xff] %v1748
        %1768 = vmatprep.subr.mxu0 0.0
        %1769 = vmatpush1.msra.mxu0 %v609
        %1770 = vmatprep.subr.mxu0 0.0
        %1771 = vmatpush1.msra.mxu0 %v614
        %1772 = vmatprep.subr.mxu0 0.0
        %1773 = vmatpush1.msra.mxu0 0.0
        %1774 = vmatprep.subr.mxu0 0.0
        %1775 = vmatpush1.msra.mxu0 0.0
        %1776 = vmatprep.subr.mxu0 0.0
        %1777 = vmatpush1.msra.mxu0 0.0
        %1778 = vmatprep.subr.mxu0 0.0
        %1779 = vmatpush1.msra.mxu0 0.0
        %1780 = vmatprep.subr.mxu0 0.0
        %1781 = vmatpush1.msra.mxu0 0.0
        %1782 = vmatprep.subr.mxu0 0.0
        %1783 = vmatpush1.msra.mxu0 0.0
        %1784 = vmatprep.subr.mxu0 0.0
        %1785 = vmatpush1.msra.mxu0 0.0
        %1786 = vmatprep.subr.mxu0 0.0
        %1787 = vmatpush1.msra.mxu0 0.0
        %1788 = vmatprep.subr.mxu0 0.0
        %1789 = vmatpush1.msra.mxu0 0.0
        %1790 = vmatprep.subr.mxu0 0.0
        %1791 = vmatpush1.msra.mxu0 0.0
        %1792 = vmatprep.subr.mxu0 0.0
        %1793 = vmatpush1.msra.mxu0 0.0
        %1794 = vmatprep.subr.mxu0 0.0
        %1795 = vmatpush1.msra.mxu0 0.0
        %1796 = vmatprep.subr.mxu0 0.0
        %1797 = vmatpush1.msra.mxu0 0.0
        %1798 = vmatprep.subr.mxu0 0.0
        %1799 = vmatpush1.msra.mxu0 0.0
        %1800 = vmatprep.subr.mxu0 0.0
        %1801 = vmatpush1.msra.mxu0 0.0
        %1802 = vmatprep.subr.mxu0 0.0
        %1803 = vmatpush1.msra.mxu0 0.0
        %1804 = vmatprep.subr.mxu0 0.0
        %1805 = vmatpush1.msra.mxu0 0.0
        %1806 = vmatprep.subr.mxu0 0.0
        %1807 = vmatpush1.msra.mxu0 0.0
        %1808 = vmatprep.subr.mxu0 0.0
        %1809 = vmatpush1.msra.mxu0 0.0
        %1810 = vmatprep.subr.mxu0 0.0
        %1811 = vmatpush1.msra.mxu0 0.0
        %1812 = vmatprep.subr.mxu0 0.0
        %1813 = vmatpush1.msra.mxu0 0.0
        %1814 = vmatprep.subr.mxu0 0.0
        %1815 = vmatpush1.msra.mxu0 0.0
        %1816 = vmatprep.subr.mxu0 0.0
        %1817 = vmatpush1.msra.mxu0 0.0
        %1818 = vmatprep.subr.mxu0 0.0
        %1819 = vmatpush1.msra.mxu0 0.0
        %1820 = vmatprep.subr.mxu0 0.0
        %1821 = vmatpush1.msra.mxu0 0.0
        %1822 = vmatprep.subr.mxu0 0.0
        %1823 = vmatpush1.msra.mxu0 0.0
        %1824 = vmatprep.subr.mxu0 0.0
        %1825 = vmatpush1.msra.mxu0 0.0
        %1826 = vmatprep.subr.mxu0 0.0
        %1827 = vmatpush1.msra.mxu0 0.0
        %1828 = vmatprep.subr.mxu0 0.0
        %1829 = vmatpush1.msra.mxu0 0.0
        %1830 = vmatprep.subr.mxu0 0.0
        %1831 = vmatpush1.msra.mxu0 0.0
        %1832 = vmatprep.mubr.f32.mxu0 0.0
        %1833 = vmatmul.mubr.f32.gmra.mrb[0].mxu0 %v912
        %v1834 = vpop.f32.mrb[0].mxu0
        %v1835 = vadd.f32 0.0, %v1834
        %v1836 = vpop.f32.mrb[0].mxu0
        %1837 = vmatprep.mubr.f32.mxu0 0.0
        %1838 = vmatmul.mubr.f32.gmra.mrb[0].mxu0 %v915
        %v1839 = vpop.f32.mrb[0].mxu0
        %v1840 = vadd.f32 0.0, %v1839
        %v1841 = vpop.f32.mrb[0].mxu0
        %1842 = vmatprep.mubr.f32.mxu0 0.0
        %1843 = vmatmul.mubr.f32.gmra.mrb[0].mxu0 %v918
        %v1844 = vpop.f32.mrb[0].mxu0
        %v1845 = vadd.f32 0.0, %v1844
        %v1846 = vpop.f32.mrb[0].mxu0
        %1847 = vmatprep.mubr.f32.mxu0 0.0
        %1848 = vmatmul.mubr.f32.gmra.mrb[0].mxu0 %v921
        %v1849 = vpop.f32.mrb[0].mxu0
        %v1850 = vadd.f32 0.0, %v1849
        %v1851 = vpop.f32.mrb[0].mxu0
        %1852 = vmatprep.mubr.f32.mxu0 0.0
        %1853 = vmatmul.mubr.f32.gmra.mrb[0].mxu0 %v924
        %v1854 = vpop.f32.mrb[0].mxu0
        %v1855 = vadd.f32 0.0, %v1854
        %v1856 = vpop.f32.mrb[0].mxu0
        %1857 = vmatprep.mubr.f32.mxu0 0.0
        %1858 = vmatmul.mubr.f32.gmra.mrb[0].mxu0 %v927
        %v1859 = vpop.f32.mrb[0].mxu0
        %v1860 = vadd.f32 0.0, %v1859
        %v1861 = vpop.f32.mrb[0].mxu0
        %1862 = vmatprep.mubr.f32.mxu0 0.0
        %1863 = vmatmul.mubr.f32.gmra.mrb[0].mxu0 %v930
        %v1864 = vpop.f32.mrb[0].mxu0
        %v1865 = vadd.f32 0.0, %v1864
        %v1866 = vpop.f32.mrb[0].mxu0
        %1867 = vmatprep.mubr.f32.mxu0 0.0
        %1868 = vmatmul.mubr.f32.gmra.mrb[0].mxu0 %v933
        %v1869 = vpop.f32.mrb[0].mxu0
        %v1870 = vadd.f32 0.0, %v1869
        %v1871 = vpop.f32.mrb[0].mxu0
        %1872 = vmatprep.mubr.f32.mxu0 0.0
        %1873 = vmatmul.mubr.f32.gmra.mrb[0].mxu0 %v936
        %v1874 = vpop.f32.mrb[0].mxu0
        %v1875 = vadd.f32 0.0, %v1874
        %v1876 = vpop.f32.mrb[0].mxu0
        %1877 = vmatprep.mubr.f32.mxu0 0.0
        %1878 = vmatmul.mubr.f32.gmra.mrb[0].mxu0 %v939
        %v1879 = vpop.f32.mrb[0].mxu0
        %v1880 = vadd.f32 0.0, %v1879
        %v1881 = vpop.f32.mrb[0].mxu0
        %1882 = vmatprep.mubr.f32.mxu0 0.0
        %1883 = vmatmul.mubr.f32.gmra.mrb[0].mxu0 %v942
        %v1884 = vpop.f32.mrb[0].mxu0
        %v1885 = vadd.f32 0.0, %v1884
        %v1886 = vpop.f32.mrb[0].mxu0
        %1887 = vmatprep.mubr.f32.mxu0 0.0
        %1888 = vmatmul.mubr.f32.gmra.mrb[0].mxu0 %v945
        %v1889 = vpop.f32.mrb[0].mxu0
        %v1890 = vadd.f32 0.0, %v1889
        %v1891 = vpop.f32.mrb[0].mxu0
        %1892 = vmatprep.mubr.f32.mxu0 0.0
        %1893 = vmatmul.mubr.f32.gmra.mrb[0].mxu0 %v948
        %v1894 = vpop.f32.mrb[0].mxu0
        %v1895 = vadd.f32 0.0, %v1894
        %v1896 = vpop.f32.mrb[0].mxu0
        %1897 = vmatprep.mubr.f32.mxu0 0.0
        %1898 = vmatmul.mubr.f32.gmra.mrb[0].mxu0 %v951
        %v1899 = vpop.f32.mrb[0].mxu0
        %v1900 = vadd.f32 0.0, %v1899
        %v1901 = vpop.f32.mrb[0].mxu0
        %1902 = vmatprep.mubr.f32.mxu0 0.0
        %1903 = vmatmul.mubr.f32.gmra.mrb[0].mxu0 %v954
        %v1904 = vpop.f32.mrb[0].mxu0
        %v1905 = vadd.f32 0.0, %v1904
        %v1906 = vpop.f32.mrb[0].mxu0
        %1907 = vmatprep.mubr.f32.mxu0 0.0
        %1908 = vmatmul.mubr.f32.gmra.mrb[0].mxu0 %v957
        %v1909 = vpop.f32.mrb[0].mxu0
        %v1910 = vadd.f32 0.0, %v1909
        %v1911 = vpop.f32.mrb[0].mxu0
        %1912 = vdwg.mxu0
        %s1913 = scalar_lea.vmem %s220, 640 [#allocation7]
        %1914 = vst [vmem:[%s1913] sm:$0xff] %v1835
        %1915 = vst [vmem:[%s1913 + $0x8] sm:$0xff] %v1840
        %1916 = vst [vmem:[%s1913 + $0x10] sm:$0xff] %v1845
        %1917 = vst [vmem:[%s1913 + $0x18] sm:$0xff] %v1850
        %1918 = vst [vmem:[%s1913 + $0x20] sm:$0xff] %v1855
        %1919 = vst [vmem:[%s1913 + $0x28] sm:$0xff] %v1860
        %1920 = vst [vmem:[%s1913 + $0x30] sm:$0xff] %v1865
        %1921 = vst [vmem:[%s1913 + $0x38] sm:$0xff] %v1870
        %1922 = vst [vmem:[%s1913 + $0x40] sm:$0xff] %v1875
        %1923 = vst [vmem:[%s1913 + $0x48] sm:$0xff] %v1880
        %1924 = vst [vmem:[%s1913 + $0x50] sm:$0xff] %v1885
        %1925 = vst [vmem:[%s1913 + $0x58] sm:$0xff] %v1890
        %1926 = vst [vmem:[%s1913 + $0x60] sm:$0xff] %v1895
        %1927 = vst [vmem:[%s1913 + $0x68] sm:$0xff] %v1900
        %1928 = vst [vmem:[%s1913 + $0x70] sm:$0xff] %v1905
        %1929 = vst [vmem:[%s1913 + $0x78] sm:$0xff] %v1910
        %1930 = vmatprep.subr.mxu0 0.0
        %1931 = vmatpush1.msra.mxu0 %v619
        %1932 = vmatprep.subr.mxu0 0.0
        %1933 = vmatpush1.msra.mxu0 %v624
        %1934 = vmatprep.subr.mxu0 0.0
        %1935 = vmatpush1.msra.mxu0 0.0
        %1936 = vmatprep.subr.mxu0 0.0
        %1937 = vmatpush1.msra.mxu0 0.0
        %1938 = vmatprep.subr.mxu0 0.0
        %1939 = vmatpush1.msra.mxu0 0.0
        %1940 = vmatprep.subr.mxu0 0.0
        %1941 = vmatpush1.msra.mxu0 0.0
        %1942 = vmatprep.subr.mxu0 0.0
        %1943 = vmatpush1.msra.mxu0 0.0
        %1944 = vmatprep.subr.mxu0 0.0
        %1945 = vmatpush1.msra.mxu0 0.0
        %1946 = vmatprep.subr.mxu0 0.0
        %1947 = vmatpush1.msra.mxu0 0.0
        %1948 = vmatprep.subr.mxu0 0.0
        %1949 = vmatpush1.msra.mxu0 0.0
        %1950 = vmatprep.subr.mxu0 0.0
        %1951 = vmatpush1.msra.mxu0 0.0
        %1952 = vmatprep.subr.mxu0 0.0
        %1953 = vmatpush1.msra.mxu0 0.0
        %1954 = vmatprep.subr.mxu0 0.0
        %1955 = vmatpush1.msra.mxu0 0.0
        %1956 = vmatprep.subr.mxu0 0.0
        %1957 = vmatpush1.msra.mxu0 0.0
        %1958 = vmatprep.subr.mxu0 0.0
        %1959 = vmatpush1.msra.mxu0 0.0
        %1960 = vmatprep.subr.mxu0 0.0
        %1961 = vmatpush1.msra.mxu0 0.0
        %1962 = vmatprep.subr.mxu0 0.0
        %1963 = vmatpush1.msra.mxu0 0.0
        %1964 = vmatprep.subr.mxu0 0.0
        %1965 = vmatpush1.msra.mxu0 0.0
        %1966 = vmatprep.subr.mxu0 0.0
        %1967 = vmatpush1.msra.mxu0 0.0
        %1968 = vmatprep.subr.mxu0 0.0
        %1969 = vmatpush1.msra.mxu0 0.0
        %1970 = vmatprep.subr.mxu0 0.0
        %1971 = vmatpush1.msra.mxu0 0.0
        %1972 = vmatprep.subr.mxu0 0.0
        %1973 = vmatpush1.msra.mxu0 0.0
        %1974 = vmatprep.subr.mxu0 0.0
        %1975 = vmatpush1.msra.mxu0 0.0
        %1976 = vmatprep.subr.mxu0 0.0
        %1977 = vmatpush1.msra.mxu0 0.0
        %1978 = vmatprep.subr.mxu0 0.0
        %1979 = vmatpush1.msra.mxu0 0.0
        %1980 = vmatprep.subr.mxu0 0.0
        %1981 = vmatpush1.msra.mxu0 0.0
        %1982 = vmatprep.subr.mxu0 0.0
        %1983 = vmatpush1.msra.mxu0 0.0
        %1984 = vmatprep.subr.mxu0 0.0
        %1985 = vmatpush1.msra.mxu0 0.0
        %1986 = vmatprep.subr.mxu0 0.0
        %1987 = vmatpush1.msra.mxu0 0.0
        %1988 = vmatprep.subr.mxu0 0.0
        %1989 = vmatpush1.msra.mxu0 0.0
        %1990 = vmatprep.subr.mxu0 0.0
        %1991 = vmatpush1.msra.mxu0 0.0
        %1992 = vmatprep.subr.mxu0 0.0
        %1993 = vmatpush1.msra.mxu0 0.0
        %1994 = vmatprep.mubr.f32.mxu0 0.0
        %1995 = vmatmul.mubr.f32.gmra.mrb[0].mxu0 %v912
        %v1996 = vpop.f32.mrb[0].mxu0
        %v1997 = vadd.f32 0.0, %v1996
        %v1998 = vpop.f32.mrb[0].mxu0
        %1999 = vmatprep.mubr.f32.mxu0 0.0
        %2000 = vmatmul.mubr.f32.gmra.mrb[0].mxu0 %v915
        %v2001 = vpop.f32.mrb[0].mxu0
        %v2002 = vadd.f32 0.0, %v2001
        %v2003 = vpop.f32.mrb[0].mxu0
        %2004 = vmatprep.mubr.f32.mxu0 0.0
        %2005 = vmatmul.mubr.f32.gmra.mrb[0].mxu0 %v918
        %v2006 = vpop.f32.mrb[0].mxu0
        %v2007 = vadd.f32 0.0, %v2006
        %v2008 = vpop.f32.mrb[0].mxu0
        %2009 = vmatprep.mubr.f32.mxu0 0.0
        %2010 = vmatmul.mubr.f32.gmra.mrb[0].mxu0 %v921
        %v2011 = vpop.f32.mrb[0].mxu0
        %v2012 = vadd.f32 0.0, %v2011
        %v2013 = vpop.f32.mrb[0].mxu0
        %2014 = vmatprep.mubr.f32.mxu0 0.0
        %2015 = vmatmul.mubr.f32.gmra.mrb[0].mxu0 %v924
        %v2016 = vpop.f32.mrb[0].mxu0
        %v2017 = vadd.f32 0.0, %v2016
        %v2018 = vpop.f32.mrb[0].mxu0
        %2019 = vmatprep.mubr.f32.mxu0 0.0
        %2020 = vmatmul.mubr.f32.gmra.mrb[0].mxu0 %v927
        %v2021 = vpop.f32.mrb[0].mxu0
        %v2022 = vadd.f32 0.0, %v2021
        %v2023 = vpop.f32.mrb[0].mxu0
        %2024 = vmatprep.mubr.f32.mxu0 0.0
        %2025 = vmatmul.mubr.f32.gmra.mrb[0].mxu0 %v930
        %v2026 = vpop.f32.mrb[0].mxu0
        %v2027 = vadd.f32 0.0, %v2026
        %v2028 = vpop.f32.mrb[0].mxu0
        %2029 = vmatprep.mubr.f32.mxu0 0.0
        %2030 = vmatmul.mubr.f32.gmra.mrb[0].mxu0 %v933
        %v2031 = vpop.f32.mrb[0].mxu0
        %v2032 = vadd.f32 0.0, %v2031
        %v2033 = vpop.f32.mrb[0].mxu0
        %2034 = vmatprep.mubr.f32.mxu0 0.0
        %2035 = vmatmul.mubr.f32.gmra.mrb[0].mxu0 %v936
        %v2036 = vpop.f32.mrb[0].mxu0
        %v2037 = vadd.f32 0.0, %v2036
        %v2038 = vpop.f32.mrb[0].mxu0
        %2039 = vmatprep.mubr.f32.mxu0 0.0
        %2040 = vmatmul.mubr.f32.gmra.mrb[0].mxu0 %v939
        %v2041 = vpop.f32.mrb[0].mxu0
        %v2042 = vadd.f32 0.0, %v2041
        %v2043 = vpop.f32.mrb[0].mxu0
        %2044 = vmatprep.mubr.f32.mxu0 0.0
        %2045 = vmatmul.mubr.f32.gmra.mrb[0].mxu0 %v942
        %v2046 = vpop.f32.mrb[0].mxu0
        %v2047 = vadd.f32 0.0, %v2046
        %v2048 = vpop.f32.mrb[0].mxu0
        %2049 = vmatprep.mubr.f32.mxu0 0.0
        %2050 = vmatmul.mubr.f32.gmra.mrb[0].mxu0 %v945
        %v2051 = vpop.f32.mrb[0].mxu0
        %v2052 = vadd.f32 0.0, %v2051
        %v2053 = vpop.f32.mrb[0].mxu0
        %2054 = vmatprep.mubr.f32.mxu0 0.0
        %2055 = vmatmul.mubr.f32.gmra.mrb[0].mxu0 %v948
        %v2056 = vpop.f32.mrb[0].mxu0
        %v2057 = vadd.f32 0.0, %v2056
        %v2058 = vpop.f32.mrb[0].mxu0
        %2059 = vmatprep.mubr.f32.mxu0 0.0
        %2060 = vmatmul.mubr.f32.gmra.mrb[0].mxu0 %v951
        %v2061 = vpop.f32.mrb[0].mxu0
        %v2062 = vadd.f32 0.0, %v2061
        %v2063 = vpop.f32.mrb[0].mxu0
        %2064 = vmatprep.mubr.f32.mxu0 0.0
        %2065 = vmatmul.mubr.f32.gmra.mrb[0].mxu0 %v954
        %v2066 = vpop.f32.mrb[0].mxu0
        %v2067 = vadd.f32 0.0, %v2066
        %v2068 = vpop.f32.mrb[0].mxu0
        %2069 = vmatprep.mubr.f32.mxu0 0.0
        %2070 = vmatmul.mubr.f32.gmra.mrb[0].mxu0 %v957
        %v2071 = vpop.f32.mrb[0].mxu0
        %v2072 = vadd.f32 0.0, %v2071
        %v2073 = vpop.f32.mrb[0].mxu0
        %2074 = vdwg.mxu0
        %s2075 = scalar_lea.vmem %s220, 768 [#allocation7]
        %2076 = vst [vmem:[%s2075] sm:$0xff] %v1997
        %2077 = vst [vmem:[%s2075 + $0x8] sm:$0xff] %v2002
        %2078 = vst [vmem:[%s2075 + $0x10] sm:$0xff] %v2007
        %2079 = vst [vmem:[%s2075 + $0x18] sm:$0xff] %v2012
        %2080 = vst [vmem:[%s2075 + $0x20] sm:$0xff] %v2017
        %2081 = vst [vmem:[%s2075 + $0x28] sm:$0xff] %v2022
        %2082 = vst [vmem:[%s2075 + $0x30] sm:$0xff] %v2027
        %2083 = vst [vmem:[%s2075 + $0x38] sm:$0xff] %v2032
        %2084 = vst [vmem:[%s2075 + $0x40] sm:$0xff] %v2037
        %2085 = vst [vmem:[%s2075 + $0x48] sm:$0xff] %v2042
        %2086 = vst [vmem:[%s2075 + $0x50] sm:$0xff] %v2047
        %2087 = vst [vmem:[%s2075 + $0x58] sm:$0xff] %v2052
        %2088 = vst [vmem:[%s2075 + $0x60] sm:$0xff] %v2057
        %2089 = vst [vmem:[%s2075 + $0x68] sm:$0xff] %v2062
        %2090 = vst [vmem:[%s2075 + $0x70] sm:$0xff] %v2067
        %2091 = vst [vmem:[%s2075 + $0x78] sm:$0xff] %v2072
        %2092 = vmatprep.subr.mxu0 0.0
        %2093 = vmatpush1.msra.mxu0 %v629
        %2094 = vmatprep.subr.mxu0 0.0
        %2095 = vmatpush1.msra.mxu0 %v634
        %2096 = vmatprep.subr.mxu0 0.0
        %2097 = vmatpush1.msra.mxu0 0.0
        %2098 = vmatprep.subr.mxu0 0.0
        %2099 = vmatpush1.msra.mxu0 0.0
        %2100 = vmatprep.subr.mxu0 0.0
        %2101 = vmatpush1.msra.mxu0 0.0
        %2102 = vmatprep.subr.mxu0 0.0
        %2103 = vmatpush1.msra.mxu0 0.0
        %2104 = vmatprep.subr.mxu0 0.0
        %2105 = vmatpush1.msra.mxu0 0.0
        %2106 = vmatprep.subr.mxu0 0.0
        %2107 = vmatpush1.msra.mxu0 0.0
        %2108 = vmatprep.subr.mxu0 0.0
        %2109 = vmatpush1.msra.mxu0 0.0
        %2110 = vmatprep.subr.mxu0 0.0
        %2111 = vmatpush1.msra.mxu0 0.0
        %2112 = vmatprep.subr.mxu0 0.0
        %2113 = vmatpush1.msra.mxu0 0.0
        %2114 = vmatprep.subr.mxu0 0.0
        %2115 = vmatpush1.msra.mxu0 0.0
        %2116 = vmatprep.subr.mxu0 0.0
        %2117 = vmatpush1.msra.mxu0 0.0
        %2118 = vmatprep.subr.mxu0 0.0
        %2119 = vmatpush1.msra.mxu0 0.0
        %2120 = vmatprep.subr.mxu0 0.0
        %2121 = vmatpush1.msra.mxu0 0.0
        %2122 = vmatprep.subr.mxu0 0.0
        %2123 = vmatpush1.msra.mxu0 0.0
        %2124 = vmatprep.subr.mxu0 0.0
        %2125 = vmatpush1.msra.mxu0 0.0
        %2126 = vmatprep.subr.mxu0 0.0
        %2127 = vmatpush1.msra.mxu0 0.0
        %2128 = vmatprep.subr.mxu0 0.0
        %2129 = vmatpush1.msra.mxu0 0.0
        %2130 = vmatprep.subr.mxu0 0.0
        %2131 = vmatpush1.msra.mxu0 0.0
        %2132 = vmatprep.subr.mxu0 0.0
        %2133 = vmatpush1.msra.mxu0 0.0
        %2134 = vmatprep.subr.mxu0 0.0
        %2135 = vmatpush1.msra.mxu0 0.0
        %2136 = vmatprep.subr.mxu0 0.0
        %2137 = vmatpush1.msra.mxu0 0.0
        %2138 = vmatprep.subr.mxu0 0.0
        %2139 = vmatpush1.msra.mxu0 0.0
        %2140 = vmatprep.subr.mxu0 0.0
        %2141 = vmatpush1.msra.mxu0 0.0
        %2142 = vmatprep.subr.mxu0 0.0
        %2143 = vmatpush1.msra.mxu0 0.0
        %2144 = vmatprep.subr.mxu0 0.0
        %2145 = vmatpush1.msra.mxu0 0.0
        %2146 = vmatprep.subr.mxu0 0.0
        %2147 = vmatpush1.msra.mxu0 0.0
        %2148 = vmatprep.subr.mxu0 0.0
        %2149 = vmatpush1.msra.mxu0 0.0
        %2150 = vmatprep.subr.mxu0 0.0
        %2151 = vmatpush1.msra.mxu0 0.0
        %2152 = vmatprep.subr.mxu0 0.0
        %2153 = vmatpush1.msra.mxu0 0.0
        %2154 = vmatprep.subr.mxu0 0.0
        %2155 = vmatpush1.msra.mxu0 0.0
        %2156 = vmatprep.mubr.f32.mxu0 0.0
        %2157 = vmatmul.mubr.f32.gmra.mrb[0].mxu0 %v912
        %v2158 = vpop.f32.mrb[0].mxu0
        %v2159 = vadd.f32 0.0, %v2158
        %v2160 = vpop.f32.mrb[0].mxu0
        %2161 = vmatprep.mubr.f32.mxu0 0.0
        %2162 = vmatmul.mubr.f32.gmra.mrb[0].mxu0 %v915
        %v2163 = vpop.f32.mrb[0].mxu0
        %v2164 = vadd.f32 0.0, %v2163
        %v2165 = vpop.f32.mrb[0].mxu0
        %2166 = vmatprep.mubr.f32.mxu0 0.0
        %2167 = vmatmul.mubr.f32.gmra.mrb[0].mxu0 %v918
        %v2168 = vpop.f32.mrb[0].mxu0
        %v2169 = vadd.f32 0.0, %v2168
        %v2170 = vpop.f32.mrb[0].mxu0
        %2171 = vmatprep.mubr.f32.mxu0 0.0
        %2172 = vmatmul.mubr.f32.gmra.mrb[0].mxu0 %v921
        %v2173 = vpop.f32.mrb[0].mxu0
        %v2174 = vadd.f32 0.0, %v2173
        %v2175 = vpop.f32.mrb[0].mxu0
        %2176 = vmatprep.mubr.f32.mxu0 0.0
        %2177 = vmatmul.mubr.f32.gmra.mrb[0].mxu0 %v924
        %v2178 = vpop.f32.mrb[0].mxu0
        %v2179 = vadd.f32 0.0, %v2178
        %v2180 = vpop.f32.mrb[0].mxu0
        %2181 = vmatprep.mubr.f32.mxu0 0.0
        %2182 = vmatmul.mubr.f32.gmra.mrb[0].mxu0 %v927
        %v2183 = vpop.f32.mrb[0].mxu0
        %v2184 = vadd.f32 0.0, %v2183
        %v2185 = vpop.f32.mrb[0].mxu0
        %2186 = vmatprep.mubr.f32.mxu0 0.0
        %2187 = vmatmul.mubr.f32.gmra.mrb[0].mxu0 %v930
        %v2188 = vpop.f32.mrb[0].mxu0
        %v2189 = vadd.f32 0.0, %v2188
        %v2190 = vpop.f32.mrb[0].mxu0
        %2191 = vmatprep.mubr.f32.mxu0 0.0
        %2192 = vmatmul.mubr.f32.gmra.mrb[0].mxu0 %v933
        %v2193 = vpop.f32.mrb[0].mxu0
        %v2194 = vadd.f32 0.0, %v2193
        %v2195 = vpop.f32.mrb[0].mxu0
        %2196 = vmatprep.mubr.f32.mxu0 0.0
        %2197 = vmatmul.mubr.f32.gmra.mrb[0].mxu0 %v936
        %v2198 = vpop.f32.mrb[0].mxu0
        %v2199 = vadd.f32 0.0, %v2198
        %v2200 = vpop.f32.mrb[0].mxu0
        %2201 = vmatprep.mubr.f32.mxu0 0.0
        %2202 = vmatmul.mubr.f32.gmra.mrb[0].mxu0 %v939
        %v2203 = vpop.f32.mrb[0].mxu0
        %v2204 = vadd.f32 0.0, %v2203
        %v2205 = vpop.f32.mrb[0].mxu0
        %2206 = vmatprep.mubr.f32.mxu0 0.0
        %2207 = vmatmul.mubr.f32.gmra.mrb[0].mxu0 %v942
        %v2208 = vpop.f32.mrb[0].mxu0
        %v2209 = vadd.f32 0.0, %v2208
        %v2210 = vpop.f32.mrb[0].mxu0
        %2211 = vmatprep.mubr.f32.mxu0 0.0
        %2212 = vmatmul.mubr.f32.gmra.mrb[0].mxu0 %v945
        %v2213 = vpop.f32.mrb[0].mxu0
        %v2214 = vadd.f32 0.0, %v2213
        %v2215 = vpop.f32.mrb[0].mxu0
        %2216 = vmatprep.mubr.f32.mxu0 0.0
        %2217 = vmatmul.mubr.f32.gmra.mrb[0].mxu0 %v948
        %v2218 = vpop.f32.mrb[0].mxu0
        %v2219 = vadd.f32 0.0, %v2218
        %v2220 = vpop.f32.mrb[0].mxu0
        %2221 = vmatprep.mubr.f32.mxu0 0.0
        %2222 = vmatmul.mubr.f32.gmra.mrb[0].mxu0 %v951
        %v2223 = vpop.f32.mrb[0].mxu0
        %v2224 = vadd.f32 0.0, %v2223
        %v2225 = vpop.f32.mrb[0].mxu0
        %2226 = vmatprep.mubr.f32.mxu0 0.0
        %2227 = vmatmul.mubr.f32.gmra.mrb[0].mxu0 %v954
        %v2228 = vpop.f32.mrb[0].mxu0
        %v2229 = vadd.f32 0.0, %v2228
        %v2230 = vpop.f32.mrb[0].mxu0
        %2231 = vmatprep.mubr.f32.mxu0 0.0
        %2232 = vmatmul.mubr.f32.gmra.mrb[0].mxu0 %v957
        %v2233 = vpop.f32.mrb[0].mxu0
        %v2234 = vadd.f32 0.0, %v2233
        %v2235 = vpop.f32.mrb[0].mxu0
        %2236 = vdwg.mxu0
        %s2237 = scalar_lea.vmem %s220, 896 [#allocation7]
        %2238 = vst [vmem:[%s2237] sm:$0xff] %v2159
        %2239 = vst [vmem:[%s2237 + $0x8] sm:$0xff] %v2164
        %2240 = vst [vmem:[%s2237 + $0x10] sm:$0xff] %v2169
        %2241 = vst [vmem:[%s2237 + $0x18] sm:$0xff] %v2174
        %2242 = vst [vmem:[%s2237 + $0x20] sm:$0xff] %v2179
        %2243 = vst [vmem:[%s2237 + $0x28] sm:$0xff] %v2184
        %2244 = vst [vmem:[%s2237 + $0x30] sm:$0xff] %v2189
        %2245 = vst [vmem:[%s2237 + $0x38] sm:$0xff] %v2194
        %2246 = vst [vmem:[%s2237 + $0x40] sm:$0xff] %v2199
        %2247 = vst [vmem:[%s2237 + $0x48] sm:$0xff] %v2204
        %2248 = vst [vmem:[%s2237 + $0x50] sm:$0xff] %v2209
        %2249 = vst [vmem:[%s2237 + $0x58] sm:$0xff] %v2214
        %2250 = vst [vmem:[%s2237 + $0x60] sm:$0xff] %v2219
        %2251 = vst [vmem:[%s2237 + $0x68] sm:$0xff] %v2224
        %2252 = vst [vmem:[%s2237 + $0x70] sm:$0xff] %v2229
        %2253 = vst [vmem:[%s2237 + $0x78] sm:$0xff] %v2234
        %2254 = vmatprep.subr.mxu0 0.0
        %2255 = vmatpush1.msra.mxu0 %v639
        %2256 = vmatprep.subr.mxu0 0.0
        %2257 = vmatpush1.msra.mxu0 %v644
        %2258 = vmatprep.subr.mxu0 0.0
        %2259 = vmatpush1.msra.mxu0 0.0
        %2260 = vmatprep.subr.mxu0 0.0
        %2261 = vmatpush1.msra.mxu0 0.0
        %2262 = vmatprep.subr.mxu0 0.0
        %2263 = vmatpush1.msra.mxu0 0.0
        %2264 = vmatprep.subr.mxu0 0.0
        %2265 = vmatpush1.msra.mxu0 0.0
        %2266 = vmatprep.subr.mxu0 0.0
        %2267 = vmatpush1.msra.mxu0 0.0
        %2268 = vmatprep.subr.mxu0 0.0
        %2269 = vmatpush1.msra.mxu0 0.0
        %2270 = vmatprep.subr.mxu0 0.0
        %2271 = vmatpush1.msra.mxu0 0.0
        %2272 = vmatprep.subr.mxu0 0.0
        %2273 = vmatpush1.msra.mxu0 0.0
        %2274 = vmatprep.subr.mxu0 0.0
        %2275 = vmatpush1.msra.mxu0 0.0
        %2276 = vmatprep.subr.mxu0 0.0
        %2277 = vmatpush1.msra.mxu0 0.0
        %2278 = vmatprep.subr.mxu0 0.0
        %2279 = vmatpush1.msra.mxu0 0.0
        %2280 = vmatprep.subr.mxu0 0.0
        %2281 = vmatpush1.msra.mxu0 0.0
        %2282 = vmatprep.subr.mxu0 0.0
        %2283 = vmatpush1.msra.mxu0 0.0
        %2284 = vmatprep.subr.mxu0 0.0
        %2285 = vmatpush1.msra.mxu0 0.0
        %2286 = vmatprep.subr.mxu0 0.0
        %2287 = vmatpush1.msra.mxu0 0.0
        %2288 = vmatprep.subr.mxu0 0.0
        %2289 = vmatpush1.msra.mxu0 0.0
        %2290 = vmatprep.subr.mxu0 0.0
        %2291 = vmatpush1.msra.mxu0 0.0
        %2292 = vmatprep.subr.mxu0 0.0
        %2293 = vmatpush1.msra.mxu0 0.0
        %2294 = vmatprep.subr.mxu0 0.0
        %2295 = vmatpush1.msra.mxu0 0.0
        %2296 = vmatprep.subr.mxu0 0.0
        %2297 = vmatpush1.msra.mxu0 0.0
        %2298 = vmatprep.subr.mxu0 0.0
        %2299 = vmatpush1.msra.mxu0 0.0
        %2300 = vmatprep.subr.mxu0 0.0
        %2301 = vmatpush1.msra.mxu0 0.0
        %2302 = vmatprep.subr.mxu0 0.0
        %2303 = vmatpush1.msra.mxu0 0.0
        %2304 = vmatprep.subr.mxu0 0.0
        %2305 = vmatpush1.msra.mxu0 0.0
        %2306 = vmatprep.subr.mxu0 0.0
        %2307 = vmatpush1.msra.mxu0 0.0
        %2308 = vmatprep.subr.mxu0 0.0
        %2309 = vmatpush1.msra.mxu0 0.0
        %2310 = vmatprep.subr.mxu0 0.0
        %2311 = vmatpush1.msra.mxu0 0.0
        %2312 = vmatprep.subr.mxu0 0.0
        %2313 = vmatpush1.msra.mxu0 0.0
        %2314 = vmatprep.subr.mxu0 0.0
        %2315 = vmatpush1.msra.mxu0 0.0
        %2316 = vmatprep.subr.mxu0 0.0
        %2317 = vmatpush1.msra.mxu0 0.0
        %2318 = vmatprep.mubr.f32.mxu0 0.0
        %2319 = vmatmul.mubr.f32.gmra.mrb[0].mxu0 %v912
        %v2320 = vpop.f32.mrb[0].mxu0
        %v2321 = vadd.f32 0.0, %v2320
        %v2322 = vpop.f32.mrb[0].mxu0
        %2323 = vmatprep.mubr.f32.mxu0 0.0
        %2324 = vmatmul.mubr.f32.gmra.mrb[0].mxu0 %v915
        %v2325 = vpop.f32.mrb[0].mxu0
        %v2326 = vadd.f32 0.0, %v2325
        %v2327 = vpop.f32.mrb[0].mxu0
        %2328 = vmatprep.mubr.f32.mxu0 0.0
        %2329 = vmatmul.mubr.f32.gmra.mrb[0].mxu0 %v918
        %v2330 = vpop.f32.mrb[0].mxu0
        %v2331 = vadd.f32 0.0, %v2330
        %v2332 = vpop.f32.mrb[0].mxu0
        %2333 = vmatprep.mubr.f32.mxu0 0.0
        %2334 = vmatmul.mubr.f32.gmra.mrb[0].mxu0 %v921
        %v2335 = vpop.f32.mrb[0].mxu0
        %v2336 = vadd.f32 0.0, %v2335
        %v2337 = vpop.f32.mrb[0].mxu0
        %2338 = vmatprep.mubr.f32.mxu0 0.0
        %2339 = vmatmul.mubr.f32.gmra.mrb[0].mxu0 %v924
        %v2340 = vpop.f32.mrb[0].mxu0
        %v2341 = vadd.f32 0.0, %v2340
        %v2342 = vpop.f32.mrb[0].mxu0
        %2343 = vmatprep.mubr.f32.mxu0 0.0
        %2344 = vmatmul.mubr.f32.gmra.mrb[0].mxu0 %v927
        %v2345 = vpop.f32.mrb[0].mxu0
        %v2346 = vadd.f32 0.0, %v2345
        %v2347 = vpop.f32.mrb[0].mxu0
        %2348 = vmatprep.mubr.f32.mxu0 0.0
        %2349 = vmatmul.mubr.f32.gmra.mrb[0].mxu0 %v930
        %v2350 = vpop.f32.mrb[0].mxu0
        %v2351 = vadd.f32 0.0, %v2350
        %v2352 = vpop.f32.mrb[0].mxu0
        %2353 = vmatprep.mubr.f32.mxu0 0.0
        %2354 = vmatmul.mubr.f32.gmra.mrb[0].mxu0 %v933
        %v2355 = vpop.f32.mrb[0].mxu0
        %v2356 = vadd.f32 0.0, %v2355
        %v2357 = vpop.f32.mrb[0].mxu0
        %2358 = vmatprep.mubr.f32.mxu0 0.0
        %2359 = vmatmul.mubr.f32.gmra.mrb[0].mxu0 %v936
        %v2360 = vpop.f32.mrb[0].mxu0
        %v2361 = vadd.f32 0.0, %v2360
        %v2362 = vpop.f32.mrb[0].mxu0
        %2363 = vmatprep.mubr.f32.mxu0 0.0
        %2364 = vmatmul.mubr.f32.gmra.mrb[0].mxu0 %v939
        %v2365 = vpop.f32.mrb[0].mxu0
        %v2366 = vadd.f32 0.0, %v2365
        %v2367 = vpop.f32.mrb[0].mxu0
        %2368 = vmatprep.mubr.f32.mxu0 0.0
        %2369 = vmatmul.mubr.f32.gmra.mrb[0].mxu0 %v942
        %v2370 = vpop.f32.mrb[0].mxu0
        %v2371 = vadd.f32 0.0, %v2370
        %v2372 = vpop.f32.mrb[0].mxu0
        %2373 = vmatprep.mubr.f32.mxu0 0.0
        %2374 = vmatmul.mubr.f32.gmra.mrb[0].mxu0 %v945
        %v2375 = vpop.f32.mrb[0].mxu0
        %v2376 = vadd.f32 0.0, %v2375
        %v2377 = vpop.f32.mrb[0].mxu0
        %2378 = vmatprep.mubr.f32.mxu0 0.0
        %2379 = vmatmul.mubr.f32.gmra.mrb[0].mxu0 %v948
        %v2380 = vpop.f32.mrb[0].mxu0
        %v2381 = vadd.f32 0.0, %v2380
        %v2382 = vpop.f32.mrb[0].mxu0
        %2383 = vmatprep.mubr.f32.mxu0 0.0
        %2384 = vmatmul.mubr.f32.gmra.mrb[0].mxu0 %v951
        %v2385 = vpop.f32.mrb[0].mxu0
        %v2386 = vadd.f32 0.0, %v2385
        %v2387 = vpop.f32.mrb[0].mxu0
        %2388 = vmatprep.mubr.f32.mxu0 0.0
        %2389 = vmatmul.mubr.f32.gmra.mrb[0].mxu0 %v954
        %v2390 = vpop.f32.mrb[0].mxu0
        %v2391 = vadd.f32 0.0, %v2390
        %v2392 = vpop.f32.mrb[0].mxu0
        %2393 = vmatprep.mubr.f32.mxu0 0.0
        %2394 = vmatmul.mubr.f32.gmra.mrb[0].mxu0 %v957
        %v2395 = vpop.f32.mrb[0].mxu0
        %v2396 = vadd.f32 0.0, %v2395
        %v2397 = vpop.f32.mrb[0].mxu0
        %2398 = vdwg.mxu0
        %s2399 = scalar_lea.vmem %s220, 1024 [#allocation7]
        %2400 = vst [vmem:[%s2399] sm:$0xff] %v2321
        %2401 = vst [vmem:[%s2399 + $0x8] sm:$0xff] %v2326
        %2402 = vst [vmem:[%s2399 + $0x10] sm:$0xff] %v2331
        %2403 = vst [vmem:[%s2399 + $0x18] sm:$0xff] %v2336
        %2404 = vst [vmem:[%s2399 + $0x20] sm:$0xff] %v2341
        %2405 = vst [vmem:[%s2399 + $0x28] sm:$0xff] %v2346
        %2406 = vst [vmem:[%s2399 + $0x30] sm:$0xff] %v2351
        %2407 = vst [vmem:[%s2399 + $0x38] sm:$0xff] %v2356
        %2408 = vst [vmem:[%s2399 + $0x40] sm:$0xff] %v2361
        %2409 = vst [vmem:[%s2399 + $0x48] sm:$0xff] %v2366
        %2410 = vst [vmem:[%s2399 + $0x50] sm:$0xff] %v2371
        %2411 = vst [vmem:[%s2399 + $0x58] sm:$0xff] %v2376
        %2412 = vst [vmem:[%s2399 + $0x60] sm:$0xff] %v2381
        %2413 = vst [vmem:[%s2399 + $0x68] sm:$0xff] %v2386
        %2414 = vst [vmem:[%s2399 + $0x70] sm:$0xff] %v2391
        %2415 = vst [vmem:[%s2399 + $0x78] sm:$0xff] %v2396
        %2416 = vmatprep.subr.mxu0 0.0
        %2417 = vmatpush1.msra.mxu0 %v649
        %2418 = vmatprep.subr.mxu0 0.0
        %2419 = vmatpush1.msra.mxu0 %v654
        %2420 = vmatprep.subr.mxu0 0.0
        %2421 = vmatpush1.msra.mxu0 0.0
        %2422 = vmatprep.subr.mxu0 0.0
        %2423 = vmatpush1.msra.mxu0 0.0
        %2424 = vmatprep.subr.mxu0 0.0
        %2425 = vmatpush1.msra.mxu0 0.0
        %2426 = vmatprep.subr.mxu0 0.0
        %2427 = vmatpush1.msra.mxu0 0.0
        %2428 = vmatprep.subr.mxu0 0.0
        %2429 = vmatpush1.msra.mxu0 0.0
        %2430 = vmatprep.subr.mxu0 0.0
        %2431 = vmatpush1.msra.mxu0 0.0
        %2432 = vmatprep.subr.mxu0 0.0
        %2433 = vmatpush1.msra.mxu0 0.0
        %2434 = vmatprep.subr.mxu0 0.0
        %2435 = vmatpush1.msra.mxu0 0.0
        %2436 = vmatprep.subr.mxu0 0.0
        %2437 = vmatpush1.msra.mxu0 0.0
        %2438 = vmatprep.subr.mxu0 0.0
        %2439 = vmatpush1.msra.mxu0 0.0
        %2440 = vmatprep.subr.mxu0 0.0
        %2441 = vmatpush1.msra.mxu0 0.0
        %2442 = vmatprep.subr.mxu0 0.0
        %2443 = vmatpush1.msra.mxu0 0.0
        %2444 = vmatprep.subr.mxu0 0.0
        %2445 = vmatpush1.msra.mxu0 0.0
        %2446 = vmatprep.subr.mxu0 0.0
        %2447 = vmatpush1.msra.mxu0 0.0
        %2448 = vmatprep.subr.mxu0 0.0
        %2449 = vmatpush1.msra.mxu0 0.0
        %2450 = vmatprep.subr.mxu0 0.0
        %2451 = vmatpush1.msra.mxu0 0.0
        %2452 = vmatprep.subr.mxu0 0.0
        %2453 = vmatpush1.msra.mxu0 0.0
        %2454 = vmatprep.subr.mxu0 0.0
        %2455 = vmatpush1.msra.mxu0 0.0
        %2456 = vmatprep.subr.mxu0 0.0
        %2457 = vmatpush1.msra.mxu0 0.0
        %2458 = vmatprep.subr.mxu0 0.0
        %2459 = vmatpush1.msra.mxu0 0.0
        %2460 = vmatprep.subr.mxu0 0.0
        %2461 = vmatpush1.msra.mxu0 0.0
        %2462 = vmatprep.subr.mxu0 0.0
        %2463 = vmatpush1.msra.mxu0 0.0
        %2464 = vmatprep.subr.mxu0 0.0
        %2465 = vmatpush1.msra.mxu0 0.0
        %2466 = vmatprep.subr.mxu0 0.0
        %2467 = vmatpush1.msra.mxu0 0.0
        %2468 = vmatprep.subr.mxu0 0.0
        %2469 = vmatpush1.msra.mxu0 0.0
        %2470 = vmatprep.subr.mxu0 0.0
        %2471 = vmatpush1.msra.mxu0 0.0
        %2472 = vmatprep.subr.mxu0 0.0
        %2473 = vmatpush1.msra.mxu0 0.0
        %2474 = vmatprep.subr.mxu0 0.0
        %2475 = vmatpush1.msra.mxu0 0.0
        %2476 = vmatprep.subr.mxu0 0.0
        %2477 = vmatpush1.msra.mxu0 0.0
        %2478 = vmatprep.subr.mxu0 0.0
        %2479 = vmatpush1.msra.mxu0 0.0
        %2480 = vmatprep.mubr.f32.mxu0 0.0
        %2481 = vmatmul.mubr.f32.gmra.mrb[0].mxu0 %v912
        %v2482 = vpop.f32.mrb[0].mxu0
        %v2483 = vadd.f32 0.0, %v2482
        %v2484 = vpop.f32.mrb[0].mxu0
        %2485 = vmatprep.mubr.f32.mxu0 0.0
        %2486 = vmatmul.mubr.f32.gmra.mrb[0].mxu0 %v915
        %v2487 = vpop.f32.mrb[0].mxu0
        %v2488 = vadd.f32 0.0, %v2487
        %v2489 = vpop.f32.mrb[0].mxu0
        %2490 = vmatprep.mubr.f32.mxu0 0.0
        %2491 = vmatmul.mubr.f32.gmra.mrb[0].mxu0 %v918
        %v2492 = vpop.f32.mrb[0].mxu0
        %v2493 = vadd.f32 0.0, %v2492
        %v2494 = vpop.f32.mrb[0].mxu0
        %2495 = vmatprep.mubr.f32.mxu0 0.0
        %2496 = vmatmul.mubr.f32.gmra.mrb[0].mxu0 %v921
        %v2497 = vpop.f32.mrb[0].mxu0
        %v2498 = vadd.f32 0.0, %v2497
        %v2499 = vpop.f32.mrb[0].mxu0
        %2500 = vmatprep.mubr.f32.mxu0 0.0
        %2501 = vmatmul.mubr.f32.gmra.mrb[0].mxu0 %v924
        %v2502 = vpop.f32.mrb[0].mxu0
        %v2503 = vadd.f32 0.0, %v2502
        %v2504 = vpop.f32.mrb[0].mxu0
        %2505 = vmatprep.mubr.f32.mxu0 0.0
        %2506 = vmatmul.mubr.f32.gmra.mrb[0].mxu0 %v927
        %v2507 = vpop.f32.mrb[0].mxu0
        %v2508 = vadd.f32 0.0, %v2507
        %v2509 = vpop.f32.mrb[0].mxu0
        %2510 = vmatprep.mubr.f32.mxu0 0.0
        %2511 = vmatmul.mubr.f32.gmra.mrb[0].mxu0 %v930
        %v2512 = vpop.f32.mrb[0].mxu0
        %v2513 = vadd.f32 0.0, %v2512
        %v2514 = vpop.f32.mrb[0].mxu0
        %2515 = vmatprep.mubr.f32.mxu0 0.0
        %2516 = vmatmul.mubr.f32.gmra.mrb[0].mxu0 %v933
        %v2517 = vpop.f32.mrb[0].mxu0
        %v2518 = vadd.f32 0.0, %v2517
        %v2519 = vpop.f32.mrb[0].mxu0
        %2520 = vmatprep.mubr.f32.mxu0 0.0
        %2521 = vmatmul.mubr.f32.gmra.mrb[0].mxu0 %v936
        %v2522 = vpop.f32.mrb[0].mxu0
        %v2523 = vadd.f32 0.0, %v2522
        %v2524 = vpop.f32.mrb[0].mxu0
        %2525 = vmatprep.mubr.f32.mxu0 0.0
        %2526 = vmatmul.mubr.f32.gmra.mrb[0].mxu0 %v939
        %v2527 = vpop.f32.mrb[0].mxu0
        %v2528 = vadd.f32 0.0, %v2527
        %v2529 = vpop.f32.mrb[0].mxu0
        %2530 = vmatprep.mubr.f32.mxu0 0.0
        %2531 = vmatmul.mubr.f32.gmra.mrb[0].mxu0 %v942
        %v2532 = vpop.f32.mrb[0].mxu0
        %v2533 = vadd.f32 0.0, %v2532
        %v2534 = vpop.f32.mrb[0].mxu0
        %2535 = vmatprep.mubr.f32.mxu0 0.0
        %2536 = vmatmul.mubr.f32.gmra.mrb[0].mxu0 %v945
        %v2537 = vpop.f32.mrb[0].mxu0
        %v2538 = vadd.f32 0.0, %v2537
        %v2539 = vpop.f32.mrb[0].mxu0
        %2540 = vmatprep.mubr.f32.mxu0 0.0
        %2541 = vmatmul.mubr.f32.gmra.mrb[0].mxu0 %v948
        %v2542 = vpop.f32.mrb[0].mxu0
        %v2543 = vadd.f32 0.0, %v2542
        %v2544 = vpop.f32.mrb[0].mxu0
        %2545 = vmatprep.mubr.f32.mxu0 0.0
        %2546 = vmatmul.mubr.f32.gmra.mrb[0].mxu0 %v951
        %v2547 = vpop.f32.mrb[0].mxu0
        %v2548 = vadd.f32 0.0, %v2547
        %v2549 = vpop.f32.mrb[0].mxu0
        %2550 = vmatprep.mubr.f32.mxu0 0.0
        %2551 = vmatmul.mubr.f32.gmra.mrb[0].mxu0 %v954
        %v2552 = vpop.f32.mrb[0].mxu0
        %v2553 = vadd.f32 0.0, %v2552
        %v2554 = vpop.f32.mrb[0].mxu0
        %2555 = vmatprep.mubr.f32.mxu0 0.0
        %2556 = vmatmul.mubr.f32.gmra.mrb[0].mxu0 %v957
        %v2557 = vpop.f32.mrb[0].mxu0
        %v2558 = vadd.f32 0.0, %v2557
        %v2559 = vpop.f32.mrb[0].mxu0
        %2560 = vdwg.mxu0
        %s2561 = scalar_lea.vmem %s220, 1152 [#allocation7]
        %2562 = vst [vmem:[%s2561] sm:$0xff] %v2483
        %2563 = vst [vmem:[%s2561 + $0x8] sm:$0xff] %v2488
        %2564 = vst [vmem:[%s2561 + $0x10] sm:$0xff] %v2493
        %2565 = vst [vmem:[%s2561 + $0x18] sm:$0xff] %v2498
        %2566 = vst [vmem:[%s2561 + $0x20] sm:$0xff] %v2503
        %2567 = vst [vmem:[%s2561 + $0x28] sm:$0xff] %v2508
        %2568 = vst [vmem:[%s2561 + $0x30] sm:$0xff] %v2513
        %2569 = vst [vmem:[%s2561 + $0x38] sm:$0xff] %v2518
        %2570 = vst [vmem:[%s2561 + $0x40] sm:$0xff] %v2523
        %2571 = vst [vmem:[%s2561 + $0x48] sm:$0xff] %v2528
        %2572 = vst [vmem:[%s2561 + $0x50] sm:$0xff] %v2533
        %2573 = vst [vmem:[%s2561 + $0x58] sm:$0xff] %v2538
        %2574 = vst [vmem:[%s2561 + $0x60] sm:$0xff] %v2543
        %2575 = vst [vmem:[%s2561 + $0x68] sm:$0xff] %v2548
        %2576 = vst [vmem:[%s2561 + $0x70] sm:$0xff] %v2553
        %2577 = vst [vmem:[%s2561 + $0x78] sm:$0xff] %v2558
        %2578 = vmatprep.subr.mxu0 0.0
        %2579 = vmatpush1.msra.mxu0 %v659
        %2580 = vmatprep.subr.mxu0 0.0
        %2581 = vmatpush1.msra.mxu0 %v664
        %2582 = vmatprep.subr.mxu0 0.0
        %2583 = vmatpush1.msra.mxu0 0.0
        %2584 = vmatprep.subr.mxu0 0.0
        %2585 = vmatpush1.msra.mxu0 0.0
        %2586 = vmatprep.subr.mxu0 0.0
        %2587 = vmatpush1.msra.mxu0 0.0
        %2588 = vmatprep.subr.mxu0 0.0
        %2589 = vmatpush1.msra.mxu0 0.0
        %2590 = vmatprep.subr.mxu0 0.0
        %2591 = vmatpush1.msra.mxu0 0.0
        %2592 = vmatprep.subr.mxu0 0.0
        %2593 = vmatpush1.msra.mxu0 0.0
        %2594 = vmatprep.subr.mxu0 0.0
        %2595 = vmatpush1.msra.mxu0 0.0
        %2596 = vmatprep.subr.mxu0 0.0
        %2597 = vmatpush1.msra.mxu0 0.0
        %2598 = vmatprep.subr.mxu0 0.0
        %2599 = vmatpush1.msra.mxu0 0.0
        %2600 = vmatprep.subr.mxu0 0.0
        %2601 = vmatpush1.msra.mxu0 0.0
        %2602 = vmatprep.subr.mxu0 0.0
        %2603 = vmatpush1.msra.mxu0 0.0
        %2604 = vmatprep.subr.mxu0 0.0
        %2605 = vmatpush1.msra.mxu0 0.0
        %2606 = vmatprep.subr.mxu0 0.0
        %2607 = vmatpush1.msra.mxu0 0.0
        %2608 = vmatprep.subr.mxu0 0.0
        %2609 = vmatpush1.msra.mxu0 0.0
        %2610 = vmatprep.subr.mxu0 0.0
        %2611 = vmatpush1.msra.mxu0 0.0
        %2612 = vmatprep.subr.mxu0 0.0
        %2613 = vmatpush1.msra.mxu0 0.0
        %2614 = vmatprep.subr.mxu0 0.0
        %2615 = vmatpush1.msra.mxu0 0.0
        %2616 = vmatprep.subr.mxu0 0.0
        %2617 = vmatpush1.msra.mxu0 0.0
        %2618 = vmatprep.subr.mxu0 0.0
        %2619 = vmatpush1.msra.mxu0 0.0
        %2620 = vmatprep.subr.mxu0 0.0
        %2621 = vmatpush1.msra.mxu0 0.0
        %2622 = vmatprep.subr.mxu0 0.0
        %2623 = vmatpush1.msra.mxu0 0.0
        %2624 = vmatprep.subr.mxu0 0.0
        %2625 = vmatpush1.msra.mxu0 0.0
        %2626 = vmatprep.subr.mxu0 0.0
        %2627 = vmatpush1.msra.mxu0 0.0
        %2628 = vmatprep.subr.mxu0 0.0
        %2629 = vmatpush1.msra.mxu0 0.0
        %2630 = vmatprep.subr.mxu0 0.0
        %2631 = vmatpush1.msra.mxu0 0.0
        %2632 = vmatprep.subr.mxu0 0.0
        %2633 = vmatpush1.msra.mxu0 0.0
        %2634 = vmatprep.subr.mxu0 0.0
        %2635 = vmatpush1.msra.mxu0 0.0
        %2636 = vmatprep.subr.mxu0 0.0
        %2637 = vmatpush1.msra.mxu0 0.0
        %2638 = vmatprep.subr.mxu0 0.0
        %2639 = vmatpush1.msra.mxu0 0.0
        %2640 = vmatprep.subr.mxu0 0.0
        %2641 = vmatpush1.msra.mxu0 0.0
        %2642 = vmatprep.mubr.f32.mxu0 0.0
        %2643 = vmatmul.mubr.f32.gmra.mrb[0].mxu0 %v912
        %v2644 = vpop.f32.mrb[0].mxu0
        %v2645 = vadd.f32 0.0, %v2644
        %v2646 = vpop.f32.mrb[0].mxu0
        %2647 = vmatprep.mubr.f32.mxu0 0.0
        %2648 = vmatmul.mubr.f32.gmra.mrb[0].mxu0 %v915
        %v2649 = vpop.f32.mrb[0].mxu0
        %v2650 = vadd.f32 0.0, %v2649
        %v2651 = vpop.f32.mrb[0].mxu0
        %2652 = vmatprep.mubr.f32.mxu0 0.0
        %2653 = vmatmul.mubr.f32.gmra.mrb[0].mxu0 %v918
        %v2654 = vpop.f32.mrb[0].mxu0
        %v2655 = vadd.f32 0.0, %v2654
        %v2656 = vpop.f32.mrb[0].mxu0
        %2657 = vmatprep.mubr.f32.mxu0 0.0
        %2658 = vmatmul.mubr.f32.gmra.mrb[0].mxu0 %v921
        %v2659 = vpop.f32.mrb[0].mxu0
        %v2660 = vadd.f32 0.0, %v2659
        %v2661 = vpop.f32.mrb[0].mxu0
        %2662 = vmatprep.mubr.f32.mxu0 0.0
        %2663 = vmatmul.mubr.f32.gmra.mrb[0].mxu0 %v924
        %v2664 = vpop.f32.mrb[0].mxu0
        %v2665 = vadd.f32 0.0, %v2664
        %v2666 = vpop.f32.mrb[0].mxu0
        %2667 = vmatprep.mubr.f32.mxu0 0.0
        %2668 = vmatmul.mubr.f32.gmra.mrb[0].mxu0 %v927
        %v2669 = vpop.f32.mrb[0].mxu0
        %v2670 = vadd.f32 0.0, %v2669
        %v2671 = vpop.f32.mrb[0].mxu0
        %2672 = vmatprep.mubr.f32.mxu0 0.0
        %2673 = vmatmul.mubr.f32.gmra.mrb[0].mxu0 %v930
        %v2674 = vpop.f32.mrb[0].mxu0
        %v2675 = vadd.f32 0.0, %v2674
        %v2676 = vpop.f32.mrb[0].mxu0
        %2677 = vmatprep.mubr.f32.mxu0 0.0
        %2678 = vmatmul.mubr.f32.gmra.mrb[0].mxu0 %v933
        %v2679 = vpop.f32.mrb[0].mxu0
        %v2680 = vadd.f32 0.0, %v2679
        %v2681 = vpop.f32.mrb[0].mxu0
        %2682 = vmatprep.mubr.f32.mxu0 0.0
        %2683 = vmatmul.mubr.f32.gmra.mrb[0].mxu0 %v936
        %v2684 = vpop.f32.mrb[0].mxu0
        %v2685 = vadd.f32 0.0, %v2684
        %v2686 = vpop.f32.mrb[0].mxu0
        %2687 = vmatprep.mubr.f32.mxu0 0.0
        %2688 = vmatmul.mubr.f32.gmra.mrb[0].mxu0 %v939
        %v2689 = vpop.f32.mrb[0].mxu0
        %v2690 = vadd.f32 0.0, %v2689
        %v2691 = vpop.f32.mrb[0].mxu0
        %2692 = vmatprep.mubr.f32.mxu0 0.0
        %2693 = vmatmul.mubr.f32.gmra.mrb[0].mxu0 %v942
        %v2694 = vpop.f32.mrb[0].mxu0
        %v2695 = vadd.f32 0.0, %v2694
        %v2696 = vpop.f32.mrb[0].mxu0
        %2697 = vmatprep.mubr.f32.mxu0 0.0
        %2698 = vmatmul.mubr.f32.gmra.mrb[0].mxu0 %v945
        %v2699 = vpop.f32.mrb[0].mxu0
        %v2700 = vadd.f32 0.0, %v2699
        %v2701 = vpop.f32.mrb[0].mxu0
        %2702 = vmatprep.mubr.f32.mxu0 0.0
        %2703 = vmatmul.mubr.f32.gmra.mrb[0].mxu0 %v948
        %v2704 = vpop.f32.mrb[0].mxu0
        %v2705 = vadd.f32 0.0, %v2704
        %v2706 = vpop.f32.mrb[0].mxu0
        %2707 = vmatprep.mubr.f32.mxu0 0.0
        %2708 = vmatmul.mubr.f32.gmra.mrb[0].mxu0 %v951
        %v2709 = vpop.f32.mrb[0].mxu0
        %v2710 = vadd.f32 0.0, %v2709
        %v2711 = vpop.f32.mrb[0].mxu0
        %2712 = vmatprep.mubr.f32.mxu0 0.0
        %2713 = vmatmul.mubr.f32.gmra.mrb[0].mxu0 %v954
        %v2714 = vpop.f32.mrb[0].mxu0
        %v2715 = vadd.f32 0.0, %v2714
        %v2716 = vpop.f32.mrb[0].mxu0
        %2717 = vmatprep.mubr.f32.mxu0 0.0
        %2718 = vmatmul.mubr.f32.gmra.mrb[0].mxu0 %v957
        %v2719 = vpop.f32.mrb[0].mxu0
        %v2720 = vadd.f32 0.0, %v2719
        %v2721 = vpop.f32.mrb[0].mxu0
        %2722 = vdwg.mxu0
        %s2723 = scalar_lea.vmem %s220, 1280 [#allocation7]
        %2724 = vst [vmem:[%s2723] sm:$0xff] %v2645
        %2725 = vst [vmem:[%s2723 + $0x8] sm:$0xff] %v2650
        %2726 = vst [vmem:[%s2723 + $0x10] sm:$0xff] %v2655
        %2727 = vst [vmem:[%s2723 + $0x18] sm:$0xff] %v2660
        %2728 = vst [vmem:[%s2723 + $0x20] sm:$0xff] %v2665
        %2729 = vst [vmem:[%s2723 + $0x28] sm:$0xff] %v2670
        %2730 = vst [vmem:[%s2723 + $0x30] sm:$0xff] %v2675
        %2731 = vst [vmem:[%s2723 + $0x38] sm:$0xff] %v2680
        %2732 = vst [vmem:[%s2723 + $0x40] sm:$0xff] %v2685
        %2733 = vst [vmem:[%s2723 + $0x48] sm:$0xff] %v2690
        %2734 = vst [vmem:[%s2723 + $0x50] sm:$0xff] %v2695
        %2735 = vst [vmem:[%s2723 + $0x58] sm:$0xff] %v2700
        %2736 = vst [vmem:[%s2723 + $0x60] sm:$0xff] %v2705
        %2737 = vst [vmem:[%s2723 + $0x68] sm:$0xff] %v2710
        %2738 = vst [vmem:[%s2723 + $0x70] sm:$0xff] %v2715
        %2739 = vst [vmem:[%s2723 + $0x78] sm:$0xff] %v2720
        %2740 = vmatprep.subr.mxu0 0.0
        %2741 = vmatpush1.msra.mxu0 %v669
        %2742 = vmatprep.subr.mxu0 0.0
        %2743 = vmatpush1.msra.mxu0 %v674
        %2744 = vmatprep.subr.mxu0 0.0
        %2745 = vmatpush1.msra.mxu0 0.0
        %2746 = vmatprep.subr.mxu0 0.0
        %2747 = vmatpush1.msra.mxu0 0.0
        %2748 = vmatprep.subr.mxu0 0.0
        %2749 = vmatpush1.msra.mxu0 0.0
        %2750 = vmatprep.subr.mxu0 0.0
        %2751 = vmatpush1.msra.mxu0 0.0
        %2752 = vmatprep.subr.mxu0 0.0
        %2753 = vmatpush1.msra.mxu0 0.0
        %2754 = vmatprep.subr.mxu0 0.0
        %2755 = vmatpush1.msra.mxu0 0.0
        %2756 = vmatprep.subr.mxu0 0.0
        %2757 = vmatpush1.msra.mxu0 0.0
        %2758 = vmatprep.subr.mxu0 0.0
        %2759 = vmatpush1.msra.mxu0 0.0
        %2760 = vmatprep.subr.mxu0 0.0
        %2761 = vmatpush1.msra.mxu0 0.0
        %2762 = vmatprep.subr.mxu0 0.0
        %2763 = vmatpush1.msra.mxu0 0.0
        %2764 = vmatprep.subr.mxu0 0.0
        %2765 = vmatpush1.msra.mxu0 0.0
        %2766 = vmatprep.subr.mxu0 0.0
        %2767 = vmatpush1.msra.mxu0 0.0
        %2768 = vmatprep.subr.mxu0 0.0
        %2769 = vmatpush1.msra.mxu0 0.0
        %2770 = vmatprep.subr.mxu0 0.0
        %2771 = vmatpush1.msra.mxu0 0.0
        %2772 = vmatprep.subr.mxu0 0.0
        %2773 = vmatpush1.msra.mxu0 0.0
        %2774 = vmatprep.subr.mxu0 0.0
        %2775 = vmatpush1.msra.mxu0 0.0
        %2776 = vmatprep.subr.mxu0 0.0
        %2777 = vmatpush1.msra.mxu0 0.0
        %2778 = vmatprep.subr.mxu0 0.0
        %2779 = vmatpush1.msra.mxu0 0.0
        %2780 = vmatprep.subr.mxu0 0.0
        %2781 = vmatpush1.msra.mxu0 0.0
        %2782 = vmatprep.subr.mxu0 0.0
        %2783 = vmatpush1.msra.mxu0 0.0
        %2784 = vmatprep.subr.mxu0 0.0
        %2785 = vmatpush1.msra.mxu0 0.0
        %2786 = vmatprep.subr.mxu0 0.0
        %2787 = vmatpush1.msra.mxu0 0.0
        %2788 = vmatprep.subr.mxu0 0.0
        %2789 = vmatpush1.msra.mxu0 0.0
        %2790 = vmatprep.subr.mxu0 0.0
        %2791 = vmatpush1.msra.mxu0 0.0
        %2792 = vmatprep.subr.mxu0 0.0
        %2793 = vmatpush1.msra.mxu0 0.0
        %2794 = vmatprep.subr.mxu0 0.0
        %2795 = vmatpush1.msra.mxu0 0.0
        %2796 = vmatprep.subr.mxu0 0.0
        %2797 = vmatpush1.msra.mxu0 0.0
        %2798 = vmatprep.subr.mxu0 0.0
        %2799 = vmatpush1.msra.mxu0 0.0
        %2800 = vmatprep.subr.mxu0 0.0
        %2801 = vmatpush1.msra.mxu0 0.0
        %2802 = vmatprep.subr.mxu0 0.0
        %2803 = vmatpush1.msra.mxu0 0.0
        %2804 = vmatprep.mubr.f32.mxu0 0.0
        %2805 = vmatmul.mubr.f32.gmra.mrb[0].mxu0 %v912
        %v2806 = vpop.f32.mrb[0].mxu0
        %v2807 = vadd.f32 0.0, %v2806
        %v2808 = vpop.f32.mrb[0].mxu0
        %2809 = vmatprep.mubr.f32.mxu0 0.0
        %2810 = vmatmul.mubr.f32.gmra.mrb[0].mxu0 %v915
        %v2811 = vpop.f32.mrb[0].mxu0
        %v2812 = vadd.f32 0.0, %v2811
        %v2813 = vpop.f32.mrb[0].mxu0
        %2814 = vmatprep.mubr.f32.mxu0 0.0
        %2815 = vmatmul.mubr.f32.gmra.mrb[0].mxu0 %v918
        %v2816 = vpop.f32.mrb[0].mxu0
        %v2817 = vadd.f32 0.0, %v2816
        %v2818 = vpop.f32.mrb[0].mxu0
        %2819 = vmatprep.mubr.f32.mxu0 0.0
        %2820 = vmatmul.mubr.f32.gmra.mrb[0].mxu0 %v921
        %v2821 = vpop.f32.mrb[0].mxu0
        %v2822 = vadd.f32 0.0, %v2821
        %v2823 = vpop.f32.mrb[0].mxu0
        %2824 = vmatprep.mubr.f32.mxu0 0.0
        %2825 = vmatmul.mubr.f32.gmra.mrb[0].mxu0 %v924
        %v2826 = vpop.f32.mrb[0].mxu0
        %v2827 = vadd.f32 0.0, %v2826
        %v2828 = vpop.f32.mrb[0].mxu0
        %2829 = vmatprep.mubr.f32.mxu0 0.0
        %2830 = vmatmul.mubr.f32.gmra.mrb[0].mxu0 %v927
        %v2831 = vpop.f32.mrb[0].mxu0
        %v2832 = vadd.f32 0.0, %v2831
        %v2833 = vpop.f32.mrb[0].mxu0
        %2834 = vmatprep.mubr.f32.mxu0 0.0
        %2835 = vmatmul.mubr.f32.gmra.mrb[0].mxu0 %v930
        %v2836 = vpop.f32.mrb[0].mxu0
        %v2837 = vadd.f32 0.0, %v2836
        %v2838 = vpop.f32.mrb[0].mxu0
        %2839 = vmatprep.mubr.f32.mxu0 0.0
        %2840 = vmatmul.mubr.f32.gmra.mrb[0].mxu0 %v933
        %v2841 = vpop.f32.mrb[0].mxu0
        %v2842 = vadd.f32 0.0, %v2841
        %v2843 = vpop.f32.mrb[0].mxu0
        %2844 = vmatprep.mubr.f32.mxu0 0.0
        %2845 = vmatmul.mubr.f32.gmra.mrb[0].mxu0 %v936
        %v2846 = vpop.f32.mrb[0].mxu0
        %v2847 = vadd.f32 0.0, %v2846
        %v2848 = vpop.f32.mrb[0].mxu0
        %2849 = vmatprep.mubr.f32.mxu0 0.0
        %2850 = vmatmul.mubr.f32.gmra.mrb[0].mxu0 %v939
        %v2851 = vpop.f32.mrb[0].mxu0
        %v2852 = vadd.f32 0.0, %v2851
        %v2853 = vpop.f32.mrb[0].mxu0
        %2854 = vmatprep.mubr.f32.mxu0 0.0
        %2855 = vmatmul.mubr.f32.gmra.mrb[0].mxu0 %v942
        %v2856 = vpop.f32.mrb[0].mxu0
        %v2857 = vadd.f32 0.0, %v2856
        %v2858 = vpop.f32.mrb[0].mxu0
        %2859 = vmatprep.mubr.f32.mxu0 0.0
        %2860 = vmatmul.mubr.f32.gmra.mrb[0].mxu0 %v945
        %v2861 = vpop.f32.mrb[0].mxu0
        %v2862 = vadd.f32 0.0, %v2861
        %v2863 = vpop.f32.mrb[0].mxu0
        %2864 = vmatprep.mubr.f32.mxu0 0.0
        %2865 = vmatmul.mubr.f32.gmra.mrb[0].mxu0 %v948
        %v2866 = vpop.f32.mrb[0].mxu0
        %v2867 = vadd.f32 0.0, %v2866
        %v2868 = vpop.f32.mrb[0].mxu0
        %2869 = vmatprep.mubr.f32.mxu0 0.0
        %2870 = vmatmul.mubr.f32.gmra.mrb[0].mxu0 %v951
        %v2871 = vpop.f32.mrb[0].mxu0
        %v2872 = vadd.f32 0.0, %v2871
        %v2873 = vpop.f32.mrb[0].mxu0
        %2874 = vmatprep.mubr.f32.mxu0 0.0
        %2875 = vmatmul.mubr.f32.gmra.mrb[0].mxu0 %v954
        %v2876 = vpop.f32.mrb[0].mxu0
        %v2877 = vadd.f32 0.0, %v2876
        %v2878 = vpop.f32.mrb[0].mxu0
        %2879 = vmatprep.mubr.f32.mxu0 0.0
        %2880 = vmatmul.mubr.f32.gmra.mrb[0].mxu0 %v957
        %v2881 = vpop.f32.mrb[0].mxu0
        %v2882 = vadd.f32 0.0, %v2881
        %v2883 = vpop.f32.mrb[0].mxu0
        %2884 = vdwg.mxu0
        %s2885 = scalar_lea.vmem %s220, 1408 [#allocation7]
        %2886 = vst [vmem:[%s2885] sm:$0xff] %v2807
        %2887 = vst [vmem:[%s2885 + $0x8] sm:$0xff] %v2812
        %2888 = vst [vmem:[%s2885 + $0x10] sm:$0xff] %v2817
        %2889 = vst [vmem:[%s2885 + $0x18] sm:$0xff] %v2822
        %2890 = vst [vmem:[%s2885 + $0x20] sm:$0xff] %v2827
        %2891 = vst [vmem:[%s2885 + $0x28] sm:$0xff] %v2832
        %2892 = vst [vmem:[%s2885 + $0x30] sm:$0xff] %v2837
        %2893 = vst [vmem:[%s2885 + $0x38] sm:$0xff] %v2842
        %2894 = vst [vmem:[%s2885 + $0x40] sm:$0xff] %v2847
        %2895 = vst [vmem:[%s2885 + $0x48] sm:$0xff] %v2852
        %2896 = vst [vmem:[%s2885 + $0x50] sm:$0xff] %v2857
        %2897 = vst [vmem:[%s2885 + $0x58] sm:$0xff] %v2862
        %2898 = vst [vmem:[%s2885 + $0x60] sm:$0xff] %v2867
        %2899 = vst [vmem:[%s2885 + $0x68] sm:$0xff] %v2872
        %2900 = vst [vmem:[%s2885 + $0x70] sm:$0xff] %v2877
        %2901 = vst [vmem:[%s2885 + $0x78] sm:$0xff] %v2882
        %2902 = vmatprep.subr.mxu0 0.0
        %2903 = vmatpush1.msra.mxu0 %v679
        %2904 = vmatprep.subr.mxu0 0.0
        %2905 = vmatpush1.msra.mxu0 %v684
        %2906 = vmatprep.subr.mxu0 0.0
        %2907 = vmatpush1.msra.mxu0 0.0
        %2908 = vmatprep.subr.mxu0 0.0
        %2909 = vmatpush1.msra.mxu0 0.0
        %2910 = vmatprep.subr.mxu0 0.0
        %2911 = vmatpush1.msra.mxu0 0.0
        %2912 = vmatprep.subr.mxu0 0.0
        %2913 = vmatpush1.msra.mxu0 0.0
        %2914 = vmatprep.subr.mxu0 0.0
        %2915 = vmatpush1.msra.mxu0 0.0
        %2916 = vmatprep.subr.mxu0 0.0
        %2917 = vmatpush1.msra.mxu0 0.0
        %2918 = vmatprep.subr.mxu0 0.0
        %2919 = vmatpush1.msra.mxu0 0.0
        %2920 = vmatprep.subr.mxu0 0.0
        %2921 = vmatpush1.msra.mxu0 0.0
        %2922 = vmatprep.subr.mxu0 0.0
        %2923 = vmatpush1.msra.mxu0 0.0
        %2924 = vmatprep.subr.mxu0 0.0
        %2925 = vmatpush1.msra.mxu0 0.0
        %2926 = vmatprep.subr.mxu0 0.0
        %2927 = vmatpush1.msra.mxu0 0.0
        %2928 = vmatprep.subr.mxu0 0.0
        %2929 = vmatpush1.msra.mxu0 0.0
        %2930 = vmatprep.subr.mxu0 0.0
        %2931 = vmatpush1.msra.mxu0 0.0
        %2932 = vmatprep.subr.mxu0 0.0
        %2933 = vmatpush1.msra.mxu0 0.0
        %2934 = vmatprep.subr.mxu0 0.0
        %2935 = vmatpush1.msra.mxu0 0.0
        %2936 = vmatprep.subr.mxu0 0.0
        %2937 = vmatpush1.msra.mxu0 0.0
        %2938 = vmatprep.subr.mxu0 0.0
        %2939 = vmatpush1.msra.mxu0 0.0
        %2940 = vmatprep.subr.mxu0 0.0
        %2941 = vmatpush1.msra.mxu0 0.0
        %2942 = vmatprep.subr.mxu0 0.0
        %2943 = vmatpush1.msra.mxu0 0.0
        %2944 = vmatprep.subr.mxu0 0.0
        %2945 = vmatpush1.msra.mxu0 0.0
        %2946 = vmatprep.subr.mxu0 0.0
        %2947 = vmatpush1.msra.mxu0 0.0
        %2948 = vmatprep.subr.mxu0 0.0
        %2949 = vmatpush1.msra.mxu0 0.0
        %2950 = vmatprep.subr.mxu0 0.0
        %2951 = vmatpush1.msra.mxu0 0.0
        %2952 = vmatprep.subr.mxu0 0.0
        %2953 = vmatpush1.msra.mxu0 0.0
        %2954 = vmatprep.subr.mxu0 0.0
        %2955 = vmatpush1.msra.mxu0 0.0
        %2956 = vmatprep.subr.mxu0 0.0
        %2957 = vmatpush1.msra.mxu0 0.0
        %2958 = vmatprep.subr.mxu0 0.0
        %2959 = vmatpush1.msra.mxu0 0.0
        %2960 = vmatprep.subr.mxu0 0.0
        %2961 = vmatpush1.msra.mxu0 0.0
        %2962 = vmatprep.subr.mxu0 0.0
        %2963 = vmatpush1.msra.mxu0 0.0
        %2964 = vmatprep.subr.mxu0 0.0
        %2965 = vmatpush1.msra.mxu0 0.0
        %2966 = vmatprep.mubr.f32.mxu0 0.0
        %2967 = vmatmul.mubr.f32.gmra.mrb[0].mxu0 %v912
        %v2968 = vpop.f32.mrb[0].mxu0
        %v2969 = vadd.f32 0.0, %v2968
        %v2970 = vpop.f32.mrb[0].mxu0
        %2971 = vmatprep.mubr.f32.mxu0 0.0
        %2972 = vmatmul.mubr.f32.gmra.mrb[0].mxu0 %v915
        %v2973 = vpop.f32.mrb[0].mxu0
        %v2974 = vadd.f32 0.0, %v2973
        %v2975 = vpop.f32.mrb[0].mxu0
        %2976 = vmatprep.mubr.f32.mxu0 0.0
        %2977 = vmatmul.mubr.f32.gmra.mrb[0].mxu0 %v918
        %v2978 = vpop.f32.mrb[0].mxu0
        %v2979 = vadd.f32 0.0, %v2978
        %v2980 = vpop.f32.mrb[0].mxu0
        %2981 = vmatprep.mubr.f32.mxu0 0.0
        %2982 = vmatmul.mubr.f32.gmra.mrb[0].mxu0 %v921
        %v2983 = vpop.f32.mrb[0].mxu0
        %v2984 = vadd.f32 0.0, %v2983
        %v2985 = vpop.f32.mrb[0].mxu0
        %2986 = vmatprep.mubr.f32.mxu0 0.0
        %2987 = vmatmul.mubr.f32.gmra.mrb[0].mxu0 %v924
        %v2988 = vpop.f32.mrb[0].mxu0
        %v2989 = vadd.f32 0.0, %v2988
        %v2990 = vpop.f32.mrb[0].mxu0
        %2991 = vmatprep.mubr.f32.mxu0 0.0
        %2992 = vmatmul.mubr.f32.gmra.mrb[0].mxu0 %v927
        %v2993 = vpop.f32.mrb[0].mxu0
        %v2994 = vadd.f32 0.0, %v2993
        %v2995 = vpop.f32.mrb[0].mxu0
        %2996 = vmatprep.mubr.f32.mxu0 0.0
        %2997 = vmatmul.mubr.f32.gmra.mrb[0].mxu0 %v930
        %v2998 = vpop.f32.mrb[0].mxu0
        %v2999 = vadd.f32 0.0, %v2998
        %v3000 = vpop.f32.mrb[0].mxu0
        %3001 = vmatprep.mubr.f32.mxu0 0.0
        %3002 = vmatmul.mubr.f32.gmra.mrb[0].mxu0 %v933
        %v3003 = vpop.f32.mrb[0].mxu0
        %v3004 = vadd.f32 0.0, %v3003
        %v3005 = vpop.f32.mrb[0].mxu0
        %3006 = vmatprep.mubr.f32.mxu0 0.0
        %3007 = vmatmul.mubr.f32.gmra.mrb[0].mxu0 %v936
        %v3008 = vpop.f32.mrb[0].mxu0
        %v3009 = vadd.f32 0.0, %v3008
        %v3010 = vpop.f32.mrb[0].mxu0
        %3011 = vmatprep.mubr.f32.mxu0 0.0
        %3012 = vmatmul.mubr.f32.gmra.mrb[0].mxu0 %v939
        %v3013 = vpop.f32.mrb[0].mxu0
        %v3014 = vadd.f32 0.0, %v3013
        %v3015 = vpop.f32.mrb[0].mxu0
        %3016 = vmatprep.mubr.f32.mxu0 0.0
        %3017 = vmatmul.mubr.f32.gmra.mrb[0].mxu0 %v942
        %v3018 = vpop.f32.mrb[0].mxu0
        %v3019 = vadd.f32 0.0, %v3018
        %v3020 = vpop.f32.mrb[0].mxu0
        %3021 = vmatprep.mubr.f32.mxu0 0.0
        %3022 = vmatmul.mubr.f32.gmra.mrb[0].mxu0 %v945
        %v3023 = vpop.f32.mrb[0].mxu0
        %v3024 = vadd.f32 0.0, %v3023
        %v3025 = vpop.f32.mrb[0].mxu0
        %3026 = vmatprep.mubr.f32.mxu0 0.0
        %3027 = vmatmul.mubr.f32.gmra.mrb[0].mxu0 %v948
        %v3028 = vpop.f32.mrb[0].mxu0
        %v3029 = vadd.f32 0.0, %v3028
        %v3030 = vpop.f32.mrb[0].mxu0
        %3031 = vmatprep.mubr.f32.mxu0 0.0
        %3032 = vmatmul.mubr.f32.gmra.mrb[0].mxu0 %v951
        %v3033 = vpop.f32.mrb[0].mxu0
        %v3034 = vadd.f32 0.0, %v3033
        %v3035 = vpop.f32.mrb[0].mxu0
        %3036 = vmatprep.mubr.f32.mxu0 0.0
        %3037 = vmatmul.mubr.f32.gmra.mrb[0].mxu0 %v954
        %v3038 = vpop.f32.mrb[0].mxu0
        %v3039 = vadd.f32 0.0, %v3038
        %v3040 = vpop.f32.mrb[0].mxu0
        %3041 = vmatprep.mubr.f32.mxu0 0.0
        %3042 = vmatmul.mubr.f32.gmra.mrb[0].mxu0 %v957
        %v3043 = vpop.f32.mrb[0].mxu0
        %v3044 = vadd.f32 0.0, %v3043
        %v3045 = vpop.f32.mrb[0].mxu0
        %3046 = vdwg.mxu0
        %s3047 = scalar_lea.vmem %s220, 1536 [#allocation7]
        %3048 = vst [vmem:[%s3047] sm:$0xff] %v2969
        %3049 = vst [vmem:[%s3047 + $0x8] sm:$0xff] %v2974
        %3050 = vst [vmem:[%s3047 + $0x10] sm:$0xff] %v2979
        %3051 = vst [vmem:[%s3047 + $0x18] sm:$0xff] %v2984
        %3052 = vst [vmem:[%s3047 + $0x20] sm:$0xff] %v2989
        %3053 = vst [vmem:[%s3047 + $0x28] sm:$0xff] %v2994
        %3054 = vst [vmem:[%s3047 + $0x30] sm:$0xff] %v2999
        %3055 = vst [vmem:[%s3047 + $0x38] sm:$0xff] %v3004
        %3056 = vst [vmem:[%s3047 + $0x40] sm:$0xff] %v3009
        %3057 = vst [vmem:[%s3047 + $0x48] sm:$0xff] %v3014
        %3058 = vst [vmem:[%s3047 + $0x50] sm:$0xff] %v3019
        %3059 = vst [vmem:[%s3047 + $0x58] sm:$0xff] %v3024
        %3060 = vst [vmem:[%s3047 + $0x60] sm:$0xff] %v3029
        %3061 = vst [vmem:[%s3047 + $0x68] sm:$0xff] %v3034
        %3062 = vst [vmem:[%s3047 + $0x70] sm:$0xff] %v3039
        %3063 = vst [vmem:[%s3047 + $0x78] sm:$0xff] %v3044
        %3064 = vmatprep.subr.mxu0 0.0
        %3065 = vmatpush1.msra.mxu0 %v689
        %3066 = vmatprep.subr.mxu0 0.0
        %3067 = vmatpush1.msra.mxu0 %v694
        %3068 = vmatprep.subr.mxu0 0.0
        %3069 = vmatpush1.msra.mxu0 0.0
        %3070 = vmatprep.subr.mxu0 0.0
        %3071 = vmatpush1.msra.mxu0 0.0
        %3072 = vmatprep.subr.mxu0 0.0
        %3073 = vmatpush1.msra.mxu0 0.0
        %3074 = vmatprep.subr.mxu0 0.0
        %3075 = vmatpush1.msra.mxu0 0.0
        %3076 = vmatprep.subr.mxu0 0.0
        %3077 = vmatpush1.msra.mxu0 0.0
        %3078 = vmatprep.subr.mxu0 0.0
        %3079 = vmatpush1.msra.mxu0 0.0
        %3080 = vmatprep.subr.mxu0 0.0
        %3081 = vmatpush1.msra.mxu0 0.0
        %3082 = vmatprep.subr.mxu0 0.0
        %3083 = vmatpush1.msra.mxu0 0.0
        %3084 = vmatprep.subr.mxu0 0.0
        %3085 = vmatpush1.msra.mxu0 0.0
        %3086 = vmatprep.subr.mxu0 0.0
        %3087 = vmatpush1.msra.mxu0 0.0
        %3088 = vmatprep.subr.mxu0 0.0
        %3089 = vmatpush1.msra.mxu0 0.0
        %3090 = vmatprep.subr.mxu0 0.0
        %3091 = vmatpush1.msra.mxu0 0.0
        %3092 = vmatprep.subr.mxu0 0.0
        %3093 = vmatpush1.msra.mxu0 0.0
        %3094 = vmatprep.subr.mxu0 0.0
        %3095 = vmatpush1.msra.mxu0 0.0
        %3096 = vmatprep.subr.mxu0 0.0
        %3097 = vmatpush1.msra.mxu0 0.0
        %3098 = vmatprep.subr.mxu0 0.0
        %3099 = vmatpush1.msra.mxu0 0.0
        %3100 = vmatprep.subr.mxu0 0.0
        %3101 = vmatpush1.msra.mxu0 0.0
        %3102 = vmatprep.subr.mxu0 0.0
        %3103 = vmatpush1.msra.mxu0 0.0
        %3104 = vmatprep.subr.mxu0 0.0
        %3105 = vmatpush1.msra.mxu0 0.0
        %3106 = vmatprep.subr.mxu0 0.0
        %3107 = vmatpush1.msra.mxu0 0.0
        %3108 = vmatprep.subr.mxu0 0.0
        %3109 = vmatpush1.msra.mxu0 0.0
        %3110 = vmatprep.subr.mxu0 0.0
        %3111 = vmatpush1.msra.mxu0 0.0
        %3112 = vmatprep.subr.mxu0 0.0
        %3113 = vmatpush1.msra.mxu0 0.0
        %3114 = vmatprep.subr.mxu0 0.0
        %3115 = vmatpush1.msra.mxu0 0.0
        %3116 = vmatprep.subr.mxu0 0.0
        %3117 = vmatpush1.msra.mxu0 0.0
        %3118 = vmatprep.subr.mxu0 0.0
        %3119 = vmatpush1.msra.mxu0 0.0
        %3120 = vmatprep.subr.mxu0 0.0
        %3121 = vmatpush1.msra.mxu0 0.0
        %3122 = vmatprep.subr.mxu0 0.0
        %3123 = vmatpush1.msra.mxu0 0.0
        %3124 = vmatprep.subr.mxu0 0.0
        %3125 = vmatpush1.msra.mxu0 0.0
        %3126 = vmatprep.subr.mxu0 0.0
        %3127 = vmatpush1.msra.mxu0 0.0
        %3128 = vmatprep.mubr.f32.mxu0 0.0
        %3129 = vmatmul.mubr.f32.gmra.mrb[0].mxu0 %v912
        %v3130 = vpop.f32.mrb[0].mxu0
        %v3131 = vadd.f32 0.0, %v3130
        %v3132 = vpop.f32.mrb[0].mxu0
        %3133 = vmatprep.mubr.f32.mxu0 0.0
        %3134 = vmatmul.mubr.f32.gmra.mrb[0].mxu0 %v915
        %v3135 = vpop.f32.mrb[0].mxu0
        %v3136 = vadd.f32 0.0, %v3135
        %v3137 = vpop.f32.mrb[0].mxu0
        %3138 = vmatprep.mubr.f32.mxu0 0.0
        %3139 = vmatmul.mubr.f32.gmra.mrb[0].mxu0 %v918
        %v3140 = vpop.f32.mrb[0].mxu0
        %v3141 = vadd.f32 0.0, %v3140
        %v3142 = vpop.f32.mrb[0].mxu0
        %3143 = vmatprep.mubr.f32.mxu0 0.0
        %3144 = vmatmul.mubr.f32.gmra.mrb[0].mxu0 %v921
        %v3145 = vpop.f32.mrb[0].mxu0
        %v3146 = vadd.f32 0.0, %v3145
        %v3147 = vpop.f32.mrb[0].mxu0
        %3148 = vmatprep.mubr.f32.mxu0 0.0
        %3149 = vmatmul.mubr.f32.gmra.mrb[0].mxu0 %v924
        %v3150 = vpop.f32.mrb[0].mxu0
        %v3151 = vadd.f32 0.0, %v3150
        %v3152 = vpop.f32.mrb[0].mxu0
        %3153 = vmatprep.mubr.f32.mxu0 0.0
        %3154 = vmatmul.mubr.f32.gmra.mrb[0].mxu0 %v927
        %v3155 = vpop.f32.mrb[0].mxu0
        %v3156 = vadd.f32 0.0, %v3155
        %v3157 = vpop.f32.mrb[0].mxu0
        %3158 = vmatprep.mubr.f32.mxu0 0.0
        %3159 = vmatmul.mubr.f32.gmra.mrb[0].mxu0 %v930
        %v3160 = vpop.f32.mrb[0].mxu0
        %v3161 = vadd.f32 0.0, %v3160
        %v3162 = vpop.f32.mrb[0].mxu0
        %3163 = vmatprep.mubr.f32.mxu0 0.0
        %3164 = vmatmul.mubr.f32.gmra.mrb[0].mxu0 %v933
        %v3165 = vpop.f32.mrb[0].mxu0
        %v3166 = vadd.f32 0.0, %v3165
        %v3167 = vpop.f32.mrb[0].mxu0
        %3168 = vmatprep.mubr.f32.mxu0 0.0
        %3169 = vmatmul.mubr.f32.gmra.mrb[0].mxu0 %v936
        %v3170 = vpop.f32.mrb[0].mxu0
        %v3171 = vadd.f32 0.0, %v3170
        %v3172 = vpop.f32.mrb[0].mxu0
        %3173 = vmatprep.mubr.f32.mxu0 0.0
        %3174 = vmatmul.mubr.f32.gmra.mrb[0].mxu0 %v939
        %v3175 = vpop.f32.mrb[0].mxu0
        %v3176 = vadd.f32 0.0, %v3175
        %v3177 = vpop.f32.mrb[0].mxu0
        %3178 = vmatprep.mubr.f32.mxu0 0.0
        %3179 = vmatmul.mubr.f32.gmra.mrb[0].mxu0 %v942
        %v3180 = vpop.f32.mrb[0].mxu0
        %v3181 = vadd.f32 0.0, %v3180
        %v3182 = vpop.f32.mrb[0].mxu0
        %3183 = vmatprep.mubr.f32.mxu0 0.0
        %3184 = vmatmul.mubr.f32.gmra.mrb[0].mxu0 %v945
        %v3185 = vpop.f32.mrb[0].mxu0
        %v3186 = vadd.f32 0.0, %v3185
        %v3187 = vpop.f32.mrb[0].mxu0
        %3188 = vmatprep.mubr.f32.mxu0 0.0
        %3189 = vmatmul.mubr.f32.gmra.mrb[0].mxu0 %v948
        %v3190 = vpop.f32.mrb[0].mxu0
        %v3191 = vadd.f32 0.0, %v3190
        %v3192 = vpop.f32.mrb[0].mxu0
        %3193 = vmatprep.mubr.f32.mxu0 0.0
        %3194 = vmatmul.mubr.f32.gmra.mrb[0].mxu0 %v951
        %v3195 = vpop.f32.mrb[0].mxu0
        %v3196 = vadd.f32 0.0, %v3195
        %v3197 = vpop.f32.mrb[0].mxu0
        %3198 = vmatprep.mubr.f32.mxu0 0.0
        %3199 = vmatmul.mubr.f32.gmra.mrb[0].mxu0 %v954
        %v3200 = vpop.f32.mrb[0].mxu0
        %v3201 = vadd.f32 0.0, %v3200
        %v3202 = vpop.f32.mrb[0].mxu0
        %3203 = vmatprep.mubr.f32.mxu0 0.0
        %3204 = vmatmul.mubr.f32.gmra.mrb[0].mxu0 %v957
        %v3205 = vpop.f32.mrb[0].mxu0
        %v3206 = vadd.f32 0.0, %v3205
        %v3207 = vpop.f32.mrb[0].mxu0
        %3208 = vdwg.mxu0
        %s3209 = scalar_lea.vmem %s220, 1664 [#allocation7]
        %3210 = vst [vmem:[%s3209] sm:$0xff] %v3131
        %3211 = vst [vmem:[%s3209 + $0x8] sm:$0xff] %v3136
        %3212 = vst [vmem:[%s3209 + $0x10] sm:$0xff] %v3141
        %3213 = vst [vmem:[%s3209 + $0x18] sm:$0xff] %v3146
        %3214 = vst [vmem:[%s3209 + $0x20] sm:$0xff] %v3151
        %3215 = vst [vmem:[%s3209 + $0x28] sm:$0xff] %v3156
        %3216 = vst [vmem:[%s3209 + $0x30] sm:$0xff] %v3161
        %3217 = vst [vmem:[%s3209 + $0x38] sm:$0xff] %v3166
        %3218 = vst [vmem:[%s3209 + $0x40] sm:$0xff] %v3171
        %3219 = vst [vmem:[%s3209 + $0x48] sm:$0xff] %v3176
        %3220 = vst [vmem:[%s3209 + $0x50] sm:$0xff] %v3181
        %3221 = vst [vmem:[%s3209 + $0x58] sm:$0xff] %v3186
        %3222 = vst [vmem:[%s3209 + $0x60] sm:$0xff] %v3191
        %3223 = vst [vmem:[%s3209 + $0x68] sm:$0xff] %v3196
        %3224 = vst [vmem:[%s3209 + $0x70] sm:$0xff] %v3201
        %3225 = vst [vmem:[%s3209 + $0x78] sm:$0xff] %v3206
        %3226 = vmatprep.subr.mxu0 0.0
        %3227 = vmatpush1.msra.mxu0 %v699
        %3228 = vmatprep.subr.mxu0 0.0
        %3229 = vmatpush1.msra.mxu0 %v704
        %3230 = vmatprep.subr.mxu0 0.0
        %3231 = vmatpush1.msra.mxu0 0.0
        %3232 = vmatprep.subr.mxu0 0.0
        %3233 = vmatpush1.msra.mxu0 0.0
        %3234 = vmatprep.subr.mxu0 0.0
        %3235 = vmatpush1.msra.mxu0 0.0
        %3236 = vmatprep.subr.mxu0 0.0
        %3237 = vmatpush1.msra.mxu0 0.0
        %3238 = vmatprep.subr.mxu0 0.0
        %3239 = vmatpush1.msra.mxu0 0.0
        %3240 = vmatprep.subr.mxu0 0.0
        %3241 = vmatpush1.msra.mxu0 0.0
        %3242 = vmatprep.subr.mxu0 0.0
        %3243 = vmatpush1.msra.mxu0 0.0
        %3244 = vmatprep.subr.mxu0 0.0
        %3245 = vmatpush1.msra.mxu0 0.0
        %3246 = vmatprep.subr.mxu0 0.0
        %3247 = vmatpush1.msra.mxu0 0.0
        %3248 = vmatprep.subr.mxu0 0.0
        %3249 = vmatpush1.msra.mxu0 0.0
        %3250 = vmatprep.subr.mxu0 0.0
        %3251 = vmatpush1.msra.mxu0 0.0
        %3252 = vmatprep.subr.mxu0 0.0
        %3253 = vmatpush1.msra.mxu0 0.0
        %3254 = vmatprep.subr.mxu0 0.0
        %3255 = vmatpush1.msra.mxu0 0.0
        %3256 = vmatprep.subr.mxu0 0.0
        %3257 = vmatpush1.msra.mxu0 0.0
        %3258 = vmatprep.subr.mxu0 0.0
        %3259 = vmatpush1.msra.mxu0 0.0
        %3260 = vmatprep.subr.mxu0 0.0
        %3261 = vmatpush1.msra.mxu0 0.0
        %3262 = vmatprep.subr.mxu0 0.0
        %3263 = vmatpush1.msra.mxu0 0.0
        %3264 = vmatprep.subr.mxu0 0.0
        %3265 = vmatpush1.msra.mxu0 0.0
        %3266 = vmatprep.subr.mxu0 0.0
        %3267 = vmatpush1.msra.mxu0 0.0
        %3268 = vmatprep.subr.mxu0 0.0
        %3269 = vmatpush1.msra.mxu0 0.0
        %3270 = vmatprep.subr.mxu0 0.0
        %3271 = vmatpush1.msra.mxu0 0.0
        %3272 = vmatprep.subr.mxu0 0.0
        %3273 = vmatpush1.msra.mxu0 0.0
        %3274 = vmatprep.subr.mxu0 0.0
        %3275 = vmatpush1.msra.mxu0 0.0
        %3276 = vmatprep.subr.mxu0 0.0
        %3277 = vmatpush1.msra.mxu0 0.0
        %3278 = vmatprep.subr.mxu0 0.0
        %3279 = vmatpush1.msra.mxu0 0.0
        %3280 = vmatprep.subr.mxu0 0.0
        %3281 = vmatpush1.msra.mxu0 0.0
        %3282 = vmatprep.subr.mxu0 0.0
        %3283 = vmatpush1.msra.mxu0 0.0
        %3284 = vmatprep.subr.mxu0 0.0
        %3285 = vmatpush1.msra.mxu0 0.0
        %3286 = vmatprep.subr.mxu0 0.0
        %3287 = vmatpush1.msra.mxu0 0.0
        %3288 = vmatprep.subr.mxu0 0.0
        %3289 = vmatpush1.msra.mxu0 0.0
        %3290 = vmatprep.mubr.f32.mxu0 0.0
        %3291 = vmatmul.mubr.f32.gmra.mrb[0].mxu0 %v912
        %v3292 = vpop.f32.mrb[0].mxu0
        %v3293 = vadd.f32 0.0, %v3292
        %v3294 = vpop.f32.mrb[0].mxu0
        %3295 = vmatprep.mubr.f32.mxu0 0.0
        %3296 = vmatmul.mubr.f32.gmra.mrb[0].mxu0 %v915
        %v3297 = vpop.f32.mrb[0].mxu0
        %v3298 = vadd.f32 0.0, %v3297
        %v3299 = vpop.f32.mrb[0].mxu0
        %3300 = vmatprep.mubr.f32.mxu0 0.0
        %3301 = vmatmul.mubr.f32.gmra.mrb[0].mxu0 %v918
        %v3302 = vpop.f32.mrb[0].mxu0
        %v3303 = vadd.f32 0.0, %v3302
        %v3304 = vpop.f32.mrb[0].mxu0
        %3305 = vmatprep.mubr.f32.mxu0 0.0
        %3306 = vmatmul.mubr.f32.gmra.mrb[0].mxu0 %v921
        %v3307 = vpop.f32.mrb[0].mxu0
        %v3308 = vadd.f32 0.0, %v3307
        %v3309 = vpop.f32.mrb[0].mxu0
        %3310 = vmatprep.mubr.f32.mxu0 0.0
        %3311 = vmatmul.mubr.f32.gmra.mrb[0].mxu0 %v924
        %v3312 = vpop.f32.mrb[0].mxu0
        %v3313 = vadd.f32 0.0, %v3312
        %v3314 = vpop.f32.mrb[0].mxu0
        %3315 = vmatprep.mubr.f32.mxu0 0.0
        %3316 = vmatmul.mubr.f32.gmra.mrb[0].mxu0 %v927
        %v3317 = vpop.f32.mrb[0].mxu0
        %v3318 = vadd.f32 0.0, %v3317
        %v3319 = vpop.f32.mrb[0].mxu0
        %3320 = vmatprep.mubr.f32.mxu0 0.0
        %3321 = vmatmul.mubr.f32.gmra.mrb[0].mxu0 %v930
        %v3322 = vpop.f32.mrb[0].mxu0
        %v3323 = vadd.f32 0.0, %v3322
        %v3324 = vpop.f32.mrb[0].mxu0
        %3325 = vmatprep.mubr.f32.mxu0 0.0
        %3326 = vmatmul.mubr.f32.gmra.mrb[0].mxu0 %v933
        %v3327 = vpop.f32.mrb[0].mxu0
        %v3328 = vadd.f32 0.0, %v3327
        %v3329 = vpop.f32.mrb[0].mxu0
        %3330 = vmatprep.mubr.f32.mxu0 0.0
        %3331 = vmatmul.mubr.f32.gmra.mrb[0].mxu0 %v936
        %v3332 = vpop.f32.mrb[0].mxu0
        %v3333 = vadd.f32 0.0, %v3332
        %v3334 = vpop.f32.mrb[0].mxu0
        %3335 = vmatprep.mubr.f32.mxu0 0.0
        %3336 = vmatmul.mubr.f32.gmra.mrb[0].mxu0 %v939
        %v3337 = vpop.f32.mrb[0].mxu0
        %v3338 = vadd.f32 0.0, %v3337
        %v3339 = vpop.f32.mrb[0].mxu0
        %3340 = vmatprep.mubr.f32.mxu0 0.0
        %3341 = vmatmul.mubr.f32.gmra.mrb[0].mxu0 %v942
        %v3342 = vpop.f32.mrb[0].mxu0
        %v3343 = vadd.f32 0.0, %v3342
        %v3344 = vpop.f32.mrb[0].mxu0
        %3345 = vmatprep.mubr.f32.mxu0 0.0
        %3346 = vmatmul.mubr.f32.gmra.mrb[0].mxu0 %v945
        %v3347 = vpop.f32.mrb[0].mxu0
        %v3348 = vadd.f32 0.0, %v3347
        %v3349 = vpop.f32.mrb[0].mxu0
        %3350 = vmatprep.mubr.f32.mxu0 0.0
        %3351 = vmatmul.mubr.f32.gmra.mrb[0].mxu0 %v948
        %v3352 = vpop.f32.mrb[0].mxu0
        %v3353 = vadd.f32 0.0, %v3352
        %v3354 = vpop.f32.mrb[0].mxu0
        %3355 = vmatprep.mubr.f32.mxu0 0.0
        %3356 = vmatmul.mubr.f32.gmra.mrb[0].mxu0 %v951
        %v3357 = vpop.f32.mrb[0].mxu0
        %v3358 = vadd.f32 0.0, %v3357
        %v3359 = vpop.f32.mrb[0].mxu0
        %3360 = vmatprep.mubr.f32.mxu0 0.0
        %3361 = vmatmul.mubr.f32.gmra.mrb[0].mxu0 %v954
        %v3362 = vpop.f32.mrb[0].mxu0
        %v3363 = vadd.f32 0.0, %v3362
        %v3364 = vpop.f32.mrb[0].mxu0
        %3365 = vmatprep.mubr.f32.mxu0 0.0
        %3366 = vmatmul.mubr.f32.gmra.mrb[0].mxu0 %v957
        %v3367 = vpop.f32.mrb[0].mxu0
        %v3368 = vadd.f32 0.0, %v3367
        %v3369 = vpop.f32.mrb[0].mxu0
        %3370 = vdwg.mxu0
        %s3371 = scalar_lea.vmem %s220, 1792 [#allocation7]
        %3372 = vst [vmem:[%s3371] sm:$0xff] %v3293
        %3373 = vst [vmem:[%s3371 + $0x8] sm:$0xff] %v3298
        %3374 = vst [vmem:[%s3371 + $0x10] sm:$0xff] %v3303
        %3375 = vst [vmem:[%s3371 + $0x18] sm:$0xff] %v3308
        %3376 = vst [vmem:[%s3371 + $0x20] sm:$0xff] %v3313
        %3377 = vst [vmem:[%s3371 + $0x28] sm:$0xff] %v3318
        %3378 = vst [vmem:[%s3371 + $0x30] sm:$0xff] %v3323
        %3379 = vst [vmem:[%s3371 + $0x38] sm:$0xff] %v3328
        %3380 = vst [vmem:[%s3371 + $0x40] sm:$0xff] %v3333
        %3381 = vst [vmem:[%s3371 + $0x48] sm:$0xff] %v3338
        %3382 = vst [vmem:[%s3371 + $0x50] sm:$0xff] %v3343
        %3383 = vst [vmem:[%s3371 + $0x58] sm:$0xff] %v3348
        %3384 = vst [vmem:[%s3371 + $0x60] sm:$0xff] %v3353
        %3385 = vst [vmem:[%s3371 + $0x68] sm:$0xff] %v3358
        %3386 = vst [vmem:[%s3371 + $0x70] sm:$0xff] %v3363
        %3387 = vst [vmem:[%s3371 + $0x78] sm:$0xff] %v3368
        %3388 = vmatprep.subr.mxu0 0.0
        %3389 = vmatpush1.msra.mxu0 %v709
        %3390 = vmatprep.subr.mxu0 0.0
        %3391 = vmatpush1.msra.mxu0 %v714
        %3392 = vmatprep.subr.mxu0 0.0
        %3393 = vmatpush1.msra.mxu0 0.0
        %3394 = vmatprep.subr.mxu0 0.0
        %3395 = vmatpush1.msra.mxu0 0.0
        %3396 = vmatprep.subr.mxu0 0.0
        %3397 = vmatpush1.msra.mxu0 0.0
        %3398 = vmatprep.subr.mxu0 0.0
        %3399 = vmatpush1.msra.mxu0 0.0
        %3400 = vmatprep.subr.mxu0 0.0
        %3401 = vmatpush1.msra.mxu0 0.0
        %3402 = vmatprep.subr.mxu0 0.0
        %3403 = vmatpush1.msra.mxu0 0.0
        %3404 = vmatprep.subr.mxu0 0.0
        %3405 = vmatpush1.msra.mxu0 0.0
        %3406 = vmatprep.subr.mxu0 0.0
        %3407 = vmatpush1.msra.mxu0 0.0
        %3408 = vmatprep.subr.mxu0 0.0
        %3409 = vmatpush1.msra.mxu0 0.0
        %3410 = vmatprep.subr.mxu0 0.0
        %3411 = vmatpush1.msra.mxu0 0.0
        %3412 = vmatprep.subr.mxu0 0.0
        %3413 = vmatpush1.msra.mxu0 0.0
        %3414 = vmatprep.subr.mxu0 0.0
        %3415 = vmatpush1.msra.mxu0 0.0
        %3416 = vmatprep.subr.mxu0 0.0
        %3417 = vmatpush1.msra.mxu0 0.0
        %3418 = vmatprep.subr.mxu0 0.0
        %3419 = vmatpush1.msra.mxu0 0.0
        %3420 = vmatprep.subr.mxu0 0.0
        %3421 = vmatpush1.msra.mxu0 0.0
        %3422 = vmatprep.subr.mxu0 0.0
        %3423 = vmatpush1.msra.mxu0 0.0
        %3424 = vmatprep.subr.mxu0 0.0
        %3425 = vmatpush1.msra.mxu0 0.0
        %3426 = vmatprep.subr.mxu0 0.0
        %3427 = vmatpush1.msra.mxu0 0.0
        %3428 = vmatprep.subr.mxu0 0.0
        %3429 = vmatpush1.msra.mxu0 0.0
        %3430 = vmatprep.subr.mxu0 0.0
        %3431 = vmatpush1.msra.mxu0 0.0
        %3432 = vmatprep.subr.mxu0 0.0
        %3433 = vmatpush1.msra.mxu0 0.0
        %3434 = vmatprep.subr.mxu0 0.0
        %3435 = vmatpush1.msra.mxu0 0.0
        %3436 = vmatprep.subr.mxu0 0.0
        %3437 = vmatpush1.msra.mxu0 0.0
        %3438 = vmatprep.subr.mxu0 0.0
        %3439 = vmatpush1.msra.mxu0 0.0
        %3440 = vmatprep.subr.mxu0 0.0
        %3441 = vmatpush1.msra.mxu0 0.0
        %3442 = vmatprep.subr.mxu0 0.0
        %3443 = vmatpush1.msra.mxu0 0.0
        %3444 = vmatprep.subr.mxu0 0.0
        %3445 = vmatpush1.msra.mxu0 0.0
        %3446 = vmatprep.subr.mxu0 0.0
        %3447 = vmatpush1.msra.mxu0 0.0
        %3448 = vmatprep.subr.mxu0 0.0
        %3449 = vmatpush1.msra.mxu0 0.0
        %3450 = vmatprep.subr.mxu0 0.0
        %3451 = vmatpush1.msra.mxu0 0.0
        %3452 = vmatprep.mubr.f32.mxu0 0.0
        %3453 = vmatmul.mubr.f32.gmra.mrb[0].mxu0 %v912
        %v3454 = vpop.f32.mrb[0].mxu0
        %v3455 = vadd.f32 0.0, %v3454
        %v3456 = vpop.f32.mrb[0].mxu0
        %3457 = vmatprep.mubr.f32.mxu0 0.0
        %3458 = vmatmul.mubr.f32.gmra.mrb[0].mxu0 %v915
        %v3459 = vpop.f32.mrb[0].mxu0
        %v3460 = vadd.f32 0.0, %v3459
        %v3461 = vpop.f32.mrb[0].mxu0
        %3462 = vmatprep.mubr.f32.mxu0 0.0
        %3463 = vmatmul.mubr.f32.gmra.mrb[0].mxu0 %v918
        %v3464 = vpop.f32.mrb[0].mxu0
        %v3465 = vadd.f32 0.0, %v3464
        %v3466 = vpop.f32.mrb[0].mxu0
        %3467 = vmatprep.mubr.f32.mxu0 0.0
        %3468 = vmatmul.mubr.f32.gmra.mrb[0].mxu0 %v921
        %v3469 = vpop.f32.mrb[0].mxu0
        %v3470 = vadd.f32 0.0, %v3469
        %v3471 = vpop.f32.mrb[0].mxu0
        %3472 = vmatprep.mubr.f32.mxu0 0.0
        %3473 = vmatmul.mubr.f32.gmra.mrb[0].mxu0 %v924
        %v3474 = vpop.f32.mrb[0].mxu0
        %v3475 = vadd.f32 0.0, %v3474
        %v3476 = vpop.f32.mrb[0].mxu0
        %3477 = vmatprep.mubr.f32.mxu0 0.0
        %3478 = vmatmul.mubr.f32.gmra.mrb[0].mxu0 %v927
        %v3479 = vpop.f32.mrb[0].mxu0
        %v3480 = vadd.f32 0.0, %v3479
        %v3481 = vpop.f32.mrb[0].mxu0
        %3482 = vmatprep.mubr.f32.mxu0 0.0
        %3483 = vmatmul.mubr.f32.gmra.mrb[0].mxu0 %v930
        %v3484 = vpop.f32.mrb[0].mxu0
        %v3485 = vadd.f32 0.0, %v3484
        %v3486 = vpop.f32.mrb[0].mxu0
        %3487 = vmatprep.mubr.f32.mxu0 0.0
        %3488 = vmatmul.mubr.f32.gmra.mrb[0].mxu0 %v933
        %v3489 = vpop.f32.mrb[0].mxu0
        %v3490 = vadd.f32 0.0, %v3489
        %v3491 = vpop.f32.mrb[0].mxu0
        %3492 = vmatprep.mubr.f32.mxu0 0.0
        %3493 = vmatmul.mubr.f32.gmra.mrb[0].mxu0 %v936
        %v3494 = vpop.f32.mrb[0].mxu0
        %v3495 = vadd.f32 0.0, %v3494
        %v3496 = vpop.f32.mrb[0].mxu0
        %3497 = vmatprep.mubr.f32.mxu0 0.0
        %3498 = vmatmul.mubr.f32.gmra.mrb[0].mxu0 %v939
        %v3499 = vpop.f32.mrb[0].mxu0
        %v3500 = vadd.f32 0.0, %v3499
        %v3501 = vpop.f32.mrb[0].mxu0
        %3502 = vmatprep.mubr.f32.mxu0 0.0
        %3503 = vmatmul.mubr.f32.gmra.mrb[0].mxu0 %v942
        %v3504 = vpop.f32.mrb[0].mxu0
        %v3505 = vadd.f32 0.0, %v3504
        %v3506 = vpop.f32.mrb[0].mxu0
        %3507 = vmatprep.mubr.f32.mxu0 0.0
        %3508 = vmatmul.mubr.f32.gmra.mrb[0].mxu0 %v945
        %v3509 = vpop.f32.mrb[0].mxu0
        %v3510 = vadd.f32 0.0, %v3509
        %v3511 = vpop.f32.mrb[0].mxu0
        %3512 = vmatprep.mubr.f32.mxu0 0.0
        %3513 = vmatmul.mubr.f32.gmra.mrb[0].mxu0 %v948
        %v3514 = vpop.f32.mrb[0].mxu0
        %v3515 = vadd.f32 0.0, %v3514
        %v3516 = vpop.f32.mrb[0].mxu0
        %3517 = vmatprep.mubr.f32.mxu0 0.0
        %3518 = vmatmul.mubr.f32.gmra.mrb[0].mxu0 %v951
        %v3519 = vpop.f32.mrb[0].mxu0
        %v3520 = vadd.f32 0.0, %v3519
        %v3521 = vpop.f32.mrb[0].mxu0
        %3522 = vmatprep.mubr.f32.mxu0 0.0
        %3523 = vmatmul.mubr.f32.gmra.mrb[0].mxu0 %v954
        %v3524 = vpop.f32.mrb[0].mxu0
        %v3525 = vadd.f32 0.0, %v3524
        %v3526 = vpop.f32.mrb[0].mxu0
        %3527 = vmatprep.mubr.f32.mxu0 0.0
        %3528 = vmatmul.mubr.f32.gmra.mrb[0].mxu0 %v957
        %v3529 = vpop.f32.mrb[0].mxu0
        %v3530 = vadd.f32 0.0, %v3529
        %v3531 = vpop.f32.mrb[0].mxu0
        %3532 = vdwg.mxu0
        %s3533 = scalar_lea.vmem %s220, 1920 [#allocation7]
        %3534 = vst [vmem:[%s3533] sm:$0xff] %v3455
        %3535 = vst [vmem:[%s3533 + $0x8] sm:$0xff] %v3460
        %3536 = vst [vmem:[%s3533 + $0x10] sm:$0xff] %v3465
        %3537 = vst [vmem:[%s3533 + $0x18] sm:$0xff] %v3470
        %3538 = vst [vmem:[%s3533 + $0x20] sm:$0xff] %v3475
        %3539 = vst [vmem:[%s3533 + $0x28] sm:$0xff] %v3480
        %3540 = vst [vmem:[%s3533 + $0x30] sm:$0xff] %v3485
        %3541 = vst [vmem:[%s3533 + $0x38] sm:$0xff] %v3490
        %3542 = vst [vmem:[%s3533 + $0x40] sm:$0xff] %v3495
        %3543 = vst [vmem:[%s3533 + $0x48] sm:$0xff] %v3500
        %3544 = vst [vmem:[%s3533 + $0x50] sm:$0xff] %v3505
        %3545 = vst [vmem:[%s3533 + $0x58] sm:$0xff] %v3510
        %3546 = vst [vmem:[%s3533 + $0x60] sm:$0xff] %v3515
        %3547 = vst [vmem:[%s3533 + $0x68] sm:$0xff] %v3520
        %3548 = vst [vmem:[%s3533 + $0x70] sm:$0xff] %v3525
        %3549 = vst [vmem:[%s3533 + $0x78] sm:$0xff] %v3530
        %3550 = vmatprep.subr.mxu0 0.0
        %3551 = vmatpush1.msra.mxu0 %v719
        %3552 = vmatprep.subr.mxu0 0.0
        %3553 = vmatpush1.msra.mxu0 %v724
        %3554 = vmatprep.subr.mxu0 0.0
        %3555 = vmatpush1.msra.mxu0 0.0
        %3556 = vmatprep.subr.mxu0 0.0
        %3557 = vmatpush1.msra.mxu0 0.0
        %3558 = vmatprep.subr.mxu0 0.0
        %3559 = vmatpush1.msra.mxu0 0.0
        %3560 = vmatprep.subr.mxu0 0.0
        %3561 = vmatpush1.msra.mxu0 0.0
        %3562 = vmatprep.subr.mxu0 0.0
        %3563 = vmatpush1.msra.mxu0 0.0
        %3564 = vmatprep.subr.mxu0 0.0
        %3565 = vmatpush1.msra.mxu0 0.0
        %3566 = vmatprep.subr.mxu0 0.0
        %3567 = vmatpush1.msra.mxu0 0.0
        %3568 = vmatprep.subr.mxu0 0.0
        %3569 = vmatpush1.msra.mxu0 0.0
        %3570 = vmatprep.subr.mxu0 0.0
        %3571 = vmatpush1.msra.mxu0 0.0
        %3572 = vmatprep.subr.mxu0 0.0
        %3573 = vmatpush1.msra.mxu0 0.0
        %3574 = vmatprep.subr.mxu0 0.0
        %3575 = vmatpush1.msra.mxu0 0.0
        %3576 = vmatprep.subr.mxu0 0.0
        %3577 = vmatpush1.msra.mxu0 0.0
        %3578 = vmatprep.subr.mxu0 0.0
        %3579 = vmatpush1.msra.mxu0 0.0
        %3580 = vmatprep.subr.mxu0 0.0
        %3581 = vmatpush1.msra.mxu0 0.0
        %3582 = vmatprep.subr.mxu0 0.0
        %3583 = vmatpush1.msra.mxu0 0.0
        %3584 = vmatprep.subr.mxu0 0.0
        %3585 = vmatpush1.msra.mxu0 0.0
        %3586 = vmatprep.subr.mxu0 0.0
        %3587 = vmatpush1.msra.mxu0 0.0
        %3588 = vmatprep.subr.mxu0 0.0
        %3589 = vmatpush1.msra.mxu0 0.0
        %3590 = vmatprep.subr.mxu0 0.0
        %3591 = vmatpush1.msra.mxu0 0.0
        %3592 = vmatprep.subr.mxu0 0.0
        %3593 = vmatpush1.msra.mxu0 0.0
        %3594 = vmatprep.subr.mxu0 0.0
        %3595 = vmatpush1.msra.mxu0 0.0
        %3596 = vmatprep.subr.mxu0 0.0
        %3597 = vmatpush1.msra.mxu0 0.0
        %3598 = vmatprep.subr.mxu0 0.0
        %3599 = vmatpush1.msra.mxu0 0.0
        %3600 = vmatprep.subr.mxu0 0.0
        %3601 = vmatpush1.msra.mxu0 0.0
        %3602 = vmatprep.subr.mxu0 0.0
        %3603 = vmatpush1.msra.mxu0 0.0
        %3604 = vmatprep.subr.mxu0 0.0
        %3605 = vmatpush1.msra.mxu0 0.0
        %3606 = vmatprep.subr.mxu0 0.0
        %3607 = vmatpush1.msra.mxu0 0.0
        %3608 = vmatprep.subr.mxu0 0.0
        %3609 = vmatpush1.msra.mxu0 0.0
        %3610 = vmatprep.subr.mxu0 0.0
        %3611 = vmatpush1.msra.mxu0 0.0
        %3612 = vmatprep.subr.mxu0 0.0
        %3613 = vmatpush1.msra.mxu0 0.0
        %3614 = vmatprep.mubr.f32.mxu0 0.0
        %3615 = vmatmul.mubr.f32.gmra.mrb[0].mxu0 %v912
        %v3616 = vpop.f32.mrb[0].mxu0
        %v3617 = vadd.f32 0.0, %v3616
        %v3618 = vpop.f32.mrb[0].mxu0
        %3619 = vmatprep.mubr.f32.mxu0 0.0
        %3620 = vmatmul.mubr.f32.gmra.mrb[0].mxu0 %v915
        %v3621 = vpop.f32.mrb[0].mxu0
        %v3622 = vadd.f32 0.0, %v3621
        %v3623 = vpop.f32.mrb[0].mxu0
        %3624 = vmatprep.mubr.f32.mxu0 0.0
        %3625 = vmatmul.mubr.f32.gmra.mrb[0].mxu0 %v918
        %v3626 = vpop.f32.mrb[0].mxu0
        %v3627 = vadd.f32 0.0, %v3626
        %v3628 = vpop.f32.mrb[0].mxu0
        %3629 = vmatprep.mubr.f32.mxu0 0.0
        %3630 = vmatmul.mubr.f32.gmra.mrb[0].mxu0 %v921
        %v3631 = vpop.f32.mrb[0].mxu0
        %v3632 = vadd.f32 0.0, %v3631
        %v3633 = vpop.f32.mrb[0].mxu0
        %3634 = vmatprep.mubr.f32.mxu0 0.0
        %3635 = vmatmul.mubr.f32.gmra.mrb[0].mxu0 %v924
        %v3636 = vpop.f32.mrb[0].mxu0
        %v3637 = vadd.f32 0.0, %v3636
        %v3638 = vpop.f32.mrb[0].mxu0
        %3639 = vmatprep.mubr.f32.mxu0 0.0
        %3640 = vmatmul.mubr.f32.gmra.mrb[0].mxu0 %v927
        %v3641 = vpop.f32.mrb[0].mxu0
        %v3642 = vadd.f32 0.0, %v3641
        %v3643 = vpop.f32.mrb[0].mxu0
        %3644 = vmatprep.mubr.f32.mxu0 0.0
        %3645 = vmatmul.mubr.f32.gmra.mrb[0].mxu0 %v930
        %v3646 = vpop.f32.mrb[0].mxu0
        %v3647 = vadd.f32 0.0, %v3646
        %v3648 = vpop.f32.mrb[0].mxu0
        %3649 = vmatprep.mubr.f32.mxu0 0.0
        %3650 = vmatmul.mubr.f32.gmra.mrb[0].mxu0 %v933
        %v3651 = vpop.f32.mrb[0].mxu0
        %v3652 = vadd.f32 0.0, %v3651
        %v3653 = vpop.f32.mrb[0].mxu0
        %3654 = vmatprep.mubr.f32.mxu0 0.0
        %3655 = vmatmul.mubr.f32.gmra.mrb[0].mxu0 %v936
        %v3656 = vpop.f32.mrb[0].mxu0
        %v3657 = vadd.f32 0.0, %v3656
        %v3658 = vpop.f32.mrb[0].mxu0
        %3659 = vmatprep.mubr.f32.mxu0 0.0
        %3660 = vmatmul.mubr.f32.gmra.mrb[0].mxu0 %v939
        %v3661 = vpop.f32.mrb[0].mxu0
        %v3662 = vadd.f32 0.0, %v3661
        %v3663 = vpop.f32.mrb[0].mxu0
        %3664 = vmatprep.mubr.f32.mxu0 0.0
        %3665 = vmatmul.mubr.f32.gmra.mrb[0].mxu0 %v942
        %v3666 = vpop.f32.mrb[0].mxu0
        %v3667 = vadd.f32 0.0, %v3666
        %v3668 = vpop.f32.mrb[0].mxu0
        %3669 = vmatprep.mubr.f32.mxu0 0.0
        %3670 = vmatmul.mubr.f32.gmra.mrb[0].mxu0 %v945
        %v3671 = vpop.f32.mrb[0].mxu0
        %v3672 = vadd.f32 0.0, %v3671
        %v3673 = vpop.f32.mrb[0].mxu0
        %3674 = vmatprep.mubr.f32.mxu0 0.0
        %3675 = vmatmul.mubr.f32.gmra.mrb[0].mxu0 %v948
        %v3676 = vpop.f32.mrb[0].mxu0
        %v3677 = vadd.f32 0.0, %v3676
        %v3678 = vpop.f32.mrb[0].mxu0
        %3679 = vmatprep.mubr.f32.mxu0 0.0
        %3680 = vmatmul.mubr.f32.gmra.mrb[0].mxu0 %v951
        %v3681 = vpop.f32.mrb[0].mxu0
        %v3682 = vadd.f32 0.0, %v3681
        %v3683 = vpop.f32.mrb[0].mxu0
        %3684 = vmatprep.mubr.f32.mxu0 0.0
        %3685 = vmatmul.mubr.f32.gmra.mrb[0].mxu0 %v954
        %v3686 = vpop.f32.mrb[0].mxu0
        %v3687 = vadd.f32 0.0, %v3686
        %v3688 = vpop.f32.mrb[0].mxu0
        %3689 = vmatprep.mubr.f32.mxu0 0.0
        %3690 = vmatmul.mubr.f32.gmra.mrb[0].mxu0 %v957
        %v3691 = vpop.f32.mrb[0].mxu0
        %v3692 = vadd.f32 0.0, %v3691
        %v3693 = vpop.f32.mrb[0].mxu0
        %3694 = vdwg.mxu0
        %s3695 = scalar_lea.vmem %s220, 2048 [#allocation7]
        %3696 = vst [vmem:[%s3695] sm:$0xff] %v3617
        %3697 = vst [vmem:[%s3695 + $0x8] sm:$0xff] %v3622
        %3698 = vst [vmem:[%s3695 + $0x10] sm:$0xff] %v3627
        %3699 = vst [vmem:[%s3695 + $0x18] sm:$0xff] %v3632
        %3700 = vst [vmem:[%s3695 + $0x20] sm:$0xff] %v3637
        %3701 = vst [vmem:[%s3695 + $0x28] sm:$0xff] %v3642
        %3702 = vst [vmem:[%s3695 + $0x30] sm:$0xff] %v3647
        %3703 = vst [vmem:[%s3695 + $0x38] sm:$0xff] %v3652
        %3704 = vst [vmem:[%s3695 + $0x40] sm:$0xff] %v3657
        %3705 = vst [vmem:[%s3695 + $0x48] sm:$0xff] %v3662
        %3706 = vst [vmem:[%s3695 + $0x50] sm:$0xff] %v3667
        %3707 = vst [vmem:[%s3695 + $0x58] sm:$0xff] %v3672
        %3708 = vst [vmem:[%s3695 + $0x60] sm:$0xff] %v3677
        %3709 = vst [vmem:[%s3695 + $0x68] sm:$0xff] %v3682
        %3710 = vst [vmem:[%s3695 + $0x70] sm:$0xff] %v3687
        %3711 = vst [vmem:[%s3695 + $0x78] sm:$0xff] %v3692
        %3712 = vmatprep.subr.mxu0 0.0
        %3713 = vmatpush1.msra.mxu0 %v729
        %3714 = vmatprep.subr.mxu0 0.0
        %3715 = vmatpush1.msra.mxu0 %v734
        %3716 = vmatprep.subr.mxu0 0.0
        %3717 = vmatpush1.msra.mxu0 0.0
        %3718 = vmatprep.subr.mxu0 0.0
        %3719 = vmatpush1.msra.mxu0 0.0
        %3720 = vmatprep.subr.mxu0 0.0
        %3721 = vmatpush1.msra.mxu0 0.0
        %3722 = vmatprep.subr.mxu0 0.0
        %3723 = vmatpush1.msra.mxu0 0.0
        %3724 = vmatprep.subr.mxu0 0.0
        %3725 = vmatpush1.msra.mxu0 0.0
        %3726 = vmatprep.subr.mxu0 0.0
        %3727 = vmatpush1.msra.mxu0 0.0
        %3728 = vmatprep.subr.mxu0 0.0
        %3729 = vmatpush1.msra.mxu0 0.0
        %3730 = vmatprep.subr.mxu0 0.0
        %3731 = vmatpush1.msra.mxu0 0.0
        %3732 = vmatprep.subr.mxu0 0.0
        %3733 = vmatpush1.msra.mxu0 0.0
        %3734 = vmatprep.subr.mxu0 0.0
        %3735 = vmatpush1.msra.mxu0 0.0
        %3736 = vmatprep.subr.mxu0 0.0
        %3737 = vmatpush1.msra.mxu0 0.0
        %3738 = vmatprep.subr.mxu0 0.0
        %3739 = vmatpush1.msra.mxu0 0.0
        %3740 = vmatprep.subr.mxu0 0.0
        %3741 = vmatpush1.msra.mxu0 0.0
        %3742 = vmatprep.subr.mxu0 0.0
        %3743 = vmatpush1.msra.mxu0 0.0
        %3744 = vmatprep.subr.mxu0 0.0
        %3745 = vmatpush1.msra.mxu0 0.0
        %3746 = vmatprep.subr.mxu0 0.0
        %3747 = vmatpush1.msra.mxu0 0.0
        %3748 = vmatprep.subr.mxu0 0.0
        %3749 = vmatpush1.msra.mxu0 0.0
        %3750 = vmatprep.subr.mxu0 0.0
        %3751 = vmatpush1.msra.mxu0 0.0
        %3752 = vmatprep.subr.mxu0 0.0
        %3753 = vmatpush1.msra.mxu0 0.0
        %3754 = vmatprep.subr.mxu0 0.0
        %3755 = vmatpush1.msra.mxu0 0.0
        %3756 = vmatprep.subr.mxu0 0.0
        %3757 = vmatpush1.msra.mxu0 0.0
        %3758 = vmatprep.subr.mxu0 0.0
        %3759 = vmatpush1.msra.mxu0 0.0
        %3760 = vmatprep.subr.mxu0 0.0
        %3761 = vmatpush1.msra.mxu0 0.0
        %3762 = vmatprep.subr.mxu0 0.0
        %3763 = vmatpush1.msra.mxu0 0.0
        %3764 = vmatprep.subr.mxu0 0.0
        %3765 = vmatpush1.msra.mxu0 0.0
        %3766 = vmatprep.subr.mxu0 0.0
        %3767 = vmatpush1.msra.mxu0 0.0
        %3768 = vmatprep.subr.mxu0 0.0
        %3769 = vmatpush1.msra.mxu0 0.0
        %3770 = vmatprep.subr.mxu0 0.0
        %3771 = vmatpush1.msra.mxu0 0.0
        %3772 = vmatprep.subr.mxu0 0.0
        %3773 = vmatpush1.msra.mxu0 0.0
        %3774 = vmatprep.subr.mxu0 0.0
        %3775 = vmatpush1.msra.mxu0 0.0
        %3776 = vmatprep.mubr.f32.mxu0 0.0
        %3777 = vmatmul.mubr.f32.gmra.mrb[0].mxu0 %v912
        %v3778 = vpop.f32.mrb[0].mxu0
        %v3779 = vadd.f32 0.0, %v3778
        %v3780 = vpop.f32.mrb[0].mxu0
        %3781 = vmatprep.mubr.f32.mxu0 0.0
        %3782 = vmatmul.mubr.f32.gmra.mrb[0].mxu0 %v915
        %v3783 = vpop.f32.mrb[0].mxu0
        %v3784 = vadd.f32 0.0, %v3783
        %v3785 = vpop.f32.mrb[0].mxu0
        %3786 = vmatprep.mubr.f32.mxu0 0.0
        %3787 = vmatmul.mubr.f32.gmra.mrb[0].mxu0 %v918
        %v3788 = vpop.f32.mrb[0].mxu0
        %v3789 = vadd.f32 0.0, %v3788
        %v3790 = vpop.f32.mrb[0].mxu0
        %3791 = vmatprep.mubr.f32.mxu0 0.0
        %3792 = vmatmul.mubr.f32.gmra.mrb[0].mxu0 %v921
        %v3793 = vpop.f32.mrb[0].mxu0
        %v3794 = vadd.f32 0.0, %v3793
        %v3795 = vpop.f32.mrb[0].mxu0
        %3796 = vmatprep.mubr.f32.mxu0 0.0
        %3797 = vmatmul.mubr.f32.gmra.mrb[0].mxu0 %v924
        %v3798 = vpop.f32.mrb[0].mxu0
        %v3799 = vadd.f32 0.0, %v3798
        %v3800 = vpop.f32.mrb[0].mxu0
        %3801 = vmatprep.mubr.f32.mxu0 0.0
        %3802 = vmatmul.mubr.f32.gmra.mrb[0].mxu0 %v927
        %v3803 = vpop.f32.mrb[0].mxu0
        %v3804 = vadd.f32 0.0, %v3803
        %v3805 = vpop.f32.mrb[0].mxu0
        %3806 = vmatprep.mubr.f32.mxu0 0.0
        %3807 = vmatmul.mubr.f32.gmra.mrb[0].mxu0 %v930
        %v3808 = vpop.f32.mrb[0].mxu0
        %v3809 = vadd.f32 0.0, %v3808
        %v3810 = vpop.f32.mrb[0].mxu0
        %3811 = vmatprep.mubr.f32.mxu0 0.0
        %3812 = vmatmul.mubr.f32.gmra.mrb[0].mxu0 %v933
        %v3813 = vpop.f32.mrb[0].mxu0
        %v3814 = vadd.f32 0.0, %v3813
        %v3815 = vpop.f32.mrb[0].mxu0
        %3816 = vmatprep.mubr.f32.mxu0 0.0
        %3817 = vmatmul.mubr.f32.gmra.mrb[0].mxu0 %v936
        %v3818 = vpop.f32.mrb[0].mxu0
        %v3819 = vadd.f32 0.0, %v3818
        %v3820 = vpop.f32.mrb[0].mxu0
        %3821 = vmatprep.mubr.f32.mxu0 0.0
        %3822 = vmatmul.mubr.f32.gmra.mrb[0].mxu0 %v939
        %v3823 = vpop.f32.mrb[0].mxu0
        %v3824 = vadd.f32 0.0, %v3823
        %v3825 = vpop.f32.mrb[0].mxu0
        %3826 = vmatprep.mubr.f32.mxu0 0.0
        %3827 = vmatmul.mubr.f32.gmra.mrb[0].mxu0 %v942
        %v3828 = vpop.f32.mrb[0].mxu0
        %v3829 = vadd.f32 0.0, %v3828
        %v3830 = vpop.f32.mrb[0].mxu0
        %3831 = vmatprep.mubr.f32.mxu0 0.0
        %3832 = vmatmul.mubr.f32.gmra.mrb[0].mxu0 %v945
        %v3833 = vpop.f32.mrb[0].mxu0
        %v3834 = vadd.f32 0.0, %v3833
        %v3835 = vpop.f32.mrb[0].mxu0
        %3836 = vmatprep.mubr.f32.mxu0 0.0
        %3837 = vmatmul.mubr.f32.gmra.mrb[0].mxu0 %v948
        %v3838 = vpop.f32.mrb[0].mxu0
        %v3839 = vadd.f32 0.0, %v3838
        %v3840 = vpop.f32.mrb[0].mxu0
        %3841 = vmatprep.mubr.f32.mxu0 0.0
        %3842 = vmatmul.mubr.f32.gmra.mrb[0].mxu0 %v951
        %v3843 = vpop.f32.mrb[0].mxu0
        %v3844 = vadd.f32 0.0, %v3843
        %v3845 = vpop.f32.mrb[0].mxu0
        %3846 = vmatprep.mubr.f32.mxu0 0.0
        %3847 = vmatmul.mubr.f32.gmra.mrb[0].mxu0 %v954
        %v3848 = vpop.f32.mrb[0].mxu0
        %v3849 = vadd.f32 0.0, %v3848
        %v3850 = vpop.f32.mrb[0].mxu0
        %3851 = vmatprep.mubr.f32.mxu0 0.0
        %3852 = vmatmul.mubr.f32.gmra.mrb[0].mxu0 %v957
        %v3853 = vpop.f32.mrb[0].mxu0
        %v3854 = vadd.f32 0.0, %v3853
        %v3855 = vpop.f32.mrb[0].mxu0
        %3856 = vdwg.mxu0
        %s3857 = scalar_lea.vmem %s220, 2176 [#allocation7]
        %3858 = vst [vmem:[%s3857] sm:$0xff] %v3779
        %3859 = vst [vmem:[%s3857 + $0x8] sm:$0xff] %v3784
        %3860 = vst [vmem:[%s3857 + $0x10] sm:$0xff] %v3789
        %3861 = vst [vmem:[%s3857 + $0x18] sm:$0xff] %v3794
        %3862 = vst [vmem:[%s3857 + $0x20] sm:$0xff] %v3799
        %3863 = vst [vmem:[%s3857 + $0x28] sm:$0xff] %v3804
        %3864 = vst [vmem:[%s3857 + $0x30] sm:$0xff] %v3809
        %3865 = vst [vmem:[%s3857 + $0x38] sm:$0xff] %v3814
        %3866 = vst [vmem:[%s3857 + $0x40] sm:$0xff] %v3819
        %3867 = vst [vmem:[%s3857 + $0x48] sm:$0xff] %v3824
        %3868 = vst [vmem:[%s3857 + $0x50] sm:$0xff] %v3829
        %3869 = vst [vmem:[%s3857 + $0x58] sm:$0xff] %v3834
        %3870 = vst [vmem:[%s3857 + $0x60] sm:$0xff] %v3839
        %3871 = vst [vmem:[%s3857 + $0x68] sm:$0xff] %v3844
        %3872 = vst [vmem:[%s3857 + $0x70] sm:$0xff] %v3849
        %3873 = vst [vmem:[%s3857 + $0x78] sm:$0xff] %v3854
        %3874 = vmatprep.subr.mxu0 0.0
        %3875 = vmatpush1.msra.mxu0 %v739
        %3876 = vmatprep.subr.mxu0 0.0
        %3877 = vmatpush1.msra.mxu0 %v744
        %3878 = vmatprep.subr.mxu0 0.0
        %3879 = vmatpush1.msra.mxu0 0.0
        %3880 = vmatprep.subr.mxu0 0.0
        %3881 = vmatpush1.msra.mxu0 0.0
        %3882 = vmatprep.subr.mxu0 0.0
        %3883 = vmatpush1.msra.mxu0 0.0
        %3884 = vmatprep.subr.mxu0 0.0
        %3885 = vmatpush1.msra.mxu0 0.0
        %3886 = vmatprep.subr.mxu0 0.0
        %3887 = vmatpush1.msra.mxu0 0.0
        %3888 = vmatprep.subr.mxu0 0.0
        %3889 = vmatpush1.msra.mxu0 0.0
        %3890 = vmatprep.subr.mxu0 0.0
        %3891 = vmatpush1.msra.mxu0 0.0
        %3892 = vmatprep.subr.mxu0 0.0
        %3893 = vmatpush1.msra.mxu0 0.0
        %3894 = vmatprep.subr.mxu0 0.0
        %3895 = vmatpush1.msra.mxu0 0.0
        %3896 = vmatprep.subr.mxu0 0.0
        %3897 = vmatpush1.msra.mxu0 0.0
        %3898 = vmatprep.subr.mxu0 0.0
        %3899 = vmatpush1.msra.mxu0 0.0
        %3900 = vmatprep.subr.mxu0 0.0
        %3901 = vmatpush1.msra.mxu0 0.0
        %3902 = vmatprep.subr.mxu0 0.0
        %3903 = vmatpush1.msra.mxu0 0.0
        %3904 = vmatprep.subr.mxu0 0.0
        %3905 = vmatpush1.msra.mxu0 0.0
        %3906 = vmatprep.subr.mxu0 0.0
        %3907 = vmatpush1.msra.mxu0 0.0
        %3908 = vmatprep.subr.mxu0 0.0
        %3909 = vmatpush1.msra.mxu0 0.0
        %3910 = vmatprep.subr.mxu0 0.0
        %3911 = vmatpush1.msra.mxu0 0.0
        %3912 = vmatprep.subr.mxu0 0.0
        %3913 = vmatpush1.msra.mxu0 0.0
        %3914 = vmatprep.subr.mxu0 0.0
        %3915 = vmatpush1.msra.mxu0 0.0
        %3916 = vmatprep.subr.mxu0 0.0
        %3917 = vmatpush1.msra.mxu0 0.0
        %3918 = vmatprep.subr.mxu0 0.0
        %3919 = vmatpush1.msra.mxu0 0.0
        %3920 = vmatprep.subr.mxu0 0.0
        %3921 = vmatpush1.msra.mxu0 0.0
        %3922 = vmatprep.subr.mxu0 0.0
        %3923 = vmatpush1.msra.mxu0 0.0
        %3924 = vmatprep.subr.mxu0 0.0
        %3925 = vmatpush1.msra.mxu0 0.0
        %3926 = vmatprep.subr.mxu0 0.0
        %3927 = vmatpush1.msra.mxu0 0.0
        %3928 = vmatprep.subr.mxu0 0.0
        %3929 = vmatpush1.msra.mxu0 0.0
        %3930 = vmatprep.subr.mxu0 0.0
        %3931 = vmatpush1.msra.mxu0 0.0
        %3932 = vmatprep.subr.mxu0 0.0
        %3933 = vmatpush1.msra.mxu0 0.0
        %3934 = vmatprep.subr.mxu0 0.0
        %3935 = vmatpush1.msra.mxu0 0.0
        %3936 = vmatprep.subr.mxu0 0.0
        %3937 = vmatpush1.msra.mxu0 0.0
        %3938 = vmatprep.mubr.f32.mxu0 0.0
        %3939 = vmatmul.mubr.f32.gmra.mrb[0].mxu0 %v912
        %v3940 = vpop.f32.mrb[0].mxu0
        %v3941 = vadd.f32 0.0, %v3940
        %v3942 = vpop.f32.mrb[0].mxu0
        %3943 = vmatprep.mubr.f32.mxu0 0.0
        %3944 = vmatmul.mubr.f32.gmra.mrb[0].mxu0 %v915
        %v3945 = vpop.f32.mrb[0].mxu0
        %v3946 = vadd.f32 0.0, %v3945
        %v3947 = vpop.f32.mrb[0].mxu0
        %3948 = vmatprep.mubr.f32.mxu0 0.0
        %3949 = vmatmul.mubr.f32.gmra.mrb[0].mxu0 %v918
        %v3950 = vpop.f32.mrb[0].mxu0
        %v3951 = vadd.f32 0.0, %v3950
        %v3952 = vpop.f32.mrb[0].mxu0
        %3953 = vmatprep.mubr.f32.mxu0 0.0
        %3954 = vmatmul.mubr.f32.gmra.mrb[0].mxu0 %v921
        %v3955 = vpop.f32.mrb[0].mxu0
        %v3956 = vadd.f32 0.0, %v3955
        %v3957 = vpop.f32.mrb[0].mxu0
        %3958 = vmatprep.mubr.f32.mxu0 0.0
        %3959 = vmatmul.mubr.f32.gmra.mrb[0].mxu0 %v924
        %v3960 = vpop.f32.mrb[0].mxu0
        %v3961 = vadd.f32 0.0, %v3960
        %v3962 = vpop.f32.mrb[0].mxu0
        %3963 = vmatprep.mubr.f32.mxu0 0.0
        %3964 = vmatmul.mubr.f32.gmra.mrb[0].mxu0 %v927
        %v3965 = vpop.f32.mrb[0].mxu0
        %v3966 = vadd.f32 0.0, %v3965
        %v3967 = vpop.f32.mrb[0].mxu0
        %3968 = vmatprep.mubr.f32.mxu0 0.0
        %3969 = vmatmul.mubr.f32.gmra.mrb[0].mxu0 %v930
        %v3970 = vpop.f32.mrb[0].mxu0
        %v3971 = vadd.f32 0.0, %v3970
        %v3972 = vpop.f32.mrb[0].mxu0
        %3973 = vmatprep.mubr.f32.mxu0 0.0
        %3974 = vmatmul.mubr.f32.gmra.mrb[0].mxu0 %v933
        %v3975 = vpop.f32.mrb[0].mxu0
        %v3976 = vadd.f32 0.0, %v3975
        %v3977 = vpop.f32.mrb[0].mxu0
        %3978 = vmatprep.mubr.f32.mxu0 0.0
        %3979 = vmatmul.mubr.f32.gmra.mrb[0].mxu0 %v936
        %v3980 = vpop.f32.mrb[0].mxu0
        %v3981 = vadd.f32 0.0, %v3980
        %v3982 = vpop.f32.mrb[0].mxu0
        %3983 = vmatprep.mubr.f32.mxu0 0.0
        %3984 = vmatmul.mubr.f32.gmra.mrb[0].mxu0 %v939
        %v3985 = vpop.f32.mrb[0].mxu0
        %v3986 = vadd.f32 0.0, %v3985
        %v3987 = vpop.f32.mrb[0].mxu0
        %3988 = vmatprep.mubr.f32.mxu0 0.0
        %3989 = vmatmul.mubr.f32.gmra.mrb[0].mxu0 %v942
        %v3990 = vpop.f32.mrb[0].mxu0
        %v3991 = vadd.f32 0.0, %v3990
        %v3992 = vpop.f32.mrb[0].mxu0
        %3993 = vmatprep.mubr.f32.mxu0 0.0
        %3994 = vmatmul.mubr.f32.gmra.mrb[0].mxu0 %v945
        %v3995 = vpop.f32.mrb[0].mxu0
        %v3996 = vadd.f32 0.0, %v3995
        %v3997 = vpop.f32.mrb[0].mxu0
        %3998 = vmatprep.mubr.f32.mxu0 0.0
        %3999 = vmatmul.mubr.f32.gmra.mrb[0].mxu0 %v948
        %v4000 = vpop.f32.mrb[0].mxu0
        %v4001 = vadd.f32 0.0, %v4000
        %v4002 = vpop.f32.mrb[0].mxu0
        %4003 = vmatprep.mubr.f32.mxu0 0.0
        %4004 = vmatmul.mubr.f32.gmra.mrb[0].mxu0 %v951
        %v4005 = vpop.f32.mrb[0].mxu0
        %v4006 = vadd.f32 0.0, %v4005
        %v4007 = vpop.f32.mrb[0].mxu0
        %4008 = vmatprep.mubr.f32.mxu0 0.0
        %4009 = vmatmul.mubr.f32.gmra.mrb[0].mxu0 %v954
        %v4010 = vpop.f32.mrb[0].mxu0
        %v4011 = vadd.f32 0.0, %v4010
        %v4012 = vpop.f32.mrb[0].mxu0
        %4013 = vmatprep.mubr.f32.mxu0 0.0
        %4014 = vmatmul.mubr.f32.gmra.mrb[0].mxu0 %v957
        %v4015 = vpop.f32.mrb[0].mxu0
        %v4016 = vadd.f32 0.0, %v4015
        %v4017 = vpop.f32.mrb[0].mxu0
        %4018 = vdwg.mxu0
        %s4019 = scalar_lea.vmem %s220, 2304 [#allocation7]
        %4020 = vst [vmem:[%s4019] sm:$0xff] %v3941
        %4021 = vst [vmem:[%s4019 + $0x8] sm:$0xff] %v3946
        %4022 = vst [vmem:[%s4019 + $0x10] sm:$0xff] %v3951
        %4023 = vst [vmem:[%s4019 + $0x18] sm:$0xff] %v3956
        %4024 = vst [vmem:[%s4019 + $0x20] sm:$0xff] %v3961
        %4025 = vst [vmem:[%s4019 + $0x28] sm:$0xff] %v3966
        %4026 = vst [vmem:[%s4019 + $0x30] sm:$0xff] %v3971
        %4027 = vst [vmem:[%s4019 + $0x38] sm:$0xff] %v3976
        %4028 = vst [vmem:[%s4019 + $0x40] sm:$0xff] %v3981
        %4029 = vst [vmem:[%s4019 + $0x48] sm:$0xff] %v3986
        %4030 = vst [vmem:[%s4019 + $0x50] sm:$0xff] %v3991
        %4031 = vst [vmem:[%s4019 + $0x58] sm:$0xff] %v3996
        %4032 = vst [vmem:[%s4019 + $0x60] sm:$0xff] %v4001
        %4033 = vst [vmem:[%s4019 + $0x68] sm:$0xff] %v4006
        %4034 = vst [vmem:[%s4019 + $0x70] sm:$0xff] %v4011
        %4035 = vst [vmem:[%s4019 + $0x78] sm:$0xff] %v4016
        %4036 = vmatprep.subr.mxu0 0.0
        %4037 = vmatpush1.msra.mxu0 %v749
        %4038 = vmatprep.subr.mxu0 0.0
        %4039 = vmatpush1.msra.mxu0 %v754
        %4040 = vmatprep.subr.mxu0 0.0
        %4041 = vmatpush1.msra.mxu0 0.0
        %4042 = vmatprep.subr.mxu0 0.0
        %4043 = vmatpush1.msra.mxu0 0.0
        %4044 = vmatprep.subr.mxu0 0.0
        %4045 = vmatpush1.msra.mxu0 0.0
        %4046 = vmatprep.subr.mxu0 0.0
        %4047 = vmatpush1.msra.mxu0 0.0
        %4048 = vmatprep.subr.mxu0 0.0
        %4049 = vmatpush1.msra.mxu0 0.0
        %4050 = vmatprep.subr.mxu0 0.0
        %4051 = vmatpush1.msra.mxu0 0.0
        %4052 = vmatprep.subr.mxu0 0.0
        %4053 = vmatpush1.msra.mxu0 0.0
        %4054 = vmatprep.subr.mxu0 0.0
        %4055 = vmatpush1.msra.mxu0 0.0
        %4056 = vmatprep.subr.mxu0 0.0
        %4057 = vmatpush1.msra.mxu0 0.0
        %4058 = vmatprep.subr.mxu0 0.0
        %4059 = vmatpush1.msra.mxu0 0.0
        %4060 = vmatprep.subr.mxu0 0.0
        %4061 = vmatpush1.msra.mxu0 0.0
        %4062 = vmatprep.subr.mxu0 0.0
        %4063 = vmatpush1.msra.mxu0 0.0
        %4064 = vmatprep.subr.mxu0 0.0
        %4065 = vmatpush1.msra.mxu0 0.0
        %4066 = vmatprep.subr.mxu0 0.0
        %4067 = vmatpush1.msra.mxu0 0.0
        %4068 = vmatprep.subr.mxu0 0.0
        %4069 = vmatpush1.msra.mxu0 0.0
        %4070 = vmatprep.subr.mxu0 0.0
        %4071 = vmatpush1.msra.mxu0 0.0
        %4072 = vmatprep.subr.mxu0 0.0
        %4073 = vmatpush1.msra.mxu0 0.0
        %4074 = vmatprep.subr.mxu0 0.0
        %4075 = vmatpush1.msra.mxu0 0.0
        %4076 = vmatprep.subr.mxu0 0.0
        %4077 = vmatpush1.msra.mxu0 0.0
        %4078 = vmatprep.subr.mxu0 0.0
        %4079 = vmatpush1.msra.mxu0 0.0
        %4080 = vmatprep.subr.mxu0 0.0
        %4081 = vmatpush1.msra.mxu0 0.0
        %4082 = vmatprep.subr.mxu0 0.0
        %4083 = vmatpush1.msra.mxu0 0.0
        %4084 = vmatprep.subr.mxu0 0.0
        %4085 = vmatpush1.msra.mxu0 0.0
        %4086 = vmatprep.subr.mxu0 0.0
        %4087 = vmatpush1.msra.mxu0 0.0
        %4088 = vmatprep.subr.mxu0 0.0
        %4089 = vmatpush1.msra.mxu0 0.0
        %4090 = vmatprep.subr.mxu0 0.0
        %4091 = vmatpush1.msra.mxu0 0.0
        %4092 = vmatprep.subr.mxu0 0.0
        %4093 = vmatpush1.msra.mxu0 0.0
        %4094 = vmatprep.subr.mxu0 0.0
        %4095 = vmatpush1.msra.mxu0 0.0
        %4096 = vmatprep.subr.mxu0 0.0
        %4097 = vmatpush1.msra.mxu0 0.0
        %4098 = vmatprep.subr.mxu0 0.0
        %4099 = vmatpush1.msra.mxu0 0.0
        %4100 = vmatprep.mubr.f32.mxu0 0.0
        %4101 = vmatmul.mubr.f32.gmra.mrb[0].mxu0 %v912
        %v4102 = vpop.f32.mrb[0].mxu0
        %v4103 = vadd.f32 0.0, %v4102
        %v4104 = vpop.f32.mrb[0].mxu0
        %4105 = vmatprep.mubr.f32.mxu0 0.0
        %4106 = vmatmul.mubr.f32.gmra.mrb[0].mxu0 %v915
        %v4107 = vpop.f32.mrb[0].mxu0
        %v4108 = vadd.f32 0.0, %v4107
        %v4109 = vpop.f32.mrb[0].mxu0
        %4110 = vmatprep.mubr.f32.mxu0 0.0
        %4111 = vmatmul.mubr.f32.gmra.mrb[0].mxu0 %v918
        %v4112 = vpop.f32.mrb[0].mxu0
        %v4113 = vadd.f32 0.0, %v4112
        %v4114 = vpop.f32.mrb[0].mxu0
        %4115 = vmatprep.mubr.f32.mxu0 0.0
        %4116 = vmatmul.mubr.f32.gmra.mrb[0].mxu0 %v921
        %v4117 = vpop.f32.mrb[0].mxu0
        %v4118 = vadd.f32 0.0, %v4117
        %v4119 = vpop.f32.mrb[0].mxu0
        %4120 = vmatprep.mubr.f32.mxu0 0.0
        %4121 = vmatmul.mubr.f32.gmra.mrb[0].mxu0 %v924
        %v4122 = vpop.f32.mrb[0].mxu0
        %v4123 = vadd.f32 0.0, %v4122
        %v4124 = vpop.f32.mrb[0].mxu0
        %4125 = vmatprep.mubr.f32.mxu0 0.0
        %4126 = vmatmul.mubr.f32.gmra.mrb[0].mxu0 %v927
        %v4127 = vpop.f32.mrb[0].mxu0
        %v4128 = vadd.f32 0.0, %v4127
        %v4129 = vpop.f32.mrb[0].mxu0
        %4130 = vmatprep.mubr.f32.mxu0 0.0
        %4131 = vmatmul.mubr.f32.gmra.mrb[0].mxu0 %v930
        %v4132 = vpop.f32.mrb[0].mxu0
        %v4133 = vadd.f32 0.0, %v4132
        %v4134 = vpop.f32.mrb[0].mxu0
        %4135 = vmatprep.mubr.f32.mxu0 0.0
        %4136 = vmatmul.mubr.f32.gmra.mrb[0].mxu0 %v933
        %v4137 = vpop.f32.mrb[0].mxu0
        %v4138 = vadd.f32 0.0, %v4137
        %v4139 = vpop.f32.mrb[0].mxu0
        %4140 = vmatprep.mubr.f32.mxu0 0.0
        %4141 = vmatmul.mubr.f32.gmra.mrb[0].mxu0 %v936
        %v4142 = vpop.f32.mrb[0].mxu0
        %v4143 = vadd.f32 0.0, %v4142
        %v4144 = vpop.f32.mrb[0].mxu0
        %4145 = vmatprep.mubr.f32.mxu0 0.0
        %4146 = vmatmul.mubr.f32.gmra.mrb[0].mxu0 %v939
        %v4147 = vpop.f32.mrb[0].mxu0
        %v4148 = vadd.f32 0.0, %v4147
        %v4149 = vpop.f32.mrb[0].mxu0
        %4150 = vmatprep.mubr.f32.mxu0 0.0
        %4151 = vmatmul.mubr.f32.gmra.mrb[0].mxu0 %v942
        %v4152 = vpop.f32.mrb[0].mxu0
        %v4153 = vadd.f32 0.0, %v4152
        %v4154 = vpop.f32.mrb[0].mxu0
        %4155 = vmatprep.mubr.f32.mxu0 0.0
        %4156 = vmatmul.mubr.f32.gmra.mrb[0].mxu0 %v945
        %v4157 = vpop.f32.mrb[0].mxu0
        %v4158 = vadd.f32 0.0, %v4157
        %v4159 = vpop.f32.mrb[0].mxu0
        %4160 = vmatprep.mubr.f32.mxu0 0.0
        %4161 = vmatmul.mubr.f32.gmra.mrb[0].mxu0 %v948
        %v4162 = vpop.f32.mrb[0].mxu0
        %v4163 = vadd.f32 0.0, %v4162
        %v4164 = vpop.f32.mrb[0].mxu0
        %4165 = vmatprep.mubr.f32.mxu0 0.0
        %4166 = vmatmul.mubr.f32.gmra.mrb[0].mxu0 %v951
        %v4167 = vpop.f32.mrb[0].mxu0
        %v4168 = vadd.f32 0.0, %v4167
        %v4169 = vpop.f32.mrb[0].mxu0
        %4170 = vmatprep.mubr.f32.mxu0 0.0
        %4171 = vmatmul.mubr.f32.gmra.mrb[0].mxu0 %v954
        %v4172 = vpop.f32.mrb[0].mxu0
        %v4173 = vadd.f32 0.0, %v4172
        %v4174 = vpop.f32.mrb[0].mxu0
        %4175 = vmatprep.mubr.f32.mxu0 0.0
        %4176 = vmatmul.mubr.f32.gmra.mrb[0].mxu0 %v957
        %v4177 = vpop.f32.mrb[0].mxu0
        %v4178 = vadd.f32 0.0, %v4177
        %v4179 = vpop.f32.mrb[0].mxu0
        %4180 = vdwg.mxu0
        %s4181 = scalar_lea.vmem %s220, 2432 [#allocation7]
        %4182 = vst [vmem:[%s4181] sm:$0xff] %v4103
        %4183 = vst [vmem:[%s4181 + $0x8] sm:$0xff] %v4108
        %4184 = vst [vmem:[%s4181 + $0x10] sm:$0xff] %v4113
        %4185 = vst [vmem:[%s4181 + $0x18] sm:$0xff] %v4118
        %4186 = vst [vmem:[%s4181 + $0x20] sm:$0xff] %v4123
        %4187 = vst [vmem:[%s4181 + $0x28] sm:$0xff] %v4128
        %4188 = vst [vmem:[%s4181 + $0x30] sm:$0xff] %v4133
        %4189 = vst [vmem:[%s4181 + $0x38] sm:$0xff] %v4138
        %4190 = vst [vmem:[%s4181 + $0x40] sm:$0xff] %v4143
        %4191 = vst [vmem:[%s4181 + $0x48] sm:$0xff] %v4148
        %4192 = vst [vmem:[%s4181 + $0x50] sm:$0xff] %v4153
        %4193 = vst [vmem:[%s4181 + $0x58] sm:$0xff] %v4158
        %4194 = vst [vmem:[%s4181 + $0x60] sm:$0xff] %v4163
        %4195 = vst [vmem:[%s4181 + $0x68] sm:$0xff] %v4168
        %4196 = vst [vmem:[%s4181 + $0x70] sm:$0xff] %v4173
        %4197 = vst [vmem:[%s4181 + $0x78] sm:$0xff] %v4178
        %4198 = vmatprep.subr.mxu0 0.0
        %4199 = vmatpush1.msra.mxu0 %v759
        %4200 = vmatprep.subr.mxu0 0.0
        %4201 = vmatpush1.msra.mxu0 %v764
        %4202 = vmatprep.subr.mxu0 0.0
        %4203 = vmatpush1.msra.mxu0 0.0
        %4204 = vmatprep.subr.mxu0 0.0
        %4205 = vmatpush1.msra.mxu0 0.0
        %4206 = vmatprep.subr.mxu0 0.0
        %4207 = vmatpush1.msra.mxu0 0.0
        %4208 = vmatprep.subr.mxu0 0.0
        %4209 = vmatpush1.msra.mxu0 0.0
        %4210 = vmatprep.subr.mxu0 0.0
        %4211 = vmatpush1.msra.mxu0 0.0
        %4212 = vmatprep.subr.mxu0 0.0
        %4213 = vmatpush1.msra.mxu0 0.0
        %4214 = vmatprep.subr.mxu0 0.0
        %4215 = vmatpush1.msra.mxu0 0.0
        %4216 = vmatprep.subr.mxu0 0.0
        %4217 = vmatpush1.msra.mxu0 0.0
        %4218 = vmatprep.subr.mxu0 0.0
        %4219 = vmatpush1.msra.mxu0 0.0
        %4220 = vmatprep.subr.mxu0 0.0
        %4221 = vmatpush1.msra.mxu0 0.0
        %4222 = vmatprep.subr.mxu0 0.0
        %4223 = vmatpush1.msra.mxu0 0.0
        %4224 = vmatprep.subr.mxu0 0.0
        %4225 = vmatpush1.msra.mxu0 0.0
        %4226 = vmatprep.subr.mxu0 0.0
        %4227 = vmatpush1.msra.mxu0 0.0
        %4228 = vmatprep.subr.mxu0 0.0
        %4229 = vmatpush1.msra.mxu0 0.0
        %4230 = vmatprep.subr.mxu0 0.0
        %4231 = vmatpush1.msra.mxu0 0.0
        %4232 = vmatprep.subr.mxu0 0.0
        %4233 = vmatpush1.msra.mxu0 0.0
        %4234 = vmatprep.subr.mxu0 0.0
        %4235 = vmatpush1.msra.mxu0 0.0
        %4236 = vmatprep.subr.mxu0 0.0
        %4237 = vmatpush1.msra.mxu0 0.0
        %4238 = vmatprep.subr.mxu0 0.0
        %4239 = vmatpush1.msra.mxu0 0.0
        %4240 = vmatprep.subr.mxu0 0.0
        %4241 = vmatpush1.msra.mxu0 0.0
        %4242 = vmatprep.subr.mxu0 0.0
        %4243 = vmatpush1.msra.mxu0 0.0
        %4244 = vmatprep.subr.mxu0 0.0
        %4245 = vmatpush1.msra.mxu0 0.0
        %4246 = vmatprep.subr.mxu0 0.0
        %4247 = vmatpush1.msra.mxu0 0.0
        %4248 = vmatprep.subr.mxu0 0.0
        %4249 = vmatpush1.msra.mxu0 0.0
        %4250 = vmatprep.subr.mxu0 0.0
        %4251 = vmatpush1.msra.mxu0 0.0
        %4252 = vmatprep.subr.mxu0 0.0
        %4253 = vmatpush1.msra.mxu0 0.0
        %4254 = vmatprep.subr.mxu0 0.0
        %4255 = vmatpush1.msra.mxu0 0.0
        %4256 = vmatprep.subr.mxu0 0.0
        %4257 = vmatpush1.msra.mxu0 0.0
        %4258 = vmatprep.subr.mxu0 0.0
        %4259 = vmatpush1.msra.mxu0 0.0
        %4260 = vmatprep.subr.mxu0 0.0
        %4261 = vmatpush1.msra.mxu0 0.0
        %4262 = vmatprep.mubr.f32.mxu0 0.0
        %4263 = vmatmul.mubr.f32.gmra.mrb[0].mxu0 %v912
        %v4264 = vpop.f32.mrb[0].mxu0
        %v4265 = vadd.f32 0.0, %v4264
        %v4266 = vpop.f32.mrb[0].mxu0
        %4267 = vmatprep.mubr.f32.mxu0 0.0
        %4268 = vmatmul.mubr.f32.gmra.mrb[0].mxu0 %v915
        %v4269 = vpop.f32.mrb[0].mxu0
        %v4270 = vadd.f32 0.0, %v4269
        %v4271 = vpop.f32.mrb[0].mxu0
        %4272 = vmatprep.mubr.f32.mxu0 0.0
        %4273 = vmatmul.mubr.f32.gmra.mrb[0].mxu0 %v918
        %v4274 = vpop.f32.mrb[0].mxu0
        %v4275 = vadd.f32 0.0, %v4274
        %v4276 = vpop.f32.mrb[0].mxu0
        %4277 = vmatprep.mubr.f32.mxu0 0.0
        %4278 = vmatmul.mubr.f32.gmra.mrb[0].mxu0 %v921
        %v4279 = vpop.f32.mrb[0].mxu0
        %v4280 = vadd.f32 0.0, %v4279
        %v4281 = vpop.f32.mrb[0].mxu0
        %4282 = vmatprep.mubr.f32.mxu0 0.0
        %4283 = vmatmul.mubr.f32.gmra.mrb[0].mxu0 %v924
        %v4284 = vpop.f32.mrb[0].mxu0
        %v4285 = vadd.f32 0.0, %v4284
        %v4286 = vpop.f32.mrb[0].mxu0
        %4287 = vmatprep.mubr.f32.mxu0 0.0
        %4288 = vmatmul.mubr.f32.gmra.mrb[0].mxu0 %v927
        %v4289 = vpop.f32.mrb[0].mxu0
        %v4290 = vadd.f32 0.0, %v4289
        %v4291 = vpop.f32.mrb[0].mxu0
        %4292 = vmatprep.mubr.f32.mxu0 0.0
        %4293 = vmatmul.mubr.f32.gmra.mrb[0].mxu0 %v930
        %v4294 = vpop.f32.mrb[0].mxu0
        %v4295 = vadd.f32 0.0, %v4294
        %v4296 = vpop.f32.mrb[0].mxu0
        %4297 = vmatprep.mubr.f32.mxu0 0.0
        %4298 = vmatmul.mubr.f32.gmra.mrb[0].mxu0 %v933
        %v4299 = vpop.f32.mrb[0].mxu0
        %v4300 = vadd.f32 0.0, %v4299
        %v4301 = vpop.f32.mrb[0].mxu0
        %4302 = vmatprep.mubr.f32.mxu0 0.0
        %4303 = vmatmul.mubr.f32.gmra.mrb[0].mxu0 %v936
        %v4304 = vpop.f32.mrb[0].mxu0
        %v4305 = vadd.f32 0.0, %v4304
        %v4306 = vpop.f32.mrb[0].mxu0
        %4307 = vmatprep.mubr.f32.mxu0 0.0
        %4308 = vmatmul.mubr.f32.gmra.mrb[0].mxu0 %v939
        %v4309 = vpop.f32.mrb[0].mxu0
        %v4310 = vadd.f32 0.0, %v4309
        %v4311 = vpop.f32.mrb[0].mxu0
        %4312 = vmatprep.mubr.f32.mxu0 0.0
        %4313 = vmatmul.mubr.f32.gmra.mrb[0].mxu0 %v942
        %v4314 = vpop.f32.mrb[0].mxu0
        %v4315 = vadd.f32 0.0, %v4314
        %v4316 = vpop.f32.mrb[0].mxu0
        %4317 = vmatprep.mubr.f32.mxu0 0.0
        %4318 = vmatmul.mubr.f32.gmra.mrb[0].mxu0 %v945
        %v4319 = vpop.f32.mrb[0].mxu0
        %v4320 = vadd.f32 0.0, %v4319
        %v4321 = vpop.f32.mrb[0].mxu0
        %4322 = vmatprep.mubr.f32.mxu0 0.0
        %4323 = vmatmul.mubr.f32.gmra.mrb[0].mxu0 %v948
        %v4324 = vpop.f32.mrb[0].mxu0
        %v4325 = vadd.f32 0.0, %v4324
        %v4326 = vpop.f32.mrb[0].mxu0
        %4327 = vmatprep.mubr.f32.mxu0 0.0
        %4328 = vmatmul.mubr.f32.gmra.mrb[0].mxu0 %v951
        %v4329 = vpop.f32.mrb[0].mxu0
        %v4330 = vadd.f32 0.0, %v4329
        %v4331 = vpop.f32.mrb[0].mxu0
        %4332 = vmatprep.mubr.f32.mxu0 0.0
        %4333 = vmatmul.mubr.f32.gmra.mrb[0].mxu0 %v954
        %v4334 = vpop.f32.mrb[0].mxu0
        %v4335 = vadd.f32 0.0, %v4334
        %v4336 = vpop.f32.mrb[0].mxu0
        %4337 = vmatprep.mubr.f32.mxu0 0.0
        %4338 = vmatmul.mubr.f32.gmra.mrb[0].mxu0 %v957
        %v4339 = vpop.f32.mrb[0].mxu0
        %v4340 = vadd.f32 0.0, %v4339
        %v4341 = vpop.f32.mrb[0].mxu0
        %4342 = vdwg.mxu0
        %s4343 = scalar_lea.vmem %s220, 2560 [#allocation7]
        %4344 = vst [vmem:[%s4343] sm:$0xff] %v4265
        %4345 = vst [vmem:[%s4343 + $0x8] sm:$0xff] %v4270
        %4346 = vst [vmem:[%s4343 + $0x10] sm:$0xff] %v4275
        %4347 = vst [vmem:[%s4343 + $0x18] sm:$0xff] %v4280
        %4348 = vst [vmem:[%s4343 + $0x20] sm:$0xff] %v4285
        %4349 = vst [vmem:[%s4343 + $0x28] sm:$0xff] %v4290
        %4350 = vst [vmem:[%s4343 + $0x30] sm:$0xff] %v4295
        %4351 = vst [vmem:[%s4343 + $0x38] sm:$0xff] %v4300
        %4352 = vst [vmem:[%s4343 + $0x40] sm:$0xff] %v4305
        %4353 = vst [vmem:[%s4343 + $0x48] sm:$0xff] %v4310
        %4354 = vst [vmem:[%s4343 + $0x50] sm:$0xff] %v4315
        %4355 = vst [vmem:[%s4343 + $0x58] sm:$0xff] %v4320
        %4356 = vst [vmem:[%s4343 + $0x60] sm:$0xff] %v4325
        %4357 = vst [vmem:[%s4343 + $0x68] sm:$0xff] %v4330
        %4358 = vst [vmem:[%s4343 + $0x70] sm:$0xff] %v4335
        %4359 = vst [vmem:[%s4343 + $0x78] sm:$0xff] %v4340
        %4360 = vmatprep.subr.mxu0 0.0
        %4361 = vmatpush1.msra.mxu0 %v769
        %4362 = vmatprep.subr.mxu0 0.0
        %4363 = vmatpush1.msra.mxu0 %v774
        %4364 = vmatprep.subr.mxu0 0.0
        %4365 = vmatpush1.msra.mxu0 0.0
        %4366 = vmatprep.subr.mxu0 0.0
        %4367 = vmatpush1.msra.mxu0 0.0
        %4368 = vmatprep.subr.mxu0 0.0
        %4369 = vmatpush1.msra.mxu0 0.0
        %4370 = vmatprep.subr.mxu0 0.0
        %4371 = vmatpush1.msra.mxu0 0.0
        %4372 = vmatprep.subr.mxu0 0.0
        %4373 = vmatpush1.msra.mxu0 0.0
        %4374 = vmatprep.subr.mxu0 0.0
        %4375 = vmatpush1.msra.mxu0 0.0
        %4376 = vmatprep.subr.mxu0 0.0
        %4377 = vmatpush1.msra.mxu0 0.0
        %4378 = vmatprep.subr.mxu0 0.0
        %4379 = vmatpush1.msra.mxu0 0.0
        %4380 = vmatprep.subr.mxu0 0.0
        %4381 = vmatpush1.msra.mxu0 0.0
        %4382 = vmatprep.subr.mxu0 0.0
        %4383 = vmatpush1.msra.mxu0 0.0
        %4384 = vmatprep.subr.mxu0 0.0
        %4385 = vmatpush1.msra.mxu0 0.0
        %4386 = vmatprep.subr.mxu0 0.0
        %4387 = vmatpush1.msra.mxu0 0.0
        %4388 = vmatprep.subr.mxu0 0.0
        %4389 = vmatpush1.msra.mxu0 0.0
        %4390 = vmatprep.subr.mxu0 0.0
        %4391 = vmatpush1.msra.mxu0 0.0
        %4392 = vmatprep.subr.mxu0 0.0
        %4393 = vmatpush1.msra.mxu0 0.0
        %4394 = vmatprep.subr.mxu0 0.0
        %4395 = vmatpush1.msra.mxu0 0.0
        %4396 = vmatprep.subr.mxu0 0.0
        %4397 = vmatpush1.msra.mxu0 0.0
        %4398 = vmatprep.subr.mxu0 0.0
        %4399 = vmatpush1.msra.mxu0 0.0
        %4400 = vmatprep.subr.mxu0 0.0
        %4401 = vmatpush1.msra.mxu0 0.0
        %4402 = vmatprep.subr.mxu0 0.0
        %4403 = vmatpush1.msra.mxu0 0.0
        %4404 = vmatprep.subr.mxu0 0.0
        %4405 = vmatpush1.msra.mxu0 0.0
        %4406 = vmatprep.subr.mxu0 0.0
        %4407 = vmatpush1.msra.mxu0 0.0
        %4408 = vmatprep.subr.mxu0 0.0
        %4409 = vmatpush1.msra.mxu0 0.0
        %4410 = vmatprep.subr.mxu0 0.0
        %4411 = vmatpush1.msra.mxu0 0.0
        %4412 = vmatprep.subr.mxu0 0.0
        %4413 = vmatpush1.msra.mxu0 0.0
        %4414 = vmatprep.subr.mxu0 0.0
        %4415 = vmatpush1.msra.mxu0 0.0
        %4416 = vmatprep.subr.mxu0 0.0
        %4417 = vmatpush1.msra.mxu0 0.0
        %4418 = vmatprep.subr.mxu0 0.0
        %4419 = vmatpush1.msra.mxu0 0.0
        %4420 = vmatprep.subr.mxu0 0.0
        %4421 = vmatpush1.msra.mxu0 0.0
        %4422 = vmatprep.subr.mxu0 0.0
        %4423 = vmatpush1.msra.mxu0 0.0
        %4424 = vmatprep.mubr.f32.mxu0 0.0
        %4425 = vmatmul.mubr.f32.gmra.mrb[0].mxu0 %v912
        %v4426 = vpop.f32.mrb[0].mxu0
        %v4427 = vadd.f32 0.0, %v4426
        %v4428 = vpop.f32.mrb[0].mxu0
        %4429 = vmatprep.mubr.f32.mxu0 0.0
        %4430 = vmatmul.mubr.f32.gmra.mrb[0].mxu0 %v915
        %v4431 = vpop.f32.mrb[0].mxu0
        %v4432 = vadd.f32 0.0, %v4431
        %v4433 = vpop.f32.mrb[0].mxu0
        %4434 = vmatprep.mubr.f32.mxu0 0.0
        %4435 = vmatmul.mubr.f32.gmra.mrb[0].mxu0 %v918
        %v4436 = vpop.f32.mrb[0].mxu0
        %v4437 = vadd.f32 0.0, %v4436
        %v4438 = vpop.f32.mrb[0].mxu0
        %4439 = vmatprep.mubr.f32.mxu0 0.0
        %4440 = vmatmul.mubr.f32.gmra.mrb[0].mxu0 %v921
        %v4441 = vpop.f32.mrb[0].mxu0
        %v4442 = vadd.f32 0.0, %v4441
        %v4443 = vpop.f32.mrb[0].mxu0
        %4444 = vmatprep.mubr.f32.mxu0 0.0
        %4445 = vmatmul.mubr.f32.gmra.mrb[0].mxu0 %v924
        %v4446 = vpop.f32.mrb[0].mxu0
        %v4447 = vadd.f32 0.0, %v4446
        %v4448 = vpop.f32.mrb[0].mxu0
        %4449 = vmatprep.mubr.f32.mxu0 0.0
        %4450 = vmatmul.mubr.f32.gmra.mrb[0].mxu0 %v927
        %v4451 = vpop.f32.mrb[0].mxu0
        %v4452 = vadd.f32 0.0, %v4451
        %v4453 = vpop.f32.mrb[0].mxu0
        %4454 = vmatprep.mubr.f32.mxu0 0.0
        %4455 = vmatmul.mubr.f32.gmra.mrb[0].mxu0 %v930
        %v4456 = vpop.f32.mrb[0].mxu0
        %v4457 = vadd.f32 0.0, %v4456
        %v4458 = vpop.f32.mrb[0].mxu0
        %4459 = vmatprep.mubr.f32.mxu0 0.0
        %4460 = vmatmul.mubr.f32.gmra.mrb[0].mxu0 %v933
        %v4461 = vpop.f32.mrb[0].mxu0
        %v4462 = vadd.f32 0.0, %v4461
        %v4463 = vpop.f32.mrb[0].mxu0
        %4464 = vmatprep.mubr.f32.mxu0 0.0
        %4465 = vmatmul.mubr.f32.gmra.mrb[0].mxu0 %v936
        %v4466 = vpop.f32.mrb[0].mxu0
        %v4467 = vadd.f32 0.0, %v4466
        %v4468 = vpop.f32.mrb[0].mxu0
        %4469 = vmatprep.mubr.f32.mxu0 0.0
        %4470 = vmatmul.mubr.f32.gmra.mrb[0].mxu0 %v939
        %v4471 = vpop.f32.mrb[0].mxu0
        %v4472 = vadd.f32 0.0, %v4471
        %v4473 = vpop.f32.mrb[0].mxu0
        %4474 = vmatprep.mubr.f32.mxu0 0.0
        %4475 = vmatmul.mubr.f32.gmra.mrb[0].mxu0 %v942
        %v4476 = vpop.f32.mrb[0].mxu0
        %v4477 = vadd.f32 0.0, %v4476
        %v4478 = vpop.f32.mrb[0].mxu0
        %4479 = vmatprep.mubr.f32.mxu0 0.0
        %4480 = vmatmul.mubr.f32.gmra.mrb[0].mxu0 %v945
        %v4481 = vpop.f32.mrb[0].mxu0
        %v4482 = vadd.f32 0.0, %v4481
        %v4483 = vpop.f32.mrb[0].mxu0
        %4484 = vmatprep.mubr.f32.mxu0 0.0
        %4485 = vmatmul.mubr.f32.gmra.mrb[0].mxu0 %v948
        %v4486 = vpop.f32.mrb[0].mxu0
        %v4487 = vadd.f32 0.0, %v4486
        %v4488 = vpop.f32.mrb[0].mxu0
        %4489 = vmatprep.mubr.f32.mxu0 0.0
        %4490 = vmatmul.mubr.f32.gmra.mrb[0].mxu0 %v951
        %v4491 = vpop.f32.mrb[0].mxu0
        %v4492 = vadd.f32 0.0, %v4491
        %v4493 = vpop.f32.mrb[0].mxu0
        %4494 = vmatprep.mubr.f32.mxu0 0.0
        %4495 = vmatmul.mubr.f32.gmra.mrb[0].mxu0 %v954
        %v4496 = vpop.f32.mrb[0].mxu0
        %v4497 = vadd.f32 0.0, %v4496
        %v4498 = vpop.f32.mrb[0].mxu0
        %4499 = vmatprep.mubr.f32.mxu0 0.0
        %4500 = vmatmul.mubr.f32.gmra.mrb[0].mxu0 %v957
        %v4501 = vpop.f32.mrb[0].mxu0
        %v4502 = vadd.f32 0.0, %v4501
        %v4503 = vpop.f32.mrb[0].mxu0
        %4504 = vdwg.mxu0
        %s4505 = scalar_lea.vmem %s220, 2688 [#allocation7]
        %4506 = vst [vmem:[%s4505] sm:$0xff] %v4427
        %4507 = vst [vmem:[%s4505 + $0x8] sm:$0xff] %v4432
        %4508 = vst [vmem:[%s4505 + $0x10] sm:$0xff] %v4437
        %4509 = vst [vmem:[%s4505 + $0x18] sm:$0xff] %v4442
        %4510 = vst [vmem:[%s4505 + $0x20] sm:$0xff] %v4447
        %4511 = vst [vmem:[%s4505 + $0x28] sm:$0xff] %v4452
        %4512 = vst [vmem:[%s4505 + $0x30] sm:$0xff] %v4457
        %4513 = vst [vmem:[%s4505 + $0x38] sm:$0xff] %v4462
        %4514 = vst [vmem:[%s4505 + $0x40] sm:$0xff] %v4467
        %4515 = vst [vmem:[%s4505 + $0x48] sm:$0xff] %v4472
        %4516 = vst [vmem:[%s4505 + $0x50] sm:$0xff] %v4477
        %4517 = vst [vmem:[%s4505 + $0x58] sm:$0xff] %v4482
        %4518 = vst [vmem:[%s4505 + $0x60] sm:$0xff] %v4487
        %4519 = vst [vmem:[%s4505 + $0x68] sm:$0xff] %v4492
        %4520 = vst [vmem:[%s4505 + $0x70] sm:$0xff] %v4497
        %4521 = vst [vmem:[%s4505 + $0x78] sm:$0xff] %v4502
        %4522 = vmatprep.subr.mxu0 0.0
        %4523 = vmatpush1.msra.mxu0 %v779
        %4524 = vmatprep.subr.mxu0 0.0
        %4525 = vmatpush1.msra.mxu0 %v784
        %4526 = vmatprep.subr.mxu0 0.0
        %4527 = vmatpush1.msra.mxu0 0.0
        %4528 = vmatprep.subr.mxu0 0.0
        %4529 = vmatpush1.msra.mxu0 0.0
        %4530 = vmatprep.subr.mxu0 0.0
        %4531 = vmatpush1.msra.mxu0 0.0
        %4532 = vmatprep.subr.mxu0 0.0
        %4533 = vmatpush1.msra.mxu0 0.0
        %4534 = vmatprep.subr.mxu0 0.0
        %4535 = vmatpush1.msra.mxu0 0.0
        %4536 = vmatprep.subr.mxu0 0.0
        %4537 = vmatpush1.msra.mxu0 0.0
        %4538 = vmatprep.subr.mxu0 0.0
        %4539 = vmatpush1.msra.mxu0 0.0
        %4540 = vmatprep.subr.mxu0 0.0
        %4541 = vmatpush1.msra.mxu0 0.0
        %4542 = vmatprep.subr.mxu0 0.0
        %4543 = vmatpush1.msra.mxu0 0.0
        %4544 = vmatprep.subr.mxu0 0.0
        %4545 = vmatpush1.msra.mxu0 0.0
        %4546 = vmatprep.subr.mxu0 0.0
        %4547 = vmatpush1.msra.mxu0 0.0
        %4548 = vmatprep.subr.mxu0 0.0
        %4549 = vmatpush1.msra.mxu0 0.0
        %4550 = vmatprep.subr.mxu0 0.0
        %4551 = vmatpush1.msra.mxu0 0.0
        %4552 = vmatprep.subr.mxu0 0.0
        %4553 = vmatpush1.msra.mxu0 0.0
        %4554 = vmatprep.subr.mxu0 0.0
        %4555 = vmatpush1.msra.mxu0 0.0
        %4556 = vmatprep.subr.mxu0 0.0
        %4557 = vmatpush1.msra.mxu0 0.0
        %4558 = vmatprep.subr.mxu0 0.0
        %4559 = vmatpush1.msra.mxu0 0.0
        %4560 = vmatprep.subr.mxu0 0.0
        %4561 = vmatpush1.msra.mxu0 0.0
        %4562 = vmatprep.subr.mxu0 0.0
        %4563 = vmatpush1.msra.mxu0 0.0
        %4564 = vmatprep.subr.mxu0 0.0
        %4565 = vmatpush1.msra.mxu0 0.0
        %4566 = vmatprep.subr.mxu0 0.0
        %4567 = vmatpush1.msra.mxu0 0.0
        %4568 = vmatprep.subr.mxu0 0.0
        %4569 = vmatpush1.msra.mxu0 0.0
        %4570 = vmatprep.subr.mxu0 0.0
        %4571 = vmatpush1.msra.mxu0 0.0
        %4572 = vmatprep.subr.mxu0 0.0
        %4573 = vmatpush1.msra.mxu0 0.0
        %4574 = vmatprep.subr.mxu0 0.0
        %4575 = vmatpush1.msra.mxu0 0.0
        %4576 = vmatprep.subr.mxu0 0.0
        %4577 = vmatpush1.msra.mxu0 0.0
        %4578 = vmatprep.subr.mxu0 0.0
        %4579 = vmatpush1.msra.mxu0 0.0
        %4580 = vmatprep.subr.mxu0 0.0
        %4581 = vmatpush1.msra.mxu0 0.0
        %4582 = vmatprep.subr.mxu0 0.0
        %4583 = vmatpush1.msra.mxu0 0.0
        %4584 = vmatprep.subr.mxu0 0.0
        %4585 = vmatpush1.msra.mxu0 0.0
        %4586 = vmatprep.mubr.f32.mxu0 0.0
        %4587 = vmatmul.mubr.f32.gmra.mrb[0].mxu0 %v912
        %v4588 = vpop.f32.mrb[0].mxu0
        %v4589 = vadd.f32 0.0, %v4588
        %v4590 = vpop.f32.mrb[0].mxu0
        %4591 = vmatprep.mubr.f32.mxu0 0.0
        %4592 = vmatmul.mubr.f32.gmra.mrb[0].mxu0 %v915
        %v4593 = vpop.f32.mrb[0].mxu0
        %v4594 = vadd.f32 0.0, %v4593
        %v4595 = vpop.f32.mrb[0].mxu0
        %4596 = vmatprep.mubr.f32.mxu0 0.0
        %4597 = vmatmul.mubr.f32.gmra.mrb[0].mxu0 %v918
        %v4598 = vpop.f32.mrb[0].mxu0
        %v4599 = vadd.f32 0.0, %v4598
        %v4600 = vpop.f32.mrb[0].mxu0
        %4601 = vmatprep.mubr.f32.mxu0 0.0
        %4602 = vmatmul.mubr.f32.gmra.mrb[0].mxu0 %v921
        %v4603 = vpop.f32.mrb[0].mxu0
        %v4604 = vadd.f32 0.0, %v4603
        %v4605 = vpop.f32.mrb[0].mxu0
        %4606 = vmatprep.mubr.f32.mxu0 0.0
        %4607 = vmatmul.mubr.f32.gmra.mrb[0].mxu0 %v924
        %v4608 = vpop.f32.mrb[0].mxu0
        %v4609 = vadd.f32 0.0, %v4608
        %v4610 = vpop.f32.mrb[0].mxu0
        %4611 = vmatprep.mubr.f32.mxu0 0.0
        %4612 = vmatmul.mubr.f32.gmra.mrb[0].mxu0 %v927
        %v4613 = vpop.f32.mrb[0].mxu0
        %v4614 = vadd.f32 0.0, %v4613
        %v4615 = vpop.f32.mrb[0].mxu0
        %4616 = vmatprep.mubr.f32.mxu0 0.0
        %4617 = vmatmul.mubr.f32.gmra.mrb[0].mxu0 %v930
        %v4618 = vpop.f32.mrb[0].mxu0
        %v4619 = vadd.f32 0.0, %v4618
        %v4620 = vpop.f32.mrb[0].mxu0
        %4621 = vmatprep.mubr.f32.mxu0 0.0
        %4622 = vmatmul.mubr.f32.gmra.mrb[0].mxu0 %v933
        %v4623 = vpop.f32.mrb[0].mxu0
        %v4624 = vadd.f32 0.0, %v4623
        %v4625 = vpop.f32.mrb[0].mxu0
        %4626 = vmatprep.mubr.f32.mxu0 0.0
        %4627 = vmatmul.mubr.f32.gmra.mrb[0].mxu0 %v936
        %v4628 = vpop.f32.mrb[0].mxu0
        %v4629 = vadd.f32 0.0, %v4628
        %v4630 = vpop.f32.mrb[0].mxu0
        %4631 = vmatprep.mubr.f32.mxu0 0.0
        %4632 = vmatmul.mubr.f32.gmra.mrb[0].mxu0 %v939
        %v4633 = vpop.f32.mrb[0].mxu0
        %v4634 = vadd.f32 0.0, %v4633
        %v4635 = vpop.f32.mrb[0].mxu0
        %4636 = vmatprep.mubr.f32.mxu0 0.0
        %4637 = vmatmul.mubr.f32.gmra.mrb[0].mxu0 %v942
        %v4638 = vpop.f32.mrb[0].mxu0
        %v4639 = vadd.f32 0.0, %v4638
        %v4640 = vpop.f32.mrb[0].mxu0
        %4641 = vmatprep.mubr.f32.mxu0 0.0
        %4642 = vmatmul.mubr.f32.gmra.mrb[0].mxu0 %v945
        %v4643 = vpop.f32.mrb[0].mxu0
        %v4644 = vadd.f32 0.0, %v4643
        %v4645 = vpop.f32.mrb[0].mxu0
        %4646 = vmatprep.mubr.f32.mxu0 0.0
        %4647 = vmatmul.mubr.f32.gmra.mrb[0].mxu0 %v948
        %v4648 = vpop.f32.mrb[0].mxu0
        %v4649 = vadd.f32 0.0, %v4648
        %v4650 = vpop.f32.mrb[0].mxu0
        %4651 = vmatprep.mubr.f32.mxu0 0.0
        %4652 = vmatmul.mubr.f32.gmra.mrb[0].mxu0 %v951
        %v4653 = vpop.f32.mrb[0].mxu0
        %v4654 = vadd.f32 0.0, %v4653
        %v4655 = vpop.f32.mrb[0].mxu0
        %4656 = vmatprep.mubr.f32.mxu0 0.0
        %4657 = vmatmul.mubr.f32.gmra.mrb[0].mxu0 %v954
        %v4658 = vpop.f32.mrb[0].mxu0
        %v4659 = vadd.f32 0.0, %v4658
        %v4660 = vpop.f32.mrb[0].mxu0
        %4661 = vmatprep.mubr.f32.mxu0 0.0
        %4662 = vmatmul.mubr.f32.gmra.mrb[0].mxu0 %v957
        %v4663 = vpop.f32.mrb[0].mxu0
        %v4664 = vadd.f32 0.0, %v4663
        %v4665 = vpop.f32.mrb[0].mxu0
        %4666 = vdwg.mxu0
        %s4667 = scalar_lea.vmem %s220, 2816 [#allocation7]
        %4668 = vst [vmem:[%s4667] sm:$0xff] %v4589
        %4669 = vst [vmem:[%s4667 + $0x8] sm:$0xff] %v4594
        %4670 = vst [vmem:[%s4667 + $0x10] sm:$0xff] %v4599
        %4671 = vst [vmem:[%s4667 + $0x18] sm:$0xff] %v4604
        %4672 = vst [vmem:[%s4667 + $0x20] sm:$0xff] %v4609
        %4673 = vst [vmem:[%s4667 + $0x28] sm:$0xff] %v4614
        %4674 = vst [vmem:[%s4667 + $0x30] sm:$0xff] %v4619
        %4675 = vst [vmem:[%s4667 + $0x38] sm:$0xff] %v4624
        %4676 = vst [vmem:[%s4667 + $0x40] sm:$0xff] %v4629
        %4677 = vst [vmem:[%s4667 + $0x48] sm:$0xff] %v4634
        %4678 = vst [vmem:[%s4667 + $0x50] sm:$0xff] %v4639
        %4679 = vst [vmem:[%s4667 + $0x58] sm:$0xff] %v4644
        %4680 = vst [vmem:[%s4667 + $0x60] sm:$0xff] %v4649
        %4681 = vst [vmem:[%s4667 + $0x68] sm:$0xff] %v4654
        %4682 = vst [vmem:[%s4667 + $0x70] sm:$0xff] %v4659
        %4683 = vst [vmem:[%s4667 + $0x78] sm:$0xff] %v4664
        %4684 = vmatprep.subr.mxu0 0.0
        %4685 = vmatpush1.msra.mxu0 %v789
        %4686 = vmatprep.subr.mxu0 0.0
        %4687 = vmatpush1.msra.mxu0 %v794
        %4688 = vmatprep.subr.mxu0 0.0
        %4689 = vmatpush1.msra.mxu0 0.0
        %4690 = vmatprep.subr.mxu0 0.0
        %4691 = vmatpush1.msra.mxu0 0.0
        %4692 = vmatprep.subr.mxu0 0.0
        %4693 = vmatpush1.msra.mxu0 0.0
        %4694 = vmatprep.subr.mxu0 0.0
        %4695 = vmatpush1.msra.mxu0 0.0
        %4696 = vmatprep.subr.mxu0 0.0
        %4697 = vmatpush1.msra.mxu0 0.0
        %4698 = vmatprep.subr.mxu0 0.0
        %4699 = vmatpush1.msra.mxu0 0.0
        %4700 = vmatprep.subr.mxu0 0.0
        %4701 = vmatpush1.msra.mxu0 0.0
        %4702 = vmatprep.subr.mxu0 0.0
        %4703 = vmatpush1.msra.mxu0 0.0
        %4704 = vmatprep.subr.mxu0 0.0
        %4705 = vmatpush1.msra.mxu0 0.0
        %4706 = vmatprep.subr.mxu0 0.0
        %4707 = vmatpush1.msra.mxu0 0.0
        %4708 = vmatprep.subr.mxu0 0.0
        %4709 = vmatpush1.msra.mxu0 0.0
        %4710 = vmatprep.subr.mxu0 0.0
        %4711 = vmatpush1.msra.mxu0 0.0
        %4712 = vmatprep.subr.mxu0 0.0
        %4713 = vmatpush1.msra.mxu0 0.0
        %4714 = vmatprep.subr.mxu0 0.0
        %4715 = vmatpush1.msra.mxu0 0.0
        %4716 = vmatprep.subr.mxu0 0.0
        %4717 = vmatpush1.msra.mxu0 0.0
        %4718 = vmatprep.subr.mxu0 0.0
        %4719 = vmatpush1.msra.mxu0 0.0
        %4720 = vmatprep.subr.mxu0 0.0
        %4721 = vmatpush1.msra.mxu0 0.0
        %4722 = vmatprep.subr.mxu0 0.0
        %4723 = vmatpush1.msra.mxu0 0.0
        %4724 = vmatprep.subr.mxu0 0.0
        %4725 = vmatpush1.msra.mxu0 0.0
        %4726 = vmatprep.subr.mxu0 0.0
        %4727 = vmatpush1.msra.mxu0 0.0
        %4728 = vmatprep.subr.mxu0 0.0
        %4729 = vmatpush1.msra.mxu0 0.0
        %4730 = vmatprep.subr.mxu0 0.0
        %4731 = vmatpush1.msra.mxu0 0.0
        %4732 = vmatprep.subr.mxu0 0.0
        %4733 = vmatpush1.msra.mxu0 0.0
        %4734 = vmatprep.subr.mxu0 0.0
        %4735 = vmatpush1.msra.mxu0 0.0
        %4736 = vmatprep.subr.mxu0 0.0
        %4737 = vmatpush1.msra.mxu0 0.0
        %4738 = vmatprep.subr.mxu0 0.0
        %4739 = vmatpush1.msra.mxu0 0.0
        %4740 = vmatprep.subr.mxu0 0.0
        %4741 = vmatpush1.msra.mxu0 0.0
        %4742 = vmatprep.subr.mxu0 0.0
        %4743 = vmatpush1.msra.mxu0 0.0
        %4744 = vmatprep.subr.mxu0 0.0
        %4745 = vmatpush1.msra.mxu0 0.0
        %4746 = vmatprep.subr.mxu0 0.0
        %4747 = vmatpush1.msra.mxu0 0.0
        %4748 = vmatprep.mubr.f32.mxu0 0.0
        %4749 = vmatmul.mubr.f32.gmra.mrb[0].mxu0 %v912
        %v4750 = vpop.f32.mrb[0].mxu0
        %v4751 = vadd.f32 0.0, %v4750
        %v4752 = vpop.f32.mrb[0].mxu0
        %4753 = vmatprep.mubr.f32.mxu0 0.0
        %4754 = vmatmul.mubr.f32.gmra.mrb[0].mxu0 %v915
        %v4755 = vpop.f32.mrb[0].mxu0
        %v4756 = vadd.f32 0.0, %v4755
        %v4757 = vpop.f32.mrb[0].mxu0
        %4758 = vmatprep.mubr.f32.mxu0 0.0
        %4759 = vmatmul.mubr.f32.gmra.mrb[0].mxu0 %v918
        %v4760 = vpop.f32.mrb[0].mxu0
        %v4761 = vadd.f32 0.0, %v4760
        %v4762 = vpop.f32.mrb[0].mxu0
        %4763 = vmatprep.mubr.f32.mxu0 0.0
        %4764 = vmatmul.mubr.f32.gmra.mrb[0].mxu0 %v921
        %v4765 = vpop.f32.mrb[0].mxu0
        %v4766 = vadd.f32 0.0, %v4765
        %v4767 = vpop.f32.mrb[0].mxu0
        %4768 = vmatprep.mubr.f32.mxu0 0.0
        %4769 = vmatmul.mubr.f32.gmra.mrb[0].mxu0 %v924
        %v4770 = vpop.f32.mrb[0].mxu0
        %v4771 = vadd.f32 0.0, %v4770
        %v4772 = vpop.f32.mrb[0].mxu0
        %4773 = vmatprep.mubr.f32.mxu0 0.0
        %4774 = vmatmul.mubr.f32.gmra.mrb[0].mxu0 %v927
        %v4775 = vpop.f32.mrb[0].mxu0
        %v4776 = vadd.f32 0.0, %v4775
        %v4777 = vpop.f32.mrb[0].mxu0
        %4778 = vmatprep.mubr.f32.mxu0 0.0
        %4779 = vmatmul.mubr.f32.gmra.mrb[0].mxu0 %v930
        %v4780 = vpop.f32.mrb[0].mxu0
        %v4781 = vadd.f32 0.0, %v4780
        %v4782 = vpop.f32.mrb[0].mxu0
        %4783 = vmatprep.mubr.f32.mxu0 0.0
        %4784 = vmatmul.mubr.f32.gmra.mrb[0].mxu0 %v933
        %v4785 = vpop.f32.mrb[0].mxu0
        %v4786 = vadd.f32 0.0, %v4785
        %v4787 = vpop.f32.mrb[0].mxu0
        %4788 = vmatprep.mubr.f32.mxu0 0.0
        %4789 = vmatmul.mubr.f32.gmra.mrb[0].mxu0 %v936
        %v4790 = vpop.f32.mrb[0].mxu0
        %v4791 = vadd.f32 0.0, %v4790
        %v4792 = vpop.f32.mrb[0].mxu0
        %4793 = vmatprep.mubr.f32.mxu0 0.0
        %4794 = vmatmul.mubr.f32.gmra.mrb[0].mxu0 %v939
        %v4795 = vpop.f32.mrb[0].mxu0
        %v4796 = vadd.f32 0.0, %v4795
        %v4797 = vpop.f32.mrb[0].mxu0
        %4798 = vmatprep.mubr.f32.mxu0 0.0
        %4799 = vmatmul.mubr.f32.gmra.mrb[0].mxu0 %v942
        %v4800 = vpop.f32.mrb[0].mxu0
        %v4801 = vadd.f32 0.0, %v4800
        %v4802 = vpop.f32.mrb[0].mxu0
        %4803 = vmatprep.mubr.f32.mxu0 0.0
        %4804 = vmatmul.mubr.f32.gmra.mrb[0].mxu0 %v945
        %v4805 = vpop.f32.mrb[0].mxu0
        %v4806 = vadd.f32 0.0, %v4805
        %v4807 = vpop.f32.mrb[0].mxu0
        %4808 = vmatprep.mubr.f32.mxu0 0.0
        %4809 = vmatmul.mubr.f32.gmra.mrb[0].mxu0 %v948
        %v4810 = vpop.f32.mrb[0].mxu0
        %v4811 = vadd.f32 0.0, %v4810
        %v4812 = vpop.f32.mrb[0].mxu0
        %4813 = vmatprep.mubr.f32.mxu0 0.0
        %4814 = vmatmul.mubr.f32.gmra.mrb[0].mxu0 %v951
        %v4815 = vpop.f32.mrb[0].mxu0
        %v4816 = vadd.f32 0.0, %v4815
        %v4817 = vpop.f32.mrb[0].mxu0
        %4818 = vmatprep.mubr.f32.mxu0 0.0
        %4819 = vmatmul.mubr.f32.gmra.mrb[0].mxu0 %v954
        %v4820 = vpop.f32.mrb[0].mxu0
        %v4821 = vadd.f32 0.0, %v4820
        %v4822 = vpop.f32.mrb[0].mxu0
        %4823 = vmatprep.mubr.f32.mxu0 0.0
        %4824 = vmatmul.mubr.f32.gmra.mrb[0].mxu0 %v957
        %v4825 = vpop.f32.mrb[0].mxu0
        %v4826 = vadd.f32 0.0, %v4825
        %v4827 = vpop.f32.mrb[0].mxu0
        %4828 = vdwg.mxu0
        %s4829 = scalar_lea.vmem %s220, 2944 [#allocation7]
        %4830 = vst [vmem:[%s4829] sm:$0xff] %v4751
        %4831 = vst [vmem:[%s4829 + $0x8] sm:$0xff] %v4756
        %4832 = vst [vmem:[%s4829 + $0x10] sm:$0xff] %v4761
        %4833 = vst [vmem:[%s4829 + $0x18] sm:$0xff] %v4766
        %4834 = vst [vmem:[%s4829 + $0x20] sm:$0xff] %v4771
        %4835 = vst [vmem:[%s4829 + $0x28] sm:$0xff] %v4776
        %4836 = vst [vmem:[%s4829 + $0x30] sm:$0xff] %v4781
        %4837 = vst [vmem:[%s4829 + $0x38] sm:$0xff] %v4786
        %4838 = vst [vmem:[%s4829 + $0x40] sm:$0xff] %v4791
        %4839 = vst [vmem:[%s4829 + $0x48] sm:$0xff] %v4796
        %4840 = vst [vmem:[%s4829 + $0x50] sm:$0xff] %v4801
        %4841 = vst [vmem:[%s4829 + $0x58] sm:$0xff] %v4806
        %4842 = vst [vmem:[%s4829 + $0x60] sm:$0xff] %v4811
        %4843 = vst [vmem:[%s4829 + $0x68] sm:$0xff] %v4816
        %4844 = vst [vmem:[%s4829 + $0x70] sm:$0xff] %v4821
        %4845 = vst [vmem:[%s4829 + $0x78] sm:$0xff] %v4826
        %4846 = vmatprep.subr.mxu0 0.0
        %4847 = vmatpush1.msra.mxu0 %v799
        %4848 = vmatprep.subr.mxu0 0.0
        %4849 = vmatpush1.msra.mxu0 %v804
        %4850 = vmatprep.subr.mxu0 0.0
        %4851 = vmatpush1.msra.mxu0 0.0
        %4852 = vmatprep.subr.mxu0 0.0
        %4853 = vmatpush1.msra.mxu0 0.0
        %4854 = vmatprep.subr.mxu0 0.0
        %4855 = vmatpush1.msra.mxu0 0.0
        %4856 = vmatprep.subr.mxu0 0.0
        %4857 = vmatpush1.msra.mxu0 0.0
        %4858 = vmatprep.subr.mxu0 0.0
        %4859 = vmatpush1.msra.mxu0 0.0
        %4860 = vmatprep.subr.mxu0 0.0
        %4861 = vmatpush1.msra.mxu0 0.0
        %4862 = vmatprep.subr.mxu0 0.0
        %4863 = vmatpush1.msra.mxu0 0.0
        %4864 = vmatprep.subr.mxu0 0.0
        %4865 = vmatpush1.msra.mxu0 0.0
        %4866 = vmatprep.subr.mxu0 0.0
        %4867 = vmatpush1.msra.mxu0 0.0
        %4868 = vmatprep.subr.mxu0 0.0
        %4869 = vmatpush1.msra.mxu0 0.0
        %4870 = vmatprep.subr.mxu0 0.0
        %4871 = vmatpush1.msra.mxu0 0.0
        %4872 = vmatprep.subr.mxu0 0.0
        %4873 = vmatpush1.msra.mxu0 0.0
        %4874 = vmatprep.subr.mxu0 0.0
        %4875 = vmatpush1.msra.mxu0 0.0
        %4876 = vmatprep.subr.mxu0 0.0
        %4877 = vmatpush1.msra.mxu0 0.0
        %4878 = vmatprep.subr.mxu0 0.0
        %4879 = vmatpush1.msra.mxu0 0.0
        %4880 = vmatprep.subr.mxu0 0.0
        %4881 = vmatpush1.msra.mxu0 0.0
        %4882 = vmatprep.subr.mxu0 0.0
        %4883 = vmatpush1.msra.mxu0 0.0
        %4884 = vmatprep.subr.mxu0 0.0
        %4885 = vmatpush1.msra.mxu0 0.0
        %4886 = vmatprep.subr.mxu0 0.0
        %4887 = vmatpush1.msra.mxu0 0.0
        %4888 = vmatprep.subr.mxu0 0.0
        %4889 = vmatpush1.msra.mxu0 0.0
        %4890 = vmatprep.subr.mxu0 0.0
        %4891 = vmatpush1.msra.mxu0 0.0
        %4892 = vmatprep.subr.mxu0 0.0
        %4893 = vmatpush1.msra.mxu0 0.0
        %4894 = vmatprep.subr.mxu0 0.0
        %4895 = vmatpush1.msra.mxu0 0.0
        %4896 = vmatprep.subr.mxu0 0.0
        %4897 = vmatpush1.msra.mxu0 0.0
        %4898 = vmatprep.subr.mxu0 0.0
        %4899 = vmatpush1.msra.mxu0 0.0
        %4900 = vmatprep.subr.mxu0 0.0
        %4901 = vmatpush1.msra.mxu0 0.0
        %4902 = vmatprep.subr.mxu0 0.0
        %4903 = vmatpush1.msra.mxu0 0.0
        %4904 = vmatprep.subr.mxu0 0.0
        %4905 = vmatpush1.msra.mxu0 0.0
        %4906 = vmatprep.subr.mxu0 0.0
        %4907 = vmatpush1.msra.mxu0 0.0
        %4908 = vmatprep.subr.mxu0 0.0
        %4909 = vmatpush1.msra.mxu0 0.0
        %4910 = vmatprep.mubr.f32.mxu0 0.0
        %4911 = vmatmul.mubr.f32.gmra.mrb[0].mxu0 %v912
        %v4912 = vpop.f32.mrb[0].mxu0
        %v4913 = vadd.f32 0.0, %v4912
        %v4914 = vpop.f32.mrb[0].mxu0
        %4915 = vmatprep.mubr.f32.mxu0 0.0
        %4916 = vmatmul.mubr.f32.gmra.mrb[0].mxu0 %v915
        %v4917 = vpop.f32.mrb[0].mxu0
        %v4918 = vadd.f32 0.0, %v4917
        %v4919 = vpop.f32.mrb[0].mxu0
        %4920 = vmatprep.mubr.f32.mxu0 0.0
        %4921 = vmatmul.mubr.f32.gmra.mrb[0].mxu0 %v918
        %v4922 = vpop.f32.mrb[0].mxu0
        %v4923 = vadd.f32 0.0, %v4922
        %v4924 = vpop.f32.mrb[0].mxu0
        %4925 = vmatprep.mubr.f32.mxu0 0.0
        %4926 = vmatmul.mubr.f32.gmra.mrb[0].mxu0 %v921
        %v4927 = vpop.f32.mrb[0].mxu0
        %v4928 = vadd.f32 0.0, %v4927
        %v4929 = vpop.f32.mrb[0].mxu0
        %4930 = vmatprep.mubr.f32.mxu0 0.0
        %4931 = vmatmul.mubr.f32.gmra.mrb[0].mxu0 %v924
        %v4932 = vpop.f32.mrb[0].mxu0
        %v4933 = vadd.f32 0.0, %v4932
        %v4934 = vpop.f32.mrb[0].mxu0
        %4935 = vmatprep.mubr.f32.mxu0 0.0
        %4936 = vmatmul.mubr.f32.gmra.mrb[0].mxu0 %v927
        %v4937 = vpop.f32.mrb[0].mxu0
        %v4938 = vadd.f32 0.0, %v4937
        %v4939 = vpop.f32.mrb[0].mxu0
        %4940 = vmatprep.mubr.f32.mxu0 0.0
        %4941 = vmatmul.mubr.f32.gmra.mrb[0].mxu0 %v930
        %v4942 = vpop.f32.mrb[0].mxu0
        %v4943 = vadd.f32 0.0, %v4942
        %v4944 = vpop.f32.mrb[0].mxu0
        %4945 = vmatprep.mubr.f32.mxu0 0.0
        %4946 = vmatmul.mubr.f32.gmra.mrb[0].mxu0 %v933
        %v4947 = vpop.f32.mrb[0].mxu0
        %v4948 = vadd.f32 0.0, %v4947
        %v4949 = vpop.f32.mrb[0].mxu0
        %4950 = vmatprep.mubr.f32.mxu0 0.0
        %4951 = vmatmul.mubr.f32.gmra.mrb[0].mxu0 %v936
        %v4952 = vpop.f32.mrb[0].mxu0
        %v4953 = vadd.f32 0.0, %v4952
        %v4954 = vpop.f32.mrb[0].mxu0
        %4955 = vmatprep.mubr.f32.mxu0 0.0
        %4956 = vmatmul.mubr.f32.gmra.mrb[0].mxu0 %v939
        %v4957 = vpop.f32.mrb[0].mxu0
        %v4958 = vadd.f32 0.0, %v4957
        %v4959 = vpop.f32.mrb[0].mxu0
        %4960 = vmatprep.mubr.f32.mxu0 0.0
        %4961 = vmatmul.mubr.f32.gmra.mrb[0].mxu0 %v942
        %v4962 = vpop.f32.mrb[0].mxu0
        %v4963 = vadd.f32 0.0, %v4962
        %v4964 = vpop.f32.mrb[0].mxu0
        %4965 = vmatprep.mubr.f32.mxu0 0.0
        %4966 = vmatmul.mubr.f32.gmra.mrb[0].mxu0 %v945
        %v4967 = vpop.f32.mrb[0].mxu0
        %v4968 = vadd.f32 0.0, %v4967
        %v4969 = vpop.f32.mrb[0].mxu0
        %4970 = vmatprep.mubr.f32.mxu0 0.0
        %4971 = vmatmul.mubr.f32.gmra.mrb[0].mxu0 %v948
        %v4972 = vpop.f32.mrb[0].mxu0
        %v4973 = vadd.f32 0.0, %v4972
        %v4974 = vpop.f32.mrb[0].mxu0
        %4975 = vmatprep.mubr.f32.mxu0 0.0
        %4976 = vmatmul.mubr.f32.gmra.mrb[0].mxu0 %v951
        %v4977 = vpop.f32.mrb[0].mxu0
        %v4978 = vadd.f32 0.0, %v4977
        %v4979 = vpop.f32.mrb[0].mxu0
        %4980 = vmatprep.mubr.f32.mxu0 0.0
        %4981 = vmatmul.mubr.f32.gmra.mrb[0].mxu0 %v954
        %v4982 = vpop.f32.mrb[0].mxu0
        %v4983 = vadd.f32 0.0, %v4982
        %v4984 = vpop.f32.mrb[0].mxu0
        %4985 = vmatprep.mubr.f32.mxu0 0.0
        %4986 = vmatmul.mubr.f32.gmra.mrb[0].mxu0 %v957
        %v4987 = vpop.f32.mrb[0].mxu0
        %v4988 = vadd.f32 0.0, %v4987
        %v4989 = vpop.f32.mrb[0].mxu0
        %4990 = vdwg.mxu0
        %s4991 = scalar_lea.vmem %s220, 3072 [#allocation7]
        %4992 = vst [vmem:[%s4991] sm:$0xff] %v4913
        %4993 = vst [vmem:[%s4991 + $0x8] sm:$0xff] %v4918
        %4994 = vst [vmem:[%s4991 + $0x10] sm:$0xff] %v4923
        %4995 = vst [vmem:[%s4991 + $0x18] sm:$0xff] %v4928
        %4996 = vst [vmem:[%s4991 + $0x20] sm:$0xff] %v4933
        %4997 = vst [vmem:[%s4991 + $0x28] sm:$0xff] %v4938
        %4998 = vst [vmem:[%s4991 + $0x30] sm:$0xff] %v4943
        %4999 = vst [vmem:[%s4991 + $0x38] sm:$0xff] %v4948
        %5000 = vst [vmem:[%s4991 + $0x40] sm:$0xff] %v4953
        %5001 = vst [vmem:[%s4991 + $0x48] sm:$0xff] %v4958
        %5002 = vst [vmem:[%s4991 + $0x50] sm:$0xff] %v4963
        %5003 = vst [vmem:[%s4991 + $0x58] sm:$0xff] %v4968
        %5004 = vst [vmem:[%s4991 + $0x60] sm:$0xff] %v4973
        %5005 = vst [vmem:[%s4991 + $0x68] sm:$0xff] %v4978
        %5006 = vst [vmem:[%s4991 + $0x70] sm:$0xff] %v4983
        %5007 = vst [vmem:[%s4991 + $0x78] sm:$0xff] %v4988
        %5008 = vmatprep.subr.mxu0 0.0
        %5009 = vmatpush1.msra.mxu0 %v809
        %5010 = vmatprep.subr.mxu0 0.0
        %5011 = vmatpush1.msra.mxu0 %v814
        %5012 = vmatprep.subr.mxu0 0.0
        %5013 = vmatpush1.msra.mxu0 0.0
        %5014 = vmatprep.subr.mxu0 0.0
        %5015 = vmatpush1.msra.mxu0 0.0
        %5016 = vmatprep.subr.mxu0 0.0
        %5017 = vmatpush1.msra.mxu0 0.0
        %5018 = vmatprep.subr.mxu0 0.0
        %5019 = vmatpush1.msra.mxu0 0.0
        %5020 = vmatprep.subr.mxu0 0.0
        %5021 = vmatpush1.msra.mxu0 0.0
        %5022 = vmatprep.subr.mxu0 0.0
        %5023 = vmatpush1.msra.mxu0 0.0
        %5024 = vmatprep.subr.mxu0 0.0
        %5025 = vmatpush1.msra.mxu0 0.0
        %5026 = vmatprep.subr.mxu0 0.0
        %5027 = vmatpush1.msra.mxu0 0.0
        %5028 = vmatprep.subr.mxu0 0.0
        %5029 = vmatpush1.msra.mxu0 0.0
        %5030 = vmatprep.subr.mxu0 0.0
        %5031 = vmatpush1.msra.mxu0 0.0
        %5032 = vmatprep.subr.mxu0 0.0
        %5033 = vmatpush1.msra.mxu0 0.0
        %5034 = vmatprep.subr.mxu0 0.0
        %5035 = vmatpush1.msra.mxu0 0.0
        %5036 = vmatprep.subr.mxu0 0.0
        %5037 = vmatpush1.msra.mxu0 0.0
        %5038 = vmatprep.subr.mxu0 0.0
        %5039 = vmatpush1.msra.mxu0 0.0
        %5040 = vmatprep.subr.mxu0 0.0
        %5041 = vmatpush1.msra.mxu0 0.0
        %5042 = vmatprep.subr.mxu0 0.0
        %5043 = vmatpush1.msra.mxu0 0.0
        %5044 = vmatprep.subr.mxu0 0.0
        %5045 = vmatpush1.msra.mxu0 0.0
        %5046 = vmatprep.subr.mxu0 0.0
        %5047 = vmatpush1.msra.mxu0 0.0
        %5048 = vmatprep.subr.mxu0 0.0
        %5049 = vmatpush1.msra.mxu0 0.0
        %5050 = vmatprep.subr.mxu0 0.0
        %5051 = vmatpush1.msra.mxu0 0.0
        %5052 = vmatprep.subr.mxu0 0.0
        %5053 = vmatpush1.msra.mxu0 0.0
        %5054 = vmatprep.subr.mxu0 0.0
        %5055 = vmatpush1.msra.mxu0 0.0
        %5056 = vmatprep.subr.mxu0 0.0
        %5057 = vmatpush1.msra.mxu0 0.0
        %5058 = vmatprep.subr.mxu0 0.0
        %5059 = vmatpush1.msra.mxu0 0.0
        %5060 = vmatprep.subr.mxu0 0.0
        %5061 = vmatpush1.msra.mxu0 0.0
        %5062 = vmatprep.subr.mxu0 0.0
        %5063 = vmatpush1.msra.mxu0 0.0
        %5064 = vmatprep.subr.mxu0 0.0
        %5065 = vmatpush1.msra.mxu0 0.0
        %5066 = vmatprep.subr.mxu0 0.0
        %5067 = vmatpush1.msra.mxu0 0.0
        %5068 = vmatprep.subr.mxu0 0.0
        %5069 = vmatpush1.msra.mxu0 0.0
        %5070 = vmatprep.subr.mxu0 0.0
        %5071 = vmatpush1.msra.mxu0 0.0
        %5072 = vmatprep.mubr.f32.mxu0 0.0
        %5073 = vmatmul.mubr.f32.gmra.mrb[0].mxu0 %v912
        %v5074 = vpop.f32.mrb[0].mxu0
        %v5075 = vadd.f32 0.0, %v5074
        %v5076 = vpop.f32.mrb[0].mxu0
        %5077 = vmatprep.mubr.f32.mxu0 0.0
        %5078 = vmatmul.mubr.f32.gmra.mrb[0].mxu0 %v915
        %v5079 = vpop.f32.mrb[0].mxu0
        %v5080 = vadd.f32 0.0, %v5079
        %v5081 = vpop.f32.mrb[0].mxu0
        %5082 = vmatprep.mubr.f32.mxu0 0.0
        %5083 = vmatmul.mubr.f32.gmra.mrb[0].mxu0 %v918
        %v5084 = vpop.f32.mrb[0].mxu0
        %v5085 = vadd.f32 0.0, %v5084
        %v5086 = vpop.f32.mrb[0].mxu0
        %5087 = vmatprep.mubr.f32.mxu0 0.0
        %5088 = vmatmul.mubr.f32.gmra.mrb[0].mxu0 %v921
        %v5089 = vpop.f32.mrb[0].mxu0
        %v5090 = vadd.f32 0.0, %v5089
        %v5091 = vpop.f32.mrb[0].mxu0
        %5092 = vmatprep.mubr.f32.mxu0 0.0
        %5093 = vmatmul.mubr.f32.gmra.mrb[0].mxu0 %v924
        %v5094 = vpop.f32.mrb[0].mxu0
        %v5095 = vadd.f32 0.0, %v5094
        %v5096 = vpop.f32.mrb[0].mxu0
        %5097 = vmatprep.mubr.f32.mxu0 0.0
        %5098 = vmatmul.mubr.f32.gmra.mrb[0].mxu0 %v927
        %v5099 = vpop.f32.mrb[0].mxu0
        %v5100 = vadd.f32 0.0, %v5099
        %v5101 = vpop.f32.mrb[0].mxu0
        %5102 = vmatprep.mubr.f32.mxu0 0.0
        %5103 = vmatmul.mubr.f32.gmra.mrb[0].mxu0 %v930
        %v5104 = vpop.f32.mrb[0].mxu0
        %v5105 = vadd.f32 0.0, %v5104
        %v5106 = vpop.f32.mrb[0].mxu0
        %5107 = vmatprep.mubr.f32.mxu0 0.0
        %5108 = vmatmul.mubr.f32.gmra.mrb[0].mxu0 %v933
        %v5109 = vpop.f32.mrb[0].mxu0
        %v5110 = vadd.f32 0.0, %v5109
        %v5111 = vpop.f32.mrb[0].mxu0
        %5112 = vmatprep.mubr.f32.mxu0 0.0
        %5113 = vmatmul.mubr.f32.gmra.mrb[0].mxu0 %v936
        %v5114 = vpop.f32.mrb[0].mxu0
        %v5115 = vadd.f32 0.0, %v5114
        %v5116 = vpop.f32.mrb[0].mxu0
        %5117 = vmatprep.mubr.f32.mxu0 0.0
        %5118 = vmatmul.mubr.f32.gmra.mrb[0].mxu0 %v939
        %v5119 = vpop.f32.mrb[0].mxu0
        %v5120 = vadd.f32 0.0, %v5119
        %v5121 = vpop.f32.mrb[0].mxu0
        %5122 = vmatprep.mubr.f32.mxu0 0.0
        %5123 = vmatmul.mubr.f32.gmra.mrb[0].mxu0 %v942
        %v5124 = vpop.f32.mrb[0].mxu0
        %v5125 = vadd.f32 0.0, %v5124
        %v5126 = vpop.f32.mrb[0].mxu0
        %5127 = vmatprep.mubr.f32.mxu0 0.0
        %5128 = vmatmul.mubr.f32.gmra.mrb[0].mxu0 %v945
        %v5129 = vpop.f32.mrb[0].mxu0
        %v5130 = vadd.f32 0.0, %v5129
        %v5131 = vpop.f32.mrb[0].mxu0
        %5132 = vmatprep.mubr.f32.mxu0 0.0
        %5133 = vmatmul.mubr.f32.gmra.mrb[0].mxu0 %v948
        %v5134 = vpop.f32.mrb[0].mxu0
        %v5135 = vadd.f32 0.0, %v5134
        %v5136 = vpop.f32.mrb[0].mxu0
        %5137 = vmatprep.mubr.f32.mxu0 0.0
        %5138 = vmatmul.mubr.f32.gmra.mrb[0].mxu0 %v951
        %v5139 = vpop.f32.mrb[0].mxu0
        %v5140 = vadd.f32 0.0, %v5139
        %v5141 = vpop.f32.mrb[0].mxu0
        %5142 = vmatprep.mubr.f32.mxu0 0.0
        %5143 = vmatmul.mubr.f32.gmra.mrb[0].mxu0 %v954
        %v5144 = vpop.f32.mrb[0].mxu0
        %v5145 = vadd.f32 0.0, %v5144
        %v5146 = vpop.f32.mrb[0].mxu0
        %5147 = vmatprep.mubr.f32.mxu0 0.0
        %5148 = vmatmul.mubr.f32.gmra.mrb[0].mxu0 %v957
        %v5149 = vpop.f32.mrb[0].mxu0
        %v5150 = vadd.f32 0.0, %v5149
        %v5151 = vpop.f32.mrb[0].mxu0
        %5152 = vdwg.mxu0
        %s5153 = scalar_lea.vmem %s220, 3200 [#allocation7]
        %5154 = vst [vmem:[%s5153] sm:$0xff] %v5075
        %5155 = vst [vmem:[%s5153 + $0x8] sm:$0xff] %v5080
        %5156 = vst [vmem:[%s5153 + $0x10] sm:$0xff] %v5085
        %5157 = vst [vmem:[%s5153 + $0x18] sm:$0xff] %v5090
        %5158 = vst [vmem:[%s5153 + $0x20] sm:$0xff] %v5095
        %5159 = vst [vmem:[%s5153 + $0x28] sm:$0xff] %v5100
        %5160 = vst [vmem:[%s5153 + $0x30] sm:$0xff] %v5105
        %5161 = vst [vmem:[%s5153 + $0x38] sm:$0xff] %v5110
        %5162 = vst [vmem:[%s5153 + $0x40] sm:$0xff] %v5115
        %5163 = vst [vmem:[%s5153 + $0x48] sm:$0xff] %v5120
        %5164 = vst [vmem:[%s5153 + $0x50] sm:$0xff] %v5125
        %5165 = vst [vmem:[%s5153 + $0x58] sm:$0xff] %v5130
        %5166 = vst [vmem:[%s5153 + $0x60] sm:$0xff] %v5135
        %5167 = vst [vmem:[%s5153 + $0x68] sm:$0xff] %v5140
        %5168 = vst [vmem:[%s5153 + $0x70] sm:$0xff] %v5145
        %5169 = vst [vmem:[%s5153 + $0x78] sm:$0xff] %v5150
        %5170 = vmatprep.subr.mxu0 0.0
        %5171 = vmatpush1.msra.mxu0 %v819
        %5172 = vmatprep.subr.mxu0 0.0
        %5173 = vmatpush1.msra.mxu0 %v824
        %5174 = vmatprep.subr.mxu0 0.0
        %5175 = vmatpush1.msra.mxu0 0.0
        %5176 = vmatprep.subr.mxu0 0.0
        %5177 = vmatpush1.msra.mxu0 0.0
        %5178 = vmatprep.subr.mxu0 0.0
        %5179 = vmatpush1.msra.mxu0 0.0
        %5180 = vmatprep.subr.mxu0 0.0
        %5181 = vmatpush1.msra.mxu0 0.0
        %5182 = vmatprep.subr.mxu0 0.0
        %5183 = vmatpush1.msra.mxu0 0.0
        %5184 = vmatprep.subr.mxu0 0.0
        %5185 = vmatpush1.msra.mxu0 0.0
        %5186 = vmatprep.subr.mxu0 0.0
        %5187 = vmatpush1.msra.mxu0 0.0
        %5188 = vmatprep.subr.mxu0 0.0
        %5189 = vmatpush1.msra.mxu0 0.0
        %5190 = vmatprep.subr.mxu0 0.0
        %5191 = vmatpush1.msra.mxu0 0.0
        %5192 = vmatprep.subr.mxu0 0.0
        %5193 = vmatpush1.msra.mxu0 0.0
        %5194 = vmatprep.subr.mxu0 0.0
        %5195 = vmatpush1.msra.mxu0 0.0
        %5196 = vmatprep.subr.mxu0 0.0
        %5197 = vmatpush1.msra.mxu0 0.0
        %5198 = vmatprep.subr.mxu0 0.0
        %5199 = vmatpush1.msra.mxu0 0.0
        %5200 = vmatprep.subr.mxu0 0.0
        %5201 = vmatpush1.msra.mxu0 0.0
        %5202 = vmatprep.subr.mxu0 0.0
        %5203 = vmatpush1.msra.mxu0 0.0
        %5204 = vmatprep.subr.mxu0 0.0
        %5205 = vmatpush1.msra.mxu0 0.0
        %5206 = vmatprep.subr.mxu0 0.0
        %5207 = vmatpush1.msra.mxu0 0.0
        %5208 = vmatprep.subr.mxu0 0.0
        %5209 = vmatpush1.msra.mxu0 0.0
        %5210 = vmatprep.subr.mxu0 0.0
        %5211 = vmatpush1.msra.mxu0 0.0
        %5212 = vmatprep.subr.mxu0 0.0
        %5213 = vmatpush1.msra.mxu0 0.0
        %5214 = vmatprep.subr.mxu0 0.0
        %5215 = vmatpush1.msra.mxu0 0.0
        %5216 = vmatprep.subr.mxu0 0.0
        %5217 = vmatpush1.msra.mxu0 0.0
        %5218 = vmatprep.subr.mxu0 0.0
        %5219 = vmatpush1.msra.mxu0 0.0
        %5220 = vmatprep.subr.mxu0 0.0
        %5221 = vmatpush1.msra.mxu0 0.0
        %5222 = vmatprep.subr.mxu0 0.0
        %5223 = vmatpush1.msra.mxu0 0.0
        %5224 = vmatprep.subr.mxu0 0.0
        %5225 = vmatpush1.msra.mxu0 0.0
        %5226 = vmatprep.subr.mxu0 0.0
        %5227 = vmatpush1.msra.mxu0 0.0
        %5228 = vmatprep.subr.mxu0 0.0
        %5229 = vmatpush1.msra.mxu0 0.0
        %5230 = vmatprep.subr.mxu0 0.0
        %5231 = vmatpush1.msra.mxu0 0.0
        %5232 = vmatprep.subr.mxu0 0.0
        %5233 = vmatpush1.msra.mxu0 0.0
        %5234 = vmatprep.mubr.f32.mxu0 0.0
        %5235 = vmatmul.mubr.f32.gmra.mrb[0].mxu0 %v912
        %v5236 = vpop.f32.mrb[0].mxu0
        %v5237 = vadd.f32 0.0, %v5236
        %v5238 = vpop.f32.mrb[0].mxu0
        %5239 = vmatprep.mubr.f32.mxu0 0.0
        %5240 = vmatmul.mubr.f32.gmra.mrb[0].mxu0 %v915
        %v5241 = vpop.f32.mrb[0].mxu0
        %v5242 = vadd.f32 0.0, %v5241
        %v5243 = vpop.f32.mrb[0].mxu0
        %5244 = vmatprep.mubr.f32.mxu0 0.0
        %5245 = vmatmul.mubr.f32.gmra.mrb[0].mxu0 %v918
        %v5246 = vpop.f32.mrb[0].mxu0
        %v5247 = vadd.f32 0.0, %v5246
        %v5248 = vpop.f32.mrb[0].mxu0
        %5249 = vmatprep.mubr.f32.mxu0 0.0
        %5250 = vmatmul.mubr.f32.gmra.mrb[0].mxu0 %v921
        %v5251 = vpop.f32.mrb[0].mxu0
        %v5252 = vadd.f32 0.0, %v5251
        %v5253 = vpop.f32.mrb[0].mxu0
        %5254 = vmatprep.mubr.f32.mxu0 0.0
        %5255 = vmatmul.mubr.f32.gmra.mrb[0].mxu0 %v924
        %v5256 = vpop.f32.mrb[0].mxu0
        %v5257 = vadd.f32 0.0, %v5256
        %v5258 = vpop.f32.mrb[0].mxu0
        %5259 = vmatprep.mubr.f32.mxu0 0.0
        %5260 = vmatmul.mubr.f32.gmra.mrb[0].mxu0 %v927
        %v5261 = vpop.f32.mrb[0].mxu0
        %v5262 = vadd.f32 0.0, %v5261
        %v5263 = vpop.f32.mrb[0].mxu0
        %5264 = vmatprep.mubr.f32.mxu0 0.0
        %5265 = vmatmul.mubr.f32.gmra.mrb[0].mxu0 %v930
        %v5266 = vpop.f32.mrb[0].mxu0
        %v5267 = vadd.f32 0.0, %v5266
        %v5268 = vpop.f32.mrb[0].mxu0
        %5269 = vmatprep.mubr.f32.mxu0 0.0
        %5270 = vmatmul.mubr.f32.gmra.mrb[0].mxu0 %v933
        %v5271 = vpop.f32.mrb[0].mxu0
        %v5272 = vadd.f32 0.0, %v5271
        %v5273 = vpop.f32.mrb[0].mxu0
        %5274 = vmatprep.mubr.f32.mxu0 0.0
        %5275 = vmatmul.mubr.f32.gmra.mrb[0].mxu0 %v936
        %v5276 = vpop.f32.mrb[0].mxu0
        %v5277 = vadd.f32 0.0, %v5276
        %v5278 = vpop.f32.mrb[0].mxu0
        %5279 = vmatprep.mubr.f32.mxu0 0.0
        %5280 = vmatmul.mubr.f32.gmra.mrb[0].mxu0 %v939
        %v5281 = vpop.f32.mrb[0].mxu0
        %v5282 = vadd.f32 0.0, %v5281
        %v5283 = vpop.f32.mrb[0].mxu0
        %5284 = vmatprep.mubr.f32.mxu0 0.0
        %5285 = vmatmul.mubr.f32.gmra.mrb[0].mxu0 %v942
        %v5286 = vpop.f32.mrb[0].mxu0
        %v5287 = vadd.f32 0.0, %v5286
        %v5288 = vpop.f32.mrb[0].mxu0
        %5289 = vmatprep.mubr.f32.mxu0 0.0
        %5290 = vmatmul.mubr.f32.gmra.mrb[0].mxu0 %v945
        %v5291 = vpop.f32.mrb[0].mxu0
        %v5292 = vadd.f32 0.0, %v5291
        %v5293 = vpop.f32.mrb[0].mxu0
        %5294 = vmatprep.mubr.f32.mxu0 0.0
        %5295 = vmatmul.mubr.f32.gmra.mrb[0].mxu0 %v948
        %v5296 = vpop.f32.mrb[0].mxu0
        %v5297 = vadd.f32 0.0, %v5296
        %v5298 = vpop.f32.mrb[0].mxu0
        %5299 = vmatprep.mubr.f32.mxu0 0.0
        %5300 = vmatmul.mubr.f32.gmra.mrb[0].mxu0 %v951
        %v5301 = vpop.f32.mrb[0].mxu0
        %v5302 = vadd.f32 0.0, %v5301
        %v5303 = vpop.f32.mrb[0].mxu0
        %5304 = vmatprep.mubr.f32.mxu0 0.0
        %5305 = vmatmul.mubr.f32.gmra.mrb[0].mxu0 %v954
        %v5306 = vpop.f32.mrb[0].mxu0
        %v5307 = vadd.f32 0.0, %v5306
        %v5308 = vpop.f32.mrb[0].mxu0
        %5309 = vmatprep.mubr.f32.mxu0 0.0
        %5310 = vmatmul.mubr.f32.gmra.mrb[0].mxu0 %v957
        %v5311 = vpop.f32.mrb[0].mxu0
        %v5312 = vadd.f32 0.0, %v5311
        %v5313 = vpop.f32.mrb[0].mxu0
        %5314 = vdwg.mxu0
        %s5315 = scalar_lea.vmem %s220, 3328 [#allocation7]
        %5316 = vst [vmem:[%s5315] sm:$0xff] %v5237
        %5317 = vst [vmem:[%s5315 + $0x8] sm:$0xff] %v5242
        %5318 = vst [vmem:[%s5315 + $0x10] sm:$0xff] %v5247
        %5319 = vst [vmem:[%s5315 + $0x18] sm:$0xff] %v5252
        %5320 = vst [vmem:[%s5315 + $0x20] sm:$0xff] %v5257
        %5321 = vst [vmem:[%s5315 + $0x28] sm:$0xff] %v5262
        %5322 = vst [vmem:[%s5315 + $0x30] sm:$0xff] %v5267
        %5323 = vst [vmem:[%s5315 + $0x38] sm:$0xff] %v5272
        %5324 = vst [vmem:[%s5315 + $0x40] sm:$0xff] %v5277
        %5325 = vst [vmem:[%s5315 + $0x48] sm:$0xff] %v5282
        %5326 = vst [vmem:[%s5315 + $0x50] sm:$0xff] %v5287
        %5327 = vst [vmem:[%s5315 + $0x58] sm:$0xff] %v5292
        %5328 = vst [vmem:[%s5315 + $0x60] sm:$0xff] %v5297
        %5329 = vst [vmem:[%s5315 + $0x68] sm:$0xff] %v5302
        %5330 = vst [vmem:[%s5315 + $0x70] sm:$0xff] %v5307
        %5331 = vst [vmem:[%s5315 + $0x78] sm:$0xff] %v5312
        %5332 = vmatprep.subr.mxu0 0.0
        %5333 = vmatpush1.msra.mxu0 %v829
        %5334 = vmatprep.subr.mxu0 0.0
        %5335 = vmatpush1.msra.mxu0 %v834
        %5336 = vmatprep.subr.mxu0 0.0
        %5337 = vmatpush1.msra.mxu0 0.0
        %5338 = vmatprep.subr.mxu0 0.0
        %5339 = vmatpush1.msra.mxu0 0.0
        %5340 = vmatprep.subr.mxu0 0.0
        %5341 = vmatpush1.msra.mxu0 0.0
        %5342 = vmatprep.subr.mxu0 0.0
        %5343 = vmatpush1.msra.mxu0 0.0
        %5344 = vmatprep.subr.mxu0 0.0
        %5345 = vmatpush1.msra.mxu0 0.0
        %5346 = vmatprep.subr.mxu0 0.0
        %5347 = vmatpush1.msra.mxu0 0.0
        %5348 = vmatprep.subr.mxu0 0.0
        %5349 = vmatpush1.msra.mxu0 0.0
        %5350 = vmatprep.subr.mxu0 0.0
        %5351 = vmatpush1.msra.mxu0 0.0
        %5352 = vmatprep.subr.mxu0 0.0
        %5353 = vmatpush1.msra.mxu0 0.0
        %5354 = vmatprep.subr.mxu0 0.0
        %5355 = vmatpush1.msra.mxu0 0.0
        %5356 = vmatprep.subr.mxu0 0.0
        %5357 = vmatpush1.msra.mxu0 0.0
        %5358 = vmatprep.subr.mxu0 0.0
        %5359 = vmatpush1.msra.mxu0 0.0
        %5360 = vmatprep.subr.mxu0 0.0
        %5361 = vmatpush1.msra.mxu0 0.0
        %5362 = vmatprep.subr.mxu0 0.0
        %5363 = vmatpush1.msra.mxu0 0.0
        %5364 = vmatprep.subr.mxu0 0.0
        %5365 = vmatpush1.msra.mxu0 0.0
        %5366 = vmatprep.subr.mxu0 0.0
        %5367 = vmatpush1.msra.mxu0 0.0
        %5368 = vmatprep.subr.mxu0 0.0
        %5369 = vmatpush1.msra.mxu0 0.0
        %5370 = vmatprep.subr.mxu0 0.0
        %5371 = vmatpush1.msra.mxu0 0.0
        %5372 = vmatprep.subr.mxu0 0.0
        %5373 = vmatpush1.msra.mxu0 0.0
        %5374 = vmatprep.subr.mxu0 0.0
        %5375 = vmatpush1.msra.mxu0 0.0
        %5376 = vmatprep.subr.mxu0 0.0
        %5377 = vmatpush1.msra.mxu0 0.0
        %5378 = vmatprep.subr.mxu0 0.0
        %5379 = vmatpush1.msra.mxu0 0.0
        %5380 = vmatprep.subr.mxu0 0.0
        %5381 = vmatpush1.msra.mxu0 0.0
        %5382 = vmatprep.subr.mxu0 0.0
        %5383 = vmatpush1.msra.mxu0 0.0
        %5384 = vmatprep.subr.mxu0 0.0
        %5385 = vmatpush1.msra.mxu0 0.0
        %5386 = vmatprep.subr.mxu0 0.0
        %5387 = vmatpush1.msra.mxu0 0.0
        %5388 = vmatprep.subr.mxu0 0.0
        %5389 = vmatpush1.msra.mxu0 0.0
        %5390 = vmatprep.subr.mxu0 0.0
        %5391 = vmatpush1.msra.mxu0 0.0
        %5392 = vmatprep.subr.mxu0 0.0
        %5393 = vmatpush1.msra.mxu0 0.0
        %5394 = vmatprep.subr.mxu0 0.0
        %5395 = vmatpush1.msra.mxu0 0.0
        %5396 = vmatprep.mubr.f32.mxu0 0.0
        %5397 = vmatmul.mubr.f32.gmra.mrb[0].mxu0 %v912
        %v5398 = vpop.f32.mrb[0].mxu0
        %v5399 = vadd.f32 0.0, %v5398
        %v5400 = vpop.f32.mrb[0].mxu0
        %5401 = vmatprep.mubr.f32.mxu0 0.0
        %5402 = vmatmul.mubr.f32.gmra.mrb[0].mxu0 %v915
        %v5403 = vpop.f32.mrb[0].mxu0
        %v5404 = vadd.f32 0.0, %v5403
        %v5405 = vpop.f32.mrb[0].mxu0
        %5406 = vmatprep.mubr.f32.mxu0 0.0
        %5407 = vmatmul.mubr.f32.gmra.mrb[0].mxu0 %v918
        %v5408 = vpop.f32.mrb[0].mxu0
        %v5409 = vadd.f32 0.0, %v5408
        %v5410 = vpop.f32.mrb[0].mxu0
        %5411 = vmatprep.mubr.f32.mxu0 0.0
        %5412 = vmatmul.mubr.f32.gmra.mrb[0].mxu0 %v921
        %v5413 = vpop.f32.mrb[0].mxu0
        %v5414 = vadd.f32 0.0, %v5413
        %v5415 = vpop.f32.mrb[0].mxu0
        %5416 = vmatprep.mubr.f32.mxu0 0.0
        %5417 = vmatmul.mubr.f32.gmra.mrb[0].mxu0 %v924
        %v5418 = vpop.f32.mrb[0].mxu0
        %v5419 = vadd.f32 0.0, %v5418
        %v5420 = vpop.f32.mrb[0].mxu0
        %5421 = vmatprep.mubr.f32.mxu0 0.0
        %5422 = vmatmul.mubr.f32.gmra.mrb[0].mxu0 %v927
        %v5423 = vpop.f32.mrb[0].mxu0
        %v5424 = vadd.f32 0.0, %v5423
        %v5425 = vpop.f32.mrb[0].mxu0
        %5426 = vmatprep.mubr.f32.mxu0 0.0
        %5427 = vmatmul.mubr.f32.gmra.mrb[0].mxu0 %v930
        %v5428 = vpop.f32.mrb[0].mxu0
        %v5429 = vadd.f32 0.0, %v5428
        %v5430 = vpop.f32.mrb[0].mxu0
        %5431 = vmatprep.mubr.f32.mxu0 0.0
        %5432 = vmatmul.mubr.f32.gmra.mrb[0].mxu0 %v933
        %v5433 = vpop.f32.mrb[0].mxu0
        %v5434 = vadd.f32 0.0, %v5433
        %v5435 = vpop.f32.mrb[0].mxu0
        %5436 = vmatprep.mubr.f32.mxu0 0.0
        %5437 = vmatmul.mubr.f32.gmra.mrb[0].mxu0 %v936
        %v5438 = vpop.f32.mrb[0].mxu0
        %v5439 = vadd.f32 0.0, %v5438
        %v5440 = vpop.f32.mrb[0].mxu0
        %5441 = vmatprep.mubr.f32.mxu0 0.0
        %5442 = vmatmul.mubr.f32.gmra.mrb[0].mxu0 %v939
        %v5443 = vpop.f32.mrb[0].mxu0
        %v5444 = vadd.f32 0.0, %v5443
        %v5445 = vpop.f32.mrb[0].mxu0
        %5446 = vmatprep.mubr.f32.mxu0 0.0
        %5447 = vmatmul.mubr.f32.gmra.mrb[0].mxu0 %v942
        %v5448 = vpop.f32.mrb[0].mxu0
        %v5449 = vadd.f32 0.0, %v5448
        %v5450 = vpop.f32.mrb[0].mxu0
        %5451 = vmatprep.mubr.f32.mxu0 0.0
        %5452 = vmatmul.mubr.f32.gmra.mrb[0].mxu0 %v945
        %v5453 = vpop.f32.mrb[0].mxu0
        %v5454 = vadd.f32 0.0, %v5453
        %v5455 = vpop.f32.mrb[0].mxu0
        %5456 = vmatprep.mubr.f32.mxu0 0.0
        %5457 = vmatmul.mubr.f32.gmra.mrb[0].mxu0 %v948
        %v5458 = vpop.f32.mrb[0].mxu0
        %v5459 = vadd.f32 0.0, %v5458
        %v5460 = vpop.f32.mrb[0].mxu0
        %5461 = vmatprep.mubr.f32.mxu0 0.0
        %5462 = vmatmul.mubr.f32.gmra.mrb[0].mxu0 %v951
        %v5463 = vpop.f32.mrb[0].mxu0
        %v5464 = vadd.f32 0.0, %v5463
        %v5465 = vpop.f32.mrb[0].mxu0
        %5466 = vmatprep.mubr.f32.mxu0 0.0
        %5467 = vmatmul.mubr.f32.gmra.mrb[0].mxu0 %v954
        %v5468 = vpop.f32.mrb[0].mxu0
        %v5469 = vadd.f32 0.0, %v5468
        %v5470 = vpop.f32.mrb[0].mxu0
        %5471 = vmatprep.mubr.f32.mxu0 0.0
        %5472 = vmatmul.mubr.f32.gmra.mrb[0].mxu0 %v957
        %v5473 = vpop.f32.mrb[0].mxu0
        %v5474 = vadd.f32 0.0, %v5473
        %v5475 = vpop.f32.mrb[0].mxu0
        %5476 = vdwg.mxu0
        %s5477 = scalar_lea.vmem %s220, 3456 [#allocation7]
        %5478 = vst [vmem:[%s5477] sm:$0xff] %v5399
        %5479 = vst [vmem:[%s5477 + $0x8] sm:$0xff] %v5404
        %5480 = vst [vmem:[%s5477 + $0x10] sm:$0xff] %v5409
        %5481 = vst [vmem:[%s5477 + $0x18] sm:$0xff] %v5414
        %5482 = vst [vmem:[%s5477 + $0x20] sm:$0xff] %v5419
        %5483 = vst [vmem:[%s5477 + $0x28] sm:$0xff] %v5424
        %5484 = vst [vmem:[%s5477 + $0x30] sm:$0xff] %v5429
        %5485 = vst [vmem:[%s5477 + $0x38] sm:$0xff] %v5434
        %5486 = vst [vmem:[%s5477 + $0x40] sm:$0xff] %v5439
        %5487 = vst [vmem:[%s5477 + $0x48] sm:$0xff] %v5444
        %5488 = vst [vmem:[%s5477 + $0x50] sm:$0xff] %v5449
        %5489 = vst [vmem:[%s5477 + $0x58] sm:$0xff] %v5454
        %5490 = vst [vmem:[%s5477 + $0x60] sm:$0xff] %v5459
        %5491 = vst [vmem:[%s5477 + $0x68] sm:$0xff] %v5464
        %5492 = vst [vmem:[%s5477 + $0x70] sm:$0xff] %v5469
        %5493 = vst [vmem:[%s5477 + $0x78] sm:$0xff] %v5474
        %5494 = vmatprep.subr.mxu0 0.0
        %5495 = vmatpush1.msra.mxu0 %v839
        %5496 = vmatprep.subr.mxu0 0.0
        %5497 = vmatpush1.msra.mxu0 %v844
        %5498 = vmatprep.subr.mxu0 0.0
        %5499 = vmatpush1.msra.mxu0 0.0
        %5500 = vmatprep.subr.mxu0 0.0
        %5501 = vmatpush1.msra.mxu0 0.0
        %5502 = vmatprep.subr.mxu0 0.0
        %5503 = vmatpush1.msra.mxu0 0.0
        %5504 = vmatprep.subr.mxu0 0.0
        %5505 = vmatpush1.msra.mxu0 0.0
        %5506 = vmatprep.subr.mxu0 0.0
        %5507 = vmatpush1.msra.mxu0 0.0
        %5508 = vmatprep.subr.mxu0 0.0
        %5509 = vmatpush1.msra.mxu0 0.0
        %5510 = vmatprep.subr.mxu0 0.0
        %5511 = vmatpush1.msra.mxu0 0.0
        %5512 = vmatprep.subr.mxu0 0.0
        %5513 = vmatpush1.msra.mxu0 0.0
        %5514 = vmatprep.subr.mxu0 0.0
        %5515 = vmatpush1.msra.mxu0 0.0
        %5516 = vmatprep.subr.mxu0 0.0
        %5517 = vmatpush1.msra.mxu0 0.0
        %5518 = vmatprep.subr.mxu0 0.0
        %5519 = vmatpush1.msra.mxu0 0.0
        %5520 = vmatprep.subr.mxu0 0.0
        %5521 = vmatpush1.msra.mxu0 0.0
        %5522 = vmatprep.subr.mxu0 0.0
        %5523 = vmatpush1.msra.mxu0 0.0
        %5524 = vmatprep.subr.mxu0 0.0
        %5525 = vmatpush1.msra.mxu0 0.0
        %5526 = vmatprep.subr.mxu0 0.0
        %5527 = vmatpush1.msra.mxu0 0.0
        %5528 = vmatprep.subr.mxu0 0.0
        %5529 = vmatpush1.msra.mxu0 0.0
        %5530 = vmatprep.subr.mxu0 0.0
        %5531 = vmatpush1.msra.mxu0 0.0
        %5532 = vmatprep.subr.mxu0 0.0
        %5533 = vmatpush1.msra.mxu0 0.0
        %5534 = vmatprep.subr.mxu0 0.0
        %5535 = vmatpush1.msra.mxu0 0.0
        %5536 = vmatprep.subr.mxu0 0.0
        %5537 = vmatpush1.msra.mxu0 0.0
        %5538 = vmatprep.subr.mxu0 0.0
        %5539 = vmatpush1.msra.mxu0 0.0
        %5540 = vmatprep.subr.mxu0 0.0
        %5541 = vmatpush1.msra.mxu0 0.0
        %5542 = vmatprep.subr.mxu0 0.0
        %5543 = vmatpush1.msra.mxu0 0.0
        %5544 = vmatprep.subr.mxu0 0.0
        %5545 = vmatpush1.msra.mxu0 0.0
        %5546 = vmatprep.subr.mxu0 0.0
        %5547 = vmatpush1.msra.mxu0 0.0
        %5548 = vmatprep.subr.mxu0 0.0
        %5549 = vmatpush1.msra.mxu0 0.0
        %5550 = vmatprep.subr.mxu0 0.0
        %5551 = vmatpush1.msra.mxu0 0.0
        %5552 = vmatprep.subr.mxu0 0.0
        %5553 = vmatpush1.msra.mxu0 0.0
        %5554 = vmatprep.subr.mxu0 0.0
        %5555 = vmatpush1.msra.mxu0 0.0
        %5556 = vmatprep.subr.mxu0 0.0
        %5557 = vmatpush1.msra.mxu0 0.0
        %5558 = vmatprep.mubr.f32.mxu0 0.0
        %5559 = vmatmul.mubr.f32.gmra.mrb[0].mxu0 %v912
        %v5560 = vpop.f32.mrb[0].mxu0
        %v5561 = vadd.f32 0.0, %v5560
        %v5562 = vpop.f32.mrb[0].mxu0
        %5563 = vmatprep.mubr.f32.mxu0 0.0
        %5564 = vmatmul.mubr.f32.gmra.mrb[0].mxu0 %v915
        %v5565 = vpop.f32.mrb[0].mxu0
        %v5566 = vadd.f32 0.0, %v5565
        %v5567 = vpop.f32.mrb[0].mxu0
        %5568 = vmatprep.mubr.f32.mxu0 0.0
        %5569 = vmatmul.mubr.f32.gmra.mrb[0].mxu0 %v918
        %v5570 = vpop.f32.mrb[0].mxu0
        %v5571 = vadd.f32 0.0, %v5570
        %v5572 = vpop.f32.mrb[0].mxu0
        %5573 = vmatprep.mubr.f32.mxu0 0.0
        %5574 = vmatmul.mubr.f32.gmra.mrb[0].mxu0 %v921
        %v5575 = vpop.f32.mrb[0].mxu0
        %v5576 = vadd.f32 0.0, %v5575
        %v5577 = vpop.f32.mrb[0].mxu0
        %5578 = vmatprep.mubr.f32.mxu0 0.0
        %5579 = vmatmul.mubr.f32.gmra.mrb[0].mxu0 %v924
        %v5580 = vpop.f32.mrb[0].mxu0
        %v5581 = vadd.f32 0.0, %v5580
        %v5582 = vpop.f32.mrb[0].mxu0
        %5583 = vmatprep.mubr.f32.mxu0 0.0
        %5584 = vmatmul.mubr.f32.gmra.mrb[0].mxu0 %v927
        %v5585 = vpop.f32.mrb[0].mxu0
        %v5586 = vadd.f32 0.0, %v5585
        %v5587 = vpop.f32.mrb[0].mxu0
        %5588 = vmatprep.mubr.f32.mxu0 0.0
        %5589 = vmatmul.mubr.f32.gmra.mrb[0].mxu0 %v930
        %v5590 = vpop.f32.mrb[0].mxu0
        %v5591 = vadd.f32 0.0, %v5590
        %v5592 = vpop.f32.mrb[0].mxu0
        %5593 = vmatprep.mubr.f32.mxu0 0.0
        %5594 = vmatmul.mubr.f32.gmra.mrb[0].mxu0 %v933
        %v5595 = vpop.f32.mrb[0].mxu0
        %v5596 = vadd.f32 0.0, %v5595
        %v5597 = vpop.f32.mrb[0].mxu0
        %5598 = vmatprep.mubr.f32.mxu0 0.0
        %5599 = vmatmul.mubr.f32.gmra.mrb[0].mxu0 %v936
        %v5600 = vpop.f32.mrb[0].mxu0
        %v5601 = vadd.f32 0.0, %v5600
        %v5602 = vpop.f32.mrb[0].mxu0
        %5603 = vmatprep.mubr.f32.mxu0 0.0
        %5604 = vmatmul.mubr.f32.gmra.mrb[0].mxu0 %v939
        %v5605 = vpop.f32.mrb[0].mxu0
        %v5606 = vadd.f32 0.0, %v5605
        %v5607 = vpop.f32.mrb[0].mxu0
        %5608 = vmatprep.mubr.f32.mxu0 0.0
        %5609 = vmatmul.mubr.f32.gmra.mrb[0].mxu0 %v942
        %v5610 = vpop.f32.mrb[0].mxu0
        %v5611 = vadd.f32 0.0, %v5610
        %v5612 = vpop.f32.mrb[0].mxu0
        %5613 = vmatprep.mubr.f32.mxu0 0.0
        %5614 = vmatmul.mubr.f32.gmra.mrb[0].mxu0 %v945
        %v5615 = vpop.f32.mrb[0].mxu0
        %v5616 = vadd.f32 0.0, %v5615
        %v5617 = vpop.f32.mrb[0].mxu0
        %5618 = vmatprep.mubr.f32.mxu0 0.0
        %5619 = vmatmul.mubr.f32.gmra.mrb[0].mxu0 %v948
        %v5620 = vpop.f32.mrb[0].mxu0
        %v5621 = vadd.f32 0.0, %v5620
        %v5622 = vpop.f32.mrb[0].mxu0
        %5623 = vmatprep.mubr.f32.mxu0 0.0
        %5624 = vmatmul.mubr.f32.gmra.mrb[0].mxu0 %v951
        %v5625 = vpop.f32.mrb[0].mxu0
        %v5626 = vadd.f32 0.0, %v5625
        %v5627 = vpop.f32.mrb[0].mxu0
        %5628 = vmatprep.mubr.f32.mxu0 0.0
        %5629 = vmatmul.mubr.f32.gmra.mrb[0].mxu0 %v954
        %v5630 = vpop.f32.mrb[0].mxu0
        %v5631 = vadd.f32 0.0, %v5630
        %v5632 = vpop.f32.mrb[0].mxu0
        %5633 = vmatprep.mubr.f32.mxu0 0.0
        %5634 = vmatmul.mubr.f32.gmra.mrb[0].mxu0 %v957
        %v5635 = vpop.f32.mrb[0].mxu0
        %v5636 = vadd.f32 0.0, %v5635
        %v5637 = vpop.f32.mrb[0].mxu0
        %5638 = vdwg.mxu0
        %s5639 = scalar_lea.vmem %s220, 3584 [#allocation7]
        %5640 = vst [vmem:[%s5639] sm:$0xff] %v5561
        %5641 = vst [vmem:[%s5639 + $0x8] sm:$0xff] %v5566
        %5642 = vst [vmem:[%s5639 + $0x10] sm:$0xff] %v5571
        %5643 = vst [vmem:[%s5639 + $0x18] sm:$0xff] %v5576
        %5644 = vst [vmem:[%s5639 + $0x20] sm:$0xff] %v5581
        %5645 = vst [vmem:[%s5639 + $0x28] sm:$0xff] %v5586
        %5646 = vst [vmem:[%s5639 + $0x30] sm:$0xff] %v5591
        %5647 = vst [vmem:[%s5639 + $0x38] sm:$0xff] %v5596
        %5648 = vst [vmem:[%s5639 + $0x40] sm:$0xff] %v5601
        %5649 = vst [vmem:[%s5639 + $0x48] sm:$0xff] %v5606
        %5650 = vst [vmem:[%s5639 + $0x50] sm:$0xff] %v5611
        %5651 = vst [vmem:[%s5639 + $0x58] sm:$0xff] %v5616
        %5652 = vst [vmem:[%s5639 + $0x60] sm:$0xff] %v5621
        %5653 = vst [vmem:[%s5639 + $0x68] sm:$0xff] %v5626
        %5654 = vst [vmem:[%s5639 + $0x70] sm:$0xff] %v5631
        %5655 = vst [vmem:[%s5639 + $0x78] sm:$0xff] %v5636
        %5656 = vmatprep.subr.mxu0 0.0
        %5657 = vmatpush1.msra.mxu0 %v849
        %5658 = vmatprep.subr.mxu0 0.0
        %5659 = vmatpush1.msra.mxu0 %v854
        %5660 = vmatprep.subr.mxu0 0.0
        %5661 = vmatpush1.msra.mxu0 0.0
        %5662 = vmatprep.subr.mxu0 0.0
        %5663 = vmatpush1.msra.mxu0 0.0
        %5664 = vmatprep.subr.mxu0 0.0
        %5665 = vmatpush1.msra.mxu0 0.0
        %5666 = vmatprep.subr.mxu0 0.0
        %5667 = vmatpush1.msra.mxu0 0.0
        %5668 = vmatprep.subr.mxu0 0.0
        %5669 = vmatpush1.msra.mxu0 0.0
        %5670 = vmatprep.subr.mxu0 0.0
        %5671 = vmatpush1.msra.mxu0 0.0
        %5672 = vmatprep.subr.mxu0 0.0
        %5673 = vmatpush1.msra.mxu0 0.0
        %5674 = vmatprep.subr.mxu0 0.0
        %5675 = vmatpush1.msra.mxu0 0.0
        %5676 = vmatprep.subr.mxu0 0.0
        %5677 = vmatpush1.msra.mxu0 0.0
        %5678 = vmatprep.subr.mxu0 0.0
        %5679 = vmatpush1.msra.mxu0 0.0
        %5680 = vmatprep.subr.mxu0 0.0
        %5681 = vmatpush1.msra.mxu0 0.0
        %5682 = vmatprep.subr.mxu0 0.0
        %5683 = vmatpush1.msra.mxu0 0.0
        %5684 = vmatprep.subr.mxu0 0.0
        %5685 = vmatpush1.msra.mxu0 0.0
        %5686 = vmatprep.subr.mxu0 0.0
        %5687 = vmatpush1.msra.mxu0 0.0
        %5688 = vmatprep.subr.mxu0 0.0
        %5689 = vmatpush1.msra.mxu0 0.0
        %5690 = vmatprep.subr.mxu0 0.0
        %5691 = vmatpush1.msra.mxu0 0.0
        %5692 = vmatprep.subr.mxu0 0.0
        %5693 = vmatpush1.msra.mxu0 0.0
        %5694 = vmatprep.subr.mxu0 0.0
        %5695 = vmatpush1.msra.mxu0 0.0
        %5696 = vmatprep.subr.mxu0 0.0
        %5697 = vmatpush1.msra.mxu0 0.0
        %5698 = vmatprep.subr.mxu0 0.0
        %5699 = vmatpush1.msra.mxu0 0.0
        %5700 = vmatprep.subr.mxu0 0.0
        %5701 = vmatpush1.msra.mxu0 0.0
        %5702 = vmatprep.subr.mxu0 0.0
        %5703 = vmatpush1.msra.mxu0 0.0
        %5704 = vmatprep.subr.mxu0 0.0
        %5705 = vmatpush1.msra.mxu0 0.0
        %5706 = vmatprep.subr.mxu0 0.0
        %5707 = vmatpush1.msra.mxu0 0.0
        %5708 = vmatprep.subr.mxu0 0.0
        %5709 = vmatpush1.msra.mxu0 0.0
        %5710 = vmatprep.subr.mxu0 0.0
        %5711 = vmatpush1.msra.mxu0 0.0
        %5712 = vmatprep.subr.mxu0 0.0
        %5713 = vmatpush1.msra.mxu0 0.0
        %5714 = vmatprep.subr.mxu0 0.0
        %5715 = vmatpush1.msra.mxu0 0.0
        %5716 = vmatprep.subr.mxu0 0.0
        %5717 = vmatpush1.msra.mxu0 0.0
        %5718 = vmatprep.subr.mxu0 0.0
        %5719 = vmatpush1.msra.mxu0 0.0
        %5720 = vmatprep.mubr.f32.mxu0 0.0
        %5721 = vmatmul.mubr.f32.gmra.mrb[0].mxu0 %v912
        %v5722 = vpop.f32.mrb[0].mxu0
        %v5723 = vadd.f32 0.0, %v5722
        %v5724 = vpop.f32.mrb[0].mxu0
        %5725 = vmatprep.mubr.f32.mxu0 0.0
        %5726 = vmatmul.mubr.f32.gmra.mrb[0].mxu0 %v915
        %v5727 = vpop.f32.mrb[0].mxu0
        %v5728 = vadd.f32 0.0, %v5727
        %v5729 = vpop.f32.mrb[0].mxu0
        %5730 = vmatprep.mubr.f32.mxu0 0.0
        %5731 = vmatmul.mubr.f32.gmra.mrb[0].mxu0 %v918
        %v5732 = vpop.f32.mrb[0].mxu0
        %v5733 = vadd.f32 0.0, %v5732
        %v5734 = vpop.f32.mrb[0].mxu0
        %5735 = vmatprep.mubr.f32.mxu0 0.0
        %5736 = vmatmul.mubr.f32.gmra.mrb[0].mxu0 %v921
        %v5737 = vpop.f32.mrb[0].mxu0
        %v5738 = vadd.f32 0.0, %v5737
        %v5739 = vpop.f32.mrb[0].mxu0
        %5740 = vmatprep.mubr.f32.mxu0 0.0
        %5741 = vmatmul.mubr.f32.gmra.mrb[0].mxu0 %v924
        %v5742 = vpop.f32.mrb[0].mxu0
        %v5743 = vadd.f32 0.0, %v5742
        %v5744 = vpop.f32.mrb[0].mxu0
        %5745 = vmatprep.mubr.f32.mxu0 0.0
        %5746 = vmatmul.mubr.f32.gmra.mrb[0].mxu0 %v927
        %v5747 = vpop.f32.mrb[0].mxu0
        %v5748 = vadd.f32 0.0, %v5747
        %v5749 = vpop.f32.mrb[0].mxu0
        %5750 = vmatprep.mubr.f32.mxu0 0.0
        %5751 = vmatmul.mubr.f32.gmra.mrb[0].mxu0 %v930
        %v5752 = vpop.f32.mrb[0].mxu0
        %v5753 = vadd.f32 0.0, %v5752
        %v5754 = vpop.f32.mrb[0].mxu0
        %5755 = vmatprep.mubr.f32.mxu0 0.0
        %5756 = vmatmul.mubr.f32.gmra.mrb[0].mxu0 %v933
        %v5757 = vpop.f32.mrb[0].mxu0
        %v5758 = vadd.f32 0.0, %v5757
        %v5759 = vpop.f32.mrb[0].mxu0
        %5760 = vmatprep.mubr.f32.mxu0 0.0
        %5761 = vmatmul.mubr.f32.gmra.mrb[0].mxu0 %v936
        %v5762 = vpop.f32.mrb[0].mxu0
        %v5763 = vadd.f32 0.0, %v5762
        %v5764 = vpop.f32.mrb[0].mxu0
        %5765 = vmatprep.mubr.f32.mxu0 0.0
        %5766 = vmatmul.mubr.f32.gmra.mrb[0].mxu0 %v939
        %v5767 = vpop.f32.mrb[0].mxu0
        %v5768 = vadd.f32 0.0, %v5767
        %v5769 = vpop.f32.mrb[0].mxu0
        %5770 = vmatprep.mubr.f32.mxu0 0.0
        %5771 = vmatmul.mubr.f32.gmra.mrb[0].mxu0 %v942
        %v5772 = vpop.f32.mrb[0].mxu0
        %v5773 = vadd.f32 0.0, %v5772
        %v5774 = vpop.f32.mrb[0].mxu0
        %5775 = vmatprep.mubr.f32.mxu0 0.0
        %5776 = vmatmul.mubr.f32.gmra.mrb[0].mxu0 %v945
        %v5777 = vpop.f32.mrb[0].mxu0
        %v5778 = vadd.f32 0.0, %v5777
        %v5779 = vpop.f32.mrb[0].mxu0
        %5780 = vmatprep.mubr.f32.mxu0 0.0
        %5781 = vmatmul.mubr.f32.gmra.mrb[0].mxu0 %v948
        %v5782 = vpop.f32.mrb[0].mxu0
        %v5783 = vadd.f32 0.0, %v5782
        %v5784 = vpop.f32.mrb[0].mxu0
        %5785 = vmatprep.mubr.f32.mxu0 0.0
        %5786 = vmatmul.mubr.f32.gmra.mrb[0].mxu0 %v951
        %v5787 = vpop.f32.mrb[0].mxu0
        %v5788 = vadd.f32 0.0, %v5787
        %v5789 = vpop.f32.mrb[0].mxu0
        %5790 = vmatprep.mubr.f32.mxu0 0.0
        %5791 = vmatmul.mubr.f32.gmra.mrb[0].mxu0 %v954
        %v5792 = vpop.f32.mrb[0].mxu0
        %v5793 = vadd.f32 0.0, %v5792
        %v5794 = vpop.f32.mrb[0].mxu0
        %5795 = vmatprep.mubr.f32.mxu0 0.0
        %5796 = vmatmul.mubr.f32.gmra.mrb[0].mxu0 %v957
        %v5797 = vpop.f32.mrb[0].mxu0
        %v5798 = vadd.f32 0.0, %v5797
        %v5799 = vpop.f32.mrb[0].mxu0
        %5800 = vdwg.mxu0
        %s5801 = scalar_lea.vmem %s220, 3712 [#allocation7]
        %5802 = vst [vmem:[%s5801] sm:$0xff] %v5723
        %5803 = vst [vmem:[%s5801 + $0x8] sm:$0xff] %v5728
        %5804 = vst [vmem:[%s5801 + $0x10] sm:$0xff] %v5733
        %5805 = vst [vmem:[%s5801 + $0x18] sm:$0xff] %v5738
        %5806 = vst [vmem:[%s5801 + $0x20] sm:$0xff] %v5743
        %5807 = vst [vmem:[%s5801 + $0x28] sm:$0xff] %v5748
        %5808 = vst [vmem:[%s5801 + $0x30] sm:$0xff] %v5753
        %5809 = vst [vmem:[%s5801 + $0x38] sm:$0xff] %v5758
        %5810 = vst [vmem:[%s5801 + $0x40] sm:$0xff] %v5763
        %5811 = vst [vmem:[%s5801 + $0x48] sm:$0xff] %v5768
        %5812 = vst [vmem:[%s5801 + $0x50] sm:$0xff] %v5773
        %5813 = vst [vmem:[%s5801 + $0x58] sm:$0xff] %v5778
        %5814 = vst [vmem:[%s5801 + $0x60] sm:$0xff] %v5783
        %5815 = vst [vmem:[%s5801 + $0x68] sm:$0xff] %v5788
        %5816 = vst [vmem:[%s5801 + $0x70] sm:$0xff] %v5793
        %5817 = vst [vmem:[%s5801 + $0x78] sm:$0xff] %v5798
        %5818 = vmatprep.subr.mxu0 0.0
        %5819 = vmatpush1.msra.mxu0 %v859
        %5820 = vmatprep.subr.mxu0 0.0
        %5821 = vmatpush1.msra.mxu0 %v864
        %5822 = vmatprep.subr.mxu0 0.0
        %5823 = vmatpush1.msra.mxu0 0.0
        %5824 = vmatprep.subr.mxu0 0.0
        %5825 = vmatpush1.msra.mxu0 0.0
        %5826 = vmatprep.subr.mxu0 0.0
        %5827 = vmatpush1.msra.mxu0 0.0
        %5828 = vmatprep.subr.mxu0 0.0
        %5829 = vmatpush1.msra.mxu0 0.0
        %5830 = vmatprep.subr.mxu0 0.0
        %5831 = vmatpush1.msra.mxu0 0.0
        %5832 = vmatprep.subr.mxu0 0.0
        %5833 = vmatpush1.msra.mxu0 0.0
        %5834 = vmatprep.subr.mxu0 0.0
        %5835 = vmatpush1.msra.mxu0 0.0
        %5836 = vmatprep.subr.mxu0 0.0
        %5837 = vmatpush1.msra.mxu0 0.0
        %5838 = vmatprep.subr.mxu0 0.0
        %5839 = vmatpush1.msra.mxu0 0.0
        %5840 = vmatprep.subr.mxu0 0.0
        %5841 = vmatpush1.msra.mxu0 0.0
        %5842 = vmatprep.subr.mxu0 0.0
        %5843 = vmatpush1.msra.mxu0 0.0
        %5844 = vmatprep.subr.mxu0 0.0
        %5845 = vmatpush1.msra.mxu0 0.0
        %5846 = vmatprep.subr.mxu0 0.0
        %5847 = vmatpush1.msra.mxu0 0.0
        %5848 = vmatprep.subr.mxu0 0.0
        %5849 = vmatpush1.msra.mxu0 0.0
        %5850 = vmatprep.subr.mxu0 0.0
        %5851 = vmatpush1.msra.mxu0 0.0
        %5852 = vmatprep.subr.mxu0 0.0
        %5853 = vmatpush1.msra.mxu0 0.0
        %5854 = vmatprep.subr.mxu0 0.0
        %5855 = vmatpush1.msra.mxu0 0.0
        %5856 = vmatprep.subr.mxu0 0.0
        %5857 = vmatpush1.msra.mxu0 0.0
        %5858 = vmatprep.subr.mxu0 0.0
        %5859 = vmatpush1.msra.mxu0 0.0
        %5860 = vmatprep.subr.mxu0 0.0
        %5861 = vmatpush1.msra.mxu0 0.0
        %5862 = vmatprep.subr.mxu0 0.0
        %5863 = vmatpush1.msra.mxu0 0.0
        %5864 = vmatprep.subr.mxu0 0.0
        %5865 = vmatpush1.msra.mxu0 0.0
        %5866 = vmatprep.subr.mxu0 0.0
        %5867 = vmatpush1.msra.mxu0 0.0
        %5868 = vmatprep.subr.mxu0 0.0
        %5869 = vmatpush1.msra.mxu0 0.0
        %5870 = vmatprep.subr.mxu0 0.0
        %5871 = vmatpush1.msra.mxu0 0.0
        %5872 = vmatprep.subr.mxu0 0.0
        %5873 = vmatpush1.msra.mxu0 0.0
        %5874 = vmatprep.subr.mxu0 0.0
        %5875 = vmatpush1.msra.mxu0 0.0
        %5876 = vmatprep.subr.mxu0 0.0
        %5877 = vmatpush1.msra.mxu0 0.0
        %5878 = vmatprep.subr.mxu0 0.0
        %5879 = vmatpush1.msra.mxu0 0.0
        %5880 = vmatprep.subr.mxu0 0.0
        %5881 = vmatpush1.msra.mxu0 0.0
        %5882 = vmatprep.mubr.f32.mxu0 0.0
        %5883 = vmatmul.mubr.f32.gmra.mrb[0].mxu0 %v912
        %v5884 = vpop.f32.mrb[0].mxu0
        %v5885 = vadd.f32 0.0, %v5884
        %v5886 = vpop.f32.mrb[0].mxu0
        %5887 = vmatprep.mubr.f32.mxu0 0.0
        %5888 = vmatmul.mubr.f32.gmra.mrb[0].mxu0 %v915
        %v5889 = vpop.f32.mrb[0].mxu0
        %v5890 = vadd.f32 0.0, %v5889
        %v5891 = vpop.f32.mrb[0].mxu0
        %5892 = vmatprep.mubr.f32.mxu0 0.0
        %5893 = vmatmul.mubr.f32.gmra.mrb[0].mxu0 %v918
        %v5894 = vpop.f32.mrb[0].mxu0
        %v5895 = vadd.f32 0.0, %v5894
        %v5896 = vpop.f32.mrb[0].mxu0
        %5897 = vmatprep.mubr.f32.mxu0 0.0
        %5898 = vmatmul.mubr.f32.gmra.mrb[0].mxu0 %v921
        %v5899 = vpop.f32.mrb[0].mxu0
        %v5900 = vadd.f32 0.0, %v5899
        %v5901 = vpop.f32.mrb[0].mxu0
        %5902 = vmatprep.mubr.f32.mxu0 0.0
        %5903 = vmatmul.mubr.f32.gmra.mrb[0].mxu0 %v924
        %v5904 = vpop.f32.mrb[0].mxu0
        %v5905 = vadd.f32 0.0, %v5904
        %v5906 = vpop.f32.mrb[0].mxu0
        %5907 = vmatprep.mubr.f32.mxu0 0.0
        %5908 = vmatmul.mubr.f32.gmra.mrb[0].mxu0 %v927
        %v5909 = vpop.f32.mrb[0].mxu0
        %v5910 = vadd.f32 0.0, %v5909
        %v5911 = vpop.f32.mrb[0].mxu0
        %5912 = vmatprep.mubr.f32.mxu0 0.0
        %5913 = vmatmul.mubr.f32.gmra.mrb[0].mxu0 %v930
        %v5914 = vpop.f32.mrb[0].mxu0
        %v5915 = vadd.f32 0.0, %v5914
        %v5916 = vpop.f32.mrb[0].mxu0
        %5917 = vmatprep.mubr.f32.mxu0 0.0
        %5918 = vmatmul.mubr.f32.gmra.mrb[0].mxu0 %v933
        %v5919 = vpop.f32.mrb[0].mxu0
        %v5920 = vadd.f32 0.0, %v5919
        %v5921 = vpop.f32.mrb[0].mxu0
        %5922 = vmatprep.mubr.f32.mxu0 0.0
        %5923 = vmatmul.mubr.f32.gmra.mrb[0].mxu0 %v936
        %v5924 = vpop.f32.mrb[0].mxu0
        %v5925 = vadd.f32 0.0, %v5924
        %v5926 = vpop.f32.mrb[0].mxu0
        %5927 = vmatprep.mubr.f32.mxu0 0.0
        %5928 = vmatmul.mubr.f32.gmra.mrb[0].mxu0 %v939
        %v5929 = vpop.f32.mrb[0].mxu0
        %v5930 = vadd.f32 0.0, %v5929
        %v5931 = vpop.f32.mrb[0].mxu0
        %5932 = vmatprep.mubr.f32.mxu0 0.0
        %5933 = vmatmul.mubr.f32.gmra.mrb[0].mxu0 %v942
        %v5934 = vpop.f32.mrb[0].mxu0
        %v5935 = vadd.f32 0.0, %v5934
        %v5936 = vpop.f32.mrb[0].mxu0
        %5937 = vmatprep.mubr.f32.mxu0 0.0
        %5938 = vmatmul.mubr.f32.gmra.mrb[0].mxu0 %v945
        %v5939 = vpop.f32.mrb[0].mxu0
        %v5940 = vadd.f32 0.0, %v5939
        %v5941 = vpop.f32.mrb[0].mxu0
        %5942 = vmatprep.mubr.f32.mxu0 0.0
        %5943 = vmatmul.mubr.f32.gmra.mrb[0].mxu0 %v948
        %v5944 = vpop.f32.mrb[0].mxu0
        %v5945 = vadd.f32 0.0, %v5944
        %v5946 = vpop.f32.mrb[0].mxu0
        %5947 = vmatprep.mubr.f32.mxu0 0.0
        %5948 = vmatmul.mubr.f32.gmra.mrb[0].mxu0 %v951
        %v5949 = vpop.f32.mrb[0].mxu0
        %v5950 = vadd.f32 0.0, %v5949
        %v5951 = vpop.f32.mrb[0].mxu0
        %5952 = vmatprep.mubr.f32.mxu0 0.0
        %5953 = vmatmul.mubr.f32.gmra.mrb[0].mxu0 %v954
        %v5954 = vpop.f32.mrb[0].mxu0
        %v5955 = vadd.f32 0.0, %v5954
        %v5956 = vpop.f32.mrb[0].mxu0
        %5957 = vmatprep.mubr.f32.mxu0 0.0
        %5958 = vmatmul.mubr.f32.gmra.mrb[0].mxu0 %v957
        %v5959 = vpop.f32.mrb[0].mxu0
        %v5960 = vadd.f32 0.0, %v5959
        %v5961 = vpop.f32.mrb[0].mxu0
        %5962 = vdwg.mxu0
        %s5963 = scalar_lea.vmem %s220, 3840 [#allocation7]
        %5964 = vst [vmem:[%s5963] sm:$0xff] %v5885
        %5965 = vst [vmem:[%s5963 + $0x8] sm:$0xff] %v5890
        %5966 = vst [vmem:[%s5963 + $0x10] sm:$0xff] %v5895
        %5967 = vst [vmem:[%s5963 + $0x18] sm:$0xff] %v5900
        %5968 = vst [vmem:[%s5963 + $0x20] sm:$0xff] %v5905
        %5969 = vst [vmem:[%s5963 + $0x28] sm:$0xff] %v5910
        %5970 = vst [vmem:[%s5963 + $0x30] sm:$0xff] %v5915
        %5971 = vst [vmem:[%s5963 + $0x38] sm:$0xff] %v5920
        %5972 = vst [vmem:[%s5963 + $0x40] sm:$0xff] %v5925
        %5973 = vst [vmem:[%s5963 + $0x48] sm:$0xff] %v5930
        %5974 = vst [vmem:[%s5963 + $0x50] sm:$0xff] %v5935
        %5975 = vst [vmem:[%s5963 + $0x58] sm:$0xff] %v5940
        %5976 = vst [vmem:[%s5963 + $0x60] sm:$0xff] %v5945
        %5977 = vst [vmem:[%s5963 + $0x68] sm:$0xff] %v5950
        %5978 = vst [vmem:[%s5963 + $0x70] sm:$0xff] %v5955
        %5979 = vst [vmem:[%s5963 + $0x78] sm:$0xff] %v5960
        %5980 = vmatprep.subr.mxu0 0.0
        %5981 = vmatpush1.msra.mxu0 %v869
        %5982 = vmatprep.subr.mxu0 0.0
        %5983 = vmatpush1.msra.mxu0 %v874
        %5984 = vmatprep.subr.mxu0 0.0
        %5985 = vmatpush1.msra.mxu0 0.0
        %5986 = vmatprep.subr.mxu0 0.0
        %5987 = vmatpush1.msra.mxu0 0.0
        %5988 = vmatprep.subr.mxu0 0.0
        %5989 = vmatpush1.msra.mxu0 0.0
        %5990 = vmatprep.subr.mxu0 0.0
        %5991 = vmatpush1.msra.mxu0 0.0
        %5992 = vmatprep.subr.mxu0 0.0
        %5993 = vmatpush1.msra.mxu0 0.0
        %5994 = vmatprep.subr.mxu0 0.0
        %5995 = vmatpush1.msra.mxu0 0.0
        %5996 = vmatprep.subr.mxu0 0.0
        %5997 = vmatpush1.msra.mxu0 0.0
        %5998 = vmatprep.subr.mxu0 0.0
        %5999 = vmatpush1.msra.mxu0 0.0
        %6000 = vmatprep.subr.mxu0 0.0
        %6001 = vmatpush1.msra.mxu0 0.0
        %6002 = vmatprep.subr.mxu0 0.0
        %6003 = vmatpush1.msra.mxu0 0.0
        %6004 = vmatprep.subr.mxu0 0.0
        %6005 = vmatpush1.msra.mxu0 0.0
        %6006 = vmatprep.subr.mxu0 0.0
        %6007 = vmatpush1.msra.mxu0 0.0
        %6008 = vmatprep.subr.mxu0 0.0
        %6009 = vmatpush1.msra.mxu0 0.0
        %6010 = vmatprep.subr.mxu0 0.0
        %6011 = vmatpush1.msra.mxu0 0.0
        %6012 = vmatprep.subr.mxu0 0.0
        %6013 = vmatpush1.msra.mxu0 0.0
        %6014 = vmatprep.subr.mxu0 0.0
        %6015 = vmatpush1.msra.mxu0 0.0
        %6016 = vmatprep.subr.mxu0 0.0
        %6017 = vmatpush1.msra.mxu0 0.0
        %6018 = vmatprep.subr.mxu0 0.0
        %6019 = vmatpush1.msra.mxu0 0.0
        %6020 = vmatprep.subr.mxu0 0.0
        %6021 = vmatpush1.msra.mxu0 0.0
        %6022 = vmatprep.subr.mxu0 0.0
        %6023 = vmatpush1.msra.mxu0 0.0
        %6024 = vmatprep.subr.mxu0 0.0
        %6025 = vmatpush1.msra.mxu0 0.0
        %6026 = vmatprep.subr.mxu0 0.0
        %6027 = vmatpush1.msra.mxu0 0.0
        %6028 = vmatprep.subr.mxu0 0.0
        %6029 = vmatpush1.msra.mxu0 0.0
        %6030 = vmatprep.subr.mxu0 0.0
        %6031 = vmatpush1.msra.mxu0 0.0
        %6032 = vmatprep.subr.mxu0 0.0
        %6033 = vmatpush1.msra.mxu0 0.0
        %6034 = vmatprep.subr.mxu0 0.0
        %6035 = vmatpush1.msra.mxu0 0.0
        %6036 = vmatprep.subr.mxu0 0.0
        %6037 = vmatpush1.msra.mxu0 0.0
        %6038 = vmatprep.subr.mxu0 0.0
        %6039 = vmatpush1.msra.mxu0 0.0
        %6040 = vmatprep.subr.mxu0 0.0
        %6041 = vmatpush1.msra.mxu0 0.0
        %6042 = vmatprep.subr.mxu0 0.0
        %6043 = vmatpush1.msra.mxu0 0.0
        %6044 = vmatprep.mubr.f32.mxu0 0.0
        %6045 = vmatmul.mubr.f32.gmra.mrb[0].mxu0 %v912
        %v6046 = vpop.f32.mrb[0].mxu0
        %v6047 = vadd.f32 0.0, %v6046
        %v6048 = vpop.f32.mrb[0].mxu0
        %6049 = vmatprep.mubr.f32.mxu0 0.0
        %6050 = vmatmul.mubr.f32.gmra.mrb[0].mxu0 %v915
        %v6051 = vpop.f32.mrb[0].mxu0
        %v6052 = vadd.f32 0.0, %v6051
        %v6053 = vpop.f32.mrb[0].mxu0
        %6054 = vmatprep.mubr.f32.mxu0 0.0
        %6055 = vmatmul.mubr.f32.gmra.mrb[0].mxu0 %v918
        %v6056 = vpop.f32.mrb[0].mxu0
        %v6057 = vadd.f32 0.0, %v6056
        %v6058 = vpop.f32.mrb[0].mxu0
        %6059 = vmatprep.mubr.f32.mxu0 0.0
        %6060 = vmatmul.mubr.f32.gmra.mrb[0].mxu0 %v921
        %v6061 = vpop.f32.mrb[0].mxu0
        %v6062 = vadd.f32 0.0, %v6061
        %v6063 = vpop.f32.mrb[0].mxu0
        %6064 = vmatprep.mubr.f32.mxu0 0.0
        %6065 = vmatmul.mubr.f32.gmra.mrb[0].mxu0 %v924
        %v6066 = vpop.f32.mrb[0].mxu0
        %v6067 = vadd.f32 0.0, %v6066
        %v6068 = vpop.f32.mrb[0].mxu0
        %6069 = vmatprep.mubr.f32.mxu0 0.0
        %6070 = vmatmul.mubr.f32.gmra.mrb[0].mxu0 %v927
        %v6071 = vpop.f32.mrb[0].mxu0
        %v6072 = vadd.f32 0.0, %v6071
        %v6073 = vpop.f32.mrb[0].mxu0
        %6074 = vmatprep.mubr.f32.mxu0 0.0
        %6075 = vmatmul.mubr.f32.gmra.mrb[0].mxu0 %v930
        %v6076 = vpop.f32.mrb[0].mxu0
        %v6077 = vadd.f32 0.0, %v6076
        %v6078 = vpop.f32.mrb[0].mxu0
        %6079 = vmatprep.mubr.f32.mxu0 0.0
        %6080 = vmatmul.mubr.f32.gmra.mrb[0].mxu0 %v933
        %v6081 = vpop.f32.mrb[0].mxu0
        %v6082 = vadd.f32 0.0, %v6081
        %v6083 = vpop.f32.mrb[0].mxu0
        %6084 = vmatprep.mubr.f32.mxu0 0.0
        %6085 = vmatmul.mubr.f32.gmra.mrb[0].mxu0 %v936
        %v6086 = vpop.f32.mrb[0].mxu0
        %v6087 = vadd.f32 0.0, %v6086
        %v6088 = vpop.f32.mrb[0].mxu0
        %6089 = vmatprep.mubr.f32.mxu0 0.0
        %6090 = vmatmul.mubr.f32.gmra.mrb[0].mxu0 %v939
        %v6091 = vpop.f32.mrb[0].mxu0
        %v6092 = vadd.f32 0.0, %v6091
        %v6093 = vpop.f32.mrb[0].mxu0
        %6094 = vmatprep.mubr.f32.mxu0 0.0
        %6095 = vmatmul.mubr.f32.gmra.mrb[0].mxu0 %v942
        %v6096 = vpop.f32.mrb[0].mxu0
        %v6097 = vadd.f32 0.0, %v6096
        %v6098 = vpop.f32.mrb[0].mxu0
        %6099 = vmatprep.mubr.f32.mxu0 0.0
        %6100 = vmatmul.mubr.f32.gmra.mrb[0].mxu0 %v945
        %v6101 = vpop.f32.mrb[0].mxu0
        %v6102 = vadd.f32 0.0, %v6101
        %v6103 = vpop.f32.mrb[0].mxu0
        %6104 = vmatprep.mubr.f32.mxu0 0.0
        %6105 = vmatmul.mubr.f32.gmra.mrb[0].mxu0 %v948
        %v6106 = vpop.f32.mrb[0].mxu0
        %v6107 = vadd.f32 0.0, %v6106
        %v6108 = vpop.f32.mrb[0].mxu0
        %6109 = vmatprep.mubr.f32.mxu0 0.0
        %6110 = vmatmul.mubr.f32.gmra.mrb[0].mxu0 %v951
        %v6111 = vpop.f32.mrb[0].mxu0
        %v6112 = vadd.f32 0.0, %v6111
        %v6113 = vpop.f32.mrb[0].mxu0
        %6114 = vmatprep.mubr.f32.mxu0 0.0
        %6115 = vmatmul.mubr.f32.gmra.mrb[0].mxu0 %v954
        %v6116 = vpop.f32.mrb[0].mxu0
        %v6117 = vadd.f32 0.0, %v6116
        %v6118 = vpop.f32.mrb[0].mxu0
        %6119 = vmatprep.mubr.f32.mxu0 0.0
        %6120 = vmatmul.mubr.f32.gmra.mrb[0].mxu0 %v957
        %v6121 = vpop.f32.mrb[0].mxu0
        %v6122 = vadd.f32 0.0, %v6121
        %v6123 = vpop.f32.mrb[0].mxu0
        %6124 = vdwg.mxu0
        %s6125 = scalar_lea.vmem %s220, 3968 [#allocation7]
        %6126 = vst [vmem:[%s6125] sm:$0xff] %v6047
        %6127 = vst [vmem:[%s6125 + $0x8] sm:$0xff] %v6052
        %6128 = vst [vmem:[%s6125 + $0x10] sm:$0xff] %v6057
        %6129 = vst [vmem:[%s6125 + $0x18] sm:$0xff] %v6062
        %6130 = vst [vmem:[%s6125 + $0x20] sm:$0xff] %v6067
        %6131 = vst [vmem:[%s6125 + $0x28] sm:$0xff] %v6072
        %6132 = vst [vmem:[%s6125 + $0x30] sm:$0xff] %v6077
        %6133 = vst [vmem:[%s6125 + $0x38] sm:$0xff] %v6082
        %6134 = vst [vmem:[%s6125 + $0x40] sm:$0xff] %v6087
        %6135 = vst [vmem:[%s6125 + $0x48] sm:$0xff] %v6092
        %6136 = vst [vmem:[%s6125 + $0x50] sm:$0xff] %v6097
        %6137 = vst [vmem:[%s6125 + $0x58] sm:$0xff] %v6102
        %6138 = vst [vmem:[%s6125 + $0x60] sm:$0xff] %v6107
        %6139 = vst [vmem:[%s6125 + $0x68] sm:$0xff] %v6112
        %6140 = vst [vmem:[%s6125 + $0x70] sm:$0xff] %v6117
        %6141 = vst [vmem:[%s6125 + $0x78] sm:$0xff] %v6122
        %s6142 = sand.u32 %s111, 1
        %s6143 = scalar_lea.sflag [#allocation4], %s6142
        %s6144 = sand.u32 %s111, 1
        %s6145 = smul.addr %s6144, 4096
        %s6146 = scalar_lea.vmem [#allocation7], %s6145
        // Predicated region
        $region41: #{tpu_custom_call.1} parent=31 // pred_check
          %p6147 = pneg %p121
        $region42: #{tpu_custom_call.1} parent=31 // pred_check_branch
          %6149 = sbr.rel (%p6147) target = $region44
        $region43: #{tpu_custom_call.1} parent=31 // pred_region
          %s6150 = smul.u32 32, %s24
          %s6152 = ssub.s32 65536, 65536
          %6153 = vsyncadd %s6143, %s6152
          %s6154 = smul.addr %s6150, 16
          %s6155 = smul.addr %s23, 512
          %s6156 = sadd.s32 %s6154, %s6155
          %s6157 = smul.addr %s6156, 128
          %s6158 = scalar_lea.hbm %s3, %s6157
          %s6159 = sshll.u32 %s6146, 4
          %s6160 = int_to_ptr.vmem [resolvable:$true] %s6159
          %6165 = dma.vmem_to_hbm [thread:$0]  %s6160, 65536, %s6158, %s6143, 128, 128, 8
        $region44: #{tpu_custom_call.1} parent=31 // pred_fallthru
          _
      $region32: #{tpu_custom_call.1} parent=5 // pred_fallthru
        _
      %p6166 = scmp.le.s32.totalorder 2, %s14
      // Predicated region
      $region45: #{tpu_custom_call.1} parent=5 // pred_check
        %p6167 = pneg %p6166
      $region46: #{tpu_custom_call.1} parent=5 // pred_check_branch
        %6169 = sbr.rel (%p6167) target = $region48
      $region47: #{tpu_custom_call.1} parent=5 // pred_region
        %s6170 = ssub.s32 %s14, 2
        // Predicated region
        $region49: #{tpu_custom_call.1} parent=47 // pred_check
          %p6171 = pneg %p127
        $region50: #{tpu_custom_call.1} parent=47 // pred_check_branch
          %6173 = sbr.rel (%p6171) target = $region52
        $region51: #{tpu_custom_call.1} parent=47 // pred_region
          %s6174 = sand.u32 %s112, 1
          %s6175 = scalar_lea.sflag [#allocation4], %s6174
          %s6176 = sand.u32 %s112, 1
          %s6177 = smul.addr %s6176, 4096
          %s6178 = scalar_lea.vmem [#allocation7], %s6177
          %6179 = dma.done %s6175, 65536
        $region52: #{tpu_custom_call.1} parent=47 // pred_fallthru
          _
      $region48: #{tpu_custom_call.1} parent=5 // pred_fallthru
        _
    $region6: #{tpu_custom_call.1} parent=1 // loop_footer
      %s18 = sadd.s32 1, %s14
    $region7: #{tpu_custom_call.1} parent=1 // loop_footer_branch
      %13 = sbr.rel target = $region3
    $region8: #{tpu_custom_call.1} parent=1 // loop_exit
      _
    %6180 = vsyncpa [#allocation3], 1
    %s6181 = scalar_lea.sflag [#allocation3], 1
    %6182 = vsyncpa %s6181, 1
    %6183 = vsyncpa [#allocation6], 1
    %6184 = vsyncpa [#allocation4], 1
    %s6185 = scalar_lea.sflag [#allocation4], 1
    %6186 = vsyncpa %s6185, 1

</llo_original>
